<compile_context>
chip_gen: v7x
topology: tpu7x:2x2x1
jax: 0.10.0
libtpu: 0.0.40
codegen_flags: <defaults>
</compile_context>

<pallas_src>
import functools

import jax
import jax.numpy as jnp
from jax.experimental import pallas as pl
from jax.experimental.pallas import tpu as pltpu

EPS = 1e-5


@functools.lru_cache(maxsize=1)
def _tpu_budget():
    """(tile_m cap, vmem_limit_bytes), tuned per TPU generation."""
    try:
        vmem = getattr(pltpu.get_tpu_info(), "vmem_capacity_bytes", None)
    except Exception:  # noqa: BLE001 - conservative fallback (old jax / emulator)
        vmem = None
    if vmem is not None and vmem <= 64 * 1024 * 1024:     # v7x-class (64 MiB)
        return 512, 32 * 1024 * 1024
    if vmem is not None:                                   # v5e / v6e (128 MiB)
        return 2048, 96 * 1024 * 1024
    return 1024, 32 * 1024 * 1024                          # unknown: previous safe cfg


def _pick_tile_m(m, cap):
    """Largest multiple-of-8 row tile dividing m, preferring >=2 grid steps."""
    best_single = None
    t = min(cap, m)
    t -= t % 8
    while t >= 8:
        if m % t == 0:
            if m // t >= 2:
                return t
            if best_single is None:
                best_single = t
        t -= 8
    # TODO(synk): pad M (with masked BN stats) instead of degrading to one block.
    return best_single if best_single is not None else m


def _ceil_to(x, q):
    return ((x + q - 1) // q) * q


def _pad_c(c):
    """Lane-friendly channel padding: full 128-lane vregs for small channel counts."""
    return _ceil_to(c, 128) if c < 128 else _ceil_to(c, 8)


def _pad_last(a, c_pad):
    c = a.shape[-1]
    if c == c_pad:
        return a
    return jnp.pad(a, [(0, 0)] * (a.ndim - 1) + [(0, c_pad - c)])


def _bcast_spec(shape):
    """BlockSpec for a small array that is identical for every grid step."""
    nd = len(shape)
    return pl.BlockSpec(shape, lambda i, _nd=nd: (0,) * _nd)


def _bn_affine(stats_partial, gamma, beta, m):
    """Fold BN into y*scale + shift.  stats_partial: (P, 2, C) per-tile sums."""
    stats = jnp.sum(stats_partial, axis=0)                   # (2, C)
    mu = stats[0:1, :] / m
    var = jnp.maximum(stats[1:2, :] / m - mu * mu, 0.0)      # single pass, clamped
    scale = gamma * jax.lax.rsqrt(var + EPS)                  # rsqrt -> EUP slot
    shift = beta - mu * scale
    return scale, shift


# ----------------------------------------------------------------------------
# Kernels
# ----------------------------------------------------------------------------
def _conv1x1_stats_kernel(x_ref, w_ref, y_ref, stats_ref):
    """Tile of y = x @ w (bf16 MXU, f32 acc) + per-tile BN partial sums."""
    s = jnp.dot(x_ref[...], w_ref[...], preferred_element_type=jnp.float32)
    stats_ref[...] = jnp.concatenate(
        [jnp.sum(s, axis=0, keepdims=True),
         jnp.sum(s * s, axis=0, keepdims=True)], axis=0)[None]
    y_ref[...] = s.astype(y_ref.dtype)


def _conv3x3_stats_kernel(y1_ref, stats1_ref, g_ref, b_ref, w_ref,
                          y2_ref, stats2_ref, pad_ref, col_ref, *deint,
                          hh, ww, ho, wo, cin, cout, stride, m_prev):
    """bn1+ReLU folded into the load of the pre-BN slab; 3x3 conv as a single
    bf16 im2col MXU dot (K = 9*cin); bn2 per-image partial stats.
    One batch image per ("parallel") grid step."""
    scale, shift = _bn_affine(stats1_ref[...], g_ref[...], b_ref[...], m_prev)
    act = jnp.maximum(y1_ref[0].astype(jnp.float32) * scale + shift, 0.0)

    # bf16 zero-padded tile in VMEM; borders rewritten every step so the grid
    # axis is safe under "parallel" (per-core scratch) / multi-buffering.
    zrow = jnp.zeros((1, ww + 2, cin), jnp.bfloat16)
    zcol = jnp.zeros((hh + 2, 1, cin), jnp.bfloat16)
    pad_ref[0:1, :, :] = zrow
    pad_ref[hh + 1:hh + 2, :, :] = zrow
    pad_ref[:, 0:1, :] = zcol
    pad_ref[:, ww + 1:ww + 2, :] = zcol
    pad_ref[1:hh + 1, 1:ww + 1, :] = act.astype(jnp.bfloat16)

    # Build the (ho*wo, 9*cin) im2col slab; column block `tap` holds the window
    # for kernel tap (kh, kw), tap = kh*3 + kw (matches the w2 row layout).
    if stride == 1:
        for kh in range(3):
            for kw in range(3):
                tap = kh * 3 + kw
                win = pad_ref[kh:kh + ho, kw:kw + wo, :]
                col_ref[:, tap * cin:(tap + 1) * cin] = win.reshape(ho * wo, cin)
    elif stride == 2:
        # Deinterleave the W (sublane) axis once -> taps become contiguous in W
        # and only strided along the cheap leading (H) axis.
        pe_ref, po_ref = deint
        pe_ref[...] = pad_ref[:, pl.ds(0, (ww + 3) // 2, 2), :]
        po_ref[...] = pad_ref[:, pl.ds(1, (ww + 2) // 2, 2), :]
        for kh in range(3):
            for kw in range(3):
                tap = kh * 3 + kw
                src = pe_ref if kw % 2 == 0 else po_ref
                win = src[pl.ds(kh, ho, 2), kw // 2:kw // 2 + wo, :]
                col_ref[:, tap * cin:(tap + 1) * cin] = win.reshape(ho * wo, cin)
    else:
        # TODO(synk): generic stride slow path (never used by standard ResNets).
        for kh in range(3):
            for kw in range(3):
                tap = kh * 3 + kw
                win = pad_ref[pl.ds(kh, ho, stride), pl.ds(kw, wo, stride), :]
                col_ref[:, tap * cin:(tap + 1) * cin] = win.reshape(ho * wo, cin)

    # One MXU dot with K = 9*cin.
    acc = jnp.dot(col_ref[...], w_ref[...], preferred_element_type=jnp.float32)

    stats2_ref[...] = jnp.concatenate(
        [jnp.sum(acc, axis=0, keepdims=True),
         jnp.sum(acc * acc, axis=0, keepdims=True)], axis=0)[None]
    y2_ref[...] = acc.reshape(1, ho, wo, cout).astype(y2_ref.dtype)


def _conv3_shortcut_stats_kernel(y2_ref, stats2_ref, g_ref, b_ref, w3_ref,
                                 xs_ref, ws_ref,
                                 y3_ref, ys_ref, stats3_ref, statss_ref,
                                 *, m_prev):
    """bn2+ReLU on the fly, conv3 (1x1) + fused shortcut 1x1 projection, plus
    the two BN partial-stat emissions (no cross-step accumulation)."""
    scale, shift = _bn_affine(stats2_ref[...], g_ref[...], b_ref[...], m_prev)
    act = jnp.maximum(y2_ref[...].astype(jnp.float32) * scale + shift, 0.0)

    s3 = jnp.dot(act.astype(jnp.bfloat16), w3_ref[...],
                 preferred_element_type=jnp.float32)
    ss = jnp.dot(xs_ref[...], ws_ref[...], preferred_element_type=jnp.float32)

    stats3_ref[...] = jnp.concatenate(
        [jnp.sum(s3, axis=0, keepdims=True),
         jnp.sum(s3 * s3, axis=0, keepdims=True)], axis=0)[None]
    statss_ref[...] = jnp.concatenate(
        [jnp.sum(ss, axis=0, keepdims=True),
         jnp.sum(ss * ss, axis=0, keepdims=True)], axis=0)[None]
    y3_ref[...] = s3.astype(y3_ref.dtype)
    ys_ref[...] = ss.astype(ys_ref.dtype)


def _conv3_stats_kernel(y2_ref, stats2_ref, g_ref, b_ref, w3_ref,
                        y3_ref, stats3_ref, *, m_prev):
    """Identity-shortcut variant: bn2+ReLU on the fly, conv3, bn3 partial stats."""
    scale, shift = _bn_affine(stats2_ref[...], g_ref[...], b_ref[...], m_prev)
    act = jnp.maximum(y2_ref[...].astype(jnp.float32) * scale + shift, 0.0)
    s3 = jnp.dot(act.astype(jnp.bfloat16), w3_ref[...],
                 preferred_element_type=jnp.float32)
    stats3_ref[...] = jnp.concatenate(
        [jnp.sum(s3, axis=0, keepdims=True),
         jnp.sum(s3 * s3, axis=0, keepdims=True)], axis=0)[None]
    y3_ref[...] = s3.astype(y3_ref.dtype)


def _bn_add_relu_proj_kernel(y3_ref, ys_ref, stats3_ref, g3_ref, b3_ref,
                             statss_ref, gs_ref, bs_ref, o_ref, *, m):
    """Final fused pass: bn3(y3) + bn_s(shortcut conv) + ReLU (bf16 output)."""
    sc3, sh3 = _bn_affine(stats3_ref[...], g3_ref[...], b3_ref[...], m)
    scs, shs = _bn_affine(statss_ref[...], gs_ref[...], bs_ref[...], m)
    out = (y3_ref[...].astype(jnp.float32) * sc3 + sh3
           + ys_ref[...].astype(jnp.float32) * scs + shs)
    o_ref[...] = jnp.maximum(out, 0.0).astype(o_ref.dtype)


def _bn_add_relu_identity_kernel(y3_ref, xsc_ref, stats3_ref, g3_ref, b3_ref,
                                 o_ref, *, m):
    """Final fused pass: bn3(y3) + identity shortcut + ReLU (bf16 output)."""
    sc3, sh3 = _bn_affine(stats3_ref[...], g3_ref[...], b3_ref[...], m)
    out = (y3_ref[...].astype(jnp.float32) * sc3 + sh3
           + xsc_ref[...].astype(jnp.float32))
    o_ref[...] = jnp.maximum(out, 0.0).astype(o_ref.dtype)


# ----------------------------------------------------------------------------
# pallas_call wrappers
# ----------------------------------------------------------------------------
def conv1x1_stats(x2d, w, *, tile_m, vmem_limit):
    m, k = x2d.shape
    n = w.shape[1]
    nt = m // tile_m
    return pl.pallas_call(
        _conv1x1_stats_kernel,
        grid=(nt,),
        in_specs=[pl.BlockSpec((tile_m, k), lambda i: (i, 0)),
                  _bcast_spec((k, n))],
        out_specs=(pl.BlockSpec((tile_m, n), lambda i: (i, 0)),
                   pl.BlockSpec((1, 2, n), lambda i: (i, 0, 0))),
        out_shape=(jax.ShapeDtypeStruct((m, n), jnp.bfloat16),
                   jax.ShapeDtypeStruct((nt, 2, n), jnp.float32)),
        compiler_params=pltpu.CompilerParams(
            dimension_semantics=("parallel",),     # no RMW -> megacore-shardable
            vmem_limit_bytes=vmem_limit),
        cost_estimate=pl.CostEstimate(
            flops=2 * m * k * n, transcendentals=0,
            bytes_accessed=2 * (m * k + k * n + m * n) + 8 * nt * n),
    )(x2d, w)


def conv3x3_stats(y1_4d, stats1, g1, b1, w2flat, *, stride, m_prev, vmem_limit):
    n, hh, ww, cin = y1_4d.shape
    cout = w2flat.shape[1]
    ho = (hh - 1) // stride + 1
    wo = (ww - 1) // stride + 1
    p1 = stats1.shape[0]
    kernel = functools.partial(_conv3x3_stats_kernel, hh=hh, ww=ww, ho=ho, wo=wo,
                               cin=cin, cout=cout, stride=stride, m_prev=m_prev)
    scratch = [pltpu.VMEM((hh + 2, ww + 2, cin), jnp.bfloat16),     # padded tile
               pltpu.VMEM((ho * wo, 9 * cin), jnp.bfloat16)]        # im2col slab
    if stride == 2:
        scratch += [pltpu.VMEM((hh + 2, (ww + 3) // 2, cin), jnp.bfloat16),
                    pltpu.VMEM((hh + 2, (ww + 2) // 2, cin), jnp.bfloat16)]
    return pl.pallas_call(
        kernel,
        grid=(n,),
        in_specs=[pl.BlockSpec((1, hh, ww, cin), lambda i: (i, 0, 0, 0)),
                  _bcast_spec((p1, 2, cin)),
                  _bcast_spec((1, cin)),
                  _bcast_spec((1, cin)),
                  _bcast_spec((9 * cin, cout))],
        out_specs=(pl.BlockSpec((1, ho, wo, cout), lambda i: (i, 0, 0, 0)),
                   pl.BlockSpec((1, 2, cout), lambda i: (i, 0, 0))),
        out_shape=(jax.ShapeDtypeStruct((n, ho, wo, cout), jnp.bfloat16),
                   jax.ShapeDtypeStruct((n, 2, cout), jnp.float32)),
        scratch_shapes=scratch,
        compiler_params=pltpu.CompilerParams(
            dimension_semantics=("parallel",),
            vmem_limit_bytes=vmem_limit),
        cost_estimate=pl.CostEstimate(
            flops=2 * n * ho * wo * 9 * cin * cout, transcendentals=0,
            bytes_accessed=2 * n * hh * ww * cin + 2 * 9 * cin * cout
                           + 2 * n * ho * wo * cout + 8 * (p1 * cin + n * cout)),
    )(y1_4d, stats1, g1, b1, w2flat)


def conv3_shortcut_stats(y2_2d, stats2, g2, b2, w3, xs2d, ws,
                         *, tile_m, m_prev, vmem_limit):
    mm, p = y2_2d.shape
    c4 = w3.shape[1]
    cin = xs2d.shape[1]
    p2 = stats2.shape[0]
    nt = mm // tile_m
    kernel = functools.partial(_conv3_shortcut_stats_kernel, m_prev=m_prev)
    return pl.pallas_call(
        kernel,
        grid=(nt,),
        in_specs=[pl.BlockSpec((tile_m, p), lambda i: (i, 0)),
                  _bcast_spec((p2, 2, p)),
                  _bcast_spec((1, p)),
                  _bcast_spec((1, p)),
                  _bcast_spec((p, c4)),
                  pl.BlockSpec((tile_m, cin), lambda i: (i, 0)),
                  _bcast_spec((cin, c4))],
        out_specs=(pl.BlockSpec((tile_m, c4), lambda i: (i, 0)),
                   pl.BlockSpec((tile_m, c4), lambda i: (i, 0)),
                   pl.BlockSpec((1, 2, c4), lambda i: (i, 0, 0)),
                   pl.BlockSpec((1, 2, c4), lambda i: (i, 0, 0))),
        out_shape=(jax.ShapeDtypeStruct((mm, c4), jnp.bfloat16),
                   jax.ShapeDtypeStruct((mm, c4), jnp.bfloat16),
                   jax.ShapeDtypeStruct((nt, 2, c4), jnp.float32),
                   jax.ShapeDtypeStruct((nt, 2, c4), jnp.float32)),
        compiler_params=pltpu.CompilerParams(
            dimension_semantics=("parallel",),
            vmem_limit_bytes=vmem_limit),
        cost_estimate=pl.CostEstimate(
            flops=2 * mm * c4 * (p + cin), transcendentals=0,
            bytes_accessed=2 * (mm * p + mm * cin + p * c4 + cin * c4 + 2 * mm * c4)),
    )(y2_2d, stats2, g2, b2, w3, xs2d, ws)


def conv3_stats(y2_2d, stats2, g2, b2, w3, *, tile_m, m_prev, vmem_limit):
    mm, p = y2_2d.shape
    c4 = w3.shape[1]
    p2 = stats2.shape[0]
    nt = mm // tile_m
    kernel = functools.partial(_conv3_stats_kernel, m_prev=m_prev)
    return pl.pallas_call(
        kernel,
        grid=(nt,),
        in_specs=[pl.BlockSpec((tile_m, p), lambda i: (i, 0)),
                  _bcast_spec((p2, 2, p)),
                  _bcast_spec((1, p)),
                  _bcast_spec((1, p)),
                  _bcast_spec((p, c4))],
        out_specs=(pl.BlockSpec((tile_m, c4), lambda i: (i, 0)),
                   pl.BlockSpec((1, 2, c4), lambda i: (i, 0, 0))),
        out_shape=(jax.ShapeDtypeStruct((mm, c4), jnp.bfloat16),
                   jax.ShapeDtypeStruct((nt, 2, c4), jnp.float32)),
        compiler_params=pltpu.CompilerParams(
            dimension_semantics=("parallel",),
            vmem_limit_bytes=vmem_limit),
        cost_estimate=pl.CostEstimate(
            flops=2 * mm * p * c4, transcendentals=0,
            bytes_accessed=2 * (mm * p + p * c4 + mm * c4)),
    )(y2_2d, stats2, g2, b2, w3)


def bn_add_relu_proj(y3, ys, stats3, g3, b3, statss, gs, bs,
                     *, tile_m, m, vmem_limit):
    mm, c4 = y3.shape
    p = stats3.shape[0]
    kernel = functools.partial(_bn_add_relu_proj_kernel, m=m)
    return pl.pallas_call(
        kernel,
        grid=(mm // tile_m,),
        in_specs=[pl.BlockSpec((tile_m, c4), lambda i: (i, 0)),
                  pl.BlockSpec((tile_m, c4), lambda i: (i, 0)),
                  _bcast_spec((p, 2, c4)), _bcast_spec((1, c4)), _bcast_spec((1, c4)),
                  _bcast_spec((p, 2, c4)), _bcast_spec((1, c4)), _bcast_spec((1, c4))],
        out_specs=pl.BlockSpec((tile_m, c4), lambda i: (i, 0)),
        out_shape=jax.ShapeDtypeStruct((mm, c4), jnp.bfloat16),
        compiler_params=pltpu.CompilerParams(
            dimension_semantics=("parallel",),
            vmem_limit_bytes=vmem_limit),
        cost_estimate=pl.CostEstimate(
            flops=8 * mm * c4, transcendentals=2 * c4,
            bytes_accessed=3 * 2 * mm * c4),
    )(y3, ys, stats3, g3, b3, statss, gs, bs)


def bn_add_relu_identity(y3, x_sc, stats3, g3, b3, *, tile_m, m, vmem_limit):
    mm, c4 = y3.shape
    p = stats3.shape[0]
    kernel = functools.partial(_bn_add_relu_identity_kernel, m=m)
    return pl.pallas_call(
        kernel,
        grid=(mm // tile_m,),
        in_specs=[pl.BlockSpec((tile_m, c4), lambda i: (i, 0)),
                  pl.BlockSpec((tile_m, c4), lambda i: (i, 0)),
                  _bcast_spec((p, 2, c4)), _bcast_spec((1, c4)), _bcast_spec((1, c4))],
        out_specs=pl.BlockSpec((tile_m, c4), lambda i: (i, 0)),
        out_shape=jax.ShapeDtypeStruct((mm, c4), jnp.bfloat16),
        compiler_params=pltpu.CompilerParams(
            dimension_semantics=("parallel",),
            vmem_limit_bytes=vmem_limit),
        cost_estimate=pl.CostEstimate(
            flops=5 * mm * c4, transcendentals=c4,
            bytes_accessed=3 * 2 * mm * c4),
    )(y3, x_sc, stats3, g3, b3)


# ----------------------------------------------------------------------------
# Parameters + forward
# ----------------------------------------------------------------------------
def init_bottleneck_params(key, in_planes, planes, stride):
    expansion = 4
    out_planes = expansion * planes
    k1, k2, k3, k4 = jax.random.split(key, 4)

    def conv_w(k, cout, cin, kh, kw):
        fan_in = cin * kh * kw
        return jax.random.normal(k, (cout, cin, kh, kw), jnp.float32) / jnp.sqrt(fan_in)

    w1 = conv_w(k1, planes, in_planes, 1, 1)
    w2 = conv_w(k2, planes, planes, 3, 3)
    w3 = conv_w(k3, out_planes, planes, 1, 1)

    params = {
        # 1x1 conv == channel matmul: (Cin, Cout)
        "w1": jnp.transpose(w1[:, :, 0, 0], (1, 0)),
        # 3x3 conv as 9 per-tap (Cin, Cout) matrices, tap = kh*3 + kw
        "w2": jnp.transpose(w2, (2, 3, 1, 0)).reshape(9, planes, planes),
        "w3": jnp.transpose(w3[:, :, 0, 0], (1, 0)),
        "g1": jnp.ones((planes,), jnp.float32), "b1": jnp.zeros((planes,), jnp.float32),
        "g2": jnp.ones((planes,), jnp.float32), "b2": jnp.zeros((planes,), jnp.float32),
        "g3": jnp.ones((out_planes,), jnp.float32), "b3": jnp.zeros((out_planes,), jnp.float32),
    }
    if stride != 1 or in_planes != out_planes:
        ws = conv_w(k4, out_planes, in_planes, 1, 1)
        params["ws"] = jnp.transpose(ws[:, :, 0, 0], (1, 0))
        params["gs"] = jnp.ones((out_planes,), jnp.float32)
        params["bs"] = jnp.zeros((out_planes,), jnp.float32)
    return params


def bottleneck_forward(x_nchw, params, stride):
    """Input NCHW float32; output NCHW bfloat16."""
    n, cin, h, w = x_nchw.shape
    planes = params["w1"].shape[1]
    c4 = params["w3"].shape[1]
    ho = (h - 1) // stride + 1
    wo = (w - 1) // stride + 1
    m1 = n * h * w
    m2 = n * ho * wo

    cap, vmem_limit = _tpu_budget()
    tile_m1 = _pick_tile_m(m1, cap)
    tile_m2 = _pick_tile_m(m2, cap)

    cin_p, pln_p, c4_p = _pad_c(cin), _pad_c(planes), _pad_c(c4)

    def gvec(name, cpad):                  # (1, C) f32, zero-padded channels
        return _pad_last(params[name].reshape(1, -1), cpad)

    def wmat(name, rpad, cpad):            # (Cin, Cout) bf16, zero-padded
        wm = params[name]
        wm = jnp.pad(wm, ((0, rpad - wm.shape[0]), (0, cpad - wm.shape[1])))
        return wm.astype(jnp.bfloat16)

    # Single bf16 NHWC slab of x: feeds conv1, the shortcut 1x1, the identity add.
    x_bf = _pad_last(jnp.transpose(x_nchw, (0, 2, 3, 1)).astype(jnp.bfloat16), cin_p)
    x2d = x_bf.reshape(m1, cin_p)

    # 3x3 weight as one (9*Cin, Cout) bf16 matrix (im2col RHS), tap-major rows.
    w2p = jnp.pad(params["w2"], ((0, 0), (0, pln_p - planes), (0, pln_p - planes)))
    w2flat = w2p.reshape(9 * pln_p, pln_p).astype(jnp.bfloat16)

    # conv1 (1x1) + bn1 partial stats (pre-BN slab stored bf16)
    y1, stats1 = conv1x1_stats(x2d, wmat("w1", cin_p, pln_p),
                               tile_m=tile_m1, vmem_limit=vmem_limit)

    # conv2 (3x3, pad=1, stride) with bn1+ReLU folded in; single im2col MXU dot
    y2_4d, stats2 = conv3x3_stats(y1.reshape(n, h, w, pln_p), stats1,
                                  gvec("g1", pln_p), gvec("b1", pln_p), w2flat,
                                  stride=stride, m_prev=m1, vmem_limit=vmem_limit)
    y2 = y2_4d.reshape(m2, pln_p)

    if "ws" in params:
        xs2d = (x_bf[:, ::stride, ::stride, :].reshape(m2, cin_p)
                if stride > 1 else x2d)
        y3, ys, stats3, statss = conv3_shortcut_stats(
            y2, stats2, gvec("g2", pln_p), gvec("b2", pln_p),
            wmat("w3", pln_p, c4_p), xs2d, wmat("ws", cin_p, c4_p),
            tile_m=tile_m2, m_prev=m2, vmem_limit=vmem_limit)
        out2d = bn_add_relu_proj(y3, ys, stats3, gvec("g3", c4_p), gvec("b3", c4_p),
                                 statss, gvec("gs", c4_p), gvec("bs", c4_p),
                                 tile_m=tile_m2, m=m2, vmem_limit=vmem_limit)
    else:
        assert stride == 1 and cin == c4, \
            "identity shortcut requires stride == 1 and in_planes == 4 * planes"
        y3, stats3 = conv3_stats(y2, stats2, gvec("g2", pln_p), gvec("b2", pln_p),
                                 wmat("w3", pln_p, c4_p),
                                 tile_m=tile_m2, m_prev=m2, vmem_limit=vmem_limit)
        out2d = bn_add_relu_identity(y3, x2d, stats3, gvec("g3", c4_p),
                                     gvec("b3", c4_p),
                                     tile_m=tile_m2, m=m2, vmem_limit=vmem_limit)

    out = out2d[:, :c4].reshape(n, ho, wo, c4)
    # TODO(synk): fold this NHWC->NCHW edge transpose into the last kernel once a
    #             lane-dense packed-NCHW layout is worth the in-kernel XLU transpose.
    return jnp.transpose(out, (0, 3, 1, 2))


# ----------------------------------------------------------------------------
# Pure-JAX float32 reference (for a loose numerical check)
# ----------------------------------------------------------------------------
def reference_forward(x_nchw, params, stride):
    hp = jax.lax.Precision.HIGHEST
    x = jnp.transpose(x_nchw, (0, 2, 3, 1)).astype(jnp.float32)

    def bn(s, gamma, beta):
        mu = jnp.mean(s, axis=(0, 1, 2), keepdims=True)
        var = jnp.mean((s - mu) ** 2, axis=(0, 1, 2), keepdims=True)
        return (s - mu) * jax.lax.rsqrt(var + EPS) * gamma + beta

    out = jax.nn.relu(bn(jnp.einsum("nhwc,cd->nhwd", x, params["w1"], precision=hp),
                         params["g1"], params["b1"]))
    cin2, cout2 = params["w2"].shape[1], params["w2"].shape[2]
    w2 = params["w2"].reshape(3, 3, cin2, cout2)
    out = jax.lax.conv_general_dilated(out, w2, (stride, stride), ((1, 1), (1, 1)),
                                       dimension_numbers=("NHWC", "HWIO", "NHWC"),
                                       precision=hp)
    out = jax.nn.relu(bn(out, params["g2"], params["b2"]))
    out = bn(jnp.einsum("nhwc,cd->nhwd", out, params["w3"], precision=hp),
             params["g3"], params["b3"])
    if "ws" in params:
        xs = x[:, ::stride, ::stride, :]
        sc = bn(jnp.einsum("nhwc,cd->nhwd", xs, params["ws"], precision=hp),
                params["gs"], params["bs"])
    else:
        sc = x
    out = jax.nn.relu(out + sc)
    return jnp.transpose(out, (0, 3, 1, 2))


# ----------------------------------------------------------------------------
# Demo
# ----------------------------------------------------------------------------
if __name__ == "__main__":
    key = jax.random.PRNGKey(0)
    kx, kp = jax.random.split(key)

    batch, in_planes, planes, stride = 2, 4, 4, 1
    H = W = 16
    x = jax.random.normal(kx, (batch, in_planes, H, W), jnp.float32)  # NCHW

    params = init_bottleneck_params(kp, in_planes, planes, stride)

    fwd = jax.jit(functools.partial(bottleneck_forward, stride=stride))
    y = fwd(x, params)
    jax.block_until_ready(y)

    expected_shape = (batch, 4 * planes, H // stride, W // stride)
    assert y.shape == expected_shape, (y.shape, expected_shape)
    assert bool(jnp.all(y >= 0.0))  # final ReLU

    # Loose numerical check vs. a pure-JAX f32 reference (kernels use bf16 MXU
    # inputs, bf16 inter-layer slabs and bf16 output, so tolerance is generous).
    y_ref = reference_forward(x, params, stride)
    rel_err = float(jnp.linalg.norm(y.astype(jnp.float32) - y_ref)
                    / (jnp.linalg.norm(y_ref) + 1e-12))
    assert rel_err < 5e-2, rel_err

    print("KERNEL_OK")
</pallas_src>

<mosaic_0001>
module attributes {stable_mosaic.version = 11 : i64} {
  func.func @_conv1x1_stats_kernel(%arg0: i32, %arg1: memref<256x128xbf16, #tpu.memory_space<vmem>>, %arg2: memref<128x128xbf16, #tpu.memory_space<vmem>>, %arg3: memref<256x128xbf16, #tpu.memory_space<vmem>>, %arg4: memref<1x2x128xf32, #tpu.memory_space<vmem>>) attributes {dimension_semantics = [#tpu.dimension_semantics<parallel>], iteration_bounds = array<i64: 2>, scalar_prefetch = 0 : i64, scratch_operands = 0 : i64, tpu.core_type = #tpu.core_type<tc>, window_params = [{transform_indices = @transform_0, window_bounds = array<i64: 256, 128>}, {pipeline_mode = #tpu.pipeline_mode<synchronous>, transform_indices = @transform_1, window_bounds = array<i64: 128, 128>}, {transform_indices = @transform_2, window_bounds = array<i64: 256, 128>}, {transform_indices = @transform_3, window_bounds = array<i64: 1, 2, 128>}]} {
    %c0 = arith.constant 0 : index
    %c0_0 = arith.constant 0 : index
    %0 = vector.load %arg1[%c0, %c0_0] : memref<256x128xbf16, #tpu.memory_space<vmem>>, vector<256x128xbf16>
    %c0_1 = arith.constant 0 : index
    %c0_2 = arith.constant 0 : index
    %1 = vector.load %arg2[%c0_1, %c0_2] : memref<128x128xbf16, #tpu.memory_space<vmem>>, vector<128x128xbf16>
    %cst = arith.constant dense<0.000000e+00> : vector<256x128xf32>
    %2 = tpu.matmul %0, %1, %cst {dimension_numbers = #tpu.dot_dimension_numbers<[1], [0], [0], [1], [0, 0, 1, 1], [], []>} : vector<256x128xbf16>, vector<128x128xbf16>, vector<256x128xf32> -> vector<256x128xf32>
    %cst_3 = arith.constant dense<0.000000e+00> : vector<128xf32>
    %3 = vector.multi_reduction <add>, %2, %cst_3 [0] : vector<256x128xf32> to vector<128xf32>
    %4 = vector.shape_cast %3 : vector<128xf32> to vector<1x128xf32>
    %5 = arith.mulf %2, %2 : vector<256x128xf32>
    %cst_4 = arith.constant dense<0.000000e+00> : vector<128xf32>
    %6 = vector.multi_reduction <add>, %5, %cst_4 [0] : vector<256x128xf32> to vector<128xf32>
    %7 = vector.shape_cast %6 : vector<128xf32> to vector<1x128xf32>
    %8 = tpu.concatenate %4, %7 in 0 : vector<1x128xf32>, vector<1x128xf32> -> vector<2x128xf32>
    %9 = vector.shape_cast %8 : vector<2x128xf32> to vector<1x2x128xf32>
    %c0_5 = arith.constant 0 : index
    %c0_6 = arith.constant 0 : index
    %c0_7 = arith.constant 0 : index
    %10 = vector.load %arg4[%c0_5, %c0_6, %c0_7] : memref<1x2x128xf32, #tpu.memory_space<vmem>>, vector<1x2x128xf32>
    tpu.vector_store %arg4[%c0_5, %c0_6, %c0_7], %9 {strides = array<i32>} : memref<1x2x128xf32, #tpu.memory_space<vmem>>, vector<1x2x128xf32>,
    %11 = arith.truncf %2 : vector<256x128xf32> to vector<256x128xbf16>
    %c0_8 = arith.constant 0 : index
    %c0_9 = arith.constant 0 : index
    %12 = vector.load %arg3[%c0_8, %c0_9] : memref<256x128xbf16, #tpu.memory_space<vmem>>, vector<256x128xbf16>
    tpu.vector_store %arg3[%c0_8, %c0_9], %11 {strides = array<i32>} : memref<256x128xbf16, #tpu.memory_space<vmem>>, vector<256x128xbf16>,
    return
  }
  func.func @transform_0(%arg0: i32) -> (i32, i32) {
    %c0_i32 = arith.constant 0 : i32
    %c0_i32_0 = arith.constant 0 : i32
    return %arg0, %c0_i32 : i32, i32
  }
  func.func @transform_1(%arg0: i32) -> (i32, i32) {
    %c0_i32 = arith.constant 0 : i32
    %c0_i32_0 = arith.constant 0 : i32
    %c0_i32_1 = arith.constant 0 : i32
    return %c0_i32, %c0_i32_0 : i32, i32
  }
  func.func @transform_2(%arg0: i32) -> (i32, i32) {
    %c0_i32 = arith.constant 0 : i32
    %c0_i32_0 = arith.constant 0 : i32
    return %arg0, %c0_i32 : i32, i32
  }
  func.func @transform_3(%arg0: i32) -> (i32, i32, i32) {
    %c0_i32 = arith.constant 0 : i32
    %c0_i32_0 = arith.constant 0 : i32
    %c0_i32_1 = arith.constant 0 : i32
    return %arg0, %c0_i32, %c0_i32_0 : i32, i32, i32
  }
}

module attributes {stable_mosaic.version = 11 : i64} {
  func.func @_conv3x3_stats_kernel(%arg0: i32, %arg1: memref<1x16x16x128xbf16, #tpu.memory_space<vmem>>, %arg2: memref<2x2x128xf32, #tpu.memory_space<vmem>>, %arg3: memref<1x128xf32, #tpu.memory_space<vmem>>, %arg4: memref<1x128xf32, #tpu.memory_space<vmem>>, %arg5: memref<1152x128xbf16, #tpu.memory_space<vmem>>, %arg6: memref<1x16x16x128xbf16, #tpu.memory_space<vmem>>, %arg7: memref<1x2x128xf32, #tpu.memory_space<vmem>>, %arg8: memref<18x18x128xbf16, #tpu.memory_space<vmem>>, %arg9: memref<256x1152xbf16, #tpu.memory_space<vmem>>) attributes {dimension_semantics = [#tpu.dimension_semantics<parallel>], iteration_bounds = array<i64: 2>, scalar_prefetch = 0 : i64, scratch_operands = 2 : i64, tpu.core_type = #tpu.core_type<tc>, window_params = [{transform_indices = @transform_0, window_bounds = array<i64: 1, 16, 16, 128>}, {pipeline_mode = #tpu.pipeline_mode<synchronous>, transform_indices = @transform_1, window_bounds = array<i64: 2, 2, 128>}, {pipeline_mode = #tpu.pipeline_mode<synchronous>, transform_indices = @transform_2, window_bounds = array<i64: 1, 128>}, {pipeline_mode = #tpu.pipeline_mode<synchronous>, transform_indices = @transform_3, window_bounds = array<i64: 1, 128>}, {pipeline_mode = #tpu.pipeline_mode<synchronous>, transform_indices = @transform_4, window_bounds = array<i64: 1152, 128>}, {transform_indices = @transform_5, window_bounds = array<i64: 1, 16, 16, 128>}, {transform_indices = @transform_6, window_bounds = array<i64: 1, 2, 128>}]} {
    %c0 = arith.constant 0 : index
    %c0_0 = arith.constant 0 : index
    %c0_1 = arith.constant 0 : index
    %0 = vector.load %arg2[%c0, %c0_0, %c0_1] : memref<2x2x128xf32, #tpu.memory_space<vmem>>, vector<2x2x128xf32>
    %c0_2 = arith.constant 0 : index
    %c0_3 = arith.constant 0 : index
    %1 = vector.load %arg3[%c0_2, %c0_3] : memref<1x128xf32, #tpu.memory_space<vmem>>, vector<1x128xf32>
    %c0_4 = arith.constant 0 : index
    %c0_5 = arith.constant 0 : index
    %2 = vector.load %arg4[%c0_4, %c0_5] : memref<1x128xf32, #tpu.memory_space<vmem>>, vector<1x128xf32>
    %cst = arith.constant dense<0.000000e+00> : vector<2x128xf32>
    %3 = vector.multi_reduction <add>, %0, %cst [0] : vector<2x2x128xf32> to vector<2x128xf32>
    %4 = vector.extract_strided_slice %3 {offsets = [0, 0], sizes = [1, 128], strides = [1, 1]} : vector<2x128xf32> to vector<1x128xf32>
    %cst_6 = arith.constant 5.120000e+02 : f32
    %5 = vector.broadcast %cst_6 : f32 to vector<1x128xf32>
    %6 = arith.divf %4, %5 : vector<1x128xf32>
    %7 = vector.extract_strided_slice %3 {offsets = [1, 0], sizes = [1, 128], strides = [1, 1]} : vector<2x128xf32> to vector<1x128xf32>
    %cst_7 = arith.constant 5.120000e+02 : f32
    %8 = vector.broadcast %cst_7 : f32 to vector<1x128xf32>
    %9 = arith.divf %7, %8 : vector<1x128xf32>
    %10 = arith.mulf %6, %6 : vector<1x128xf32>
    %11 = arith.subf %9, %10 : vector<1x128xf32>
    %cst_8 = arith.constant 0.000000e+00 : f32
    %12 = vector.broadcast %cst_8 : f32 to vector<1x128xf32>
    %13 = arith.maximumf %11, %12 : vector<1x128xf32>
    %cst_9 = arith.constant 9.99999974E-6 : f32
    %14 = vector.broadcast %cst_9 : f32 to vector<1x128xf32>
    %15 = arith.addf %13, %14 : vector<1x128xf32>
    %16 = math.rsqrt %15 : vector<1x128xf32>
    %17 = arith.mulf %1, %16 : vector<1x128xf32>
    %18 = arith.mulf %6, %17 : vector<1x128xf32>
    %19 = arith.subf %2, %18 : vector<1x128xf32>
    %c0_10 = arith.constant 0 : index
    %c0_11 = arith.constant 0 : index
    %c0_12 = arith.constant 0 : index
    %c0_13 = arith.constant 0 : index
    %20 = vector.load %arg1[%c0_10, %c0_11, %c0_12, %c0_13] : memref<1x16x16x128xbf16, #tpu.memory_space<vmem>>, vector<1x16x16x128xbf16>
    %21 = vector.shape_cast %20 : vector<1x16x16x128xbf16> to vector<16x16x128xbf16>
    %22 = arith.extf %21 : vector<16x16x128xbf16> to vector<16x16x128xf32>
    %23 = vector.shape_cast %17 : vector<1x128xf32> to vector<1x1x128xf32>
    %24 = vector.broadcast %23 : vector<1x1x128xf32> to vector<16x16x128xf32>
    %25 = arith.mulf %22, %24 : vector<16x16x128xf32>
    %26 = vector.shape_cast %19 : vector<1x128xf32> to vector<1x1x128xf32>
    %27 = vector.broadcast %26 : vector<1x1x128xf32> to vector<16x16x128xf32>
    %28 = arith.addf %25, %27 : vector<16x16x128xf32>
    %cst_14 = arith.constant 0.000000e+00 : f32
    %29 = vector.broadcast %cst_14 : f32 to vector<16x16x128xf32>
    %30 = arith.maximumf %28, %29 : vector<16x16x128xf32>
    %cst_15 = arith.constant 0.000000e+00 : bf16
    %31 = vector.broadcast %cst_15 : bf16 to vector<1x18x128xbf16>
    %cst_16 = arith.constant 0.000000e+00 : bf16
    %32 = vector.broadcast %cst_16 : bf16 to vector<18x1x128xbf16>
    %c0_17 = arith.constant 0 : index
    %c0_18 = arith.constant 0 : index
    %c0_19 = arith.constant 0 : index
    %33 = vector.load %arg8[%c0_17, %c0_18, %c0_19] : memref<18x18x128xbf16, #tpu.memory_space<vmem>>, vector<1x18x128xbf16>
    tpu.vector_store %arg8[%c0_17, %c0_18, %c0_19], %31 {strides = array<i32>} : memref<18x18x128xbf16, #tpu.memory_space<vmem>>, vector<1x18x128xbf16>,
    %c17 = arith.constant 17 : index
    %c0_20 = arith.constant 0 : index
    %c0_21 = arith.constant 0 : index
    %34 = vector.load %arg8[%c17, %c0_20, %c0_21] : memref<18x18x128xbf16, #tpu.memory_space<vmem>>, vector<1x18x128xbf16>
    tpu.vector_store %arg8[%c17, %c0_20, %c0_21], %31 {strides = array<i32>} : memref<18x18x128xbf16, #tpu.memory_space<vmem>>, vector<1x18x128xbf16>,
    %c0_22 = arith.constant 0 : index
    %c0_23 = arith.constant 0 : index
    %c0_24 = arith.constant 0 : index
    %35 = vector.load %arg8[%c0_22, %c0_23, %c0_24] : memref<18x18x128xbf16, #tpu.memory_space<vmem>>, vector<18x1x128xbf16>
    tpu.vector_store %arg8[%c0_22, %c0_23, %c0_24], %32 {strides = array<i32>} : memref<18x18x128xbf16, #tpu.memory_space<vmem>>, vector<18x1x128xbf16>,
    %c0_25 = arith.constant 0 : index
    %c17_26 = arith.constant 17 : index
    %c0_27 = arith.constant 0 : index
    %36 = vector.load %arg8[%c0_25, %c17_26, %c0_27] : memref<18x18x128xbf16, #tpu.memory_space<vmem>>, vector<18x1x128xbf16>
    tpu.vector_store %arg8[%c0_25, %c17_26, %c0_27], %32 {strides = array<i32>} : memref<18x18x128xbf16, #tpu.memory_space<vmem>>, vector<18x1x128xbf16>,
    %37 = arith.truncf %30 : vector<16x16x128xf32> to vector<16x16x128xbf16>
    %c1 = arith.constant 1 : index
    %c1_28 = arith.constant 1 : index
    %c0_29 = arith.constant 0 : index
    %38 = vector.load %arg8[%c1, %c1_28, %c0_29] : memref<18x18x128xbf16, #tpu.memory_space<vmem>>, vector<16x16x128xbf16>
    tpu.vector_store %arg8[%c1, %c1_28, %c0_29], %37 {strides = array<i32>} : memref<18x18x128xbf16, #tpu.memory_space<vmem>>, vector<16x16x128xbf16>,
    %c0_30 = arith.constant 0 : index
    %c0_31 = arith.constant 0 : index
    %c0_32 = arith.constant 0 : index
    %39 = vector.load %arg8[%c0_30, %c0_31, %c0_32] : memref<18x18x128xbf16, #tpu.memory_space<vmem>>, vector<16x16x128xbf16>
    %40 = vector.shape_cast %39 : vector<16x16x128xbf16> to vector<256x128xbf16>
    %c0_33 = arith.constant 0 : index
    %c0_34 = arith.constant 0 : index
    %41 = vector.load %arg9[%c0_33, %c0_34] : memref<256x1152xbf16, #tpu.memory_space<vmem>>, vector<256x128xbf16>
    tpu.vector_store %arg9[%c0_33, %c0_34], %40 {strides = array<i32>} : memref<256x1152xbf16, #tpu.memory_space<vmem>>, vector<256x128xbf16>,
    %c0_35 = arith.constant 0 : index
    %c1_36 = arith.constant 1 : index
    %c0_37 = arith.constant 0 : index
    %42 = vector.load %arg8[%c0_35, %c1_36, %c0_37] : memref<18x18x128xbf16, #tpu.memory_space<vmem>>, vector<16x16x128xbf16>
    %43 = vector.shape_cast %42 : vector<16x16x128xbf16> to vector<256x128xbf16>
    %c0_38 = arith.constant 0 : index
    %c128 = arith.constant 128 : index
    %44 = vector.load %arg9[%c0_38, %c128] : memref<256x1152xbf16, #tpu.memory_space<vmem>>, vector<256x128xbf16>
    tpu.vector_store %arg9[%c0_38, %c128], %43 {strides = array<i32>} : memref<256x1152xbf16, #tpu.memory_space<vmem>>, vector<256x128xbf16>,
    %c0_39 = arith.constant 0 : index
    %c2 = arith.constant 2 : index
    %c0_40 = arith.constant 0 : index
    %45 = vector.load %arg8[%c0_39, %c2, %c0_40] : memref<18x18x128xbf16, #tpu.memory_space<vmem>>, vector<16x16x128xbf16>
    %46 = vector.shape_cast %45 : vector<16x16x128xbf16> to vector<256x128xbf16>
    %c0_41 = arith.constant 0 : index
    %c256 = arith.constant 256 : index
    %47 = vector.load %arg9[%c0_41, %c256] : memref<256x1152xbf16, #tpu.memory_space<vmem>>, vector<256x128xbf16>
    tpu.vector_store %arg9[%c0_41, %c256], %46 {strides = array<i32>} : memref<256x1152xbf16, #tpu.memory_space<vmem>>, vector<256x128xbf16>,
    %c1_42 = arith.constant 1 : index
    %c0_43 = arith.constant 0 : index
    %c0_44 = arith.constant 0 : index
    %48 = vector.load %arg8[%c1_42, %c0_43, %c0_44] : memref<18x18x128xbf16, #tpu.memory_space<vmem>>, vector<16x16x128xbf16>
    %49 = vector.shape_cast %48 : vector<16x16x128xbf16> to vector<256x128xbf16>
    %c0_45 = arith.constant 0 : index
    %c384 = arith.constant 384 : index
    %50 = vector.load %arg9[%c0_45, %c384] : memref<256x1152xbf16, #tpu.memory_space<vmem>>, vector<256x128xbf16>
    tpu.vector_store %arg9[%c0_45, %c384], %49 {strides = array<i32>} : memref<256x1152xbf16, #tpu.memory_space<vmem>>, vector<256x128xbf16>,
    %c1_46 = arith.constant 1 : index
    %c1_47 = arith.constant 1 : index
    %c0_48 = arith.constant 0 : index
    %51 = vector.load %arg8[%c1_46, %c1_47, %c0_48] : memref<18x18x128xbf16, #tpu.memory_space<vmem>>, vector<16x16x128xbf16>
    %52 = vector.shape_cast %51 : vector<16x16x128xbf16> to vector<256x128xbf16>
    %c0_49 = arith.constant 0 : index
    %c512 = arith.constant 512 : index
    %53 = vector.load %arg9[%c0_49, %c512] : memref<256x1152xbf16, #tpu.memory_space<vmem>>, vector<256x128xbf16>
    tpu.vector_store %arg9[%c0_49, %c512], %52 {strides = array<i32>} : memref<256x1152xbf16, #tpu.memory_space<vmem>>, vector<256x128xbf16>,
    %c1_50 = arith.constant 1 : index
    %c2_51 = arith.constant 2 : index
    %c0_52 = arith.constant 0 : index
    %54 = vector.load %arg8[%c1_50, %c2_51, %c0_52] : memref<18x18x128xbf16, #tpu.memory_space<vmem>>, vector<16x16x128xbf16>
    %55 = vector.shape_cast %54 : vector<16x16x128xbf16> to vector<256x128xbf16>
    %c0_53 = arith.constant 0 : index
    %c640 = arith.constant 640 : index
    %56 = vector.load %arg9[%c0_53, %c640] : memref<256x1152xbf16, #tpu.memory_space<vmem>>, vector<256x128xbf16>
    tpu.vector_store %arg9[%c0_53, %c640], %55 {strides = array<i32>} : memref<256x1152xbf16, #tpu.memory_space<vmem>>, vector<256x128xbf16>,
    %c2_54 = arith.constant 2 : index
    %c0_55 = arith.constant 0 : index
    %c0_56 = arith.constant 0 : index
    %57 = vector.load %arg8[%c2_54, %c0_55, %c0_56] : memref<18x18x128xbf16, #tpu.memory_space<vmem>>, vector<16x16x128xbf16>
    %58 = vector.shape_cast %57 : vector<16x16x128xbf16> to vector<256x128xbf16>
    %c0_57 = arith.constant 0 : index
    %c768 = arith.constant 768 : index
    %59 = vector.load %arg9[%c0_57, %c768] : memref<256x1152xbf16, #tpu.memory_space<vmem>>, vector<256x128xbf16>
    tpu.vector_store %arg9[%c0_57, %c768], %58 {strides = array<i32>} : memref<256x1152xbf16, #tpu.memory_space<vmem>>, vector<256x128xbf16>,
    %c2_58 = arith.constant 2 : index
    %c1_59 = arith.constant 1 : index
    %c0_60 = arith.constant 0 : index
    %60 = vector.load %arg8[%c2_58, %c1_59, %c0_60] : memref<18x18x128xbf16, #tpu.memory_space<vmem>>, vector<16x16x128xbf16>
    %61 = vector.shape_cast %60 : vector<16x16x128xbf16> to vector<256x128xbf16>
    %c0_61 = arith.constant 0 : index
    %c896 = arith.constant 896 : index
    %62 = vector.load %arg9[%c0_61, %c896] : memref<256x1152xbf16, #tpu.memory_space<vmem>>, vector<256x128xbf16>
    tpu.vector_store %arg9[%c0_61, %c896], %61 {strides = array<i32>} : memref<256x1152xbf16, #tpu.memory_space<vmem>>, vector<256x128xbf16>,
    %c2_62 = arith.constant 2 : index
    %c2_63 = arith.constant 2 : index
    %c0_64 = arith.constant 0 : index
    %63 = vector.load %arg8[%c2_62, %c2_63, %c0_64] : memref<18x18x128xbf16, #tpu.memory_space<vmem>>, vector<16x16x128xbf16>
    %64 = vector.shape_cast %63 : vector<16x16x128xbf16> to vector<256x128xbf16>
    %c0_65 = arith.constant 0 : index
    %c1024 = arith.constant 1024 : index
    %65 = vector.load %arg9[%c0_65, %c1024] : memref<256x1152xbf16, #tpu.memory_space<vmem>>, vector<256x128xbf16>
    tpu.vector_store %arg9[%c0_65, %c1024], %64 {strides = array<i32>} : memref<256x1152xbf16, #tpu.memory_space<vmem>>, vector<256x128xbf16>,
    %c0_66 = arith.constant 0 : index
    %c0_67 = arith.constant 0 : index
    %66 = vector.load %arg9[%c0_66, %c0_67] : memref<256x1152xbf16, #tpu.memory_space<vmem>>, vector<256x1152xbf16>
    %c0_68 = arith.constant 0 : index
    %c0_69 = arith.constant 0 : index
    %67 = vector.load %arg5[%c0_68, %c0_69] : memref<1152x128xbf16, #tpu.memory_space<vmem>>, vector<1152x128xbf16>
    %cst_70 = arith.constant dense<0.000000e+00> : vector<256x128xf32>
    %68 = tpu.matmul %66, %67, %cst_70 {dimension_numbers = #tpu.dot_dimension_numbers<[1], [0], [0], [1], [0, 0, 1, 1], [], []>} : vector<256x1152xbf16>, vector<1152x128xbf16>, vector<256x128xf32> -> vector<256x128xf32>
    %cst_71 = arith.constant dense<0.000000e+00> : vector<128xf32>
    %69 = vector.multi_reduction <add>, %68, %cst_71 [0] : vector<256x128xf32> to vector<128xf32>
    %70 = vector.shape_cast %69 : vector<128xf32> to vector<1x128xf32>
    %71 = arith.mulf %68, %68 : vector<256x128xf32>
    %cst_72 = arith.constant dense<0.000000e+00> : vector<128xf32>
    %72 = vector.multi_reduction <add>, %71, %cst_72 [0] : vector<256x128xf32> to vector<128xf32>
    %73 = vector.shape_cast %72 : vector<128xf32> to vector<1x128xf32>
    %74 = tpu.concatenate %70, %73 in 0 : vector<1x128xf32>, vector<1x128xf32> -> vector<2x128xf32>
    %75 = vector.shape_cast %74 : vector<2x128xf32> to vector<1x2x128xf32>
    %c0_73 = arith.constant 0 : index
    %c0_74 = arith.constant 0 : index
    %c0_75 = arith.constant 0 : index
    %76 = vector.load %arg7[%c0_73, %c0_74, %c0_75] : memref<1x2x128xf32, #tpu.memory_space<vmem>>, vector<1x2x128xf32>
    tpu.vector_store %arg7[%c0_73, %c0_74, %c0_75], %75 {strides = array<i32>} : memref<1x2x128xf32, #tpu.memory_space<vmem>>, vector<1x2x128xf32>,
    %77 = vector.shape_cast %68 : vector<256x128xf32> to vector<1x16x16x128xf32>
    %78 = arith.truncf %77 : vector<1x16x16x128xf32> to vector<1x16x16x128xbf16>
    %c0_76 = arith.constant 0 : index
    %c0_77 = arith.constant 0 : index
    %c0_78 = arith.constant 0 : index
    %c0_79 = arith.constant 0 : index
    %79 = vector.load %arg6[%c0_76, %c0_77, %c0_78, %c0_79] : memref<1x16x16x128xbf16, #tpu.memory_space<vmem>>, vector<1x16x16x128xbf16>
    tpu.vector_store %arg6[%c0_76, %c0_77, %c0_78, %c0_79], %78 {strides = array<i32>} : memref<1x16x16x128xbf16, #tpu.memory_space<vmem>>, vector<1x16x16x128xbf16>,
    return
  }
  func.func @transform_0(%arg0: i32) -> (i32, i32, i32, i32) {
    %c0_i32 = arith.constant 0 : i32
    %c0_i32_0 = arith.constant 0 : i32
    %c0_i32_1 = arith.constant 0 : i32
    %c0_i32_2 = arith.constant 0 : i32
    return %arg0, %c0_i32, %c0_i32_0, %c0_i32_1 : i32, i32, i32, i32
  }
  func.func @transform_1(%arg0: i32) -> (i32, i32, i32) {
    %c0_i32 = arith.constant 0 : i32
    %c0_i32_0 = arith.constant 0 : i32
    %c0_i32_1 = arith.constant 0 : i32
    %c0_i32_2 = arith.constant 0 : i32
    return %c0_i32, %c0_i32_0, %c0_i32_1 : i32, i32, i32
  }
  func.func @transform_2(%arg0: i32) -> (i32, i32) {
    %c0_i32 = arith.constant 0 : i32
    %c0_i32_0 = arith.constant 0 : i32
    %c0_i32_1 = arith.constant 0 : i32
    return %c0_i32, %c0_i32_0 : i32, i32
  }
  func.func @transform_3(%arg0: i32) -> (i32, i32) {
    %c0_i32 = arith.constant 0 : i32
    %c0_i32_0 = arith.constant 0 : i32
    %c0_i32_1 = arith.constant 0 : i32
    return %c0_i32, %c0_i32_0 : i32, i32
  }
  func.func @transform_4(%arg0: i32) -> (i32, i32) {
    %c0_i32 = arith.constant 0 : i32
    %c0_i32_0 = arith.constant 0 : i32
    %c0_i32_1 = arith.constant 0 : i32
    return %c0_i32, %c0_i32_0 : i32, i32
  }
  func.func @transform_5(%arg0: i32) -> (i32, i32, i32, i32) {
    %c0_i32 = arith.constant 0 : i32
    %c0_i32_0 = arith.constant 0 : i32
    %c0_i32_1 = arith.constant 0 : i32
    %c0_i32_2 = arith.constant 0 : i32
    return %arg0, %c0_i32, %c0_i32_0, %c0_i32_1 : i32, i32, i32, i32
  }
  func.func @transform_6(%arg0: i32) -> (i32, i32, i32) {
    %c0_i32 = arith.constant 0 : i32
    %c0_i32_0 = arith.constant 0 : i32
    %c0_i32_1 = arith.constant 0 : i32
    return %arg0, %c0_i32, %c0_i32_0 : i32, i32, i32
  }
}

module attributes {stable_mosaic.version = 11 : i64} {
  func.func @_conv3_shortcut_stats_kernel(%arg0: i32, %arg1: memref<256x128xbf16, #tpu.memory_space<vmem>>, %arg2: memref<2x2x128xf32, #tpu.memory_space<vmem>>, %arg3: memref<1x128xf32, #tpu.memory_space<vmem>>, %arg4: memref<1x128xf32, #tpu.memory_space<vmem>>, %arg5: memref<128x128xbf16, #tpu.memory_space<vmem>>, %arg6: memref<256x128xbf16, #tpu.memory_space<vmem>>, %arg7: memref<128x128xbf16, #tpu.memory_space<vmem>>, %arg8: memref<256x128xbf16, #tpu.memory_space<vmem>>, %arg9: memref<256x128xbf16, #tpu.memory_space<vmem>>, %arg10: memref<1x2x128xf32, #tpu.memory_space<vmem>>, %arg11: memref<1x2x128xf32, #tpu.memory_space<vmem>>) attributes {dimension_semantics = [#tpu.dimension_semantics<parallel>], iteration_bounds = array<i64: 2>, scalar_prefetch = 0 : i64, scratch_operands = 0 : i64, tpu.core_type = #tpu.core_type<tc>, window_params = [{transform_indices = @transform_0, window_bounds = array<i64: 256, 128>}, {pipeline_mode = #tpu.pipeline_mode<synchronous>, transform_indices = @transform_1, window_bounds = array<i64: 2, 2, 128>}, {pipeline_mode = #tpu.pipeline_mode<synchronous>, transform_indices = @transform_2, window_bounds = array<i64: 1, 128>}, {pipeline_mode = #tpu.pipeline_mode<synchronous>, transform_indices = @transform_3, window_bounds = array<i64: 1, 128>}, {pipeline_mode = #tpu.pipeline_mode<synchronous>, transform_indices = @transform_4, window_bounds = array<i64: 128, 128>}, {transform_indices = @transform_5, window_bounds = array<i64: 256, 128>}, {pipeline_mode = #tpu.pipeline_mode<synchronous>, transform_indices = @transform_6, window_bounds = array<i64: 128, 128>}, {transform_indices = @transform_7, window_bounds = array<i64: 256, 128>}, {transform_indices = @transform_8, window_bounds = array<i64: 256, 128>}, {transform_indices = @transform_9, window_bounds = array<i64: 1, 2, 128>}, {transform_indices = @transform_10, window_bounds = array<i64: 1, 2, 128>}]} {
    %c0 = arith.constant 0 : index
    %c0_0 = arith.constant 0 : index
    %c0_1 = arith.constant 0 : index
    %0 = vector.load %arg2[%c0, %c0_0, %c0_1] : memref<2x2x128xf32, #tpu.memory_space<vmem>>, vector<2x2x128xf32>
    %c0_2 = arith.constant 0 : index
    %c0_3 = arith.constant 0 : index
    %1 = vector.load %arg3[%c0_2, %c0_3] : memref<1x128xf32, #tpu.memory_space<vmem>>, vector<1x128xf32>
    %c0_4 = arith.constant 0 : index
    %c0_5 = arith.constant 0 : index
    %2 = vector.load %arg4[%c0_4, %c0_5] : memref<1x128xf32, #tpu.memory_space<vmem>>, vector<1x128xf32>
    %cst = arith.constant dense<0.000000e+00> : vector<2x128xf32>
    %3 = vector.multi_reduction <add>, %0, %cst [0] : vector<2x2x128xf32> to vector<2x128xf32>
    %4 = vector.extract_strided_slice %3 {offsets = [0, 0], sizes = [1, 128], strides = [1, 1]} : vector<2x128xf32> to vector<1x128xf32>
    %cst_6 = arith.constant 5.120000e+02 : f32
    %5 = vector.broadcast %cst_6 : f32 to vector<1x128xf32>
    %6 = arith.divf %4, %5 : vector<1x128xf32>
    %7 = vector.extract_strided_slice %3 {offsets = [1, 0], sizes = [1, 128], strides = [1, 1]} : vector<2x128xf32> to vector<1x128xf32>
    %cst_7 = arith.constant 5.120000e+02 : f32
    %8 = vector.broadcast %cst_7 : f32 to vector<1x128xf32>
    %9 = arith.divf %7, %8 : vector<1x128xf32>
    %10 = arith.mulf %6, %6 : vector<1x128xf32>
    %11 = arith.subf %9, %10 : vector<1x128xf32>
    %cst_8 = arith.constant 0.000000e+00 : f32
    %12 = vector.broadcast %cst_8 : f32 to vector<1x128xf32>
    %13 = arith.maximumf %11, %12 : vector<1x128xf32>
    %cst_9 = arith.constant 9.99999974E-6 : f32
    %14 = vector.broadcast %cst_9 : f32 to vector<1x128xf32>
    %15 = arith.addf %13, %14 : vector<1x128xf32>
    %16 = math.rsqrt %15 : vector<1x128xf32>
    %17 = arith.mulf %1, %16 : vector<1x128xf32>
    %18 = arith.mulf %6, %17 : vector<1x128xf32>
    %19 = arith.subf %2, %18 : vector<1x128xf32>
    %c0_10 = arith.constant 0 : index
    %c0_11 = arith.constant 0 : index
    %20 = vector.load %arg1[%c0_10, %c0_11] : memref<256x128xbf16, #tpu.memory_space<vmem>>, vector<256x128xbf16>
    %21 = arith.extf %20 : vector<256x128xbf16> to vector<256x128xf32>
    %22 = vector.broadcast %17 : vector<1x128xf32> to vector<256x128xf32>
    %23 = arith.mulf %21, %22 : vector<256x128xf32>
    %24 = vector.broadcast %19 : vector<1x128xf32> to vector<256x128xf32>
    %25 = arith.addf %23, %24 : vector<256x128xf32>
    %cst_12 = arith.constant 0.000000e+00 : f32
    %26 = vector.broadcast %cst_12 : f32 to vector<256x128xf32>
    %27 = arith.maximumf %25, %26 : vector<256x128xf32>
    %28 = arith.truncf %27 : vector<256x128xf32> to vector<256x128xbf16>
    %c0_13 = arith.constant 0 : index
    %c0_14 = arith.constant 0 : index
    %29 = vector.load %arg5[%c0_13, %c0_14] : memref<128x128xbf16, #tpu.memory_space<vmem>>, vector<128x128xbf16>
    %cst_15 = arith.constant dense<0.000000e+00> : vector<256x128xf32>
    %30 = tpu.matmul %28, %29, %cst_15 {dimension_numbers = #tpu.dot_dimension_numbers<[1], [0], [0], [1], [0, 0, 1, 1], [], []>} : vector<256x128xbf16>, vector<128x128xbf16>, vector<256x128xf32> -> vector<256x128xf32>
    %c0_16 = arith.constant 0 : index
    %c0_17 = arith.constant 0 : index
    %31 = vector.load %arg6[%c0_16, %c0_17] : memref<256x128xbf16, #tpu.memory_space<vmem>>, vector<256x128xbf16>
    %c0_18 = arith.constant 0 : index
    %c0_19 = arith.constant 0 : index
    %32 = vector.load %arg7[%c0_18, %c0_19] : memref<128x128xbf16, #tpu.memory_space<vmem>>, vector<128x128xbf16>
    %cst_20 = arith.constant dense<0.000000e+00> : vector<256x128xf32>
    %33 = tpu.matmul %31, %32, %cst_20 {dimension_numbers = #tpu.dot_dimension_numbers<[1], [0], [0], [1], [0, 0, 1, 1], [], []>} : vector<256x128xbf16>, vector<128x128xbf16>, vector<256x128xf32> -> vector<256x128xf32>
    %cst_21 = arith.constant dense<0.000000e+00> : vector<128xf32>
    %34 = vector.multi_reduction <add>, %30, %cst_21 [0] : vector<256x128xf32> to vector<128xf32>
    %35 = vector.shape_cast %34 : vector<128xf32> to vector<1x128xf32>
    %36 = arith.mulf %30, %30 : vector<256x128xf32>
    %cst_22 = arith.constant dense<0.000000e+00> : vector<128xf32>
    %37 = vector.multi_reduction <add>, %36, %cst_22 [0] : vector<256x128xf32> to vector<128xf32>
    %38 = vector.shape_cast %37 : vector<128xf32> to vector<1x128xf32>
    %39 = tpu.concatenate %35, %38 in 0 : vector<1x128xf32>, vector<1x128xf32> -> vector<2x128xf32>
    %40 = vector.shape_cast %39 : vector<2x128xf32> to vector<1x2x128xf32>
    %c0_23 = arith.constant 0 : index
    %c0_24 = arith.constant 0 : index
    %c0_25 = arith.constant 0 : index
    %41 = vector.load %arg10[%c0_23, %c0_24, %c0_25] : memref<1x2x128xf32, #tpu.memory_space<vmem>>, vector<1x2x128xf32>
    tpu.vector_store %arg10[%c0_23, %c0_24, %c0_25], %40 {strides = array<i32>} : memref<1x2x128xf32, #tpu.memory_space<vmem>>, vector<1x2x128xf32>,
    %cst_26 = arith.constant dense<0.000000e+00> : vector<128xf32>
    %42 = vector.multi_reduction <add>, %33, %cst_26 [0] : vector<256x128xf32> to vector<128xf32>
    %43 = vector.shape_cast %42 : vector<128xf32> to vector<1x128xf32>
    %44 = arith.mulf %33, %33 : vector<256x128xf32>
    %cst_27 = arith.constant dense<0.000000e+00> : vector<128xf32>
    %45 = vector.multi_reduction <add>, %44, %cst_27 [0] : vector<256x128xf32> to vector<128xf32>
    %46 = vector.shape_cast %45 : vector<128xf32> to vector<1x128xf32>
    %47 = tpu.concatenate %43, %46 in 0 : vector<1x128xf32>, vector<1x128xf32> -> vector<2x128xf32>
    %48 = vector.shape_cast %47 : vector<2x128xf32> to vector<1x2x128xf32>
    %c0_28 = arith.constant 0 : index
    %c0_29 = arith.constant 0 : index
    %c0_30 = arith.constant 0 : index
    %49 = vector.load %arg11[%c0_28, %c0_29, %c0_30] : memref<1x2x128xf32, #tpu.memory_space<vmem>>, vector<1x2x128xf32>
    tpu.vector_store %arg11[%c0_28, %c0_29, %c0_30], %48 {strides = array<i32>} : memref<1x2x128xf32, #tpu.memory_space<vmem>>, vector<1x2x128xf32>,
    %50 = arith.truncf %30 : vector<256x128xf32> to vector<256x128xbf16>
    %c0_31 = arith.constant 0 : index
    %c0_32 = arith.constant 0 : index
    %51 = vector.load %arg8[%c0_31, %c0_32] : memref<256x128xbf16, #tpu.memory_space<vmem>>, vector<256x128xbf16>
    tpu.vector_store %arg8[%c0_31, %c0_32], %50 {strides = array<i32>} : memref<256x128xbf16, #tpu.memory_space<vmem>>, vector<256x128xbf16>,
    %52 = arith.truncf %33 : vector<256x128xf32> to vector<256x128xbf16>
    %c0_33 = arith.constant 0 : index
    %c0_34 = arith.constant 0 : index
    %53 = vector.load %arg9[%c0_33, %c0_34] : memref<256x128xbf16, #tpu.memory_space<vmem>>, vector<256x128xbf16>
    tpu.vector_store %arg9[%c0_33, %c0_34], %52 {strides = array<i32>} : memref<256x128xbf16, #tpu.memory_space<vmem>>, vector<256x128xbf16>,
    return
  }
  func.func @transform_0(%arg0: i32) -> (i32, i32) {
    %c0_i32 = arith.constant 0 : i32
    %c0_i32_0 = arith.constant 0 : i32
    return %arg0, %c0_i32 : i32, i32
  }
  func.func @transform_1(%arg0: i32) -> (i32, i32, i32) {
    %c0_i32 = arith.constant 0 : i32
    %c0_i32_0 = arith.constant 0 : i32
    %c0_i32_1 = arith.constant 0 : i32
    %c0_i32_2 = arith.constant 0 : i32
    return %c0_i32, %c0_i32_0, %c0_i32_1 : i32, i32, i32
  }
  func.func @transform_2(%arg0: i32) -> (i32, i32) {
    %c0_i32 = arith.constant 0 : i32
    %c0_i32_0 = arith.constant 0 : i32
    %c0_i32_1 = arith.constant 0 : i32
    return %c0_i32, %c0_i32_0 : i32, i32
  }
  func.func @transform_3(%arg0: i32) -> (i32, i32) {
    %c0_i32 = arith.constant 0 : i32
    %c0_i32_0 = arith.constant 0 : i32
    %c0_i32_1 = arith.constant 0 : i32
    return %c0_i32, %c0_i32_0 : i32, i32
  }
  func.func @transform_4(%arg0: i32) -> (i32, i32) {
    %c0_i32 = arith.constant 0 : i32
    %c0_i32_0 = arith.constant 0 : i32
    %c0_i32_1 = arith.constant 0 : i32
    return %c0_i32, %c0_i32_0 : i32, i32
  }
  func.func @transform_5(%arg0: i32) -> (i32, i32) {
    %c0_i32 = arith.constant 0 : i32
    %c0_i32_0 = arith.constant 0 : i32
    return %arg0, %c0_i32 : i32, i32
  }
  func.func @transform_6(%arg0: i32) -> (i32, i32) {
    %c0_i32 = arith.constant 0 : i32
    %c0_i32_0 = arith.constant 0 : i32
    %c0_i32_1 = arith.constant 0 : i32
    return %c0_i32, %c0_i32_0 : i32, i32
  }
  func.func @transform_7(%arg0: i32) -> (i32, i32) {
    %c0_i32 = arith.constant 0 : i32
    %c0_i32_0 = arith.constant 0 : i32
    return %arg0, %c0_i32 : i32, i32
  }
  func.func @transform_8(%arg0: i32) -> (i32, i32) {
    %c0_i32 = arith.constant 0 : i32
    %c0_i32_0 = arith.constant 0 : i32
    return %arg0, %c0_i32 : i32, i32
  }
  func.func @transform_9(%arg0: i32) -> (i32, i32, i32) {
    %c0_i32 = arith.constant 0 : i32
    %c0_i32_0 = arith.constant 0 : i32
    %c0_i32_1 = arith.constant 0 : i32
    return %arg0, %c0_i32, %c0_i32_0 : i32, i32, i32
  }
  func.func @transform_10(%arg0: i32) -> (i32, i32, i32) {
    %c0_i32 = arith.constant 0 : i32
    %c0_i32_0 = arith.constant 0 : i32
    %c0_i32_1 = arith.constant 0 : i32
    return %arg0, %c0_i32, %c0_i32_0 : i32, i32, i32
  }
}

module attributes {stable_mosaic.version = 11 : i64} {
  func.func @_bn_add_relu_proj_kernel(%arg0: i32, %arg1: memref<256x128xbf16, #tpu.memory_space<vmem>>, %arg2: memref<256x128xbf16, #tpu.memory_space<vmem>>, %arg3: memref<2x2x128xf32, #tpu.memory_space<vmem>>, %arg4: memref<1x128xf32, #tpu.memory_space<vmem>>, %arg5: memref<1x128xf32, #tpu.memory_space<vmem>>, %arg6: memref<2x2x128xf32, #tpu.memory_space<vmem>>, %arg7: memref<1x128xf32, #tpu.memory_space<vmem>>, %arg8: memref<1x128xf32, #tpu.memory_space<vmem>>, %arg9: memref<256x128xbf16, #tpu.memory_space<vmem>>) attributes {dimension_semantics = [#tpu.dimension_semantics<parallel>], iteration_bounds = array<i64: 2>, scalar_prefetch = 0 : i64, scratch_operands = 0 : i64, tpu.core_type = #tpu.core_type<tc>, window_params = [{transform_indices = @transform_0, window_bounds = array<i64: 256, 128>}, {transform_indices = @transform_1, window_bounds = array<i64: 256, 128>}, {pipeline_mode = #tpu.pipeline_mode<synchronous>, transform_indices = @transform_2, window_bounds = array<i64: 2, 2, 128>}, {pipeline_mode = #tpu.pipeline_mode<synchronous>, transform_indices = @transform_3, window_bounds = array<i64: 1, 128>}, {pipeline_mode = #tpu.pipeline_mode<synchronous>, transform_indices = @transform_4, window_bounds = array<i64: 1, 128>}, {pipeline_mode = #tpu.pipeline_mode<synchronous>, transform_indices = @transform_5, window_bounds = array<i64: 2, 2, 128>}, {pipeline_mode = #tpu.pipeline_mode<synchronous>, transform_indices = @transform_6, window_bounds = array<i64: 1, 128>}, {pipeline_mode = #tpu.pipeline_mode<synchronous>, transform_indices = @transform_7, window_bounds = array<i64: 1, 128>}, {transform_indices = @transform_8, window_bounds = array<i64: 256, 128>}]} {
    %c0 = arith.constant 0 : index
    %c0_0 = arith.constant 0 : index
    %c0_1 = arith.constant 0 : index
    %0 = vector.load %arg3[%c0, %c0_0, %c0_1] : memref<2x2x128xf32, #tpu.memory_space<vmem>>, vector<2x2x128xf32>
    %c0_2 = arith.constant 0 : index
    %c0_3 = arith.constant 0 : index
    %1 = vector.load %arg4[%c0_2, %c0_3] : memref<1x128xf32, #tpu.memory_space<vmem>>, vector<1x128xf32>
    %c0_4 = arith.constant 0 : index
    %c0_5 = arith.constant 0 : index
    %2 = vector.load %arg5[%c0_4, %c0_5] : memref<1x128xf32, #tpu.memory_space<vmem>>, vector<1x128xf32>
    %cst = arith.constant dense<0.000000e+00> : vector<2x128xf32>
    %3 = vector.multi_reduction <add>, %0, %cst [0] : vector<2x2x128xf32> to vector<2x128xf32>
    %4 = vector.extract_strided_slice %3 {offsets = [0, 0], sizes = [1, 128], strides = [1, 1]} : vector<2x128xf32> to vector<1x128xf32>
    %cst_6 = arith.constant 5.120000e+02 : f32
    %5 = vector.broadcast %cst_6 : f32 to vector<1x128xf32>
    %6 = arith.divf %4, %5 : vector<1x128xf32>
    %7 = vector.extract_strided_slice %3 {offsets = [1, 0], sizes = [1, 128], strides = [1, 1]} : vector<2x128xf32> to vector<1x128xf32>
    %cst_7 = arith.constant 5.120000e+02 : f32
    %8 = vector.broadcast %cst_7 : f32 to vector<1x128xf32>
    %9 = arith.divf %7, %8 : vector<1x128xf32>
    %10 = arith.mulf %6, %6 : vector<1x128xf32>
    %11 = arith.subf %9, %10 : vector<1x128xf32>
    %cst_8 = arith.constant 0.000000e+00 : f32
    %12 = vector.broadcast %cst_8 : f32 to vector<1x128xf32>
    %13 = arith.maximumf %11, %12 : vector<1x128xf32>
    %cst_9 = arith.constant 9.99999974E-6 : f32
    %14 = vector.broadcast %cst_9 : f32 to vector<1x128xf32>
    %15 = arith.addf %13, %14 : vector<1x128xf32>
    %16 = math.rsqrt %15 : vector<1x128xf32>
    %17 = arith.mulf %1, %16 : vector<1x128xf32>
    %18 = arith.mulf %6, %17 : vector<1x128xf32>
    %19 = arith.subf %2, %18 : vector<1x128xf32>
    %c0_10 = arith.constant 0 : index
    %c0_11 = arith.constant 0 : index
    %c0_12 = arith.constant 0 : index
    %20 = vector.load %arg6[%c0_10, %c0_11, %c0_12] : memref<2x2x128xf32, #tpu.memory_space<vmem>>, vector<2x2x128xf32>
    %c0_13 = arith.constant 0 : index
    %c0_14 = arith.constant 0 : index
    %21 = vector.load %arg7[%c0_13, %c0_14] : memref<1x128xf32, #tpu.memory_space<vmem>>, vector<1x128xf32>
    %c0_15 = arith.constant 0 : index
    %c0_16 = arith.constant 0 : index
    %22 = vector.load %arg8[%c0_15, %c0_16] : memref<1x128xf32, #tpu.memory_space<vmem>>, vector<1x128xf32>
    %cst_17 = arith.constant dense<0.000000e+00> : vector<2x128xf32>
    %23 = vector.multi_reduction <add>, %20, %cst_17 [0] : vector<2x2x128xf32> to vector<2x128xf32>
    %24 = vector.extract_strided_slice %23 {offsets = [0, 0], sizes = [1, 128], strides = [1, 1]} : vector<2x128xf32> to vector<1x128xf32>
    %cst_18 = arith.constant 5.120000e+02 : f32
    %25 = vector.broadcast %cst_18 : f32 to vector<1x128xf32>
    %26 = arith.divf %24, %25 : vector<1x128xf32>
    %27 = vector.extract_strided_slice %23 {offsets = [1, 0], sizes = [1, 128], strides = [1, 1]} : vector<2x128xf32> to vector<1x128xf32>
    %cst_19 = arith.constant 5.120000e+02 : f32
    %28 = vector.broadcast %cst_19 : f32 to vector<1x128xf32>
    %29 = arith.divf %27, %28 : vector<1x128xf32>
    %30 = arith.mulf %26, %26 : vector<1x128xf32>
    %31 = arith.subf %29, %30 : vector<1x128xf32>
    %cst_20 = arith.constant 0.000000e+00 : f32
    %32 = vector.broadcast %cst_20 : f32 to vector<1x128xf32>
    %33 = arith.maximumf %31, %32 : vector<1x128xf32>
    %cst_21 = arith.constant 9.99999974E-6 : f32
    %34 = vector.broadcast %cst_21 : f32 to vector<1x128xf32>
    %35 = arith.addf %33, %34 : vector<1x128xf32>
    %36 = math.rsqrt %35 : vector<1x128xf32>
    %37 = arith.mulf %21, %36 : vector<1x128xf32>
    %38 = arith.mulf %26, %37 : vector<1x128xf32>
    %39 = arith.subf %22, %38 : vector<1x128xf32>
    %c0_22 = arith.constant 0 : index
    %c0_23 = arith.constant 0 : index
    %40 = vector.load %arg1[%c0_22, %c0_23] : memref<256x128xbf16, #tpu.memory_space<vmem>>, vector<256x128xbf16>
    %41 = arith.extf %40 : vector<256x128xbf16> to vector<256x128xf32>
    %42 = vector.broadcast %17 : vector<1x128xf32> to vector<256x128xf32>
    %43 = arith.mulf %41, %42 : vector<256x128xf32>
    %44 = vector.broadcast %19 : vector<1x128xf32> to vector<256x128xf32>
    %45 = arith.addf %43, %44 : vector<256x128xf32>
    %c0_24 = arith.constant 0 : index
    %c0_25 = arith.constant 0 : index
    %46 = vector.load %arg2[%c0_24, %c0_25] : memref<256x128xbf16, #tpu.memory_space<vmem>>, vector<256x128xbf16>
    %47 = arith.extf %46 : vector<256x128xbf16> to vector<256x128xf32>
    %48 = vector.broadcast %37 : vector<1x128xf32> to vector<256x128xf32>
    %49 = arith.mulf %47, %48 : vector<256x128xf32>
    %50 = arith.addf %45, %49 : vector<256x128xf32>
    %51 = vector.broadcast %39 : vector<1x128xf32> to vector<256x128xf32>
    %52 = arith.addf %50, %51 : vector<256x128xf32>
    %cst_26 = arith.constant 0.000000e+00 : f32
    %53 = vector.broadcast %cst_26 : f32 to vector<256x128xf32>
    %54 = arith.maximumf %52, %53 : vector<256x128xf32>
    %55 = arith.truncf %54 : vector<256x128xf32> to vector<256x128xbf16>
    %c0_27 = arith.constant 0 : index
    %c0_28 = arith.constant 0 : index
    %56 = vector.load %arg9[%c0_27, %c0_28] : memref<256x128xbf16, #tpu.memory_space<vmem>>, vector<256x128xbf16>
    tpu.vector_store %arg9[%c0_27, %c0_28], %55 {strides = array<i32>} : memref<256x128xbf16, #tpu.memory_space<vmem>>, vector<256x128xbf16>,
    return
  }
  func.func @transform_0(%arg0: i32) -> (i32, i32) {
    %c0_i32 = arith.constant 0 : i32
    %c0_i32_0 = arith.constant 0 : i32
    return %arg0, %c0_i32 : i32, i32
  }
  func.func @transform_1(%arg0: i32) -> (i32, i32) {
    %c0_i32 = arith.constant 0 : i32
    %c0_i32_0 = arith.constant 0 : i32
    return %arg0, %c0_i32 : i32, i32
  }
  func.func @transform_2(%arg0: i32) -> (i32, i32, i32) {
    %c0_i32 = arith.constant 0 : i32
    %c0_i32_0 = arith.constant 0 : i32
    %c0_i32_1 = arith.constant 0 : i32
    %c0_i32_2 = arith.constant 0 : i32
    return %c0_i32, %c0_i32_0, %c0_i32_1 : i32, i32, i32
  }
  func.func @transform_3(%arg0: i32) -> (i32, i32) {
    %c0_i32 = arith.constant 0 : i32
    %c0_i32_0 = arith.constant 0 : i32
    %c0_i32_1 = arith.constant 0 : i32
    return %c0_i32, %c0_i32_0 : i32, i32
  }
  func.func @transform_4(%arg0: i32) -> (i32, i32) {
    %c0_i32 = arith.constant 0 : i32
    %c0_i32_0 = arith.constant 0 : i32
    %c0_i32_1 = arith.constant 0 : i32
    return %c0_i32, %c0_i32_0 : i32, i32
  }
  func.func @transform_5(%arg0: i32) -> (i32, i32, i32) {
    %c0_i32 = arith.constant 0 : i32
    %c0_i32_0 = arith.constant 0 : i32
    %c0_i32_1 = arith.constant 0 : i32
    %c0_i32_2 = arith.constant 0 : i32
    return %c0_i32, %c0_i32_0, %c0_i32_1 : i32, i32, i32
  }
  func.func @transform_6(%arg0: i32) -> (i32, i32) {
    %c0_i32 = arith.constant 0 : i32
    %c0_i32_0 = arith.constant 0 : i32
    %c0_i32_1 = arith.constant 0 : i32
    return %c0_i32, %c0_i32_0 : i32, i32
  }
  func.func @transform_7(%arg0: i32) -> (i32, i32) {
    %c0_i32 = arith.constant 0 : i32
    %c0_i32_0 = arith.constant 0 : i32
    %c0_i32_1 = arith.constant 0 : i32
    return %c0_i32, %c0_i32_0 : i32, i32
  }
  func.func @transform_8(%arg0: i32) -> (i32, i32) {
    %c0_i32 = arith.constant 0 : i32
    %c0_i32_0 = arith.constant 0 : i32
    return %arg0, %c0_i32 : i32, i32
  }
}

</mosaic_0001>

<llo_original>
// kernel: bottleneck_forward.4
$region0: #{bottleneck_forward.4}
  #allocation0 [shape = 'u32[]', space=smem, size = 0x4, offset = 0x4, fixed_abs, tag = 'smem constant byte address 0x4 - core index']
  #allocation1 [shape = 'u32[144,128]{1,0:T(1,128)}', space=vmem, size = 0x12000, scoped, tag = 'internal scratch']
  %s0 = inlined_call_operand.vmem [shape: bf16[512,128], index: 0, kind: input, shape index: {}]
  %s1 = inlined_call_operand.vmem [shape: bf16[128,128], index: 1, kind: input, shape index: {}]
  %s2 = inlined_call_operand.vmem [shape: bf16[512,128], index: 2, kind: output, shape index: {0}]
  %s3 = inlined_call_operand.vmem [shape: f32[2,2,128], index: 3, kind: output, shape index: {1}]
  %4 = xla_tuple %s2, %s3
  %s5 = sld [smem:[#allocation0]]
  $region49: #{bottleneck_forward.4} parent=0
    _
  %s7 = ssub.s32 1, %s5
  %s8 = scalar_select 0, %s7, %s5
  loop: start=0, step=1, limit=4
  $region2: #{bottleneck_forward.4} parent=0 // loop_pre_header
    _
  $region3: #{bottleneck_forward.4} parent=0 // loop_header
    %s10 = sphi 0, %s14
    %p11 = scmp.ge.s32.totalorder %s10, 4
    %s20 = sphi 0, %s22
    %s23 = sphi 0, %s20
    %s24 = sphi 0, %s23
    %s40 = sphi 0, %s24
    %s44 = sphi 0, %s44
    %s46 = sphi 0, %s44
    %s47 = sphi 0, %s46
    %s61 = sphi 0, %s47
    %s67 = sphi 0, %s69
    %s70 = sphi 0, %s67
    %s71 = sphi 0, %s70
    %s87 = sphi 0, %s71
    %s93 = sphi 0, %s95
    %s96 = sphi 0, %s93
    %s97 = sphi 0, %s96
    %s113 = sphi 0, %s97
  $region4: #{bottleneck_forward.4} parent=0 // loop_header_branch
    %13 = sbr.rel (%p11) target = $region8
  $region5: #{bottleneck_forward.4} parent=0 // loop_body
    %s15 = ssub.s32 %s10, 1
    %s16 = ssub.s32 %s10, 2
    %s17 = sadd.s32 %s10, 1
    %s18 = ssub.s32 %s10, %s17
    %p19 = scmp.eq.s32.totalorder %s18, 0
    %s21 = sadd.s32 %s20, 1
    %s22 = scalar_select %p19, %s20, %s21
    %p25 = pneg %p19
    %p26 = scmp.eq.s32.totalorder %s10, 1
    %p27 = por %p25, %p26
    %p28 = scmp.ne.s32.totalorder %s20, %s23
    %p29 = scmp.eq.s32.totalorder %s10, 0
    %p30 = por %p28, %p29
    %p31 = scmp.ne.s32.totalorder %s20, %s23
    %p32 = scmp.eq.s32.totalorder %s15, 1
    %p33 = por %p31, %p32
    %p34 = scmp.ne.s32.totalorder %s23, %s24
    %p35 = scmp.eq.s32.totalorder %s15, 0
    %p36 = por %p34, %p35
    %p37 = scmp.ne.s32.totalorder %s23, %s24
    %p38 = scmp.eq.s32.totalorder %s16, 1
    %p39 = por %p37, %p38
    %p41 = scmp.ne.s32.totalorder %s24, %s40
    %p42 = scmp.eq.s32.totalorder %s16, 0
    %p43 = por %p41, %p42
    %s45 = sadd.s32 %s44, 1
    %p48 = scmp.eq.s32.totalorder %s10, 1
    %p49 = scmp.ne.s32.totalorder %s44, %s46
    %p50 = scmp.eq.s32.totalorder %s10, 0
    %p51 = por %p49, %p50
    %p52 = scmp.ne.s32.totalorder %s44, %s46
    %p53 = scmp.eq.s32.totalorder %s15, 1
    %p54 = por %p52, %p53
    %p55 = scmp.ne.s32.totalorder %s46, %s47
    %p56 = scmp.eq.s32.totalorder %s15, 0
    %p57 = por %p55, %p56
    %p58 = scmp.ne.s32.totalorder %s46, %s47
    %p59 = scmp.eq.s32.totalorder %s16, 1
    %p60 = por %p58, %p59
    %p62 = scmp.ne.s32.totalorder %s47, %s61
    %p63 = scmp.eq.s32.totalorder %s16, 0
    %p64 = por %p62, %p63
    %s65 = ssub.s32 %s10, %s17
    %p66 = scmp.eq.s32.totalorder %s65, 0
    %s68 = sadd.s32 %s67, 1
    %s69 = scalar_select %p66, %s67, %s68
    %p72 = pneg %p66
    %p73 = scmp.eq.s32.totalorder %s10, 1
    %p74 = por %p72, %p73
    %p75 = scmp.ne.s32.totalorder %s67, %s70
    %p76 = scmp.eq.s32.totalorder %s10, 0
    %p77 = por %p75, %p76
    %p78 = scmp.ne.s32.totalorder %s67, %s70
    %p79 = scmp.eq.s32.totalorder %s15, 1
    %p80 = por %p78, %p79
    %p81 = scmp.ne.s32.totalorder %s70, %s71
    %p82 = scmp.eq.s32.totalorder %s15, 0
    %p83 = por %p81, %p82
    %p84 = scmp.ne.s32.totalorder %s70, %s71
    %p85 = scmp.eq.s32.totalorder %s16, 1
    %p86 = por %p84, %p85
    %p88 = scmp.ne.s32.totalorder %s71, %s87
    %p89 = scmp.eq.s32.totalorder %s16, 0
    %p90 = por %p88, %p89
    %s91 = ssub.s32 %s10, %s17
    %p92 = scmp.eq.s32.totalorder %s91, 0
    %s94 = sadd.s32 %s93, 1
    %s95 = scalar_select %p92, %s93, %s94
    %p98 = pneg %p92
    %p99 = scmp.eq.s32.totalorder %s10, 1
    %p100 = por %p98, %p99
    %p101 = scmp.ne.s32.totalorder %s93, %s96
    %p102 = scmp.eq.s32.totalorder %s10, 0
    %p103 = por %p101, %p102
    %p104 = scmp.ne.s32.totalorder %s93, %s96
    %p105 = scmp.eq.s32.totalorder %s15, 1
    %p106 = por %p104, %p105
    %p107 = scmp.ne.s32.totalorder %s96, %s97
    %p108 = scmp.eq.s32.totalorder %s15, 0
    %p109 = por %p107, %p108
    %p110 = scmp.ne.s32.totalorder %s96, %s97
    %p111 = scmp.eq.s32.totalorder %s16, 1
    %p112 = por %p110, %p111
    %p114 = scmp.ne.s32.totalorder %s97, %s113
    %p115 = scmp.eq.s32.totalorder %s16, 0
    %p116 = por %p114, %p115
    %p117 = scmp.le.s32.totalorder 1, %s10
    %p118 = scmp.lt.s32.totalorder %s10, 3
    %p119 = pnand %p117, %p118
    %p120 = pneg %p119
    // Predicated region
    $region9: #{bottleneck_forward.4} parent=5 // pred_check
      _
    $region10: #{bottleneck_forward.4} parent=5 // pred_check_branch
      %122 = sbr.rel (%p119) target = $region12
    $region11: #{bottleneck_forward.4} parent=5 // pred_region
      %s123 = ssub.s32 %s10, 1
      // Predicated region
      $region13: #{bottleneck_forward.4} parent=11 // pred_check
        %p124 = pneg %p57
      $region14: #{bottleneck_forward.4} parent=11 // pred_check_branch
        %126 = sbr.rel (%p124) target = $region16
      $region15: #{bottleneck_forward.4} parent=11 // pred_region
        _
      $region16: #{bottleneck_forward.4} parent=11 // pred_fallthru
        _
    $region12: #{bottleneck_forward.4} parent=5 // pred_fallthru
      _
    %p127 = scmp.lt.s32.totalorder %s10, 2
    // Predicated region
    $region17: #{bottleneck_forward.4} parent=5 // pred_check
      %p128 = pneg %p127
    $region18: #{bottleneck_forward.4} parent=5 // pred_check_branch
      %130 = sbr.rel (%p128) target = $region20
    $region19: #{bottleneck_forward.4} parent=5 // pred_region
      // Predicated region
      $region21: #{bottleneck_forward.4} parent=19 // pred_check
        %p131 = pneg %p30
      $region22: #{bottleneck_forward.4} parent=19 // pred_check_branch
        %133 = sbr.rel (%p131) target = $region24
      $region23: #{bottleneck_forward.4} parent=19 // pred_region
        %s134 = smul.u32 32, %s10
        %p135 = scmp.lt.s32.totalorder %s134, 63
        %s136 = scalar_select %p135, %s134, 63
        %s137 = smul.addr %s136, 4
        %s138 = scalar_lea.vmem %s0, %s137
        %s139 = smul.u32 32, %s10
      $region24: #{bottleneck_forward.4} parent=19 // pred_fallthru
        _
    $region20: #{bottleneck_forward.4} parent=5 // pred_fallthru
      _
    %p140 = scmp.le.s32.totalorder 1, %s10
    %p141 = scmp.lt.s32.totalorder %s10, 3
    %p142 = pnand %p140, %p141
    %p143 = pneg %p142
    // Predicated region
    $region25: #{bottleneck_forward.4} parent=5 // pred_check
      _
    $region26: #{bottleneck_forward.4} parent=5 // pred_check_branch
      %145 = sbr.rel (%p142) target = $region28
    $region27: #{bottleneck_forward.4} parent=5 // pred_region
      %s146 = ssub.s32 %s10, 1
      %s147 = smul.u32 32, %s15
      %p148 = scmp.lt.s32.totalorder %s147, 63
      %s149 = scalar_select %p148, %s147, 63
      %s150 = smul.addr %s149, 4
      %s151 = scalar_lea.vmem %s0, %s150
      %p152 = pneg %p36
      %p153 = pneg %p33
      %p154 = pneg %p57
      %p155 = pneg %p54
      %p156 = pneg %p83
      %p157 = pneg %p80
      %s158 = smul.u32 32, %s15
      %p159 = scmp.lt.s32.totalorder %s158, 63
      %s160 = scalar_select %p159, %s158, 63
      %s161 = smul.addr %s160, 4
      %s162 = scalar_lea.vmem %s2, %s161
      %p163 = pneg %p109
      %p164 = pneg %p106
      %p165 = scmp.lt.s32.totalorder %s15, 1
      %s166 = scalar_select %p165, %s15, 1
      %s167 = smul.addr %s166, 2
      %s168 = scalar_lea.vmem %s3, %s167
      %s169 = smul.u32 32, %s15
      %p170 = scmp.lt.s32.totalorder %s169, 63
      %s171 = scalar_select %p170, %s169, 63
      %s172 = smul.addr %s171, 4
      %s173 = scalar_lea.vmem %s0, %s172
      %s174 = smul.u32 32, %s15
      %s175 = smul.u32 32, %s15
      %p176 = scmp.lt.s32.totalorder %s175, 63
      %s177 = scalar_select %p176, %s175, 63
      %s178 = smul.addr %s177, 4
      %s179 = scalar_lea.vmem %s2, %s178
      %s180 = smul.u32 32, %s15
      %p181 = scmp.lt.s32.totalorder %s15, 1
      %s182 = scalar_select %p181, %s15, 1
      %s183 = smul.addr %s182, 2
      %s184 = scalar_lea.vmem %s3, %s183
      %v186 = vld [vmem:[%s173] sm:$0xf]
      %v187 = vld [vmem:[%s173 + $0x4] sm:$0xf]
      %v188 = vld [vmem:[%s173 + $0x8] sm:$0xf]
      %v189 = vld [vmem:[%s173 + $0xc] sm:$0xf]
      %v190 = vld [vmem:[%s173 + $0x10] sm:$0xf]
      %v191 = vld [vmem:[%s173 + $0x14] sm:$0xf]
      %v192 = vld [vmem:[%s173 + $0x18] sm:$0xf]
      %v193 = vld [vmem:[%s173 + $0x1c] sm:$0xf]
      %v194 = vld [vmem:[%s173 + $0x20] sm:$0xf]
      %v195 = vld [vmem:[%s173 + $0x24] sm:$0xf]
      %v196 = vld [vmem:[%s173 + $0x28] sm:$0xf]
      %v197 = vld [vmem:[%s173 + $0x2c] sm:$0xf]
      %v198 = vld [vmem:[%s173 + $0x30] sm:$0xf]
      %v199 = vld [vmem:[%s173 + $0x34] sm:$0xf]
      %v200 = vld [vmem:[%s173 + $0x38] sm:$0xf]
      %v201 = vld [vmem:[%s173 + $0x3c] sm:$0xf]
      %v202 = vld [vmem:[%s173 + $0x40] sm:$0xf]
      %v203 = vld [vmem:[%s173 + $0x44] sm:$0xf]
      %v204 = vld [vmem:[%s173 + $0x48] sm:$0xf]
      %v205 = vld [vmem:[%s173 + $0x4c] sm:$0xf]
      %v206 = vld [vmem:[%s173 + $0x50] sm:$0xf]
      %v207 = vld [vmem:[%s173 + $0x54] sm:$0xf]
      %v208 = vld [vmem:[%s173 + $0x58] sm:$0xf]
      %v209 = vld [vmem:[%s173 + $0x5c] sm:$0xf]
      %v210 = vld [vmem:[%s173 + $0x60] sm:$0xf]
      %v211 = vld [vmem:[%s173 + $0x64] sm:$0xf]
      %v212 = vld [vmem:[%s173 + $0x68] sm:$0xf]
      %v213 = vld [vmem:[%s173 + $0x6c] sm:$0xf]
      %v214 = vld [vmem:[%s173 + $0x70] sm:$0xf]
      %v215 = vld [vmem:[%s173 + $0x74] sm:$0xf]
      %v216 = vld [vmem:[%s173 + $0x78] sm:$0xf]
      %v217 = vld [vmem:[%s173 + $0x7c] sm:$0xf]
      %v218 = vld [vmem:[%s1] sm:$0xf]
      %v219 = vld [vmem:[%s1 + $0x4] sm:$0xf]
      %v220 = vld [vmem:[%s1 + $0x8] sm:$0xf]
      %v221 = vld [vmem:[%s1 + $0xc] sm:$0xf]
      %v222 = vld [vmem:[%s1 + $0x10] sm:$0xf]
      %v223 = vld [vmem:[%s1 + $0x14] sm:$0xf]
      %v224 = vld [vmem:[%s1 + $0x18] sm:$0xf]
      %v225 = vld [vmem:[%s1 + $0x1c] sm:$0xf]
      %v226 = vld [vmem:[%s1 + $0x20] sm:$0xf]
      %v227 = vld [vmem:[%s1 + $0x24] sm:$0xf]
      %v228 = vld [vmem:[%s1 + $0x28] sm:$0xf]
      %v229 = vld [vmem:[%s1 + $0x2c] sm:$0xf]
      %v230 = vld [vmem:[%s1 + $0x30] sm:$0xf]
      %v231 = vld [vmem:[%s1 + $0x34] sm:$0xf]
      %v232 = vld [vmem:[%s1 + $0x38] sm:$0xf]
      %v233 = vld [vmem:[%s1 + $0x3c] sm:$0xf]
      %v266 = vunpack.c.l.b16 %v186
      %v267 = vunpack.c.l.b16 %v187
      %v268 = vunpack.c.l.b16 %v188
      %v269 = vunpack.c.l.b16 %v189
      %v270 = vunpack.c.l.b16 %v190
      %v271 = vunpack.c.l.b16 %v191
      %v272 = vunpack.c.l.b16 %v192
      %v273 = vunpack.c.l.b16 %v193
      %v274 = vunpack.c.l.b16 %v194
      %v275 = vunpack.c.l.b16 %v195
      %v276 = vunpack.c.l.b16 %v196
      %v277 = vunpack.c.l.b16 %v197
      %v278 = vunpack.c.l.b16 %v198
      %v279 = vunpack.c.l.b16 %v199
      %v280 = vunpack.c.l.b16 %v200
      %v281 = vunpack.c.l.b16 %v201
      %v282 = vunpack.c.l.b16 %v202
      %v283 = vunpack.c.l.b16 %v203
      %v284 = vunpack.c.l.b16 %v204
      %v285 = vunpack.c.l.b16 %v205
      %v286 = vunpack.c.l.b16 %v206
      %v287 = vunpack.c.l.b16 %v207
      %v288 = vunpack.c.l.b16 %v208
      %v289 = vunpack.c.l.b16 %v209
      %v290 = vunpack.c.l.b16 %v210
      %v291 = vunpack.c.l.b16 %v211
      %v292 = vunpack.c.l.b16 %v212
      %v293 = vunpack.c.l.b16 %v213
      %v294 = vunpack.c.l.b16 %v214
      %v295 = vunpack.c.l.b16 %v215
      %v296 = vunpack.c.l.b16 %v216
      %v297 = vunpack.c.l.b16 %v217
      %v298 = vpack.c.b16 %v267, %v266
      %v299 = vpack.c.b16 %v269, %v268
      %v300 = vpack.c.b16 %v271, %v270
      %v301 = vpack.c.b16 %v273, %v272
      %v302 = vpack.c.b16 %v275, %v274
      %v303 = vpack.c.b16 %v277, %v276
      %v304 = vpack.c.b16 %v279, %v278
      %v305 = vpack.c.b16 %v281, %v280
      %v306 = vpack.c.b16 %v283, %v282
      %v307 = vpack.c.b16 %v285, %v284
      %v308 = vpack.c.b16 %v287, %v286
      %v309 = vpack.c.b16 %v289, %v288
      %v310 = vpack.c.b16 %v291, %v290
      %v311 = vpack.c.b16 %v293, %v292
      %v312 = vpack.c.b16 %v295, %v294
      %v313 = vpack.c.b16 %v297, %v296
      %v346 = vunpack.c.l.b16 %v218
      %v347 = vunpack.c.l.b16 %v219
      %v348 = vunpack.c.l.b16 %v220
      %v349 = vunpack.c.l.b16 %v221
      %v350 = vunpack.c.l.b16 %v222
      %v351 = vunpack.c.l.b16 %v223
      %v352 = vunpack.c.l.b16 %v224
      %v353 = vunpack.c.l.b16 %v225
      %v354 = vunpack.c.l.b16 %v226
      %v355 = vunpack.c.l.b16 %v227
      %v356 = vunpack.c.l.b16 %v228
      %v357 = vunpack.c.l.b16 %v229
      %v358 = vunpack.c.l.b16 %v230
      %v359 = vunpack.c.l.b16 %v231
      %v360 = vunpack.c.l.b16 %v232
      %v361 = vunpack.c.l.b16 %v233
      %v362 = vpack.c.b16 %v347, %v346
      %v363 = vpack.c.b16 %v349, %v348
      %v364 = vpack.c.b16 %v351, %v350
      %v365 = vpack.c.b16 %v353, %v352
      %v366 = vpack.c.b16 %v355, %v354
      %v367 = vpack.c.b16 %v357, %v356
      %v368 = vpack.c.b16 %v359, %v358
      %v369 = vpack.c.b16 %v361, %v360
      %378 = vmatprep.subr.bf16.mxu0 0
      %379 = vmatpush1.bf16.msra.mxu0 %v362
      %380 = vmatprep.subr.bf16.mxu0 0
      %381 = vmatpush1.bf16.msra.mxu0 %v363
      %382 = vmatprep.subr.bf16.mxu0 0
      %383 = vmatpush1.bf16.msra.mxu0 %v364
      %384 = vmatprep.subr.bf16.mxu0 0
      %385 = vmatpush1.bf16.msra.mxu0 %v365
      %386 = vmatprep.subr.bf16.mxu0 0
      %387 = vmatpush1.bf16.msra.mxu0 %v366
      %388 = vmatprep.subr.bf16.mxu0 0
      %389 = vmatpush1.bf16.msra.mxu0 %v367
      %390 = vmatprep.subr.bf16.mxu0 0
      %391 = vmatpush1.bf16.msra.mxu0 %v368
      %392 = vmatprep.subr.bf16.mxu0 0
      %393 = vmatpush1.bf16.msra.mxu0 %v369
      %394 = vmatprep.subr.bf16.mxu0 0
      %395 = vmatpush1.bf16.msra.mxu0 0
      %396 = vmatprep.subr.bf16.mxu0 0
      %397 = vmatpush1.bf16.msra.mxu0 0
      %398 = vmatprep.subr.bf16.mxu0 0
      %399 = vmatpush1.bf16.msra.mxu0 0
      %400 = vmatprep.subr.bf16.mxu0 0
      %401 = vmatpush1.bf16.msra.mxu0 0
      %402 = vmatprep.subr.bf16.mxu0 0
      %403 = vmatpush1.bf16.msra.mxu0 0
      %404 = vmatprep.subr.bf16.mxu0 0
      %405 = vmatpush1.bf16.msra.mxu0 0
      %406 = vmatprep.subr.bf16.mxu0 0
      %407 = vmatpush1.bf16.msra.mxu0 0
      %408 = vmatprep.subr.bf16.mxu0 0
      %409 = vmatpush1.bf16.msra.mxu0 0
      %410 = vmatprep.mubr.bf16.mxu0 0
      %411 = vmatmul.mubr.bf16.gmra.mrb[0].mxu0 %v298
      %v412 = vpop.f32.mrb[0].mxu0
      %v413 = vadd.f32 0.0, %v412
      %v414 = vpop.f32.mrb[0].mxu0
      %v415 = vpop.f32.mrb[0].mxu0
      %v416 = vadd.f32 0.0, %v415
      %v417 = vpop.f32.mrb[0].mxu0
      %418 = vmatprep.mubr.bf16.mxu0 0
      %419 = vmatmul.mubr.bf16.gmra.mrb[0].mxu0 %v299
      %v420 = vpop.f32.mrb[0].mxu0
      %v421 = vadd.f32 0.0, %v420
      %v422 = vpop.f32.mrb[0].mxu0
      %v423 = vpop.f32.mrb[0].mxu0
      %v424 = vadd.f32 0.0, %v423
      %v425 = vpop.f32.mrb[0].mxu0
      %426 = vmatprep.mubr.bf16.mxu0 0
      %427 = vmatmul.mubr.bf16.gmra.mrb[0].mxu0 %v300
      %v428 = vpop.f32.mrb[0].mxu0
      %v429 = vadd.f32 0.0, %v428
      %v430 = vpop.f32.mrb[0].mxu0
      %v431 = vpop.f32.mrb[0].mxu0
      %v432 = vadd.f32 0.0, %v431
      %v433 = vpop.f32.mrb[0].mxu0
      %434 = vmatprep.mubr.bf16.mxu0 0
      %435 = vmatmul.mubr.bf16.gmra.mrb[0].mxu0 %v301
      %v436 = vpop.f32.mrb[0].mxu0
      %v437 = vadd.f32 0.0, %v436
      %v438 = vpop.f32.mrb[0].mxu0
      %v439 = vpop.f32.mrb[0].mxu0
      %v440 = vadd.f32 0.0, %v439
      %v441 = vpop.f32.mrb[0].mxu0
      %442 = vmatprep.mubr.bf16.mxu0 0
      %443 = vmatmul.mubr.bf16.gmra.mrb[0].mxu0 %v302
      %v444 = vpop.f32.mrb[0].mxu0
      %v445 = vadd.f32 0.0, %v444
      %v446 = vpop.f32.mrb[0].mxu0
      %v447 = vpop.f32.mrb[0].mxu0
      %v448 = vadd.f32 0.0, %v447
      %v449 = vpop.f32.mrb[0].mxu0
      %450 = vmatprep.mubr.bf16.mxu0 0
      %451 = vmatmul.mubr.bf16.gmra.mrb[0].mxu0 %v303
      %v452 = vpop.f32.mrb[0].mxu0
      %v453 = vadd.f32 0.0, %v452
      %v454 = vpop.f32.mrb[0].mxu0
      %v455 = vpop.f32.mrb[0].mxu0
      %v456 = vadd.f32 0.0, %v455
      %v457 = vpop.f32.mrb[0].mxu0
      %458 = vmatprep.mubr.bf16.mxu0 0
      %459 = vmatmul.mubr.bf16.gmra.mrb[0].mxu0 %v304
      %v460 = vpop.f32.mrb[0].mxu0
      %v461 = vadd.f32 0.0, %v460
      %v462 = vpop.f32.mrb[0].mxu0
      %v463 = vpop.f32.mrb[0].mxu0
      %v464 = vadd.f32 0.0, %v463
      %v465 = vpop.f32.mrb[0].mxu0
      %466 = vmatprep.mubr.bf16.mxu0 0
      %467 = vmatmul.mubr.bf16.gmra.mrb[0].mxu0 %v305
      %v468 = vpop.f32.mrb[0].mxu0
      %v469 = vadd.f32 0.0, %v468
      %v470 = vpop.f32.mrb[0].mxu0
      %v471 = vpop.f32.mrb[0].mxu0
      %v472 = vadd.f32 0.0, %v471
      %v473 = vpop.f32.mrb[0].mxu0
      %474 = vmatprep.mubr.bf16.mxu0 0
      %475 = vmatmul.mubr.bf16.gmra.mrb[0].mxu0 %v306
      %v476 = vpop.f32.mrb[0].mxu0
      %v477 = vadd.f32 0.0, %v476
      %v478 = vpop.f32.mrb[0].mxu0
      %v479 = vpop.f32.mrb[0].mxu0
      %v480 = vadd.f32 0.0, %v479
      %v481 = vpop.f32.mrb[0].mxu0
      %482 = vmatprep.mubr.bf16.mxu0 0
      %483 = vmatmul.mubr.bf16.gmra.mrb[0].mxu0 %v307
      %v484 = vpop.f32.mrb[0].mxu0
      %v485 = vadd.f32 0.0, %v484
      %v486 = vpop.f32.mrb[0].mxu0
      %v487 = vpop.f32.mrb[0].mxu0
      %v488 = vadd.f32 0.0, %v487
      %v489 = vpop.f32.mrb[0].mxu0
      %490 = vmatprep.mubr.bf16.mxu0 0
      %491 = vmatmul.mubr.bf16.gmra.mrb[0].mxu0 %v308
      %v492 = vpop.f32.mrb[0].mxu0
      %v493 = vadd.f32 0.0, %v492
      %v494 = vpop.f32.mrb[0].mxu0
      %v495 = vpop.f32.mrb[0].mxu0
      %v496 = vadd.f32 0.0, %v495
      %v497 = vpop.f32.mrb[0].mxu0
      %498 = vmatprep.mubr.bf16.mxu0 0
      %499 = vmatmul.mubr.bf16.gmra.mrb[0].mxu0 %v309
      %v500 = vpop.f32.mrb[0].mxu0
      %v501 = vadd.f32 0.0, %v500
      %v502 = vpop.f32.mrb[0].mxu0
      %v503 = vpop.f32.mrb[0].mxu0
      %v504 = vadd.f32 0.0, %v503
      %v505 = vpop.f32.mrb[0].mxu0
      %506 = vmatprep.mubr.bf16.mxu0 0
      %507 = vmatmul.mubr.bf16.gmra.mrb[0].mxu0 %v310
      %v508 = vpop.f32.mrb[0].mxu0
      %v509 = vadd.f32 0.0, %v508
      %v510 = vpop.f32.mrb[0].mxu0
      %v511 = vpop.f32.mrb[0].mxu0
      %v512 = vadd.f32 0.0, %v511
      %v513 = vpop.f32.mrb[0].mxu0
      %514 = vmatprep.mubr.bf16.mxu0 0
      %515 = vmatmul.mubr.bf16.gmra.mrb[0].mxu0 %v311
      %v516 = vpop.f32.mrb[0].mxu0
      %v517 = vadd.f32 0.0, %v516
      %v518 = vpop.f32.mrb[0].mxu0
      %v519 = vpop.f32.mrb[0].mxu0
      %v520 = vadd.f32 0.0, %v519
      %v521 = vpop.f32.mrb[0].mxu0
      %522 = vmatprep.mubr.bf16.mxu0 0
      %523 = vmatmul.mubr.bf16.gmra.mrb[0].mxu0 %v312
      %v524 = vpop.f32.mrb[0].mxu0
      %v525 = vadd.f32 0.0, %v524
      %v526 = vpop.f32.mrb[0].mxu0
      %v527 = vpop.f32.mrb[0].mxu0
      %v528 = vadd.f32 0.0, %v527
      %v529 = vpop.f32.mrb[0].mxu0
      %530 = vmatprep.mubr.bf16.mxu0 0
      %531 = vmatmul.mubr.bf16.gmra.mrb[0].mxu0 %v313
      %v532 = vpop.f32.mrb[0].mxu0
      %v533 = vadd.f32 0.0, %v532
      %v534 = vpop.f32.mrb[0].mxu0
      %v535 = vpop.f32.mrb[0].mxu0
      %v536 = vadd.f32 0.0, %v535
      %v537 = vpop.f32.mrb[0].mxu0
      %538 = vdwg.mxu0
      %v539 = vadd.f32 %v413, %v416
      %v540 = vadd.f32 %v539, %v421
      %v541 = vadd.f32 %v540, %v424
      %v542 = vadd.f32 %v541, %v429
      %v543 = vadd.f32 %v542, %v432
      %v544 = vadd.f32 %v543, %v437
      %v545 = vadd.f32 %v544, %v440
      %v546 = vadd.f32 %v545, %v445
      %v547 = vadd.f32 %v546, %v448
      %v548 = vadd.f32 %v547, %v453
      %v549 = vadd.f32 %v548, %v456
      %v550 = vadd.f32 %v549, %v461
      %v551 = vadd.f32 %v550, %v464
      %v552 = vadd.f32 %v551, %v469
      %v553 = vadd.f32 %v552, %v472
      %v554 = vadd.f32 %v553, %v477
      %v555 = vadd.f32 %v554, %v480
      %v556 = vadd.f32 %v555, %v485
      %v557 = vadd.f32 %v556, %v488
      %v558 = vadd.f32 %v557, %v493
      %v559 = vadd.f32 %v558, %v496
      %v560 = vadd.f32 %v559, %v501
      %v561 = vadd.f32 %v560, %v504
      %v562 = vadd.f32 %v561, %v509
      %v563 = vadd.f32 %v562, %v512
      %v564 = vadd.f32 %v563, %v517
      %v565 = vadd.f32 %v564, %v520
      %v566 = vadd.f32 %v565, %v525
      %v567 = vadd.f32 %v566, %v528
      %v568 = vadd.f32 %v567, %v533
      %v569 = vadd.f32 %v568, %v536
      %v570 = vrot.slane %v569, 4
      %v571 = vadd.f32 %v569, %v570
      %v572 = vrot.slane %v571, 2
      %v573 = vadd.f32 %v571, %v572
      %v574 = vrot.slane %v573, 1
      %v575 = vadd.f32 %v573, %v574
      %v576 = vmul.f32 %v413, %v413
      %v577 = vmul.f32 %v416, %v416
      %v578 = vmul.f32 %v421, %v421
      %v579 = vmul.f32 %v424, %v424
      %v580 = vmul.f32 %v429, %v429
      %v581 = vmul.f32 %v432, %v432
      %v582 = vmul.f32 %v437, %v437
      %v583 = vmul.f32 %v440, %v440
      %v584 = vmul.f32 %v445, %v445
      %v585 = vmul.f32 %v448, %v448
      %v586 = vmul.f32 %v453, %v453
      %v587 = vmul.f32 %v456, %v456
      %v588 = vmul.f32 %v461, %v461
      %v589 = vmul.f32 %v464, %v464
      %v590 = vmul.f32 %v469, %v469
      %v591 = vmul.f32 %v472, %v472
      %v592 = vmul.f32 %v477, %v477
      %v593 = vmul.f32 %v480, %v480
      %v594 = vmul.f32 %v485, %v485
      %v595 = vmul.f32 %v488, %v488
      %v596 = vmul.f32 %v493, %v493
      %v597 = vmul.f32 %v496, %v496
      %v598 = vmul.f32 %v501, %v501
      %v599 = vmul.f32 %v504, %v504
      %v600 = vmul.f32 %v509, %v509
      %v601 = vmul.f32 %v512, %v512
      %v602 = vmul.f32 %v517, %v517
      %v603 = vmul.f32 %v520, %v520
      %v604 = vmul.f32 %v525, %v525
      %v605 = vmul.f32 %v528, %v528
      %v606 = vmul.f32 %v533, %v533
      %v607 = vmul.f32 %v536, %v536
      %v608 = vadd.f32 %v576, %v577
      %v609 = vadd.f32 %v608, %v578
      %v610 = vadd.f32 %v609, %v579
      %v611 = vadd.f32 %v610, %v580
      %v612 = vadd.f32 %v611, %v581
      %v613 = vadd.f32 %v612, %v582
      %v614 = vadd.f32 %v613, %v583
      %v615 = vadd.f32 %v614, %v584
      %v616 = vadd.f32 %v615, %v585
      %v617 = vadd.f32 %v616, %v586
      %v618 = vadd.f32 %v617, %v587
      %v619 = vadd.f32 %v618, %v588
      %v620 = vadd.f32 %v619, %v589
      %v621 = vadd.f32 %v620, %v590
      %v622 = vadd.f32 %v621, %v591
      %v623 = vadd.f32 %v622, %v592
      %v624 = vadd.f32 %v623, %v593
      %v625 = vadd.f32 %v624, %v594
      %v626 = vadd.f32 %v625, %v595
      %v627 = vadd.f32 %v626, %v596
      %v628 = vadd.f32 %v627, %v597
      %v629 = vadd.f32 %v628, %v598
      %v630 = vadd.f32 %v629, %v599
      %v631 = vadd.f32 %v630, %v600
      %v632 = vadd.f32 %v631, %v601
      %v633 = vadd.f32 %v632, %v602
      %v634 = vadd.f32 %v633, %v603
      %v635 = vadd.f32 %v634, %v604
      %v636 = vadd.f32 %v635, %v605
      %v637 = vadd.f32 %v636, %v606
      %v638 = vadd.f32 %v637, %v607
      %v639 = vrot.slane %v638, 4
      %v640 = vadd.f32 %v638, %v639
      %v641 = vrot.slane %v640, 2
      %v642 = vadd.f32 %v640, %v641
      %v643 = vrot.slane %v642, 1
      %v644 = vadd.f32 %v642, %v643
      %vm645 = vcmask 1040384
      %v646 = vsel %vm645, %v575, %v644
      %647 = vst [vmem:[%s184] sm:$0x3] %v646
      %v648 = vpack.c.bf16 %v416, %v413
      %v649 = vpack.c.bf16 %v424, %v421
      %v650 = vpack.c.bf16 %v432, %v429
      %v651 = vpack.c.bf16 %v440, %v437
      %v652 = vpack.c.bf16 %v448, %v445
      %v653 = vpack.c.bf16 %v456, %v453
      %v654 = vpack.c.bf16 %v464, %v461
      %v655 = vpack.c.bf16 %v472, %v469
      %v656 = vpack.c.bf16 %v480, %v477
      %v657 = vpack.c.bf16 %v488, %v485
      %v658 = vpack.c.bf16 %v496, %v493
      %v659 = vpack.c.bf16 %v504, %v501
      %v660 = vpack.c.bf16 %v512, %v509
      %v661 = vpack.c.bf16 %v520, %v517
      %v662 = vpack.c.bf16 %v528, %v525
      %v663 = vpack.c.bf16 %v536, %v533
      %v680 = vunpack.c.l.b16 %v648
      %v681 = vunpack.c.h.b16 %v648
      %v682 = vunpack.c.l.b16 %v649
      %v683 = vunpack.c.h.b16 %v649
      %v684 = vunpack.c.l.b16 %v650
      %v685 = vunpack.c.h.b16 %v650
      %v686 = vunpack.c.l.b16 %v651
      %v687 = vunpack.c.h.b16 %v651
      %v688 = vunpack.c.l.b16 %v652
      %v689 = vunpack.c.h.b16 %v652
      %v690 = vunpack.c.l.b16 %v653
      %v691 = vunpack.c.h.b16 %v653
      %v692 = vunpack.c.l.b16 %v654
      %v693 = vunpack.c.h.b16 %v654
      %v694 = vunpack.c.l.b16 %v655
      %v695 = vunpack.c.h.b16 %v655
      %v696 = vunpack.c.l.b16 %v656
      %v697 = vunpack.c.h.b16 %v656
      %v698 = vunpack.c.l.b16 %v657
      %v699 = vunpack.c.h.b16 %v657
      %v700 = vunpack.c.l.b16 %v658
      %v701 = vunpack.c.h.b16 %v658
      %v702 = vunpack.c.l.b16 %v659
      %v703 = vunpack.c.h.b16 %v659
      %v704 = vunpack.c.l.b16 %v660
      %v705 = vunpack.c.h.b16 %v660
      %v706 = vunpack.c.l.b16 %v661
      %v707 = vunpack.c.h.b16 %v661
      %v708 = vunpack.c.l.b16 %v662
      %v709 = vunpack.c.h.b16 %v662
      %v710 = vunpack.c.l.b16 %v663
      %v711 = vunpack.c.h.b16 %v663
      %v712 = vpack.c.b16 %v680, %v680
      %v713 = vpack.c.b16 %v681, %v681
      %v714 = vpack.c.b16 %v682, %v682
      %v715 = vpack.c.b16 %v683, %v683
      %v716 = vpack.c.b16 %v684, %v684
      %v717 = vpack.c.b16 %v685, %v685
      %v718 = vpack.c.b16 %v686, %v686
      %v719 = vpack.c.b16 %v687, %v687
      %v720 = vpack.c.b16 %v688, %v688
      %v721 = vpack.c.b16 %v689, %v689
      %v722 = vpack.c.b16 %v690, %v690
      %v723 = vpack.c.b16 %v691, %v691
      %v724 = vpack.c.b16 %v692, %v692
      %v725 = vpack.c.b16 %v693, %v693
      %v726 = vpack.c.b16 %v694, %v694
      %v727 = vpack.c.b16 %v695, %v695
      %v728 = vpack.c.b16 %v696, %v696
      %v729 = vpack.c.b16 %v697, %v697
      %v730 = vpack.c.b16 %v698, %v698
      %v731 = vpack.c.b16 %v699, %v699
      %v732 = vpack.c.b16 %v700, %v700
      %v733 = vpack.c.b16 %v701, %v701
      %v734 = vpack.c.b16 %v702, %v702
      %v735 = vpack.c.b16 %v703, %v703
      %v736 = vpack.c.b16 %v704, %v704
      %v737 = vpack.c.b16 %v705, %v705
      %v738 = vpack.c.b16 %v706, %v706
      %v739 = vpack.c.b16 %v707, %v707
      %v740 = vpack.c.b16 %v708, %v708
      %v741 = vpack.c.b16 %v709, %v709
      %v742 = vpack.c.b16 %v710, %v710
      %v743 = vpack.c.b16 %v711, %v711
      %776 = vst [vmem:[%s179] sm:$0xf] %v712
      %777 = vst [vmem:[%s179 + $0x4] sm:$0xf] %v713
      %778 = vst [vmem:[%s179 + $0x8] sm:$0xf] %v714
      %779 = vst [vmem:[%s179 + $0xc] sm:$0xf] %v715
      %780 = vst [vmem:[%s179 + $0x10] sm:$0xf] %v716
      %781 = vst [vmem:[%s179 + $0x14] sm:$0xf] %v717
      %782 = vst [vmem:[%s179 + $0x18] sm:$0xf] %v718
      %783 = vst [vmem:[%s179 + $0x1c] sm:$0xf] %v719
      %784 = vst [vmem:[%s179 + $0x20] sm:$0xf] %v720
      %785 = vst [vmem:[%s179 + $0x24] sm:$0xf] %v721
      %786 = vst [vmem:[%s179 + $0x28] sm:$0xf] %v722
      %787 = vst [vmem:[%s179 + $0x2c] sm:$0xf] %v723
      %788 = vst [vmem:[%s179 + $0x30] sm:$0xf] %v724
      %789 = vst [vmem:[%s179 + $0x34] sm:$0xf] %v725
      %790 = vst [vmem:[%s179 + $0x38] sm:$0xf] %v726
      %791 = vst [vmem:[%s179 + $0x3c] sm:$0xf] %v727
      %792 = vst [vmem:[%s179 + $0x40] sm:$0xf] %v728
      %793 = vst [vmem:[%s179 + $0x44] sm:$0xf] %v729
      %794 = vst [vmem:[%s179 + $0x48] sm:$0xf] %v730
      %795 = vst [vmem:[%s179 + $0x4c] sm:$0xf] %v731
      %796 = vst [vmem:[%s179 + $0x50] sm:$0xf] %v732
      %797 = vst [vmem:[%s179 + $0x54] sm:$0xf] %v733
      %798 = vst [vmem:[%s179 + $0x58] sm:$0xf] %v734
      %799 = vst [vmem:[%s179 + $0x5c] sm:$0xf] %v735
      %800 = vst [vmem:[%s179 + $0x60] sm:$0xf] %v736
      %801 = vst [vmem:[%s179 + $0x64] sm:$0xf] %v737
      %802 = vst [vmem:[%s179 + $0x68] sm:$0xf] %v738
      %803 = vst [vmem:[%s179 + $0x6c] sm:$0xf] %v739
      %804 = vst [vmem:[%s179 + $0x70] sm:$0xf] %v740
      %805 = vst [vmem:[%s179 + $0x74] sm:$0xf] %v741
      %806 = vst [vmem:[%s179 + $0x78] sm:$0xf] %v742
      %807 = vst [vmem:[%s179 + $0x7c] sm:$0xf] %v743
      %s808 = smul.u32 32, %s15
      %p809 = scmp.lt.s32.totalorder %s808, 63
      %s810 = scalar_select %p809, %s808, 63
      %s811 = smul.addr %s810, 4
      %s812 = scalar_lea.vmem %s2, %s811
      %p813 = scmp.lt.s32.totalorder %s15, 1
      %s814 = scalar_select %p813, %s15, 1
      %s815 = smul.addr %s814, 2
      %s816 = scalar_lea.vmem %s3, %s815
      // Predicated region
      $region29: #{bottleneck_forward.4} parent=27 // pred_check
        %p817 = pneg %p80
      $region30: #{bottleneck_forward.4} parent=27 // pred_check_branch
        %819 = sbr.rel (%p817) target = $region32
      $region31: #{bottleneck_forward.4} parent=27 // pred_region
        %s820 = smul.u32 32, %s15
      $region32: #{bottleneck_forward.4} parent=27 // pred_fallthru
        _
      // Predicated region
      $region33: #{bottleneck_forward.4} parent=27 // pred_check
        %p821 = pneg %p106
      $region34: #{bottleneck_forward.4} parent=27 // pred_check_branch
        %823 = sbr.rel (%p821) target = $region36
      $region35: #{bottleneck_forward.4} parent=27 // pred_region
        _
      $region36: #{bottleneck_forward.4} parent=27 // pred_fallthru
        _
    $region28: #{bottleneck_forward.4} parent=5 // pred_fallthru
      _
    %p824 = scmp.le.s32.totalorder 2, %s10
    // Predicated region
    $region37: #{bottleneck_forward.4} parent=5 // pred_check
      %p825 = pneg %p824
    $region38: #{bottleneck_forward.4} parent=5 // pred_check_branch
      %827 = sbr.rel (%p825) target = $region40
    $region39: #{bottleneck_forward.4} parent=5 // pred_region
      %s828 = ssub.s32 %s10, 2
      // Predicated region
      $region41: #{bottleneck_forward.4} parent=39 // pred_check
        %p829 = pneg %p86
      $region42: #{bottleneck_forward.4} parent=39 // pred_check_branch
        %831 = sbr.rel (%p829) target = $region44
      $region43: #{bottleneck_forward.4} parent=39 // pred_region
        %s832 = smul.u32 32, %s16
        %p833 = scmp.lt.s32.totalorder %s832, 63
        %s834 = scalar_select %p833, %s832, 63
        %s835 = smul.addr %s834, 4
        %s836 = scalar_lea.vmem %s2, %s835
      $region44: #{bottleneck_forward.4} parent=39 // pred_fallthru
        _
      // Predicated region
      $region45: #{bottleneck_forward.4} parent=39 // pred_check
        %p837 = pneg %p112
      $region46: #{bottleneck_forward.4} parent=39 // pred_check_branch
        %839 = sbr.rel (%p837) target = $region48
      $region47: #{bottleneck_forward.4} parent=39 // pred_region
        %p840 = scmp.lt.s32.totalorder %s16, 1
        %s841 = scalar_select %p840, %s16, 1
        %s842 = smul.addr %s841, 2
        %s843 = scalar_lea.vmem %s3, %s842
      $region48: #{bottleneck_forward.4} parent=39 // pred_fallthru
        _
    $region40: #{bottleneck_forward.4} parent=5 // pred_fallthru
      _
  $region6: #{bottleneck_forward.4} parent=0 // loop_footer
    %s14 = sadd.s32 1, %s10
  $region7: #{bottleneck_forward.4} parent=0 // loop_footer_branch
    %9 = sbr.rel target = $region3
  $region8: #{bottleneck_forward.4} parent=0 // loop_exit
    _

// kernel: bottleneck_forward.7
$region0: #{bottleneck_forward.7}
  #allocation0 [shape = 'u32[]', space=smem, size = 0x4, offset = 0x4, fixed_abs, tag = 'smem constant byte address 0x4 - core index']
  #allocation1 [shape = 'u32[144,128]{1,0:T(1,128)}', space=vmem, size = 0x12000, scoped, tag = 'internal scratch']
  %s0 = inlined_call_operand.vmem [shape: bf16[512,128], index: 0, kind: input, shape index: {}]
  %s1 = inlined_call_operand.vmem [shape: bf16[512,128], index: 1, kind: input, shape index: {}]
  %s2 = inlined_call_operand.vmem [shape: f32[2,2,128], index: 2, kind: input, shape index: {}]
  %s3 = inlined_call_operand.vmem [shape: f32[1,128], index: 3, kind: input, shape index: {}]
  %s4 = inlined_call_operand.vmem [shape: f32[1,128], index: 4, kind: input, shape index: {}]
  %s5 = inlined_call_operand.vmem [shape: f32[2,2,128], index: 5, kind: input, shape index: {}]
  %s6 = inlined_call_operand.vmem [shape: f32[1,128], index: 6, kind: input, shape index: {}]
  %s7 = inlined_call_operand.vmem [shape: f32[1,128], index: 7, kind: input, shape index: {}]
  %s8 = inlined_call_operand.vmem [shape: bf16[512,128], index: 8, kind: output, shape index: {}]
  %s9 = sld [smem:[#allocation0]]
  $region65: #{bottleneck_forward.7} parent=0
    _
  %s11 = ssub.s32 1, %s9
  %s12 = scalar_select 0, %s11, %s9
  loop: start=0, step=1, limit=4
  $region2: #{bottleneck_forward.7} parent=0 // loop_pre_header
    _
  $region3: #{bottleneck_forward.7} parent=0 // loop_header
    %s14 = sphi 0, %s18
    %p15 = scmp.ge.s32.totalorder %s14, 4
    %s24 = sphi 0, %s26
    %s27 = sphi 0, %s24
    %s28 = sphi 0, %s27
    %s44 = sphi 0, %s28
    %s50 = sphi 0, %s52
    %s53 = sphi 0, %s50
    %s54 = sphi 0, %s53
    %s70 = sphi 0, %s54
    %s74 = sphi 0, %s74
    %s76 = sphi 0, %s74
    %s77 = sphi 0, %s76
    %s91 = sphi 0, %s77
    %s95 = sphi 0, %s95
    %s97 = sphi 0, %s95
    %s98 = sphi 0, %s97
    %s112 = sphi 0, %s98
    %s116 = sphi 0, %s116
    %s118 = sphi 0, %s116
    %s119 = sphi 0, %s118
    %s133 = sphi 0, %s119
    %s137 = sphi 0, %s137
    %s139 = sphi 0, %s137
    %s140 = sphi 0, %s139
    %s154 = sphi 0, %s140
    %s158 = sphi 0, %s158
    %s160 = sphi 0, %s158
    %s161 = sphi 0, %s160
    %s175 = sphi 0, %s161
    %s179 = sphi 0, %s179
    %s181 = sphi 0, %s179
    %s182 = sphi 0, %s181
    %s196 = sphi 0, %s182
    %s202 = sphi 0, %s204
    %s205 = sphi 0, %s202
    %s206 = sphi 0, %s205
    %s222 = sphi 0, %s206
  $region4: #{bottleneck_forward.7} parent=0 // loop_header_branch
    %17 = sbr.rel (%p15) target = $region8
  $region5: #{bottleneck_forward.7} parent=0 // loop_body
    %s19 = ssub.s32 %s14, 1
    %s20 = ssub.s32 %s14, 2
    %s21 = sadd.s32 %s14, 1
    %s22 = ssub.s32 %s14, %s21
    %p23 = scmp.eq.s32.totalorder %s22, 0
    %s25 = sadd.s32 %s24, 1
    %s26 = scalar_select %p23, %s24, %s25
    %p29 = pneg %p23
    %p30 = scmp.eq.s32.totalorder %s14, 1
    %p31 = por %p29, %p30
    %p32 = scmp.ne.s32.totalorder %s24, %s27
    %p33 = scmp.eq.s32.totalorder %s14, 0
    %p34 = por %p32, %p33
    %p35 = scmp.ne.s32.totalorder %s24, %s27
    %p36 = scmp.eq.s32.totalorder %s19, 1
    %p37 = por %p35, %p36
    %p38 = scmp.ne.s32.totalorder %s27, %s28
    %p39 = scmp.eq.s32.totalorder %s19, 0
    %p40 = por %p38, %p39
    %p41 = scmp.ne.s32.totalorder %s27, %s28
    %p42 = scmp.eq.s32.totalorder %s20, 1
    %p43 = por %p41, %p42
    %p45 = scmp.ne.s32.totalorder %s28, %s44
    %p46 = scmp.eq.s32.totalorder %s20, 0
    %p47 = por %p45, %p46
    %s48 = ssub.s32 %s14, %s21
    %p49 = scmp.eq.s32.totalorder %s48, 0
    %s51 = sadd.s32 %s50, 1
    %s52 = scalar_select %p49, %s50, %s51
    %p55 = pneg %p49
    %p56 = scmp.eq.s32.totalorder %s14, 1
    %p57 = por %p55, %p56
    %p58 = scmp.ne.s32.totalorder %s50, %s53
    %p59 = scmp.eq.s32.totalorder %s14, 0
    %p60 = por %p58, %p59
    %p61 = scmp.ne.s32.totalorder %s50, %s53
    %p62 = scmp.eq.s32.totalorder %s19, 1
    %p63 = por %p61, %p62
    %p64 = scmp.ne.s32.totalorder %s53, %s54
    %p65 = scmp.eq.s32.totalorder %s19, 0
    %p66 = por %p64, %p65
    %p67 = scmp.ne.s32.totalorder %s53, %s54
    %p68 = scmp.eq.s32.totalorder %s20, 1
    %p69 = por %p67, %p68
    %p71 = scmp.ne.s32.totalorder %s54, %s70
    %p72 = scmp.eq.s32.totalorder %s20, 0
    %p73 = por %p71, %p72
    %s75 = sadd.s32 %s74, 1
    %p78 = scmp.eq.s32.totalorder %s14, 1
    %p79 = scmp.ne.s32.totalorder %s74, %s76
    %p80 = scmp.eq.s32.totalorder %s14, 0
    %p81 = por %p79, %p80
    %p82 = scmp.ne.s32.totalorder %s74, %s76
    %p83 = scmp.eq.s32.totalorder %s19, 1
    %p84 = por %p82, %p83
    %p85 = scmp.ne.s32.totalorder %s76, %s77
    %p86 = scmp.eq.s32.totalorder %s19, 0
    %p87 = por %p85, %p86
    %p88 = scmp.ne.s32.totalorder %s76, %s77
    %p89 = scmp.eq.s32.totalorder %s20, 1
    %p90 = por %p88, %p89
    %p92 = scmp.ne.s32.totalorder %s77, %s91
    %p93 = scmp.eq.s32.totalorder %s20, 0
    %p94 = por %p92, %p93
    %s96 = sadd.s32 %s95, 1
    %p99 = scmp.eq.s32.totalorder %s14, 1
    %p100 = scmp.ne.s32.totalorder %s95, %s97
    %p101 = scmp.eq.s32.totalorder %s14, 0
    %p102 = por %p100, %p101
    %p103 = scmp.ne.s32.totalorder %s95, %s97
    %p104 = scmp.eq.s32.totalorder %s19, 1
    %p105 = por %p103, %p104
    %p106 = scmp.ne.s32.totalorder %s97, %s98
    %p107 = scmp.eq.s32.totalorder %s19, 0
    %p108 = por %p106, %p107
    %p109 = scmp.ne.s32.totalorder %s97, %s98
    %p110 = scmp.eq.s32.totalorder %s20, 1
    %p111 = por %p109, %p110
    %p113 = scmp.ne.s32.totalorder %s98, %s112
    %p114 = scmp.eq.s32.totalorder %s20, 0
    %p115 = por %p113, %p114
    %s117 = sadd.s32 %s116, 1
    %p120 = scmp.eq.s32.totalorder %s14, 1
    %p121 = scmp.ne.s32.totalorder %s116, %s118
    %p122 = scmp.eq.s32.totalorder %s14, 0
    %p123 = por %p121, %p122
    %p124 = scmp.ne.s32.totalorder %s116, %s118
    %p125 = scmp.eq.s32.totalorder %s19, 1
    %p126 = por %p124, %p125
    %p127 = scmp.ne.s32.totalorder %s118, %s119
    %p128 = scmp.eq.s32.totalorder %s19, 0
    %p129 = por %p127, %p128
    %p130 = scmp.ne.s32.totalorder %s118, %s119
    %p131 = scmp.eq.s32.totalorder %s20, 1
    %p132 = por %p130, %p131
    %p134 = scmp.ne.s32.totalorder %s119, %s133
    %p135 = scmp.eq.s32.totalorder %s20, 0
    %p136 = por %p134, %p135
    %s138 = sadd.s32 %s137, 1
    %p141 = scmp.eq.s32.totalorder %s14, 1
    %p142 = scmp.ne.s32.totalorder %s137, %s139
    %p143 = scmp.eq.s32.totalorder %s14, 0
    %p144 = por %p142, %p143
    %p145 = scmp.ne.s32.totalorder %s137, %s139
    %p146 = scmp.eq.s32.totalorder %s19, 1
    %p147 = por %p145, %p146
    %p148 = scmp.ne.s32.totalorder %s139, %s140
    %p149 = scmp.eq.s32.totalorder %s19, 0
    %p150 = por %p148, %p149
    %p151 = scmp.ne.s32.totalorder %s139, %s140
    %p152 = scmp.eq.s32.totalorder %s20, 1
    %p153 = por %p151, %p152
    %p155 = scmp.ne.s32.totalorder %s140, %s154
    %p156 = scmp.eq.s32.totalorder %s20, 0
    %p157 = por %p155, %p156
    %s159 = sadd.s32 %s158, 1
    %p162 = scmp.eq.s32.totalorder %s14, 1
    %p163 = scmp.ne.s32.totalorder %s158, %s160
    %p164 = scmp.eq.s32.totalorder %s14, 0
    %p165 = por %p163, %p164
    %p166 = scmp.ne.s32.totalorder %s158, %s160
    %p167 = scmp.eq.s32.totalorder %s19, 1
    %p168 = por %p166, %p167
    %p169 = scmp.ne.s32.totalorder %s160, %s161
    %p170 = scmp.eq.s32.totalorder %s19, 0
    %p171 = por %p169, %p170
    %p172 = scmp.ne.s32.totalorder %s160, %s161
    %p173 = scmp.eq.s32.totalorder %s20, 1
    %p174 = por %p172, %p173
    %p176 = scmp.ne.s32.totalorder %s161, %s175
    %p177 = scmp.eq.s32.totalorder %s20, 0
    %p178 = por %p176, %p177
    %s180 = sadd.s32 %s179, 1
    %p183 = scmp.eq.s32.totalorder %s14, 1
    %p184 = scmp.ne.s32.totalorder %s179, %s181
    %p185 = scmp.eq.s32.totalorder %s14, 0
    %p186 = por %p184, %p185
    %p187 = scmp.ne.s32.totalorder %s179, %s181
    %p188 = scmp.eq.s32.totalorder %s19, 1
    %p189 = por %p187, %p188
    %p190 = scmp.ne.s32.totalorder %s181, %s182
    %p191 = scmp.eq.s32.totalorder %s19, 0
    %p192 = por %p190, %p191
    %p193 = scmp.ne.s32.totalorder %s181, %s182
    %p194 = scmp.eq.s32.totalorder %s20, 1
    %p195 = por %p193, %p194
    %p197 = scmp.ne.s32.totalorder %s182, %s196
    %p198 = scmp.eq.s32.totalorder %s20, 0
    %p199 = por %p197, %p198
    %s200 = ssub.s32 %s14, %s21
    %p201 = scmp.eq.s32.totalorder %s200, 0
    %s203 = sadd.s32 %s202, 1
    %s204 = scalar_select %p201, %s202, %s203
    %p207 = pneg %p201
    %p208 = scmp.eq.s32.totalorder %s14, 1
    %p209 = por %p207, %p208
    %p210 = scmp.ne.s32.totalorder %s202, %s205
    %p211 = scmp.eq.s32.totalorder %s14, 0
    %p212 = por %p210, %p211
    %p213 = scmp.ne.s32.totalorder %s202, %s205
    %p214 = scmp.eq.s32.totalorder %s19, 1
    %p215 = por %p213, %p214
    %p216 = scmp.ne.s32.totalorder %s205, %s206
    %p217 = scmp.eq.s32.totalorder %s19, 0
    %p218 = por %p216, %p217
    %p219 = scmp.ne.s32.totalorder %s205, %s206
    %p220 = scmp.eq.s32.totalorder %s20, 1
    %p221 = por %p219, %p220
    %p223 = scmp.ne.s32.totalorder %s206, %s222
    %p224 = scmp.eq.s32.totalorder %s20, 0
    %p225 = por %p223, %p224
    %p226 = scmp.le.s32.totalorder 1, %s14
    %p227 = scmp.lt.s32.totalorder %s14, 3
    %p228 = pnand %p226, %p227
    %p229 = pneg %p228
    // Predicated region
    $region9: #{bottleneck_forward.7} parent=5 // pred_check
      _
    $region10: #{bottleneck_forward.7} parent=5 // pred_check_branch
      %231 = sbr.rel (%p228) target = $region12
    $region11: #{bottleneck_forward.7} parent=5 // pred_region
      %s232 = ssub.s32 %s14, 1
      // Predicated region
      $region13: #{bottleneck_forward.7} parent=11 // pred_check
        %p233 = pneg %p87
      $region14: #{bottleneck_forward.7} parent=11 // pred_check_branch
        %235 = sbr.rel (%p233) target = $region16
      $region15: #{bottleneck_forward.7} parent=11 // pred_region
        _
      $region16: #{bottleneck_forward.7} parent=11 // pred_fallthru
        _
      // Predicated region
      $region17: #{bottleneck_forward.7} parent=11 // pred_check
        %p236 = pneg %p108
      $region18: #{bottleneck_forward.7} parent=11 // pred_check_branch
        %238 = sbr.rel (%p236) target = $region20
      $region19: #{bottleneck_forward.7} parent=11 // pred_region
        _
      $region20: #{bottleneck_forward.7} parent=11 // pred_fallthru
        _
      // Predicated region
      $region21: #{bottleneck_forward.7} parent=11 // pred_check
        %p239 = pneg %p129
      $region22: #{bottleneck_forward.7} parent=11 // pred_check_branch
        %241 = sbr.rel (%p239) target = $region24
      $region23: #{bottleneck_forward.7} parent=11 // pred_region
        _
      $region24: #{bottleneck_forward.7} parent=11 // pred_fallthru
        _
      // Predicated region
      $region25: #{bottleneck_forward.7} parent=11 // pred_check
        %p242 = pneg %p150
      $region26: #{bottleneck_forward.7} parent=11 // pred_check_branch
        %244 = sbr.rel (%p242) target = $region28
      $region27: #{bottleneck_forward.7} parent=11 // pred_region
        _
      $region28: #{bottleneck_forward.7} parent=11 // pred_fallthru
        _
      // Predicated region
      $region29: #{bottleneck_forward.7} parent=11 // pred_check
        %p245 = pneg %p171
      $region30: #{bottleneck_forward.7} parent=11 // pred_check_branch
        %247 = sbr.rel (%p245) target = $region32
      $region31: #{bottleneck_forward.7} parent=11 // pred_region
        _
      $region32: #{bottleneck_forward.7} parent=11 // pred_fallthru
        _
      // Predicated region
      $region33: #{bottleneck_forward.7} parent=11 // pred_check
        %p248 = pneg %p192
      $region34: #{bottleneck_forward.7} parent=11 // pred_check_branch
        %250 = sbr.rel (%p248) target = $region36
      $region35: #{bottleneck_forward.7} parent=11 // pred_region
        _
      $region36: #{bottleneck_forward.7} parent=11 // pred_fallthru
        _
    $region12: #{bottleneck_forward.7} parent=5 // pred_fallthru
      _
    %p251 = scmp.lt.s32.totalorder %s14, 2
    // Predicated region
    $region37: #{bottleneck_forward.7} parent=5 // pred_check
      %p252 = pneg %p251
    $region38: #{bottleneck_forward.7} parent=5 // pred_check_branch
      %254 = sbr.rel (%p252) target = $region40
    $region39: #{bottleneck_forward.7} parent=5 // pred_region
      // Predicated region
      $region41: #{bottleneck_forward.7} parent=39 // pred_check
        %p255 = pneg %p34
      $region42: #{bottleneck_forward.7} parent=39 // pred_check_branch
        %257 = sbr.rel (%p255) target = $region44
      $region43: #{bottleneck_forward.7} parent=39 // pred_region
        %s258 = smul.u32 32, %s14
        %p259 = scmp.lt.s32.totalorder %s258, 63
        %s260 = scalar_select %p259, %s258, 63
        %s261 = smul.addr %s260, 4
        %s262 = scalar_lea.vmem %s0, %s261
        %s263 = smul.u32 32, %s14
      $region44: #{bottleneck_forward.7} parent=39 // pred_fallthru
        _
      // Predicated region
      $region45: #{bottleneck_forward.7} parent=39 // pred_check
        %p264 = pneg %p60
      $region46: #{bottleneck_forward.7} parent=39 // pred_check_branch
        %266 = sbr.rel (%p264) target = $region48
      $region47: #{bottleneck_forward.7} parent=39 // pred_region
        %s267 = smul.u32 32, %s14
        %p268 = scmp.lt.s32.totalorder %s267, 63
        %s269 = scalar_select %p268, %s267, 63
        %s270 = smul.addr %s269, 4
        %s271 = scalar_lea.vmem %s1, %s270
        %s272 = smul.u32 32, %s14
      $region48: #{bottleneck_forward.7} parent=39 // pred_fallthru
        _
    $region40: #{bottleneck_forward.7} parent=5 // pred_fallthru
      _
    %p273 = scmp.le.s32.totalorder 1, %s14
    %p274 = scmp.lt.s32.totalorder %s14, 3
    %p275 = pnand %p273, %p274
    %p276 = pneg %p275
    // Predicated region
    $region49: #{bottleneck_forward.7} parent=5 // pred_check
      _
    $region50: #{bottleneck_forward.7} parent=5 // pred_check_branch
      %278 = sbr.rel (%p275) target = $region52
    $region51: #{bottleneck_forward.7} parent=5 // pred_region
      %s279 = ssub.s32 %s14, 1
      %s280 = smul.u32 32, %s19
      %p281 = scmp.lt.s32.totalorder %s280, 63
      %s282 = scalar_select %p281, %s280, 63
      %s283 = smul.addr %s282, 4
      %s284 = scalar_lea.vmem %s0, %s283
      %p285 = pneg %p40
      %p286 = pneg %p37
      %s287 = smul.u32 32, %s19
      %p288 = scmp.lt.s32.totalorder %s287, 63
      %s289 = scalar_select %p288, %s287, 63
      %s290 = smul.addr %s289, 4
      %s291 = scalar_lea.vmem %s1, %s290
      %p292 = pneg %p66
      %p293 = pneg %p63
      %p294 = pneg %p87
      %p295 = pneg %p84
      %p296 = pneg %p108
      %p297 = pneg %p105
      %p298 = pneg %p129
      %p299 = pneg %p126
      %p300 = pneg %p150
      %p301 = pneg %p147
      %p302 = pneg %p171
      %p303 = pneg %p168
      %p304 = pneg %p192
      %p305 = pneg %p189
      %p306 = pneg %p218
      %p307 = pneg %p215
      %s308 = smul.u32 32, %s19
      %p309 = scmp.lt.s32.totalorder %s308, 63
      %s310 = scalar_select %p309, %s308, 63
      %s311 = smul.addr %s310, 4
      %s312 = scalar_lea.vmem %s8, %s311
      %s313 = smul.u32 32, %s19
      %p314 = scmp.lt.s32.totalorder %s313, 63
      %s315 = scalar_select %p314, %s313, 63
      %s316 = smul.addr %s315, 4
      %s317 = scalar_lea.vmem %s0, %s316
      %s318 = smul.u32 32, %s19
      %s319 = smul.u32 32, %s19
      %p320 = scmp.lt.s32.totalorder %s319, 63
      %s321 = scalar_select %p320, %s319, 63
      %s322 = smul.addr %s321, 4
      %s323 = scalar_lea.vmem %s1, %s322
      %s324 = smul.u32 32, %s19
      %s325 = smul.u32 32, %s19
      %p326 = scmp.lt.s32.totalorder %s325, 63
      %s327 = scalar_select %p326, %s325, 63
      %s328 = smul.addr %s327, 4
      %s329 = scalar_lea.vmem %s8, %s328
      %s330 = smul.u32 32, %s19
      %v331 = vld [vmem:[%s2] sm:$0x3]
      %v332 = vld [vmem:[%s2 + $0x2] sm:$0x3]
      %v333 = vld [vmem:[%s3] sm:$0x1]
      %v334 = vld [vmem:[%s4] sm:$0x1]
      %vm335 = vcmask 1041408
      %v336 = vsel %vm335, %v331, 0.0
      %v337 = vsel %vm335, %v332, 0.0
      %v338 = vadd.f32 %v336, %v337
      %v339 = vrcp.pop 512.0
      %v340 = vmul.f32 %v338, %v339
      %v341 = vmul.f32 %v340, %v340
      %v343 = vrot.slane %v341, 7
      %v345 = vsub.f32 %v340, %v343
      %v346 = vmax.f32 %v345, 0.0
      %v347 = vadd.f32 %v346, 1e-05
      %v348 = vrsqrt.pop %v347
      %v351 = vunpack.c.l.s4 1966171168
      %v352 = vunpack.c.0.s8 %v351
      %v353 = vlaneseq
      %v354 = vshrl.u32 %v353, 7
      %v355 = vsub.s32 %v352, %v354
      %v356 = vrot.slane %v348, %v355
      %v357 = vcombine.high %v356, %v356
      %v359 = vunpack.c.l.s4 1966171168
      %v360 = vunpack.c.0.s8 %v359
      %v361 = vlaneseq
      %v362 = vshrl.u32 %v361, 7
      %v363 = vsub.s32 %v360, %v362
      %v364 = vrot.slane %v357, %v363
      %v366 = vmul.f32 %v333, %v364
      %v367 = vmul.f32 %v340, %v366
      %v368 = vsub.f32 %v334, %v367
      %v369 = vld [vmem:[%s5] sm:$0x3]
      %v370 = vld [vmem:[%s5 + $0x2] sm:$0x3]
      %v371 = vld [vmem:[%s6] sm:$0x1]
      %v372 = vld [vmem:[%s7] sm:$0x1]
      %v373 = vsel %vm335, %v369, 0.0
      %v374 = vsel %vm335, %v370, 0.0
      %v375 = vadd.f32 %v373, %v374
      %v376 = vmul.f32 %v375, %v339
      %v377 = vmul.f32 %v376, %v376
      %v379 = vrot.slane %v377, 7
      %v381 = vsub.f32 %v376, %v379
      %v382 = vmax.f32 %v381, 0.0
      %v383 = vadd.f32 %v382, 1e-05
      %v384 = vrsqrt.pop %v383
      %v387 = vunpack.c.l.s4 1966171168
      %v388 = vunpack.c.0.s8 %v387
      %v389 = vlaneseq
      %v390 = vshrl.u32 %v389, 7
      %v391 = vsub.s32 %v388, %v390
      %v392 = vrot.slane %v384, %v391
      %v393 = vcombine.high %v392, %v392
      %v395 = vunpack.c.l.s4 1966171168
      %v396 = vunpack.c.0.s8 %v395
      %v397 = vlaneseq
      %v398 = vshrl.u32 %v397, 7
      %v399 = vsub.s32 %v396, %v398
      %v400 = vrot.slane %v393, %v399
      %v402 = vmul.f32 %v371, %v400
      %v403 = vmul.f32 %v376, %v402
      %v404 = vsub.f32 %v372, %v403
      %v405 = vld [vmem:[%s317] sm:$0xf]
      %v406 = vld [vmem:[%s317 + $0x4] sm:$0xf]
      %v407 = vld [vmem:[%s317 + $0x8] sm:$0xf]
      %v408 = vld [vmem:[%s317 + $0xc] sm:$0xf]
      %v409 = vld [vmem:[%s317 + $0x10] sm:$0xf]
      %v410 = vld [vmem:[%s317 + $0x14] sm:$0xf]
      %v411 = vld [vmem:[%s317 + $0x18] sm:$0xf]
      %v412 = vld [vmem:[%s317 + $0x1c] sm:$0xf]
      %v413 = vld [vmem:[%s317 + $0x20] sm:$0xf]
      %v414 = vld [vmem:[%s317 + $0x24] sm:$0xf]
      %v415 = vld [vmem:[%s317 + $0x28] sm:$0xf]
      %v416 = vld [vmem:[%s317 + $0x2c] sm:$0xf]
      %v417 = vld [vmem:[%s317 + $0x30] sm:$0xf]
      %v418 = vld [vmem:[%s317 + $0x34] sm:$0xf]
      %v419 = vld [vmem:[%s317 + $0x38] sm:$0xf]
      %v420 = vld [vmem:[%s317 + $0x3c] sm:$0xf]
      %v421 = vld [vmem:[%s317 + $0x40] sm:$0xf]
      %v422 = vld [vmem:[%s317 + $0x44] sm:$0xf]
      %v423 = vld [vmem:[%s317 + $0x48] sm:$0xf]
      %v424 = vld [vmem:[%s317 + $0x4c] sm:$0xf]
      %v425 = vld [vmem:[%s317 + $0x50] sm:$0xf]
      %v426 = vld [vmem:[%s317 + $0x54] sm:$0xf]
      %v427 = vld [vmem:[%s317 + $0x58] sm:$0xf]
      %v428 = vld [vmem:[%s317 + $0x5c] sm:$0xf]
      %v429 = vld [vmem:[%s317 + $0x60] sm:$0xf]
      %v430 = vld [vmem:[%s317 + $0x64] sm:$0xf]
      %v431 = vld [vmem:[%s317 + $0x68] sm:$0xf]
      %v432 = vld [vmem:[%s317 + $0x6c] sm:$0xf]
      %v433 = vld [vmem:[%s317 + $0x70] sm:$0xf]
      %v434 = vld [vmem:[%s317 + $0x74] sm:$0xf]
      %v435 = vld [vmem:[%s317 + $0x78] sm:$0xf]
      %v436 = vld [vmem:[%s317 + $0x7c] sm:$0xf]
      %v437 = vunpack.c.l.bf16 %v405
      %v438 = vunpack.c.l.bf16 %v406
      %v439 = vunpack.c.l.bf16 %v407
      %v440 = vunpack.c.l.bf16 %v408
      %v441 = vunpack.c.l.bf16 %v409
      %v442 = vunpack.c.l.bf16 %v410
      %v443 = vunpack.c.l.bf16 %v411
      %v444 = vunpack.c.l.bf16 %v412
      %v445 = vunpack.c.l.bf16 %v413
      %v446 = vunpack.c.l.bf16 %v414
      %v447 = vunpack.c.l.bf16 %v415
      %v448 = vunpack.c.l.bf16 %v416
      %v449 = vunpack.c.l.bf16 %v417
      %v450 = vunpack.c.l.bf16 %v418
      %v451 = vunpack.c.l.bf16 %v419
      %v452 = vunpack.c.l.bf16 %v420
      %v453 = vunpack.c.l.bf16 %v421
      %v454 = vunpack.c.l.bf16 %v422
      %v455 = vunpack.c.l.bf16 %v423
      %v456 = vunpack.c.l.bf16 %v424
      %v457 = vunpack.c.l.bf16 %v425
      %v458 = vunpack.c.l.bf16 %v426
      %v459 = vunpack.c.l.bf16 %v427
      %v460 = vunpack.c.l.bf16 %v428
      %v461 = vunpack.c.l.bf16 %v429
      %v462 = vunpack.c.l.bf16 %v430
      %v463 = vunpack.c.l.bf16 %v431
      %v464 = vunpack.c.l.bf16 %v432
      %v465 = vunpack.c.l.bf16 %v433
      %v466 = vunpack.c.l.bf16 %v434
      %v467 = vunpack.c.l.bf16 %v435
      %v468 = vunpack.c.l.bf16 %v436
      %v470 = vlaneseq
      %v471 = vshrl.u32 %v470, 7
      %v472 = vsub.s32 0, %v471
      %v473 = vrot.slane %v366, %v472
      %v475 = vmul.f32 %v437, %v473
      %v476 = vmul.f32 %v438, %v473
      %v477 = vmul.f32 %v439, %v473
      %v478 = vmul.f32 %v440, %v473
      %v479 = vmul.f32 %v441, %v473
      %v480 = vmul.f32 %v442, %v473
      %v481 = vmul.f32 %v443, %v473
      %v482 = vmul.f32 %v444, %v473
      %v483 = vmul.f32 %v445, %v473
      %v484 = vmul.f32 %v446, %v473
      %v485 = vmul.f32 %v447, %v473
      %v486 = vmul.f32 %v448, %v473
      %v487 = vmul.f32 %v449, %v473
      %v488 = vmul.f32 %v450, %v473
      %v489 = vmul.f32 %v451, %v473
      %v490 = vmul.f32 %v452, %v473
      %v491 = vmul.f32 %v453, %v473
      %v492 = vmul.f32 %v454, %v473
      %v493 = vmul.f32 %v455, %v473
      %v494 = vmul.f32 %v456, %v473
      %v495 = vmul.f32 %v457, %v473
      %v496 = vmul.f32 %v458, %v473
      %v497 = vmul.f32 %v459, %v473
      %v498 = vmul.f32 %v460, %v473
      %v499 = vmul.f32 %v461, %v473
      %v500 = vmul.f32 %v462, %v473
      %v501 = vmul.f32 %v463, %v473
      %v502 = vmul.f32 %v464, %v473
      %v503 = vmul.f32 %v465, %v473
      %v504 = vmul.f32 %v466, %v473
      %v505 = vmul.f32 %v467, %v473
      %v506 = vmul.f32 %v468, %v473
      %v508 = vlaneseq
      %v509 = vshrl.u32 %v508, 7
      %v510 = vsub.s32 0, %v509
      %v511 = vrot.slane %v368, %v510
      %v513 = vadd.f32 %v475, %v511
      %v514 = vadd.f32 %v476, %v511
      %v515 = vadd.f32 %v477, %v511
      %v516 = vadd.f32 %v478, %v511
      %v517 = vadd.f32 %v479, %v511
      %v518 = vadd.f32 %v480, %v511
      %v519 = vadd.f32 %v481, %v511
      %v520 = vadd.f32 %v482, %v511
      %v521 = vadd.f32 %v483, %v511
      %v522 = vadd.f32 %v484, %v511
      %v523 = vadd.f32 %v485, %v511
      %v524 = vadd.f32 %v486, %v511
      %v525 = vadd.f32 %v487, %v511
      %v526 = vadd.f32 %v488, %v511
      %v527 = vadd.f32 %v489, %v511
      %v528 = vadd.f32 %v490, %v511
      %v529 = vadd.f32 %v491, %v511
      %v530 = vadd.f32 %v492, %v511
      %v531 = vadd.f32 %v493, %v511
      %v532 = vadd.f32 %v494, %v511
      %v533 = vadd.f32 %v495, %v511
      %v534 = vadd.f32 %v496, %v511
      %v535 = vadd.f32 %v497, %v511
      %v536 = vadd.f32 %v498, %v511
      %v537 = vadd.f32 %v499, %v511
      %v538 = vadd.f32 %v500, %v511
      %v539 = vadd.f32 %v501, %v511
      %v540 = vadd.f32 %v502, %v511
      %v541 = vadd.f32 %v503, %v511
      %v542 = vadd.f32 %v504, %v511
      %v543 = vadd.f32 %v505, %v511
      %v544 = vadd.f32 %v506, %v511
      %v545 = vld [vmem:[%s323] sm:$0xf]
      %v546 = vld [vmem:[%s323 + $0x4] sm:$0xf]
      %v547 = vld [vmem:[%s323 + $0x8] sm:$0xf]
      %v548 = vld [vmem:[%s323 + $0xc] sm:$0xf]
      %v549 = vld [vmem:[%s323 + $0x10] sm:$0xf]
      %v550 = vld [vmem:[%s323 + $0x14] sm:$0xf]
      %v551 = vld [vmem:[%s323 + $0x18] sm:$0xf]
      %v552 = vld [vmem:[%s323 + $0x1c] sm:$0xf]
      %v553 = vld [vmem:[%s323 + $0x20] sm:$0xf]
      %v554 = vld [vmem:[%s323 + $0x24] sm:$0xf]
      %v555 = vld [vmem:[%s323 + $0x28] sm:$0xf]
      %v556 = vld [vmem:[%s323 + $0x2c] sm:$0xf]
      %v557 = vld [vmem:[%s323 + $0x30] sm:$0xf]
      %v558 = vld [vmem:[%s323 + $0x34] sm:$0xf]
      %v559 = vld [vmem:[%s323 + $0x38] sm:$0xf]
      %v560 = vld [vmem:[%s323 + $0x3c] sm:$0xf]
      %v561 = vld [vmem:[%s323 + $0x40] sm:$0xf]
      %v562 = vld [vmem:[%s323 + $0x44] sm:$0xf]
      %v563 = vld [vmem:[%s323 + $0x48] sm:$0xf]
      %v564 = vld [vmem:[%s323 + $0x4c] sm:$0xf]
      %v565 = vld [vmem:[%s323 + $0x50] sm:$0xf]
      %v566 = vld [vmem:[%s323 + $0x54] sm:$0xf]
      %v567 = vld [vmem:[%s323 + $0x58] sm:$0xf]
      %v568 = vld [vmem:[%s323 + $0x5c] sm:$0xf]
      %v569 = vld [vmem:[%s323 + $0x60] sm:$0xf]
      %v570 = vld [vmem:[%s323 + $0x64] sm:$0xf]
      %v571 = vld [vmem:[%s323 + $0x68] sm:$0xf]
      %v572 = vld [vmem:[%s323 + $0x6c] sm:$0xf]
      %v573 = vld [vmem:[%s323 + $0x70] sm:$0xf]
      %v574 = vld [vmem:[%s323 + $0x74] sm:$0xf]
      %v575 = vld [vmem:[%s323 + $0x78] sm:$0xf]
      %v576 = vld [vmem:[%s323 + $0x7c] sm:$0xf]
      %v577 = vunpack.c.l.bf16 %v545
      %v578 = vunpack.c.l.bf16 %v546
      %v579 = vunpack.c.l.bf16 %v547
      %v580 = vunpack.c.l.bf16 %v548
      %v581 = vunpack.c.l.bf16 %v549
      %v582 = vunpack.c.l.bf16 %v550
      %v583 = vunpack.c.l.bf16 %v551
      %v584 = vunpack.c.l.bf16 %v552
      %v585 = vunpack.c.l.bf16 %v553
      %v586 = vunpack.c.l.bf16 %v554
      %v587 = vunpack.c.l.bf16 %v555
      %v588 = vunpack.c.l.bf16 %v556
      %v589 = vunpack.c.l.bf16 %v557
      %v590 = vunpack.c.l.bf16 %v558
      %v591 = vunpack.c.l.bf16 %v559
      %v592 = vunpack.c.l.bf16 %v560
      %v593 = vunpack.c.l.bf16 %v561
      %v594 = vunpack.c.l.bf16 %v562
      %v595 = vunpack.c.l.bf16 %v563
      %v596 = vunpack.c.l.bf16 %v564
      %v597 = vunpack.c.l.bf16 %v565
      %v598 = vunpack.c.l.bf16 %v566
      %v599 = vunpack.c.l.bf16 %v567
      %v600 = vunpack.c.l.bf16 %v568
      %v601 = vunpack.c.l.bf16 %v569
      %v602 = vunpack.c.l.bf16 %v570
      %v603 = vunpack.c.l.bf16 %v571
      %v604 = vunpack.c.l.bf16 %v572
      %v605 = vunpack.c.l.bf16 %v573
      %v606 = vunpack.c.l.bf16 %v574
      %v607 = vunpack.c.l.bf16 %v575
      %v608 = vunpack.c.l.bf16 %v576
      %v610 = vlaneseq
      %v611 = vshrl.u32 %v610, 7
      %v612 = vsub.s32 0, %v611
      %v613 = vrot.slane %v402, %v612
      %v615 = vmul.f32 %v577, %v613
      %v616 = vmul.f32 %v578, %v613
      %v617 = vmul.f32 %v579, %v613
      %v618 = vmul.f32 %v580, %v613
      %v619 = vmul.f32 %v581, %v613
      %v620 = vmul.f32 %v582, %v613
      %v621 = vmul.f32 %v583, %v613
      %v622 = vmul.f32 %v584, %v613
      %v623 = vmul.f32 %v585, %v613
      %v624 = vmul.f32 %v586, %v613
      %v625 = vmul.f32 %v587, %v613
      %v626 = vmul.f32 %v588, %v613
      %v627 = vmul.f32 %v589, %v613
      %v628 = vmul.f32 %v590, %v613
      %v629 = vmul.f32 %v591, %v613
      %v630 = vmul.f32 %v592, %v613
      %v631 = vmul.f32 %v593, %v613
      %v632 = vmul.f32 %v594, %v613
      %v633 = vmul.f32 %v595, %v613
      %v634 = vmul.f32 %v596, %v613
      %v635 = vmul.f32 %v597, %v613
      %v636 = vmul.f32 %v598, %v613
      %v637 = vmul.f32 %v599, %v613
      %v638 = vmul.f32 %v600, %v613
      %v639 = vmul.f32 %v601, %v613
      %v640 = vmul.f32 %v602, %v613
      %v641 = vmul.f32 %v603, %v613
      %v642 = vmul.f32 %v604, %v613
      %v643 = vmul.f32 %v605, %v613
      %v644 = vmul.f32 %v606, %v613
      %v645 = vmul.f32 %v607, %v613
      %v646 = vmul.f32 %v608, %v613
      %v647 = vadd.f32 %v513, %v615
      %v648 = vadd.f32 %v514, %v616
      %v649 = vadd.f32 %v515, %v617
      %v650 = vadd.f32 %v516, %v618
      %v651 = vadd.f32 %v517, %v619
      %v652 = vadd.f32 %v518, %v620
      %v653 = vadd.f32 %v519, %v621
      %v654 = vadd.f32 %v520, %v622
      %v655 = vadd.f32 %v521, %v623
      %v656 = vadd.f32 %v522, %v624
      %v657 = vadd.f32 %v523, %v625
      %v658 = vadd.f32 %v524, %v626
      %v659 = vadd.f32 %v525, %v627
      %v660 = vadd.f32 %v526, %v628
      %v661 = vadd.f32 %v527, %v629
      %v662 = vadd.f32 %v528, %v630
      %v663 = vadd.f32 %v529, %v631
      %v664 = vadd.f32 %v530, %v632
      %v665 = vadd.f32 %v531, %v633
      %v666 = vadd.f32 %v532, %v634
      %v667 = vadd.f32 %v533, %v635
      %v668 = vadd.f32 %v534, %v636
      %v669 = vadd.f32 %v535, %v637
      %v670 = vadd.f32 %v536, %v638
      %v671 = vadd.f32 %v537, %v639
      %v672 = vadd.f32 %v538, %v640
      %v673 = vadd.f32 %v539, %v641
      %v674 = vadd.f32 %v540, %v642
      %v675 = vadd.f32 %v541, %v643
      %v676 = vadd.f32 %v542, %v644
      %v677 = vadd.f32 %v543, %v645
      %v678 = vadd.f32 %v544, %v646
      %v680 = vlaneseq
      %v681 = vshrl.u32 %v680, 7
      %v682 = vsub.s32 0, %v681
      %v683 = vrot.slane %v404, %v682
      %v685 = vadd.f32 %v647, %v683
      %v686 = vadd.f32 %v648, %v683
      %v687 = vadd.f32 %v649, %v683
      %v688 = vadd.f32 %v650, %v683
      %v689 = vadd.f32 %v651, %v683
      %v690 = vadd.f32 %v652, %v683
      %v691 = vadd.f32 %v653, %v683
      %v692 = vadd.f32 %v654, %v683
      %v693 = vadd.f32 %v655, %v683
      %v694 = vadd.f32 %v656, %v683
      %v695 = vadd.f32 %v657, %v683
      %v696 = vadd.f32 %v658, %v683
      %v697 = vadd.f32 %v659, %v683
      %v698 = vadd.f32 %v660, %v683
      %v699 = vadd.f32 %v661, %v683
      %v700 = vadd.f32 %v662, %v683
      %v701 = vadd.f32 %v663, %v683
      %v702 = vadd.f32 %v664, %v683
      %v703 = vadd.f32 %v665, %v683
      %v704 = vadd.f32 %v666, %v683
      %v705 = vadd.f32 %v667, %v683
      %v706 = vadd.f32 %v668, %v683
      %v707 = vadd.f32 %v669, %v683
      %v708 = vadd.f32 %v670, %v683
      %v709 = vadd.f32 %v671, %v683
      %v710 = vadd.f32 %v672, %v683
      %v711 = vadd.f32 %v673, %v683
      %v712 = vadd.f32 %v674, %v683
      %v713 = vadd.f32 %v675, %v683
      %v714 = vadd.f32 %v676, %v683
      %v715 = vadd.f32 %v677, %v683
      %v716 = vadd.f32 %v678, %v683
      %v717 = vmax.f32 %v685, 0.0
      %v718 = vmax.f32 %v686, 0.0
      %v719 = vmax.f32 %v687, 0.0
      %v720 = vmax.f32 %v688, 0.0
      %v721 = vmax.f32 %v689, 0.0
      %v722 = vmax.f32 %v690, 0.0
      %v723 = vmax.f32 %v691, 0.0
      %v724 = vmax.f32 %v692, 0.0
      %v725 = vmax.f32 %v693, 0.0
      %v726 = vmax.f32 %v694, 0.0
      %v727 = vmax.f32 %v695, 0.0
      %v728 = vmax.f32 %v696, 0.0
      %v729 = vmax.f32 %v697, 0.0
      %v730 = vmax.f32 %v698, 0.0
      %v731 = vmax.f32 %v699, 0.0
      %v732 = vmax.f32 %v700, 0.0
      %v733 = vmax.f32 %v701, 0.0
      %v734 = vmax.f32 %v702, 0.0
      %v735 = vmax.f32 %v703, 0.0
      %v736 = vmax.f32 %v704, 0.0
      %v737 = vmax.f32 %v705, 0.0
      %v738 = vmax.f32 %v706, 0.0
      %v739 = vmax.f32 %v707, 0.0
      %v740 = vmax.f32 %v708, 0.0
      %v741 = vmax.f32 %v709, 0.0
      %v742 = vmax.f32 %v710, 0.0
      %v743 = vmax.f32 %v711, 0.0
      %v744 = vmax.f32 %v712, 0.0
      %v745 = vmax.f32 %v713, 0.0
      %v746 = vmax.f32 %v714, 0.0
      %v747 = vmax.f32 %v715, 0.0
      %v748 = vmax.f32 %v716, 0.0
      %v749 = vpack.c.bf16 %v718, %v717
      %v750 = vpack.c.bf16 %v720, %v719
      %v751 = vpack.c.bf16 %v722, %v721
      %v752 = vpack.c.bf16 %v724, %v723
      %v753 = vpack.c.bf16 %v726, %v725
      %v754 = vpack.c.bf16 %v728, %v727
      %v755 = vpack.c.bf16 %v730, %v729
      %v756 = vpack.c.bf16 %v732, %v731
      %v757 = vpack.c.bf16 %v734, %v733
      %v758 = vpack.c.bf16 %v736, %v735
      %v759 = vpack.c.bf16 %v738, %v737
      %v760 = vpack.c.bf16 %v740, %v739
      %v761 = vpack.c.bf16 %v742, %v741
      %v762 = vpack.c.bf16 %v744, %v743
      %v763 = vpack.c.bf16 %v746, %v745
      %v764 = vpack.c.bf16 %v748, %v747
      %v781 = vunpack.c.l.b16 %v749
      %v782 = vunpack.c.h.b16 %v749
      %v783 = vunpack.c.l.b16 %v750
      %v784 = vunpack.c.h.b16 %v750
      %v785 = vunpack.c.l.b16 %v751
      %v786 = vunpack.c.h.b16 %v751
      %v787 = vunpack.c.l.b16 %v752
      %v788 = vunpack.c.h.b16 %v752
      %v789 = vunpack.c.l.b16 %v753
      %v790 = vunpack.c.h.b16 %v753
      %v791 = vunpack.c.l.b16 %v754
      %v792 = vunpack.c.h.b16 %v754
      %v793 = vunpack.c.l.b16 %v755
      %v794 = vunpack.c.h.b16 %v755
      %v795 = vunpack.c.l.b16 %v756
      %v796 = vunpack.c.h.b16 %v756
      %v797 = vunpack.c.l.b16 %v757
      %v798 = vunpack.c.h.b16 %v757
      %v799 = vunpack.c.l.b16 %v758
      %v800 = vunpack.c.h.b16 %v758
      %v801 = vunpack.c.l.b16 %v759
      %v802 = vunpack.c.h.b16 %v759
      %v803 = vunpack.c.l.b16 %v760
      %v804 = vunpack.c.h.b16 %v760
      %v805 = vunpack.c.l.b16 %v761
      %v806 = vunpack.c.h.b16 %v761
      %v807 = vunpack.c.l.b16 %v762
      %v808 = vunpack.c.h.b16 %v762
      %v809 = vunpack.c.l.b16 %v763
      %v810 = vunpack.c.h.b16 %v763
      %v811 = vunpack.c.l.b16 %v764
      %v812 = vunpack.c.h.b16 %v764
      %v813 = vpack.c.b16 %v781, %v781
      %v814 = vpack.c.b16 %v782, %v782
      %v815 = vpack.c.b16 %v783, %v783
      %v816 = vpack.c.b16 %v784, %v784
      %v817 = vpack.c.b16 %v785, %v785
      %v818 = vpack.c.b16 %v786, %v786
      %v819 = vpack.c.b16 %v787, %v787
      %v820 = vpack.c.b16 %v788, %v788
      %v821 = vpack.c.b16 %v789, %v789
      %v822 = vpack.c.b16 %v790, %v790
      %v823 = vpack.c.b16 %v791, %v791
      %v824 = vpack.c.b16 %v792, %v792
      %v825 = vpack.c.b16 %v793, %v793
      %v826 = vpack.c.b16 %v794, %v794
      %v827 = vpack.c.b16 %v795, %v795
      %v828 = vpack.c.b16 %v796, %v796
      %v829 = vpack.c.b16 %v797, %v797
      %v830 = vpack.c.b16 %v798, %v798
      %v831 = vpack.c.b16 %v799, %v799
      %v832 = vpack.c.b16 %v800, %v800
      %v833 = vpack.c.b16 %v801, %v801
      %v834 = vpack.c.b16 %v802, %v802
      %v835 = vpack.c.b16 %v803, %v803
      %v836 = vpack.c.b16 %v804, %v804
      %v837 = vpack.c.b16 %v805, %v805
      %v838 = vpack.c.b16 %v806, %v806
      %v839 = vpack.c.b16 %v807, %v807
      %v840 = vpack.c.b16 %v808, %v808
      %v841 = vpack.c.b16 %v809, %v809
      %v842 = vpack.c.b16 %v810, %v810
      %v843 = vpack.c.b16 %v811, %v811
      %v844 = vpack.c.b16 %v812, %v812
      %877 = vst [vmem:[%s329] sm:$0xf] %v813
      %878 = vst [vmem:[%s329 + $0x4] sm:$0xf] %v814
      %879 = vst [vmem:[%s329 + $0x8] sm:$0xf] %v815
      %880 = vst [vmem:[%s329 + $0xc] sm:$0xf] %v816
      %881 = vst [vmem:[%s329 + $0x10] sm:$0xf] %v817
      %882 = vst [vmem:[%s329 + $0x14] sm:$0xf] %v818
      %883 = vst [vmem:[%s329 + $0x18] sm:$0xf] %v819
      %884 = vst [vmem:[%s329 + $0x1c] sm:$0xf] %v820
      %885 = vst [vmem:[%s329 + $0x20] sm:$0xf] %v821
      %886 = vst [vmem:[%s329 + $0x24] sm:$0xf] %v822
      %887 = vst [vmem:[%s329 + $0x28] sm:$0xf] %v823
      %888 = vst [vmem:[%s329 + $0x2c] sm:$0xf] %v824
      %889 = vst [vmem:[%s329 + $0x30] sm:$0xf] %v825
      %890 = vst [vmem:[%s329 + $0x34] sm:$0xf] %v826
      %891 = vst [vmem:[%s329 + $0x38] sm:$0xf] %v827
      %892 = vst [vmem:[%s329 + $0x3c] sm:$0xf] %v828
      %893 = vst [vmem:[%s329 + $0x40] sm:$0xf] %v829
      %894 = vst [vmem:[%s329 + $0x44] sm:$0xf] %v830
      %895 = vst [vmem:[%s329 + $0x48] sm:$0xf] %v831
      %896 = vst [vmem:[%s329 + $0x4c] sm:$0xf] %v832
      %897 = vst [vmem:[%s329 + $0x50] sm:$0xf] %v833
      %898 = vst [vmem:[%s329 + $0x54] sm:$0xf] %v834
      %899 = vst [vmem:[%s329 + $0x58] sm:$0xf] %v835
      %900 = vst [vmem:[%s329 + $0x5c] sm:$0xf] %v836
      %901 = vst [vmem:[%s329 + $0x60] sm:$0xf] %v837
      %902 = vst [vmem:[%s329 + $0x64] sm:$0xf] %v838
      %903 = vst [vmem:[%s329 + $0x68] sm:$0xf] %v839
      %904 = vst [vmem:[%s329 + $0x6c] sm:$0xf] %v840
      %905 = vst [vmem:[%s329 + $0x70] sm:$0xf] %v841
      %906 = vst [vmem:[%s329 + $0x74] sm:$0xf] %v842
      %907 = vst [vmem:[%s329 + $0x78] sm:$0xf] %v843
      %908 = vst [vmem:[%s329 + $0x7c] sm:$0xf] %v844
      %s909 = smul.u32 32, %s19
      %p910 = scmp.lt.s32.totalorder %s909, 63
      %s911 = scalar_select %p910, %s909, 63
      %s912 = smul.addr %s911, 4
      %s913 = scalar_lea.vmem %s8, %s912
      // Predicated region
      $region53: #{bottleneck_forward.7} parent=51 // pred_check
        %p914 = pneg %p215
      $region54: #{bottleneck_forward.7} parent=51 // pred_check_branch
        %916 = sbr.rel (%p914) target = $region56
      $region55: #{bottleneck_forward.7} parent=51 // pred_region
        %s917 = smul.u32 32, %s19
      $region56: #{bottleneck_forward.7} parent=51 // pred_fallthru
        _
    $region52: #{bottleneck_forward.7} parent=5 // pred_fallthru
      _
    %p918 = scmp.le.s32.totalorder 2, %s14
    // Predicated region
    $region57: #{bottleneck_forward.7} parent=5 // pred_check
      %p919 = pneg %p918
    $region58: #{bottleneck_forward.7} parent=5 // pred_check_branch
      %921 = sbr.rel (%p919) target = $region60
    $region59: #{bottleneck_forward.7} parent=5 // pred_region
      %s922 = ssub.s32 %s14, 2
      // Predicated region
      $region61: #{bottleneck_forward.7} parent=59 // pred_check
        %p923 = pneg %p221
      $region62: #{bottleneck_forward.7} parent=59 // pred_check_branch
        %925 = sbr.rel (%p923) target = $region64
      $region63: #{bottleneck_forward.7} parent=59 // pred_region
        %s926 = smul.u32 32, %s20
        %p927 = scmp.lt.s32.totalorder %s926, 63
        %s928 = scalar_select %p927, %s926, 63
        %s929 = smul.addr %s928, 4
        %s930 = scalar_lea.vmem %s8, %s929
      $region64: #{bottleneck_forward.7} parent=59 // pred_fallthru
        _
    $region60: #{bottleneck_forward.7} parent=5 // pred_fallthru
      _
  $region6: #{bottleneck_forward.7} parent=0 // loop_footer
    %s18 = sadd.s32 1, %s14
  $region7: #{bottleneck_forward.7} parent=0 // loop_footer_branch
    %13 = sbr.rel target = $region3
  $region8: #{bottleneck_forward.7} parent=0 // loop_exit
    _

// kernel: bottleneck_forward.6
$region0: #{bottleneck_forward.6}
  #allocation0 [shape = 'u32[]', space=smem, size = 0x4, offset = 0x4, fixed_abs, tag = 'smem constant byte address 0x4 - core index']
  #allocation1 [shape = 'u32[144,128]{1,0:T(1,128)}', space=vmem, size = 0x12000, scoped, tag = 'internal scratch']
  %s0 = inlined_call_operand.vmem [shape: bf16[512,128], index: 0, kind: input, shape index: {}]
  %s1 = inlined_call_operand.vmem [shape: f32[2,2,128], index: 1, kind: input, shape index: {}]
  %s2 = inlined_call_operand.vmem [shape: f32[1,128], index: 2, kind: input, shape index: {}]
  %s3 = inlined_call_operand.vmem [shape: f32[1,128], index: 3, kind: input, shape index: {}]
  %s4 = inlined_call_operand.vmem [shape: bf16[128,128], index: 4, kind: input, shape index: {}]
  %s5 = inlined_call_operand.vmem [shape: bf16[512,128], index: 5, kind: input, shape index: {}]
  %s6 = inlined_call_operand.vmem [shape: bf16[128,128], index: 6, kind: input, shape index: {}]
  %s7 = inlined_call_operand.vmem [shape: bf16[512,128], index: 7, kind: output, shape index: {0}]
  %s8 = inlined_call_operand.vmem [shape: bf16[512,128], index: 8, kind: output, shape index: {1}]
  %s9 = inlined_call_operand.vmem [shape: f32[2,2,128], index: 9, kind: output, shape index: {2}]
  %s10 = inlined_call_operand.vmem [shape: f32[2,2,128], index: 10, kind: output, shape index: {3}]
  %11 = xla_tuple %s7, %s8, %s9, %s10
  %s12 = sld [smem:[#allocation0]]
  $region85: #{bottleneck_forward.6} parent=0
    _
  %s14 = ssub.s32 1, %s12
  %s15 = scalar_select 0, %s14, %s12
  loop: start=0, step=1, limit=4
  $region2: #{bottleneck_forward.6} parent=0 // loop_pre_header
    _
  $region3: #{bottleneck_forward.6} parent=0 // loop_header
    %s17 = sphi 0, %s21
    %p18 = scmp.ge.s32.totalorder %s17, 4
    %s27 = sphi 0, %s29
    %s30 = sphi 0, %s27
    %s31 = sphi 0, %s30
    %s47 = sphi 0, %s31
    %s51 = sphi 0, %s51
    %s53 = sphi 0, %s51
    %s54 = sphi 0, %s53
    %s68 = sphi 0, %s54
    %s72 = sphi 0, %s72
    %s74 = sphi 0, %s72
    %s75 = sphi 0, %s74
    %s89 = sphi 0, %s75
    %s93 = sphi 0, %s93
    %s95 = sphi 0, %s93
    %s96 = sphi 0, %s95
    %s110 = sphi 0, %s96
    %s114 = sphi 0, %s114
    %s116 = sphi 0, %s114
    %s117 = sphi 0, %s116
    %s131 = sphi 0, %s117
    %s137 = sphi 0, %s139
    %s140 = sphi 0, %s137
    %s141 = sphi 0, %s140
    %s157 = sphi 0, %s141
    %s161 = sphi 0, %s161
    %s163 = sphi 0, %s161
    %s164 = sphi 0, %s163
    %s178 = sphi 0, %s164
    %s184 = sphi 0, %s186
    %s187 = sphi 0, %s184
    %s188 = sphi 0, %s187
    %s204 = sphi 0, %s188
    %s210 = sphi 0, %s212
    %s213 = sphi 0, %s210
    %s214 = sphi 0, %s213
    %s230 = sphi 0, %s214
    %s236 = sphi 0, %s238
    %s239 = sphi 0, %s236
    %s240 = sphi 0, %s239
    %s256 = sphi 0, %s240
    %s262 = sphi 0, %s264
    %s265 = sphi 0, %s262
    %s266 = sphi 0, %s265
    %s282 = sphi 0, %s266
  $region4: #{bottleneck_forward.6} parent=0 // loop_header_branch
    %20 = sbr.rel (%p18) target = $region8
  $region5: #{bottleneck_forward.6} parent=0 // loop_body
    %s22 = ssub.s32 %s17, 1
    %s23 = ssub.s32 %s17, 2
    %s24 = sadd.s32 %s17, 1
    %s25 = ssub.s32 %s17, %s24
    %p26 = scmp.eq.s32.totalorder %s25, 0
    %s28 = sadd.s32 %s27, 1
    %s29 = scalar_select %p26, %s27, %s28
    %p32 = pneg %p26
    %p33 = scmp.eq.s32.totalorder %s17, 1
    %p34 = por %p32, %p33
    %p35 = scmp.ne.s32.totalorder %s27, %s30
    %p36 = scmp.eq.s32.totalorder %s17, 0
    %p37 = por %p35, %p36
    %p38 = scmp.ne.s32.totalorder %s27, %s30
    %p39 = scmp.eq.s32.totalorder %s22, 1
    %p40 = por %p38, %p39
    %p41 = scmp.ne.s32.totalorder %s30, %s31
    %p42 = scmp.eq.s32.totalorder %s22, 0
    %p43 = por %p41, %p42
    %p44 = scmp.ne.s32.totalorder %s30, %s31
    %p45 = scmp.eq.s32.totalorder %s23, 1
    %p46 = por %p44, %p45
    %p48 = scmp.ne.s32.totalorder %s31, %s47
    %p49 = scmp.eq.s32.totalorder %s23, 0
    %p50 = por %p48, %p49
    %s52 = sadd.s32 %s51, 1
    %p55 = scmp.eq.s32.totalorder %s17, 1
    %p56 = scmp.ne.s32.totalorder %s51, %s53
    %p57 = scmp.eq.s32.totalorder %s17, 0
    %p58 = por %p56, %p57
    %p59 = scmp.ne.s32.totalorder %s51, %s53
    %p60 = scmp.eq.s32.totalorder %s22, 1
    %p61 = por %p59, %p60
    %p62 = scmp.ne.s32.totalorder %s53, %s54
    %p63 = scmp.eq.s32.totalorder %s22, 0
    %p64 = por %p62, %p63
    %p65 = scmp.ne.s32.totalorder %s53, %s54
    %p66 = scmp.eq.s32.totalorder %s23, 1
    %p67 = por %p65, %p66
    %p69 = scmp.ne.s32.totalorder %s54, %s68
    %p70 = scmp.eq.s32.totalorder %s23, 0
    %p71 = por %p69, %p70
    %s73 = sadd.s32 %s72, 1
    %p76 = scmp.eq.s32.totalorder %s17, 1
    %p77 = scmp.ne.s32.totalorder %s72, %s74
    %p78 = scmp.eq.s32.totalorder %s17, 0
    %p79 = por %p77, %p78
    %p80 = scmp.ne.s32.totalorder %s72, %s74
    %p81 = scmp.eq.s32.totalorder %s22, 1
    %p82 = por %p80, %p81
    %p83 = scmp.ne.s32.totalorder %s74, %s75
    %p84 = scmp.eq.s32.totalorder %s22, 0
    %p85 = por %p83, %p84
    %p86 = scmp.ne.s32.totalorder %s74, %s75
    %p87 = scmp.eq.s32.totalorder %s23, 1
    %p88 = por %p86, %p87
    %p90 = scmp.ne.s32.totalorder %s75, %s89
    %p91 = scmp.eq.s32.totalorder %s23, 0
    %p92 = por %p90, %p91
    %s94 = sadd.s32 %s93, 1
    %p97 = scmp.eq.s32.totalorder %s17, 1
    %p98 = scmp.ne.s32.totalorder %s93, %s95
    %p99 = scmp.eq.s32.totalorder %s17, 0
    %p100 = por %p98, %p99
    %p101 = scmp.ne.s32.totalorder %s93, %s95
    %p102 = scmp.eq.s32.totalorder %s22, 1
    %p103 = por %p101, %p102
    %p104 = scmp.ne.s32.totalorder %s95, %s96
    %p105 = scmp.eq.s32.totalorder %s22, 0
    %p106 = por %p104, %p105
    %p107 = scmp.ne.s32.totalorder %s95, %s96
    %p108 = scmp.eq.s32.totalorder %s23, 1
    %p109 = por %p107, %p108
    %p111 = scmp.ne.s32.totalorder %s96, %s110
    %p112 = scmp.eq.s32.totalorder %s23, 0
    %p113 = por %p111, %p112
    %s115 = sadd.s32 %s114, 1
    %p118 = scmp.eq.s32.totalorder %s17, 1
    %p119 = scmp.ne.s32.totalorder %s114, %s116
    %p120 = scmp.eq.s32.totalorder %s17, 0
    %p121 = por %p119, %p120
    %p122 = scmp.ne.s32.totalorder %s114, %s116
    %p123 = scmp.eq.s32.totalorder %s22, 1
    %p124 = por %p122, %p123
    %p125 = scmp.ne.s32.totalorder %s116, %s117
    %p126 = scmp.eq.s32.totalorder %s22, 0
    %p127 = por %p125, %p126
    %p128 = scmp.ne.s32.totalorder %s116, %s117
    %p129 = scmp.eq.s32.totalorder %s23, 1
    %p130 = por %p128, %p129
    %p132 = scmp.ne.s32.totalorder %s117, %s131
    %p133 = scmp.eq.s32.totalorder %s23, 0
    %p134 = por %p132, %p133
    %s135 = ssub.s32 %s17, %s24
    %p136 = scmp.eq.s32.totalorder %s135, 0
    %s138 = sadd.s32 %s137, 1
    %s139 = scalar_select %p136, %s137, %s138
    %p142 = pneg %p136
    %p143 = scmp.eq.s32.totalorder %s17, 1
    %p144 = por %p142, %p143
    %p145 = scmp.ne.s32.totalorder %s137, %s140
    %p146 = scmp.eq.s32.totalorder %s17, 0
    %p147 = por %p145, %p146
    %p148 = scmp.ne.s32.totalorder %s137, %s140
    %p149 = scmp.eq.s32.totalorder %s22, 1
    %p150 = por %p148, %p149
    %p151 = scmp.ne.s32.totalorder %s140, %s141
    %p152 = scmp.eq.s32.totalorder %s22, 0
    %p153 = por %p151, %p152
    %p154 = scmp.ne.s32.totalorder %s140, %s141
    %p155 = scmp.eq.s32.totalorder %s23, 1
    %p156 = por %p154, %p155
    %p158 = scmp.ne.s32.totalorder %s141, %s157
    %p159 = scmp.eq.s32.totalorder %s23, 0
    %p160 = por %p158, %p159
    %s162 = sadd.s32 %s161, 1
    %p165 = scmp.eq.s32.totalorder %s17, 1
    %p166 = scmp.ne.s32.totalorder %s161, %s163
    %p167 = scmp.eq.s32.totalorder %s17, 0
    %p168 = por %p166, %p167
    %p169 = scmp.ne.s32.totalorder %s161, %s163
    %p170 = scmp.eq.s32.totalorder %s22, 1
    %p171 = por %p169, %p170
    %p172 = scmp.ne.s32.totalorder %s163, %s164
    %p173 = scmp.eq.s32.totalorder %s22, 0
    %p174 = por %p172, %p173
    %p175 = scmp.ne.s32.totalorder %s163, %s164
    %p176 = scmp.eq.s32.totalorder %s23, 1
    %p177 = por %p175, %p176
    %p179 = scmp.ne.s32.totalorder %s164, %s178
    %p180 = scmp.eq.s32.totalorder %s23, 0
    %p181 = por %p179, %p180
    %s182 = ssub.s32 %s17, %s24
    %p183 = scmp.eq.s32.totalorder %s182, 0
    %s185 = sadd.s32 %s184, 1
    %s186 = scalar_select %p183, %s184, %s185
    %p189 = pneg %p183
    %p190 = scmp.eq.s32.totalorder %s17, 1
    %p191 = por %p189, %p190
    %p192 = scmp.ne.s32.totalorder %s184, %s187
    %p193 = scmp.eq.s32.totalorder %s17, 0
    %p194 = por %p192, %p193
    %p195 = scmp.ne.s32.totalorder %s184, %s187
    %p196 = scmp.eq.s32.totalorder %s22, 1
    %p197 = por %p195, %p196
    %p198 = scmp.ne.s32.totalorder %s187, %s188
    %p199 = scmp.eq.s32.totalorder %s22, 0
    %p200 = por %p198, %p199
    %p201 = scmp.ne.s32.totalorder %s187, %s188
    %p202 = scmp.eq.s32.totalorder %s23, 1
    %p203 = por %p201, %p202
    %p205 = scmp.ne.s32.totalorder %s188, %s204
    %p206 = scmp.eq.s32.totalorder %s23, 0
    %p207 = por %p205, %p206
    %s208 = ssub.s32 %s17, %s24
    %p209 = scmp.eq.s32.totalorder %s208, 0
    %s211 = sadd.s32 %s210, 1
    %s212 = scalar_select %p209, %s210, %s211
    %p215 = pneg %p209
    %p216 = scmp.eq.s32.totalorder %s17, 1
    %p217 = por %p215, %p216
    %p218 = scmp.ne.s32.totalorder %s210, %s213
    %p219 = scmp.eq.s32.totalorder %s17, 0
    %p220 = por %p218, %p219
    %p221 = scmp.ne.s32.totalorder %s210, %s213
    %p222 = scmp.eq.s32.totalorder %s22, 1
    %p223 = por %p221, %p222
    %p224 = scmp.ne.s32.totalorder %s213, %s214
    %p225 = scmp.eq.s32.totalorder %s22, 0
    %p226 = por %p224, %p225
    %p227 = scmp.ne.s32.totalorder %s213, %s214
    %p228 = scmp.eq.s32.totalorder %s23, 1
    %p229 = por %p227, %p228
    %p231 = scmp.ne.s32.totalorder %s214, %s230
    %p232 = scmp.eq.s32.totalorder %s23, 0
    %p233 = por %p231, %p232
    %s234 = ssub.s32 %s17, %s24
    %p235 = scmp.eq.s32.totalorder %s234, 0
    %s237 = sadd.s32 %s236, 1
    %s238 = scalar_select %p235, %s236, %s237
    %p241 = pneg %p235
    %p242 = scmp.eq.s32.totalorder %s17, 1
    %p243 = por %p241, %p242
    %p244 = scmp.ne.s32.totalorder %s236, %s239
    %p245 = scmp.eq.s32.totalorder %s17, 0
    %p246 = por %p244, %p245
    %p247 = scmp.ne.s32.totalorder %s236, %s239
    %p248 = scmp.eq.s32.totalorder %s22, 1
    %p249 = por %p247, %p248
    %p250 = scmp.ne.s32.totalorder %s239, %s240
    %p251 = scmp.eq.s32.totalorder %s22, 0
    %p252 = por %p250, %p251
    %p253 = scmp.ne.s32.totalorder %s239, %s240
    %p254 = scmp.eq.s32.totalorder %s23, 1
    %p255 = por %p253, %p254
    %p257 = scmp.ne.s32.totalorder %s240, %s256
    %p258 = scmp.eq.s32.totalorder %s23, 0
    %p259 = por %p257, %p258
    %s260 = ssub.s32 %s17, %s24
    %p261 = scmp.eq.s32.totalorder %s260, 0
    %s263 = sadd.s32 %s262, 1
    %s264 = scalar_select %p261, %s262, %s263
    %p267 = pneg %p261
    %p268 = scmp.eq.s32.totalorder %s17, 1
    %p269 = por %p267, %p268
    %p270 = scmp.ne.s32.totalorder %s262, %s265
    %p271 = scmp.eq.s32.totalorder %s17, 0
    %p272 = por %p270, %p271
    %p273 = scmp.ne.s32.totalorder %s262, %s265
    %p274 = scmp.eq.s32.totalorder %s22, 1
    %p275 = por %p273, %p274
    %p276 = scmp.ne.s32.totalorder %s265, %s266
    %p277 = scmp.eq.s32.totalorder %s22, 0
    %p278 = por %p276, %p277
    %p279 = scmp.ne.s32.totalorder %s265, %s266
    %p280 = scmp.eq.s32.totalorder %s23, 1
    %p281 = por %p279, %p280
    %p283 = scmp.ne.s32.totalorder %s266, %s282
    %p284 = scmp.eq.s32.totalorder %s23, 0
    %p285 = por %p283, %p284
    %p286 = scmp.le.s32.totalorder 1, %s17
    %p287 = scmp.lt.s32.totalorder %s17, 3
    %p288 = pnand %p286, %p287
    %p289 = pneg %p288
    // Predicated region
    $region9: #{bottleneck_forward.6} parent=5 // pred_check
      _
    $region10: #{bottleneck_forward.6} parent=5 // pred_check_branch
      %291 = sbr.rel (%p288) target = $region12
    $region11: #{bottleneck_forward.6} parent=5 // pred_region
      %s292 = ssub.s32 %s17, 1
      // Predicated region
      $region13: #{bottleneck_forward.6} parent=11 // pred_check
        %p293 = pneg %p64
      $region14: #{bottleneck_forward.6} parent=11 // pred_check_branch
        %295 = sbr.rel (%p293) target = $region16
      $region15: #{bottleneck_forward.6} parent=11 // pred_region
        _
      $region16: #{bottleneck_forward.6} parent=11 // pred_fallthru
        _
      // Predicated region
      $region17: #{bottleneck_forward.6} parent=11 // pred_check
        %p296 = pneg %p85
      $region18: #{bottleneck_forward.6} parent=11 // pred_check_branch
        %298 = sbr.rel (%p296) target = $region20
      $region19: #{bottleneck_forward.6} parent=11 // pred_region
        _
      $region20: #{bottleneck_forward.6} parent=11 // pred_fallthru
        _
      // Predicated region
      $region21: #{bottleneck_forward.6} parent=11 // pred_check
        %p299 = pneg %p106
      $region22: #{bottleneck_forward.6} parent=11 // pred_check_branch
        %301 = sbr.rel (%p299) target = $region24
      $region23: #{bottleneck_forward.6} parent=11 // pred_region
        _
      $region24: #{bottleneck_forward.6} parent=11 // pred_fallthru
        _
      // Predicated region
      $region25: #{bottleneck_forward.6} parent=11 // pred_check
        %p302 = pneg %p127
      $region26: #{bottleneck_forward.6} parent=11 // pred_check_branch
        %304 = sbr.rel (%p302) target = $region28
      $region27: #{bottleneck_forward.6} parent=11 // pred_region
        _
      $region28: #{bottleneck_forward.6} parent=11 // pred_fallthru
        _
      // Predicated region
      $region29: #{bottleneck_forward.6} parent=11 // pred_check
        %p305 = pneg %p174
      $region30: #{bottleneck_forward.6} parent=11 // pred_check_branch
        %307 = sbr.rel (%p305) target = $region32
      $region31: #{bottleneck_forward.6} parent=11 // pred_region
        _
      $region32: #{bottleneck_forward.6} parent=11 // pred_fallthru
        _
    $region12: #{bottleneck_forward.6} parent=5 // pred_fallthru
      _
    %p308 = scmp.lt.s32.totalorder %s17, 2
    // Predicated region
    $region33: #{bottleneck_forward.6} parent=5 // pred_check
      %p309 = pneg %p308
    $region34: #{bottleneck_forward.6} parent=5 // pred_check_branch
      %311 = sbr.rel (%p309) target = $region36
    $region35: #{bottleneck_forward.6} parent=5 // pred_region
      // Predicated region
      $region37: #{bottleneck_forward.6} parent=35 // pred_check
        %p312 = pneg %p37
      $region38: #{bottleneck_forward.6} parent=35 // pred_check_branch
        %314 = sbr.rel (%p312) target = $region40
      $region39: #{bottleneck_forward.6} parent=35 // pred_region
        %s315 = smul.u32 32, %s17
        %p316 = scmp.lt.s32.totalorder %s315, 63
        %s317 = scalar_select %p316, %s315, 63
        %s318 = smul.addr %s317, 4
        %s319 = scalar_lea.vmem %s0, %s318
        %s320 = smul.u32 32, %s17
      $region40: #{bottleneck_forward.6} parent=35 // pred_fallthru
        _
      // Predicated region
      $region41: #{bottleneck_forward.6} parent=35 // pred_check
        %p321 = pneg %p147
      $region42: #{bottleneck_forward.6} parent=35 // pred_check_branch
        %323 = sbr.rel (%p321) target = $region44
      $region43: #{bottleneck_forward.6} parent=35 // pred_region
        %s324 = smul.u32 32, %s17
        %p325 = scmp.lt.s32.totalorder %s324, 63
        %s326 = scalar_select %p325, %s324, 63
        %s327 = smul.addr %s326, 4
        %s328 = scalar_lea.vmem %s5, %s327
        %s329 = smul.u32 32, %s17
      $region44: #{bottleneck_forward.6} parent=35 // pred_fallthru
        _
    $region36: #{bottleneck_forward.6} parent=5 // pred_fallthru
      _
    %p330 = scmp.le.s32.totalorder 1, %s17
    %p331 = scmp.lt.s32.totalorder %s17, 3
    %p332 = pnand %p330, %p331
    %p333 = pneg %p332
    // Predicated region
    $region45: #{bottleneck_forward.6} parent=5 // pred_check
      _
    $region46: #{bottleneck_forward.6} parent=5 // pred_check_branch
      %335 = sbr.rel (%p332) target = $region48
    $region47: #{bottleneck_forward.6} parent=5 // pred_region
      %s336 = ssub.s32 %s17, 1
      %s337 = smul.u32 32, %s22
      %p338 = scmp.lt.s32.totalorder %s337, 63
      %s339 = scalar_select %p338, %s337, 63
      %s340 = smul.addr %s339, 4
      %s341 = scalar_lea.vmem %s0, %s340
      %p342 = pneg %p43
      %p343 = pneg %p40
      %p344 = pneg %p64
      %p345 = pneg %p61
      %p346 = pneg %p85
      %p347 = pneg %p82
      %p348 = pneg %p106
      %p349 = pneg %p103
      %p350 = pneg %p127
      %p351 = pneg %p124
      %s352 = smul.u32 32, %s22
      %p353 = scmp.lt.s32.totalorder %s352, 63
      %s354 = scalar_select %p353, %s352, 63
      %s355 = smul.addr %s354, 4
      %s356 = scalar_lea.vmem %s5, %s355
      %p357 = pneg %p153
      %p358 = pneg %p150
      %p359 = pneg %p174
      %p360 = pneg %p171
      %p361 = pneg %p200
      %p362 = pneg %p197
      %s363 = smul.u32 32, %s22
      %p364 = scmp.lt.s32.totalorder %s363, 63
      %s365 = scalar_select %p364, %s363, 63
      %s366 = smul.addr %s365, 4
      %s367 = scalar_lea.vmem %s7, %s366
      %p368 = pneg %p226
      %p369 = pneg %p223
      %s370 = smul.u32 32, %s22
      %p371 = scmp.lt.s32.totalorder %s370, 63
      %s372 = scalar_select %p371, %s370, 63
      %s373 = smul.addr %s372, 4
      %s374 = scalar_lea.vmem %s8, %s373
      %p375 = pneg %p252
      %p376 = pneg %p249
      %p377 = scmp.lt.s32.totalorder %s22, 1
      %s378 = scalar_select %p377, %s22, 1
      %s379 = smul.addr %s378, 2
      %s380 = scalar_lea.vmem %s9, %s379
      %p381 = pneg %p278
      %p382 = pneg %p275
      %p383 = scmp.lt.s32.totalorder %s22, 1
      %s384 = scalar_select %p383, %s22, 1
      %s385 = smul.addr %s384, 2
      %s386 = scalar_lea.vmem %s10, %s385
      %s387 = smul.u32 32, %s22
      %p388 = scmp.lt.s32.totalorder %s387, 63
      %s389 = scalar_select %p388, %s387, 63
      %s390 = smul.addr %s389, 4
      %s391 = scalar_lea.vmem %s0, %s390
      %s392 = smul.u32 32, %s22
      %s393 = smul.u32 32, %s22
      %p394 = scmp.lt.s32.totalorder %s393, 63
      %s395 = scalar_select %p394, %s393, 63
      %s396 = smul.addr %s395, 4
      %s397 = scalar_lea.vmem %s5, %s396
      %s398 = smul.u32 32, %s22
      %s399 = smul.u32 32, %s22
      %p400 = scmp.lt.s32.totalorder %s399, 63
      %s401 = scalar_select %p400, %s399, 63
      %s402 = smul.addr %s401, 4
      %s403 = scalar_lea.vmem %s7, %s402
      %s404 = smul.u32 32, %s22
      %s405 = smul.u32 32, %s22
      %p406 = scmp.lt.s32.totalorder %s405, 63
      %s407 = scalar_select %p406, %s405, 63
      %s408 = smul.addr %s407, 4
      %s409 = scalar_lea.vmem %s8, %s408
      %s410 = smul.u32 32, %s22
      %p411 = scmp.lt.s32.totalorder %s22, 1
      %s412 = scalar_select %p411, %s22, 1
      %s413 = smul.addr %s412, 2
      %s414 = scalar_lea.vmem %s9, %s413
      %p415 = scmp.lt.s32.totalorder %s22, 1
      %s416 = scalar_select %p415, %s22, 1
      %s417 = smul.addr %s416, 2
      %s418 = scalar_lea.vmem %s10, %s417
      %v420 = vld [vmem:[%s1] sm:$0x3]
      %v421 = vld [vmem:[%s1 + $0x2] sm:$0x3]
      %v422 = vld [vmem:[%s2] sm:$0x1]
      %v423 = vld [vmem:[%s3] sm:$0x1]
      %vm424 = vcmask 1041408
      %v425 = vsel %vm424, %v420, 0.0
      %v426 = vsel %vm424, %v421, 0.0
      %v427 = vadd.f32 %v425, %v426
      %v428 = vrcp.pop 512.0
      %v429 = vmul.f32 %v427, %v428
      %v430 = vmul.f32 %v429, %v429
      %v432 = vrot.slane %v430, 7
      %v434 = vsub.f32 %v429, %v432
      %v435 = vmax.f32 %v434, 0.0
      %v436 = vadd.f32 %v435, 1e-05
      %v437 = vrsqrt.pop %v436
      %v440 = vunpack.c.l.s4 1966171168
      %v441 = vunpack.c.0.s8 %v440
      %v442 = vlaneseq
      %v443 = vshrl.u32 %v442, 7
      %v444 = vsub.s32 %v441, %v443
      %v445 = vrot.slane %v437, %v444
      %v446 = vcombine.high %v445, %v445
      %v448 = vunpack.c.l.s4 1966171168
      %v449 = vunpack.c.0.s8 %v448
      %v450 = vlaneseq
      %v451 = vshrl.u32 %v450, 7
      %v452 = vsub.s32 %v449, %v451
      %v453 = vrot.slane %v446, %v452
      %v455 = vmul.f32 %v422, %v453
      %v456 = vmul.f32 %v429, %v455
      %v457 = vsub.f32 %v423, %v456
      %v458 = vld [vmem:[%s391] sm:$0xf]
      %v459 = vld [vmem:[%s391 + $0x4] sm:$0xf]
      %v460 = vld [vmem:[%s391 + $0x8] sm:$0xf]
      %v461 = vld [vmem:[%s391 + $0xc] sm:$0xf]
      %v462 = vld [vmem:[%s391 + $0x10] sm:$0xf]
      %v463 = vld [vmem:[%s391 + $0x14] sm:$0xf]
      %v464 = vld [vmem:[%s391 + $0x18] sm:$0xf]
      %v465 = vld [vmem:[%s391 + $0x1c] sm:$0xf]
      %v466 = vld [vmem:[%s391 + $0x20] sm:$0xf]
      %v467 = vld [vmem:[%s391 + $0x24] sm:$0xf]
      %v468 = vld [vmem:[%s391 + $0x28] sm:$0xf]
      %v469 = vld [vmem:[%s391 + $0x2c] sm:$0xf]
      %v470 = vld [vmem:[%s391 + $0x30] sm:$0xf]
      %v471 = vld [vmem:[%s391 + $0x34] sm:$0xf]
      %v472 = vld [vmem:[%s391 + $0x38] sm:$0xf]
      %v473 = vld [vmem:[%s391 + $0x3c] sm:$0xf]
      %v474 = vld [vmem:[%s391 + $0x40] sm:$0xf]
      %v475 = vld [vmem:[%s391 + $0x44] sm:$0xf]
      %v476 = vld [vmem:[%s391 + $0x48] sm:$0xf]
      %v477 = vld [vmem:[%s391 + $0x4c] sm:$0xf]
      %v478 = vld [vmem:[%s391 + $0x50] sm:$0xf]
      %v479 = vld [vmem:[%s391 + $0x54] sm:$0xf]
      %v480 = vld [vmem:[%s391 + $0x58] sm:$0xf]
      %v481 = vld [vmem:[%s391 + $0x5c] sm:$0xf]
      %v482 = vld [vmem:[%s391 + $0x60] sm:$0xf]
      %v483 = vld [vmem:[%s391 + $0x64] sm:$0xf]
      %v484 = vld [vmem:[%s391 + $0x68] sm:$0xf]
      %v485 = vld [vmem:[%s391 + $0x6c] sm:$0xf]
      %v486 = vld [vmem:[%s391 + $0x70] sm:$0xf]
      %v487 = vld [vmem:[%s391 + $0x74] sm:$0xf]
      %v488 = vld [vmem:[%s391 + $0x78] sm:$0xf]
      %v489 = vld [vmem:[%s391 + $0x7c] sm:$0xf]
      %v490 = vunpack.c.l.bf16 %v458
      %v491 = vunpack.c.l.bf16 %v459
      %v492 = vunpack.c.l.bf16 %v460
      %v493 = vunpack.c.l.bf16 %v461
      %v494 = vunpack.c.l.bf16 %v462
      %v495 = vunpack.c.l.bf16 %v463
      %v496 = vunpack.c.l.bf16 %v464
      %v497 = vunpack.c.l.bf16 %v465
      %v498 = vunpack.c.l.bf16 %v466
      %v499 = vunpack.c.l.bf16 %v467
      %v500 = vunpack.c.l.bf16 %v468
      %v501 = vunpack.c.l.bf16 %v469
      %v502 = vunpack.c.l.bf16 %v470
      %v503 = vunpack.c.l.bf16 %v471
      %v504 = vunpack.c.l.bf16 %v472
      %v505 = vunpack.c.l.bf16 %v473
      %v506 = vunpack.c.l.bf16 %v474
      %v507 = vunpack.c.l.bf16 %v475
      %v508 = vunpack.c.l.bf16 %v476
      %v509 = vunpack.c.l.bf16 %v477
      %v510 = vunpack.c.l.bf16 %v478
      %v511 = vunpack.c.l.bf16 %v479
      %v512 = vunpack.c.l.bf16 %v480
      %v513 = vunpack.c.l.bf16 %v481
      %v514 = vunpack.c.l.bf16 %v482
      %v515 = vunpack.c.l.bf16 %v483
      %v516 = vunpack.c.l.bf16 %v484
      %v517 = vunpack.c.l.bf16 %v485
      %v518 = vunpack.c.l.bf16 %v486
      %v519 = vunpack.c.l.bf16 %v487
      %v520 = vunpack.c.l.bf16 %v488
      %v521 = vunpack.c.l.bf16 %v489
      %v523 = vlaneseq
      %v524 = vshrl.u32 %v523, 7
      %v525 = vsub.s32 0, %v524
      %v526 = vrot.slane %v455, %v525
      %v528 = vmul.f32 %v490, %v526
      %v529 = vmul.f32 %v491, %v526
      %v530 = vmul.f32 %v492, %v526
      %v531 = vmul.f32 %v493, %v526
      %v532 = vmul.f32 %v494, %v526
      %v533 = vmul.f32 %v495, %v526
      %v534 = vmul.f32 %v496, %v526
      %v535 = vmul.f32 %v497, %v526
      %v536 = vmul.f32 %v498, %v526
      %v537 = vmul.f32 %v499, %v526
      %v538 = vmul.f32 %v500, %v526
      %v539 = vmul.f32 %v501, %v526
      %v540 = vmul.f32 %v502, %v526
      %v541 = vmul.f32 %v503, %v526
      %v542 = vmul.f32 %v504, %v526
      %v543 = vmul.f32 %v505, %v526
      %v544 = vmul.f32 %v506, %v526
      %v545 = vmul.f32 %v507, %v526
      %v546 = vmul.f32 %v508, %v526
      %v547 = vmul.f32 %v509, %v526
      %v548 = vmul.f32 %v510, %v526
      %v549 = vmul.f32 %v511, %v526
      %v550 = vmul.f32 %v512, %v526
      %v551 = vmul.f32 %v513, %v526
      %v552 = vmul.f32 %v514, %v526
      %v553 = vmul.f32 %v515, %v526
      %v554 = vmul.f32 %v516, %v526
      %v555 = vmul.f32 %v517, %v526
      %v556 = vmul.f32 %v518, %v526
      %v557 = vmul.f32 %v519, %v526
      %v558 = vmul.f32 %v520, %v526
      %v559 = vmul.f32 %v521, %v526
      %v561 = vlaneseq
      %v562 = vshrl.u32 %v561, 7
      %v563 = vsub.s32 0, %v562
      %v564 = vrot.slane %v457, %v563
      %v566 = vadd.f32 %v528, %v564
      %v567 = vadd.f32 %v529, %v564
      %v568 = vadd.f32 %v530, %v564
      %v569 = vadd.f32 %v531, %v564
      %v570 = vadd.f32 %v532, %v564
      %v571 = vadd.f32 %v533, %v564
      %v572 = vadd.f32 %v534, %v564
      %v573 = vadd.f32 %v535, %v564
      %v574 = vadd.f32 %v536, %v564
      %v575 = vadd.f32 %v537, %v564
      %v576 = vadd.f32 %v538, %v564
      %v577 = vadd.f32 %v539, %v564
      %v578 = vadd.f32 %v540, %v564
      %v579 = vadd.f32 %v541, %v564
      %v580 = vadd.f32 %v542, %v564
      %v581 = vadd.f32 %v543, %v564
      %v582 = vadd.f32 %v544, %v564
      %v583 = vadd.f32 %v545, %v564
      %v584 = vadd.f32 %v546, %v564
      %v585 = vadd.f32 %v547, %v564
      %v586 = vadd.f32 %v548, %v564
      %v587 = vadd.f32 %v549, %v564
      %v588 = vadd.f32 %v550, %v564
      %v589 = vadd.f32 %v551, %v564
      %v590 = vadd.f32 %v552, %v564
      %v591 = vadd.f32 %v553, %v564
      %v592 = vadd.f32 %v554, %v564
      %v593 = vadd.f32 %v555, %v564
      %v594 = vadd.f32 %v556, %v564
      %v595 = vadd.f32 %v557, %v564
      %v596 = vadd.f32 %v558, %v564
      %v597 = vadd.f32 %v559, %v564
      %v598 = vmax.f32 %v566, 0.0
      %v599 = vmax.f32 %v567, 0.0
      %v600 = vmax.f32 %v568, 0.0
      %v601 = vmax.f32 %v569, 0.0
      %v602 = vmax.f32 %v570, 0.0
      %v603 = vmax.f32 %v571, 0.0
      %v604 = vmax.f32 %v572, 0.0
      %v605 = vmax.f32 %v573, 0.0
      %v606 = vmax.f32 %v574, 0.0
      %v607 = vmax.f32 %v575, 0.0
      %v608 = vmax.f32 %v576, 0.0
      %v609 = vmax.f32 %v577, 0.0
      %v610 = vmax.f32 %v578, 0.0
      %v611 = vmax.f32 %v579, 0.0
      %v612 = vmax.f32 %v580, 0.0
      %v613 = vmax.f32 %v581, 0.0
      %v614 = vmax.f32 %v582, 0.0
      %v615 = vmax.f32 %v583, 0.0
      %v616 = vmax.f32 %v584, 0.0
      %v617 = vmax.f32 %v585, 0.0
      %v618 = vmax.f32 %v586, 0.0
      %v619 = vmax.f32 %v587, 0.0
      %v620 = vmax.f32 %v588, 0.0
      %v621 = vmax.f32 %v589, 0.0
      %v622 = vmax.f32 %v590, 0.0
      %v623 = vmax.f32 %v591, 0.0
      %v624 = vmax.f32 %v592, 0.0
      %v625 = vmax.f32 %v593, 0.0
      %v626 = vmax.f32 %v594, 0.0
      %v627 = vmax.f32 %v595, 0.0
      %v628 = vmax.f32 %v596, 0.0
      %v629 = vmax.f32 %v597, 0.0
      %v630 = vpack.c.bf16 %v599, %v598
      %v631 = vpack.c.bf16 %v601, %v600
      %v632 = vpack.c.bf16 %v603, %v602
      %v633 = vpack.c.bf16 %v605, %v604
      %v634 = vpack.c.bf16 %v607, %v606
      %v635 = vpack.c.bf16 %v609, %v608
      %v636 = vpack.c.bf16 %v611, %v610
      %v637 = vpack.c.bf16 %v613, %v612
      %v638 = vpack.c.bf16 %v615, %v614
      %v639 = vpack.c.bf16 %v617, %v616
      %v640 = vpack.c.bf16 %v619, %v618
      %v641 = vpack.c.bf16 %v621, %v620
      %v642 = vpack.c.bf16 %v623, %v622
      %v643 = vpack.c.bf16 %v625, %v624
      %v644 = vpack.c.bf16 %v627, %v626
      %v645 = vpack.c.bf16 %v629, %v628
      %v646 = vld [vmem:[%s4] sm:$0xf]
      %v647 = vld [vmem:[%s4 + $0x4] sm:$0xf]
      %v648 = vld [vmem:[%s4 + $0x8] sm:$0xf]
      %v649 = vld [vmem:[%s4 + $0xc] sm:$0xf]
      %v650 = vld [vmem:[%s4 + $0x10] sm:$0xf]
      %v651 = vld [vmem:[%s4 + $0x14] sm:$0xf]
      %v652 = vld [vmem:[%s4 + $0x18] sm:$0xf]
      %v653 = vld [vmem:[%s4 + $0x1c] sm:$0xf]
      %v654 = vld [vmem:[%s4 + $0x20] sm:$0xf]
      %v655 = vld [vmem:[%s4 + $0x24] sm:$0xf]
      %v656 = vld [vmem:[%s4 + $0x28] sm:$0xf]
      %v657 = vld [vmem:[%s4 + $0x2c] sm:$0xf]
      %v658 = vld [vmem:[%s4 + $0x30] sm:$0xf]
      %v659 = vld [vmem:[%s4 + $0x34] sm:$0xf]
      %v660 = vld [vmem:[%s4 + $0x38] sm:$0xf]
      %v661 = vld [vmem:[%s4 + $0x3c] sm:$0xf]
      %v678 = vunpack.c.l.b16 %v646
      %v679 = vunpack.c.l.b16 %v647
      %v680 = vunpack.c.l.b16 %v648
      %v681 = vunpack.c.l.b16 %v649
      %v682 = vunpack.c.l.b16 %v650
      %v683 = vunpack.c.l.b16 %v651
      %v684 = vunpack.c.l.b16 %v652
      %v685 = vunpack.c.l.b16 %v653
      %v686 = vunpack.c.l.b16 %v654
      %v687 = vunpack.c.l.b16 %v655
      %v688 = vunpack.c.l.b16 %v656
      %v689 = vunpack.c.l.b16 %v657
      %v690 = vunpack.c.l.b16 %v658
      %v691 = vunpack.c.l.b16 %v659
      %v692 = vunpack.c.l.b16 %v660
      %v693 = vunpack.c.l.b16 %v661
      %v694 = vpack.c.b16 %v679, %v678
      %v695 = vpack.c.b16 %v681, %v680
      %v696 = vpack.c.b16 %v683, %v682
      %v697 = vpack.c.b16 %v685, %v684
      %v698 = vpack.c.b16 %v687, %v686
      %v699 = vpack.c.b16 %v689, %v688
      %v700 = vpack.c.b16 %v691, %v690
      %v701 = vpack.c.b16 %v693, %v692
      %710 = vmatprep.subr.bf16.mxu0 0
      %711 = vmatpush1.bf16.msra.mxu0 %v694
      %712 = vmatprep.subr.bf16.mxu0 0
      %713 = vmatpush1.bf16.msra.mxu0 %v695
      %714 = vmatprep.subr.bf16.mxu0 0
      %715 = vmatpush1.bf16.msra.mxu0 %v696
      %716 = vmatprep.subr.bf16.mxu0 0
      %717 = vmatpush1.bf16.msra.mxu0 %v697
      %718 = vmatprep.subr.bf16.mxu0 0
      %719 = vmatpush1.bf16.msra.mxu0 %v698
      %720 = vmatprep.subr.bf16.mxu0 0
      %721 = vmatpush1.bf16.msra.mxu0 %v699
      %722 = vmatprep.subr.bf16.mxu0 0
      %723 = vmatpush1.bf16.msra.mxu0 %v700
      %724 = vmatprep.subr.bf16.mxu0 0
      %725 = vmatpush1.bf16.msra.mxu0 %v701
      %726 = vmatprep.subr.bf16.mxu0 0
      %727 = vmatpush1.bf16.msra.mxu0 0
      %728 = vmatprep.subr.bf16.mxu0 0
      %729 = vmatpush1.bf16.msra.mxu0 0
      %730 = vmatprep.subr.bf16.mxu0 0
      %731 = vmatpush1.bf16.msra.mxu0 0
      %732 = vmatprep.subr.bf16.mxu0 0
      %733 = vmatpush1.bf16.msra.mxu0 0
      %734 = vmatprep.subr.bf16.mxu0 0
      %735 = vmatpush1.bf16.msra.mxu0 0
      %736 = vmatprep.subr.bf16.mxu0 0
      %737 = vmatpush1.bf16.msra.mxu0 0
      %738 = vmatprep.subr.bf16.mxu0 0
      %739 = vmatpush1.bf16.msra.mxu0 0
      %740 = vmatprep.subr.bf16.mxu0 0
      %741 = vmatpush1.bf16.msra.mxu0 0
      %742 = vmatprep.mubr.bf16.mxu0 0
      %743 = vmatmul.mubr.bf16.gmra.mrb[0].mxu0 %v630
      %v744 = vpop.f32.mrb[0].mxu0
      %v745 = vadd.f32 0.0, %v744
      %v746 = vpop.f32.mrb[0].mxu0
      %v747 = vpop.f32.mrb[0].mxu0
      %v748 = vadd.f32 0.0, %v747
      %v749 = vpop.f32.mrb[0].mxu0
      %750 = vmatprep.mubr.bf16.mxu0 0
      %751 = vmatmul.mubr.bf16.gmra.mrb[0].mxu0 %v631
      %v752 = vpop.f32.mrb[0].mxu0
      %v753 = vadd.f32 0.0, %v752
      %v754 = vpop.f32.mrb[0].mxu0
      %v755 = vpop.f32.mrb[0].mxu0
      %v756 = vadd.f32 0.0, %v755
      %v757 = vpop.f32.mrb[0].mxu0
      %758 = vmatprep.mubr.bf16.mxu0 0
      %759 = vmatmul.mubr.bf16.gmra.mrb[0].mxu0 %v632
      %v760 = vpop.f32.mrb[0].mxu0
      %v761 = vadd.f32 0.0, %v760
      %v762 = vpop.f32.mrb[0].mxu0
      %v763 = vpop.f32.mrb[0].mxu0
      %v764 = vadd.f32 0.0, %v763
      %v765 = vpop.f32.mrb[0].mxu0
      %766 = vmatprep.mubr.bf16.mxu0 0
      %767 = vmatmul.mubr.bf16.gmra.mrb[0].mxu0 %v633
      %v768 = vpop.f32.mrb[0].mxu0
      %v769 = vadd.f32 0.0, %v768
      %v770 = vpop.f32.mrb[0].mxu0
      %v771 = vpop.f32.mrb[0].mxu0
      %v772 = vadd.f32 0.0, %v771
      %v773 = vpop.f32.mrb[0].mxu0
      %774 = vmatprep.mubr.bf16.mxu0 0
      %775 = vmatmul.mubr.bf16.gmra.mrb[0].mxu0 %v634
      %v776 = vpop.f32.mrb[0].mxu0
      %v777 = vadd.f32 0.0, %v776
      %v778 = vpop.f32.mrb[0].mxu0
      %v779 = vpop.f32.mrb[0].mxu0
      %v780 = vadd.f32 0.0, %v779
      %v781 = vpop.f32.mrb[0].mxu0
      %782 = vmatprep.mubr.bf16.mxu0 0
      %783 = vmatmul.mubr.bf16.gmra.mrb[0].mxu0 %v635
      %v784 = vpop.f32.mrb[0].mxu0
      %v785 = vadd.f32 0.0, %v784
      %v786 = vpop.f32.mrb[0].mxu0
      %v787 = vpop.f32.mrb[0].mxu0
      %v788 = vadd.f32 0.0, %v787
      %v789 = vpop.f32.mrb[0].mxu0
      %790 = vmatprep.mubr.bf16.mxu0 0
      %791 = vmatmul.mubr.bf16.gmra.mrb[0].mxu0 %v636
      %v792 = vpop.f32.mrb[0].mxu0
      %v793 = vadd.f32 0.0, %v792
      %v794 = vpop.f32.mrb[0].mxu0
      %v795 = vpop.f32.mrb[0].mxu0
      %v796 = vadd.f32 0.0, %v795
      %v797 = vpop.f32.mrb[0].mxu0
      %798 = vmatprep.mubr.bf16.mxu0 0
      %799 = vmatmul.mubr.bf16.gmra.mrb[0].mxu0 %v637
      %v800 = vpop.f32.mrb[0].mxu0
      %v801 = vadd.f32 0.0, %v800
      %v802 = vpop.f32.mrb[0].mxu0
      %v803 = vpop.f32.mrb[0].mxu0
      %v804 = vadd.f32 0.0, %v803
      %v805 = vpop.f32.mrb[0].mxu0
      %806 = vmatprep.mubr.bf16.mxu0 0
      %807 = vmatmul.mubr.bf16.gmra.mrb[0].mxu0 %v638
      %v808 = vpop.f32.mrb[0].mxu0
      %v809 = vadd.f32 0.0, %v808
      %v810 = vpop.f32.mrb[0].mxu0
      %v811 = vpop.f32.mrb[0].mxu0
      %v812 = vadd.f32 0.0, %v811
      %v813 = vpop.f32.mrb[0].mxu0
      %814 = vmatprep.mubr.bf16.mxu0 0
      %815 = vmatmul.mubr.bf16.gmra.mrb[0].mxu0 %v639
      %v816 = vpop.f32.mrb[0].mxu0
      %v817 = vadd.f32 0.0, %v816
      %v818 = vpop.f32.mrb[0].mxu0
      %v819 = vpop.f32.mrb[0].mxu0
      %v820 = vadd.f32 0.0, %v819
      %v821 = vpop.f32.mrb[0].mxu0
      %822 = vmatprep.mubr.bf16.mxu0 0
      %823 = vmatmul.mubr.bf16.gmra.mrb[0].mxu0 %v640
      %v824 = vpop.f32.mrb[0].mxu0
      %v825 = vadd.f32 0.0, %v824
      %v826 = vpop.f32.mrb[0].mxu0
      %v827 = vpop.f32.mrb[0].mxu0
      %v828 = vadd.f32 0.0, %v827
      %v829 = vpop.f32.mrb[0].mxu0
      %830 = vmatprep.mubr.bf16.mxu0 0
      %831 = vmatmul.mubr.bf16.gmra.mrb[0].mxu0 %v641
      %v832 = vpop.f32.mrb[0].mxu0
      %v833 = vadd.f32 0.0, %v832
      %v834 = vpop.f32.mrb[0].mxu0
      %v835 = vpop.f32.mrb[0].mxu0
      %v836 = vadd.f32 0.0, %v835
      %v837 = vpop.f32.mrb[0].mxu0
      %838 = vmatprep.mubr.bf16.mxu0 0
      %839 = vmatmul.mubr.bf16.gmra.mrb[0].mxu0 %v642
      %v840 = vpop.f32.mrb[0].mxu0
      %v841 = vadd.f32 0.0, %v840
      %v842 = vpop.f32.mrb[0].mxu0
      %v843 = vpop.f32.mrb[0].mxu0
      %v844 = vadd.f32 0.0, %v843
      %v845 = vpop.f32.mrb[0].mxu0
      %846 = vmatprep.mubr.bf16.mxu0 0
      %847 = vmatmul.mubr.bf16.gmra.mrb[0].mxu0 %v643
      %v848 = vpop.f32.mrb[0].mxu0
      %v849 = vadd.f32 0.0, %v848
      %v850 = vpop.f32.mrb[0].mxu0
      %v851 = vpop.f32.mrb[0].mxu0
      %v852 = vadd.f32 0.0, %v851
      %v853 = vpop.f32.mrb[0].mxu0
      %854 = vmatprep.mubr.bf16.mxu0 0
      %855 = vmatmul.mubr.bf16.gmra.mrb[0].mxu0 %v644
      %v856 = vpop.f32.mrb[0].mxu0
      %v857 = vadd.f32 0.0, %v856
      %v858 = vpop.f32.mrb[0].mxu0
      %v859 = vpop.f32.mrb[0].mxu0
      %v860 = vadd.f32 0.0, %v859
      %v861 = vpop.f32.mrb[0].mxu0
      %862 = vmatprep.mubr.bf16.mxu0 0
      %863 = vmatmul.mubr.bf16.gmra.mrb[0].mxu0 %v645
      %v864 = vpop.f32.mrb[0].mxu0
      %v865 = vadd.f32 0.0, %v864
      %v866 = vpop.f32.mrb[0].mxu0
      %v867 = vpop.f32.mrb[0].mxu0
      %v868 = vadd.f32 0.0, %v867
      %v869 = vpop.f32.mrb[0].mxu0
      %870 = vdwg.mxu0
      %v871 = vld [vmem:[%s397] sm:$0xf]
      %v872 = vld [vmem:[%s397 + $0x4] sm:$0xf]
      %v873 = vld [vmem:[%s397 + $0x8] sm:$0xf]
      %v874 = vld [vmem:[%s397 + $0xc] sm:$0xf]
      %v875 = vld [vmem:[%s397 + $0x10] sm:$0xf]
      %v876 = vld [vmem:[%s397 + $0x14] sm:$0xf]
      %v877 = vld [vmem:[%s397 + $0x18] sm:$0xf]
      %v878 = vld [vmem:[%s397 + $0x1c] sm:$0xf]
      %v879 = vld [vmem:[%s397 + $0x20] sm:$0xf]
      %v880 = vld [vmem:[%s397 + $0x24] sm:$0xf]
      %v881 = vld [vmem:[%s397 + $0x28] sm:$0xf]
      %v882 = vld [vmem:[%s397 + $0x2c] sm:$0xf]
      %v883 = vld [vmem:[%s397 + $0x30] sm:$0xf]
      %v884 = vld [vmem:[%s397 + $0x34] sm:$0xf]
      %v885 = vld [vmem:[%s397 + $0x38] sm:$0xf]
      %v886 = vld [vmem:[%s397 + $0x3c] sm:$0xf]
      %v887 = vld [vmem:[%s397 + $0x40] sm:$0xf]
      %v888 = vld [vmem:[%s397 + $0x44] sm:$0xf]
      %v889 = vld [vmem:[%s397 + $0x48] sm:$0xf]
      %v890 = vld [vmem:[%s397 + $0x4c] sm:$0xf]
      %v891 = vld [vmem:[%s397 + $0x50] sm:$0xf]
      %v892 = vld [vmem:[%s397 + $0x54] sm:$0xf]
      %v893 = vld [vmem:[%s397 + $0x58] sm:$0xf]
      %v894 = vld [vmem:[%s397 + $0x5c] sm:$0xf]
      %v895 = vld [vmem:[%s397 + $0x60] sm:$0xf]
      %v896 = vld [vmem:[%s397 + $0x64] sm:$0xf]
      %v897 = vld [vmem:[%s397 + $0x68] sm:$0xf]
      %v898 = vld [vmem:[%s397 + $0x6c] sm:$0xf]
      %v899 = vld [vmem:[%s397 + $0x70] sm:$0xf]
      %v900 = vld [vmem:[%s397 + $0x74] sm:$0xf]
      %v901 = vld [vmem:[%s397 + $0x78] sm:$0xf]
      %v902 = vld [vmem:[%s397 + $0x7c] sm:$0xf]
      %v903 = vld [vmem:[%s6] sm:$0xf]
      %v904 = vld [vmem:[%s6 + $0x4] sm:$0xf]
      %v905 = vld [vmem:[%s6 + $0x8] sm:$0xf]
      %v906 = vld [vmem:[%s6 + $0xc] sm:$0xf]
      %v907 = vld [vmem:[%s6 + $0x10] sm:$0xf]
      %v908 = vld [vmem:[%s6 + $0x14] sm:$0xf]
      %v909 = vld [vmem:[%s6 + $0x18] sm:$0xf]
      %v910 = vld [vmem:[%s6 + $0x1c] sm:$0xf]
      %v911 = vld [vmem:[%s6 + $0x20] sm:$0xf]
      %v912 = vld [vmem:[%s6 + $0x24] sm:$0xf]
      %v913 = vld [vmem:[%s6 + $0x28] sm:$0xf]
      %v914 = vld [vmem:[%s6 + $0x2c] sm:$0xf]
      %v915 = vld [vmem:[%s6 + $0x30] sm:$0xf]
      %v916 = vld [vmem:[%s6 + $0x34] sm:$0xf]
      %v917 = vld [vmem:[%s6 + $0x38] sm:$0xf]
      %v918 = vld [vmem:[%s6 + $0x3c] sm:$0xf]
      %v951 = vunpack.c.l.b16 %v871
      %v952 = vunpack.c.l.b16 %v872
      %v953 = vunpack.c.l.b16 %v873
      %v954 = vunpack.c.l.b16 %v874
      %v955 = vunpack.c.l.b16 %v875
      %v956 = vunpack.c.l.b16 %v876
      %v957 = vunpack.c.l.b16 %v877
      %v958 = vunpack.c.l.b16 %v878
      %v959 = vunpack.c.l.b16 %v879
      %v960 = vunpack.c.l.b16 %v880
      %v961 = vunpack.c.l.b16 %v881
      %v962 = vunpack.c.l.b16 %v882
      %v963 = vunpack.c.l.b16 %v883
      %v964 = vunpack.c.l.b16 %v884
      %v965 = vunpack.c.l.b16 %v885
      %v966 = vunpack.c.l.b16 %v886
      %v967 = vunpack.c.l.b16 %v887
      %v968 = vunpack.c.l.b16 %v888
      %v969 = vunpack.c.l.b16 %v889
      %v970 = vunpack.c.l.b16 %v890
      %v971 = vunpack.c.l.b16 %v891
      %v972 = vunpack.c.l.b16 %v892
      %v973 = vunpack.c.l.b16 %v893
      %v974 = vunpack.c.l.b16 %v894
      %v975 = vunpack.c.l.b16 %v895
      %v976 = vunpack.c.l.b16 %v896
      %v977 = vunpack.c.l.b16 %v897
      %v978 = vunpack.c.l.b16 %v898
      %v979 = vunpack.c.l.b16 %v899
      %v980 = vunpack.c.l.b16 %v900
      %v981 = vunpack.c.l.b16 %v901
      %v982 = vunpack.c.l.b16 %v902
      %v983 = vpack.c.b16 %v952, %v951
      %v984 = vpack.c.b16 %v954, %v953
      %v985 = vpack.c.b16 %v956, %v955
      %v986 = vpack.c.b16 %v958, %v957
      %v987 = vpack.c.b16 %v960, %v959
      %v988 = vpack.c.b16 %v962, %v961
      %v989 = vpack.c.b16 %v964, %v963
      %v990 = vpack.c.b16 %v966, %v965
      %v991 = vpack.c.b16 %v968, %v967
      %v992 = vpack.c.b16 %v970, %v969
      %v993 = vpack.c.b16 %v972, %v971
      %v994 = vpack.c.b16 %v974, %v973
      %v995 = vpack.c.b16 %v976, %v975
      %v996 = vpack.c.b16 %v978, %v977
      %v997 = vpack.c.b16 %v980, %v979
      %v998 = vpack.c.b16 %v982, %v981
      %v1031 = vunpack.c.l.b16 %v903
      %v1032 = vunpack.c.l.b16 %v904
      %v1033 = vunpack.c.l.b16 %v905
      %v1034 = vunpack.c.l.b16 %v906
      %v1035 = vunpack.c.l.b16 %v907
      %v1036 = vunpack.c.l.b16 %v908
      %v1037 = vunpack.c.l.b16 %v909
      %v1038 = vunpack.c.l.b16 %v910
      %v1039 = vunpack.c.l.b16 %v911
      %v1040 = vunpack.c.l.b16 %v912
      %v1041 = vunpack.c.l.b16 %v913
      %v1042 = vunpack.c.l.b16 %v914
      %v1043 = vunpack.c.l.b16 %v915
      %v1044 = vunpack.c.l.b16 %v916
      %v1045 = vunpack.c.l.b16 %v917
      %v1046 = vunpack.c.l.b16 %v918
      %v1047 = vpack.c.b16 %v1032, %v1031
      %v1048 = vpack.c.b16 %v1034, %v1033
      %v1049 = vpack.c.b16 %v1036, %v1035
      %v1050 = vpack.c.b16 %v1038, %v1037
      %v1051 = vpack.c.b16 %v1040, %v1039
      %v1052 = vpack.c.b16 %v1042, %v1041
      %v1053 = vpack.c.b16 %v1044, %v1043
      %v1054 = vpack.c.b16 %v1046, %v1045
      %1063 = vmatprep.subr.bf16.mxu0 0
      %1064 = vmatpush1.bf16.msra.mxu0 %v1047
      %1065 = vmatprep.subr.bf16.mxu0 0
      %1066 = vmatpush1.bf16.msra.mxu0 %v1048
      %1067 = vmatprep.subr.bf16.mxu0 0
      %1068 = vmatpush1.bf16.msra.mxu0 %v1049
      %1069 = vmatprep.subr.bf16.mxu0 0
      %1070 = vmatpush1.bf16.msra.mxu0 %v1050
      %1071 = vmatprep.subr.bf16.mxu0 0
      %1072 = vmatpush1.bf16.msra.mxu0 %v1051
      %1073 = vmatprep.subr.bf16.mxu0 0
      %1074 = vmatpush1.bf16.msra.mxu0 %v1052
      %1075 = vmatprep.subr.bf16.mxu0 0
      %1076 = vmatpush1.bf16.msra.mxu0 %v1053
      %1077 = vmatprep.subr.bf16.mxu0 0
      %1078 = vmatpush1.bf16.msra.mxu0 %v1054
      %1079 = vmatprep.subr.bf16.mxu0 0
      %1080 = vmatpush1.bf16.msra.mxu0 0
      %1081 = vmatprep.subr.bf16.mxu0 0
      %1082 = vmatpush1.bf16.msra.mxu0 0
      %1083 = vmatprep.subr.bf16.mxu0 0
      %1084 = vmatpush1.bf16.msra.mxu0 0
      %1085 = vmatprep.subr.bf16.mxu0 0
      %1086 = vmatpush1.bf16.msra.mxu0 0
      %1087 = vmatprep.subr.bf16.mxu0 0
      %1088 = vmatpush1.bf16.msra.mxu0 0
      %1089 = vmatprep.subr.bf16.mxu0 0
      %1090 = vmatpush1.bf16.msra.mxu0 0
      %1091 = vmatprep.subr.bf16.mxu0 0
      %1092 = vmatpush1.bf16.msra.mxu0 0
      %1093 = vmatprep.subr.bf16.mxu0 0
      %1094 = vmatpush1.bf16.msra.mxu0 0
      %1095 = vmatprep.mubr.bf16.mxu0 0
      %1096 = vmatmul.mubr.bf16.gmra.mrb[0].mxu0 %v983
      %v1097 = vpop.f32.mrb[0].mxu0
      %v1098 = vadd.f32 0.0, %v1097
      %v1099 = vpop.f32.mrb[0].mxu0
      %v1100 = vpop.f32.mrb[0].mxu0
      %v1101 = vadd.f32 0.0, %v1100
      %v1102 = vpop.f32.mrb[0].mxu0
      %1103 = vmatprep.mubr.bf16.mxu0 0
      %1104 = vmatmul.mubr.bf16.gmra.mrb[0].mxu0 %v984
      %v1105 = vpop.f32.mrb[0].mxu0
      %v1106 = vadd.f32 0.0, %v1105
      %v1107 = vpop.f32.mrb[0].mxu0
      %v1108 = vpop.f32.mrb[0].mxu0
      %v1109 = vadd.f32 0.0, %v1108
      %v1110 = vpop.f32.mrb[0].mxu0
      %1111 = vmatprep.mubr.bf16.mxu0 0
      %1112 = vmatmul.mubr.bf16.gmra.mrb[0].mxu0 %v985
      %v1113 = vpop.f32.mrb[0].mxu0
      %v1114 = vadd.f32 0.0, %v1113
      %v1115 = vpop.f32.mrb[0].mxu0
      %v1116 = vpop.f32.mrb[0].mxu0
      %v1117 = vadd.f32 0.0, %v1116
      %v1118 = vpop.f32.mrb[0].mxu0
      %1119 = vmatprep.mubr.bf16.mxu0 0
      %1120 = vmatmul.mubr.bf16.gmra.mrb[0].mxu0 %v986
      %v1121 = vpop.f32.mrb[0].mxu0
      %v1122 = vadd.f32 0.0, %v1121
      %v1123 = vpop.f32.mrb[0].mxu0
      %v1124 = vpop.f32.mrb[0].mxu0
      %v1125 = vadd.f32 0.0, %v1124
      %v1126 = vpop.f32.mrb[0].mxu0
      %1127 = vmatprep.mubr.bf16.mxu0 0
      %1128 = vmatmul.mubr.bf16.gmra.mrb[0].mxu0 %v987
      %v1129 = vpop.f32.mrb[0].mxu0
      %v1130 = vadd.f32 0.0, %v1129
      %v1131 = vpop.f32.mrb[0].mxu0
      %v1132 = vpop.f32.mrb[0].mxu0
      %v1133 = vadd.f32 0.0, %v1132
      %v1134 = vpop.f32.mrb[0].mxu0
      %1135 = vmatprep.mubr.bf16.mxu0 0
      %1136 = vmatmul.mubr.bf16.gmra.mrb[0].mxu0 %v988
      %v1137 = vpop.f32.mrb[0].mxu0
      %v1138 = vadd.f32 0.0, %v1137
      %v1139 = vpop.f32.mrb[0].mxu0
      %v1140 = vpop.f32.mrb[0].mxu0
      %v1141 = vadd.f32 0.0, %v1140
      %v1142 = vpop.f32.mrb[0].mxu0
      %1143 = vmatprep.mubr.bf16.mxu0 0
      %1144 = vmatmul.mubr.bf16.gmra.mrb[0].mxu0 %v989
      %v1145 = vpop.f32.mrb[0].mxu0
      %v1146 = vadd.f32 0.0, %v1145
      %v1147 = vpop.f32.mrb[0].mxu0
      %v1148 = vpop.f32.mrb[0].mxu0
      %v1149 = vadd.f32 0.0, %v1148
      %v1150 = vpop.f32.mrb[0].mxu0
      %1151 = vmatprep.mubr.bf16.mxu0 0
      %1152 = vmatmul.mubr.bf16.gmra.mrb[0].mxu0 %v990
      %v1153 = vpop.f32.mrb[0].mxu0
      %v1154 = vadd.f32 0.0, %v1153
      %v1155 = vpop.f32.mrb[0].mxu0
      %v1156 = vpop.f32.mrb[0].mxu0
      %v1157 = vadd.f32 0.0, %v1156
      %v1158 = vpop.f32.mrb[0].mxu0
      %1159 = vmatprep.mubr.bf16.mxu0 0
      %1160 = vmatmul.mubr.bf16.gmra.mrb[0].mxu0 %v991
      %v1161 = vpop.f32.mrb[0].mxu0
      %v1162 = vadd.f32 0.0, %v1161
      %v1163 = vpop.f32.mrb[0].mxu0
      %v1164 = vpop.f32.mrb[0].mxu0
      %v1165 = vadd.f32 0.0, %v1164
      %v1166 = vpop.f32.mrb[0].mxu0
      %1167 = vmatprep.mubr.bf16.mxu0 0
      %1168 = vmatmul.mubr.bf16.gmra.mrb[0].mxu0 %v992
      %v1169 = vpop.f32.mrb[0].mxu0
      %v1170 = vadd.f32 0.0, %v1169
      %v1171 = vpop.f32.mrb[0].mxu0
      %v1172 = vpop.f32.mrb[0].mxu0
      %v1173 = vadd.f32 0.0, %v1172
      %v1174 = vpop.f32.mrb[0].mxu0
      %1175 = vmatprep.mubr.bf16.mxu0 0
      %1176 = vmatmul.mubr.bf16.gmra.mrb[0].mxu0 %v993
      %v1177 = vpop.f32.mrb[0].mxu0
      %v1178 = vadd.f32 0.0, %v1177
      %v1179 = vpop.f32.mrb[0].mxu0
      %v1180 = vpop.f32.mrb[0].mxu0
      %v1181 = vadd.f32 0.0, %v1180
      %v1182 = vpop.f32.mrb[0].mxu0
      %1183 = vmatprep.mubr.bf16.mxu0 0
      %1184 = vmatmul.mubr.bf16.gmra.mrb[0].mxu0 %v994
      %v1185 = vpop.f32.mrb[0].mxu0
      %v1186 = vadd.f32 0.0, %v1185
      %v1187 = vpop.f32.mrb[0].mxu0
      %v1188 = vpop.f32.mrb[0].mxu0
      %v1189 = vadd.f32 0.0, %v1188
      %v1190 = vpop.f32.mrb[0].mxu0
      %1191 = vmatprep.mubr.bf16.mxu0 0
      %1192 = vmatmul.mubr.bf16.gmra.mrb[0].mxu0 %v995
      %v1193 = vpop.f32.mrb[0].mxu0
      %v1194 = vadd.f32 0.0, %v1193
      %v1195 = vpop.f32.mrb[0].mxu0
      %v1196 = vpop.f32.mrb[0].mxu0
      %v1197 = vadd.f32 0.0, %v1196
      %v1198 = vpop.f32.mrb[0].mxu0
      %1199 = vmatprep.mubr.bf16.mxu0 0
      %1200 = vmatmul.mubr.bf16.gmra.mrb[0].mxu0 %v996
      %v1201 = vpop.f32.mrb[0].mxu0
      %v1202 = vadd.f32 0.0, %v1201
      %v1203 = vpop.f32.mrb[0].mxu0
      %v1204 = vpop.f32.mrb[0].mxu0
      %v1205 = vadd.f32 0.0, %v1204
      %v1206 = vpop.f32.mrb[0].mxu0
      %1207 = vmatprep.mubr.bf16.mxu0 0
      %1208 = vmatmul.mubr.bf16.gmra.mrb[0].mxu0 %v997
      %v1209 = vpop.f32.mrb[0].mxu0
      %v1210 = vadd.f32 0.0, %v1209
      %v1211 = vpop.f32.mrb[0].mxu0
      %v1212 = vpop.f32.mrb[0].mxu0
      %v1213 = vadd.f32 0.0, %v1212
      %v1214 = vpop.f32.mrb[0].mxu0
      %1215 = vmatprep.mubr.bf16.mxu0 0
      %1216 = vmatmul.mubr.bf16.gmra.mrb[0].mxu0 %v998
      %v1217 = vpop.f32.mrb[0].mxu0
      %v1218 = vadd.f32 0.0, %v1217
      %v1219 = vpop.f32.mrb[0].mxu0
      %v1220 = vpop.f32.mrb[0].mxu0
      %v1221 = vadd.f32 0.0, %v1220
      %v1222 = vpop.f32.mrb[0].mxu0
      %1223 = vdwg.mxu0
      %v1224 = vadd.f32 %v745, %v748
      %v1225 = vadd.f32 %v1224, %v753
      %v1226 = vadd.f32 %v1225, %v756
      %v1227 = vadd.f32 %v1226, %v761
      %v1228 = vadd.f32 %v1227, %v764
      %v1229 = vadd.f32 %v1228, %v769
      %v1230 = vadd.f32 %v1229, %v772
      %v1231 = vadd.f32 %v1230, %v777
      %v1232 = vadd.f32 %v1231, %v780
      %v1233 = vadd.f32 %v1232, %v785
      %v1234 = vadd.f32 %v1233, %v788
      %v1235 = vadd.f32 %v1234, %v793
      %v1236 = vadd.f32 %v1235, %v796
      %v1237 = vadd.f32 %v1236, %v801
      %v1238 = vadd.f32 %v1237, %v804
      %v1239 = vadd.f32 %v1238, %v809
      %v1240 = vadd.f32 %v1239, %v812
      %v1241 = vadd.f32 %v1240, %v817
      %v1242 = vadd.f32 %v1241, %v820
      %v1243 = vadd.f32 %v1242, %v825
      %v1244 = vadd.f32 %v1243, %v828
      %v1245 = vadd.f32 %v1244, %v833
      %v1246 = vadd.f32 %v1245, %v836
      %v1247 = vadd.f32 %v1246, %v841
      %v1248 = vadd.f32 %v1247, %v844
      %v1249 = vadd.f32 %v1248, %v849
      %v1250 = vadd.f32 %v1249, %v852
      %v1251 = vadd.f32 %v1250, %v857
      %v1252 = vadd.f32 %v1251, %v860
      %v1253 = vadd.f32 %v1252, %v865
      %v1254 = vadd.f32 %v1253, %v868
      %v1255 = vrot.slane %v1254, 4
      %v1256 = vadd.f32 %v1254, %v1255
      %v1257 = vrot.slane %v1256, 2
      %v1258 = vadd.f32 %v1256, %v1257
      %v1259 = vrot.slane %v1258, 1
      %v1260 = vadd.f32 %v1258, %v1259
      %v1261 = vmul.f32 %v745, %v745
      %v1262 = vmul.f32 %v748, %v748
      %v1263 = vmul.f32 %v753, %v753
      %v1264 = vmul.f32 %v756, %v756
      %v1265 = vmul.f32 %v761, %v761
      %v1266 = vmul.f32 %v764, %v764
      %v1267 = vmul.f32 %v769, %v769
      %v1268 = vmul.f32 %v772, %v772
      %v1269 = vmul.f32 %v777, %v777
      %v1270 = vmul.f32 %v780, %v780
      %v1271 = vmul.f32 %v785, %v785
      %v1272 = vmul.f32 %v788, %v788
      %v1273 = vmul.f32 %v793, %v793
      %v1274 = vmul.f32 %v796, %v796
      %v1275 = vmul.f32 %v801, %v801
      %v1276 = vmul.f32 %v804, %v804
      %v1277 = vmul.f32 %v809, %v809
      %v1278 = vmul.f32 %v812, %v812
      %v1279 = vmul.f32 %v817, %v817
      %v1280 = vmul.f32 %v820, %v820
      %v1281 = vmul.f32 %v825, %v825
      %v1282 = vmul.f32 %v828, %v828
      %v1283 = vmul.f32 %v833, %v833
      %v1284 = vmul.f32 %v836, %v836
      %v1285 = vmul.f32 %v841, %v841
      %v1286 = vmul.f32 %v844, %v844
      %v1287 = vmul.f32 %v849, %v849
      %v1288 = vmul.f32 %v852, %v852
      %v1289 = vmul.f32 %v857, %v857
      %v1290 = vmul.f32 %v860, %v860
      %v1291 = vmul.f32 %v865, %v865
      %v1292 = vmul.f32 %v868, %v868
      %v1293 = vadd.f32 %v1261, %v1262
      %v1294 = vadd.f32 %v1293, %v1263
      %v1295 = vadd.f32 %v1294, %v1264
      %v1296 = vadd.f32 %v1295, %v1265
      %v1297 = vadd.f32 %v1296, %v1266
      %v1298 = vadd.f32 %v1297, %v1267
      %v1299 = vadd.f32 %v1298, %v1268
      %v1300 = vadd.f32 %v1299, %v1269
      %v1301 = vadd.f32 %v1300, %v1270
      %v1302 = vadd.f32 %v1301, %v1271
      %v1303 = vadd.f32 %v1302, %v1272
      %v1304 = vadd.f32 %v1303, %v1273
      %v1305 = vadd.f32 %v1304, %v1274
      %v1306 = vadd.f32 %v1305, %v1275
      %v1307 = vadd.f32 %v1306, %v1276
      %v1308 = vadd.f32 %v1307, %v1277
      %v1309 = vadd.f32 %v1308, %v1278
      %v1310 = vadd.f32 %v1309, %v1279
      %v1311 = vadd.f32 %v1310, %v1280
      %v1312 = vadd.f32 %v1311, %v1281
      %v1313 = vadd.f32 %v1312, %v1282
      %v1314 = vadd.f32 %v1313, %v1283
      %v1315 = vadd.f32 %v1314, %v1284
      %v1316 = vadd.f32 %v1315, %v1285
      %v1317 = vadd.f32 %v1316, %v1286
      %v1318 = vadd.f32 %v1317, %v1287
      %v1319 = vadd.f32 %v1318, %v1288
      %v1320 = vadd.f32 %v1319, %v1289
      %v1321 = vadd.f32 %v1320, %v1290
      %v1322 = vadd.f32 %v1321, %v1291
      %v1323 = vadd.f32 %v1322, %v1292
      %v1324 = vrot.slane %v1323, 4
      %v1325 = vadd.f32 %v1323, %v1324
      %v1326 = vrot.slane %v1325, 2
      %v1327 = vadd.f32 %v1325, %v1326
      %v1328 = vrot.slane %v1327, 1
      %v1329 = vadd.f32 %v1327, %v1328
      %vm1330 = vcmask 1040384
      %v1331 = vsel %vm1330, %v1260, %v1329
      %1332 = vst [vmem:[%s414] sm:$0x3] %v1331
      %v1333 = vadd.f32 %v1098, %v1101
      %v1334 = vadd.f32 %v1333, %v1106
      %v1335 = vadd.f32 %v1334, %v1109
      %v1336 = vadd.f32 %v1335, %v1114
      %v1337 = vadd.f32 %v1336, %v1117
      %v1338 = vadd.f32 %v1337, %v1122
      %v1339 = vadd.f32 %v1338, %v1125
      %v1340 = vadd.f32 %v1339, %v1130
      %v1341 = vadd.f32 %v1340, %v1133
      %v1342 = vadd.f32 %v1341, %v1138
      %v1343 = vadd.f32 %v1342, %v1141
      %v1344 = vadd.f32 %v1343, %v1146
      %v1345 = vadd.f32 %v1344, %v1149
      %v1346 = vadd.f32 %v1345, %v1154
      %v1347 = vadd.f32 %v1346, %v1157
      %v1348 = vadd.f32 %v1347, %v1162
      %v1349 = vadd.f32 %v1348, %v1165
      %v1350 = vadd.f32 %v1349, %v1170
      %v1351 = vadd.f32 %v1350, %v1173
      %v1352 = vadd.f32 %v1351, %v1178
      %v1353 = vadd.f32 %v1352, %v1181
      %v1354 = vadd.f32 %v1353, %v1186
      %v1355 = vadd.f32 %v1354, %v1189
      %v1356 = vadd.f32 %v1355, %v1194
      %v1357 = vadd.f32 %v1356, %v1197
      %v1358 = vadd.f32 %v1357, %v1202
      %v1359 = vadd.f32 %v1358, %v1205
      %v1360 = vadd.f32 %v1359, %v1210
      %v1361 = vadd.f32 %v1360, %v1213
      %v1362 = vadd.f32 %v1361, %v1218
      %v1363 = vadd.f32 %v1362, %v1221
      %v1364 = vrot.slane %v1363, 4
      %v1365 = vadd.f32 %v1363, %v1364
      %v1366 = vrot.slane %v1365, 2
      %v1367 = vadd.f32 %v1365, %v1366
      %v1368 = vrot.slane %v1367, 1
      %v1369 = vadd.f32 %v1367, %v1368
      %v1370 = vmul.f32 %v1098, %v1098
      %v1371 = vmul.f32 %v1101, %v1101
      %v1372 = vmul.f32 %v1106, %v1106
      %v1373 = vmul.f32 %v1109, %v1109
      %v1374 = vmul.f32 %v1114, %v1114
      %v1375 = vmul.f32 %v1117, %v1117
      %v1376 = vmul.f32 %v1122, %v1122
      %v1377 = vmul.f32 %v1125, %v1125
      %v1378 = vmul.f32 %v1130, %v1130
      %v1379 = vmul.f32 %v1133, %v1133
      %v1380 = vmul.f32 %v1138, %v1138
      %v1381 = vmul.f32 %v1141, %v1141
      %v1382 = vmul.f32 %v1146, %v1146
      %v1383 = vmul.f32 %v1149, %v1149
      %v1384 = vmul.f32 %v1154, %v1154
      %v1385 = vmul.f32 %v1157, %v1157
      %v1386 = vmul.f32 %v1162, %v1162
      %v1387 = vmul.f32 %v1165, %v1165
      %v1388 = vmul.f32 %v1170, %v1170
      %v1389 = vmul.f32 %v1173, %v1173
      %v1390 = vmul.f32 %v1178, %v1178
      %v1391 = vmul.f32 %v1181, %v1181
      %v1392 = vmul.f32 %v1186, %v1186
      %v1393 = vmul.f32 %v1189, %v1189
      %v1394 = vmul.f32 %v1194, %v1194
      %v1395 = vmul.f32 %v1197, %v1197
      %v1396 = vmul.f32 %v1202, %v1202
      %v1397 = vmul.f32 %v1205, %v1205
      %v1398 = vmul.f32 %v1210, %v1210
      %v1399 = vmul.f32 %v1213, %v1213
      %v1400 = vmul.f32 %v1218, %v1218
      %v1401 = vmul.f32 %v1221, %v1221
      %v1402 = vadd.f32 %v1370, %v1371
      %v1403 = vadd.f32 %v1402, %v1372
      %v1404 = vadd.f32 %v1403, %v1373
      %v1405 = vadd.f32 %v1404, %v1374
      %v1406 = vadd.f32 %v1405, %v1375
      %v1407 = vadd.f32 %v1406, %v1376
      %v1408 = vadd.f32 %v1407, %v1377
      %v1409 = vadd.f32 %v1408, %v1378
      %v1410 = vadd.f32 %v1409, %v1379
      %v1411 = vadd.f32 %v1410, %v1380
      %v1412 = vadd.f32 %v1411, %v1381
      %v1413 = vadd.f32 %v1412, %v1382
      %v1414 = vadd.f32 %v1413, %v1383
      %v1415 = vadd.f32 %v1414, %v1384
      %v1416 = vadd.f32 %v1415, %v1385
      %v1417 = vadd.f32 %v1416, %v1386
      %v1418 = vadd.f32 %v1417, %v1387
      %v1419 = vadd.f32 %v1418, %v1388
      %v1420 = vadd.f32 %v1419, %v1389
      %v1421 = vadd.f32 %v1420, %v1390
      %v1422 = vadd.f32 %v1421, %v1391
      %v1423 = vadd.f32 %v1422, %v1392
      %v1424 = vadd.f32 %v1423, %v1393
      %v1425 = vadd.f32 %v1424, %v1394
      %v1426 = vadd.f32 %v1425, %v1395
      %v1427 = vadd.f32 %v1426, %v1396
      %v1428 = vadd.f32 %v1427, %v1397
      %v1429 = vadd.f32 %v1428, %v1398
      %v1430 = vadd.f32 %v1429, %v1399
      %v1431 = vadd.f32 %v1430, %v1400
      %v1432 = vadd.f32 %v1431, %v1401
      %v1433 = vrot.slane %v1432, 4
      %v1434 = vadd.f32 %v1432, %v1433
      %v1435 = vrot.slane %v1434, 2
      %v1436 = vadd.f32 %v1434, %v1435
      %v1437 = vrot.slane %v1436, 1
      %v1438 = vadd.f32 %v1436, %v1437
      %v1439 = vsel %vm1330, %v1369, %v1438
      %1440 = vst [vmem:[%s418] sm:$0x3] %v1439
      %v1441 = vpack.c.bf16 %v748, %v745
      %v1442 = vpack.c.bf16 %v756, %v753
      %v1443 = vpack.c.bf16 %v764, %v761
      %v1444 = vpack.c.bf16 %v772, %v769
      %v1445 = vpack.c.bf16 %v780, %v777
      %v1446 = vpack.c.bf16 %v788, %v785
      %v1447 = vpack.c.bf16 %v796, %v793
      %v1448 = vpack.c.bf16 %v804, %v801
      %v1449 = vpack.c.bf16 %v812, %v809
      %v1450 = vpack.c.bf16 %v820, %v817
      %v1451 = vpack.c.bf16 %v828, %v825
      %v1452 = vpack.c.bf16 %v836, %v833
      %v1453 = vpack.c.bf16 %v844, %v841
      %v1454 = vpack.c.bf16 %v852, %v849
      %v1455 = vpack.c.bf16 %v860, %v857
      %v1456 = vpack.c.bf16 %v868, %v865
      %v1473 = vunpack.c.l.b16 %v1441
      %v1474 = vunpack.c.h.b16 %v1441
      %v1475 = vunpack.c.l.b16 %v1442
      %v1476 = vunpack.c.h.b16 %v1442
      %v1477 = vunpack.c.l.b16 %v1443
      %v1478 = vunpack.c.h.b16 %v1443
      %v1479 = vunpack.c.l.b16 %v1444
      %v1480 = vunpack.c.h.b16 %v1444
      %v1481 = vunpack.c.l.b16 %v1445
      %v1482 = vunpack.c.h.b16 %v1445
      %v1483 = vunpack.c.l.b16 %v1446
      %v1484 = vunpack.c.h.b16 %v1446
      %v1485 = vunpack.c.l.b16 %v1447
      %v1486 = vunpack.c.h.b16 %v1447
      %v1487 = vunpack.c.l.b16 %v1448
      %v1488 = vunpack.c.h.b16 %v1448
      %v1489 = vunpack.c.l.b16 %v1449
      %v1490 = vunpack.c.h.b16 %v1449
      %v1491 = vunpack.c.l.b16 %v1450
      %v1492 = vunpack.c.h.b16 %v1450
      %v1493 = vunpack.c.l.b16 %v1451
      %v1494 = vunpack.c.h.b16 %v1451
      %v1495 = vunpack.c.l.b16 %v1452
      %v1496 = vunpack.c.h.b16 %v1452
      %v1497 = vunpack.c.l.b16 %v1453
      %v1498 = vunpack.c.h.b16 %v1453
      %v1499 = vunpack.c.l.b16 %v1454
      %v1500 = vunpack.c.h.b16 %v1454
      %v1501 = vunpack.c.l.b16 %v1455
      %v1502 = vunpack.c.h.b16 %v1455
      %v1503 = vunpack.c.l.b16 %v1456
      %v1504 = vunpack.c.h.b16 %v1456
      %v1505 = vpack.c.b16 %v1473, %v1473
      %v1506 = vpack.c.b16 %v1474, %v1474
      %v1507 = vpack.c.b16 %v1475, %v1475
      %v1508 = vpack.c.b16 %v1476, %v1476
      %v1509 = vpack.c.b16 %v1477, %v1477
      %v1510 = vpack.c.b16 %v1478, %v1478
      %v1511 = vpack.c.b16 %v1479, %v1479
      %v1512 = vpack.c.b16 %v1480, %v1480
      %v1513 = vpack.c.b16 %v1481, %v1481
      %v1514 = vpack.c.b16 %v1482, %v1482
      %v1515 = vpack.c.b16 %v1483, %v1483
      %v1516 = vpack.c.b16 %v1484, %v1484
      %v1517 = vpack.c.b16 %v1485, %v1485
      %v1518 = vpack.c.b16 %v1486, %v1486
      %v1519 = vpack.c.b16 %v1487, %v1487
      %v1520 = vpack.c.b16 %v1488, %v1488
      %v1521 = vpack.c.b16 %v1489, %v1489
      %v1522 = vpack.c.b16 %v1490, %v1490
      %v1523 = vpack.c.b16 %v1491, %v1491
      %v1524 = vpack.c.b16 %v1492, %v1492
      %v1525 = vpack.c.b16 %v1493, %v1493
      %v1526 = vpack.c.b16 %v1494, %v1494
      %v1527 = vpack.c.b16 %v1495, %v1495
      %v1528 = vpack.c.b16 %v1496, %v1496
      %v1529 = vpack.c.b16 %v1497, %v1497
      %v1530 = vpack.c.b16 %v1498, %v1498
      %v1531 = vpack.c.b16 %v1499, %v1499
      %v1532 = vpack.c.b16 %v1500, %v1500
      %v1533 = vpack.c.b16 %v1501, %v1501
      %v1534 = vpack.c.b16 %v1502, %v1502
      %v1535 = vpack.c.b16 %v1503, %v1503
      %v1536 = vpack.c.b16 %v1504, %v1504
      %1569 = vst [vmem:[%s403] sm:$0xf] %v1505
      %1570 = vst [vmem:[%s403 + $0x4] sm:$0xf] %v1506
      %1571 = vst [vmem:[%s403 + $0x8] sm:$0xf] %v1507
      %1572 = vst [vmem:[%s403 + $0xc] sm:$0xf] %v1508
      %1573 = vst [vmem:[%s403 + $0x10] sm:$0xf] %v1509
      %1574 = vst [vmem:[%s403 + $0x14] sm:$0xf] %v1510
      %1575 = vst [vmem:[%s403 + $0x18] sm:$0xf] %v1511
      %1576 = vst [vmem:[%s403 + $0x1c] sm:$0xf] %v1512
      %1577 = vst [vmem:[%s403 + $0x20] sm:$0xf] %v1513
      %1578 = vst [vmem:[%s403 + $0x24] sm:$0xf] %v1514
      %1579 = vst [vmem:[%s403 + $0x28] sm:$0xf] %v1515
      %1580 = vst [vmem:[%s403 + $0x2c] sm:$0xf] %v1516
      %1581 = vst [vmem:[%s403 + $0x30] sm:$0xf] %v1517
      %1582 = vst [vmem:[%s403 + $0x34] sm:$0xf] %v1518
      %1583 = vst [vmem:[%s403 + $0x38] sm:$0xf] %v1519
      %1584 = vst [vmem:[%s403 + $0x3c] sm:$0xf] %v1520
      %1585 = vst [vmem:[%s403 + $0x40] sm:$0xf] %v1521
      %1586 = vst [vmem:[%s403 + $0x44] sm:$0xf] %v1522
      %1587 = vst [vmem:[%s403 + $0x48] sm:$0xf] %v1523
      %1588 = vst [vmem:[%s403 + $0x4c] sm:$0xf] %v1524
      %1589 = vst [vmem:[%s403 + $0x50] sm:$0xf] %v1525
      %1590 = vst [vmem:[%s403 + $0x54] sm:$0xf] %v1526
      %1591 = vst [vmem:[%s403 + $0x58] sm:$0xf] %v1527
      %1592 = vst [vmem:[%s403 + $0x5c] sm:$0xf] %v1528
      %1593 = vst [vmem:[%s403 + $0x60] sm:$0xf] %v1529
      %1594 = vst [vmem:[%s403 + $0x64] sm:$0xf] %v1530
      %1595 = vst [vmem:[%s403 + $0x68] sm:$0xf] %v1531
      %1596 = vst [vmem:[%s403 + $0x6c] sm:$0xf] %v1532
      %1597 = vst [vmem:[%s403 + $0x70] sm:$0xf] %v1533
      %1598 = vst [vmem:[%s403 + $0x74] sm:$0xf] %v1534
      %1599 = vst [vmem:[%s403 + $0x78] sm:$0xf] %v1535
      %1600 = vst [vmem:[%s403 + $0x7c] sm:$0xf] %v1536
      %v1601 = vpack.c.bf16 %v1101, %v1098
      %v1602 = vpack.c.bf16 %v1109, %v1106
      %v1603 = vpack.c.bf16 %v1117, %v1114
      %v1604 = vpack.c.bf16 %v1125, %v1122
      %v1605 = vpack.c.bf16 %v1133, %v1130
      %v1606 = vpack.c.bf16 %v1141, %v1138
      %v1607 = vpack.c.bf16 %v1149, %v1146
      %v1608 = vpack.c.bf16 %v1157, %v1154
      %v1609 = vpack.c.bf16 %v1165, %v1162
      %v1610 = vpack.c.bf16 %v1173, %v1170
      %v1611 = vpack.c.bf16 %v1181, %v1178
      %v1612 = vpack.c.bf16 %v1189, %v1186
      %v1613 = vpack.c.bf16 %v1197, %v1194
      %v1614 = vpack.c.bf16 %v1205, %v1202
      %v1615 = vpack.c.bf16 %v1213, %v1210
      %v1616 = vpack.c.bf16 %v1221, %v1218
      %v1633 = vunpack.c.l.b16 %v1601
      %v1634 = vunpack.c.h.b16 %v1601
      %v1635 = vunpack.c.l.b16 %v1602
      %v1636 = vunpack.c.h.b16 %v1602
      %v1637 = vunpack.c.l.b16 %v1603
      %v1638 = vunpack.c.h.b16 %v1603
      %v1639 = vunpack.c.l.b16 %v1604
      %v1640 = vunpack.c.h.b16 %v1604
      %v1641 = vunpack.c.l.b16 %v1605
      %v1642 = vunpack.c.h.b16 %v1605
      %v1643 = vunpack.c.l.b16 %v1606
      %v1644 = vunpack.c.h.b16 %v1606
      %v1645 = vunpack.c.l.b16 %v1607
      %v1646 = vunpack.c.h.b16 %v1607
      %v1647 = vunpack.c.l.b16 %v1608
      %v1648 = vunpack.c.h.b16 %v1608
      %v1649 = vunpack.c.l.b16 %v1609
      %v1650 = vunpack.c.h.b16 %v1609
      %v1651 = vunpack.c.l.b16 %v1610
      %v1652 = vunpack.c.h.b16 %v1610
      %v1653 = vunpack.c.l.b16 %v1611
      %v1654 = vunpack.c.h.b16 %v1611
      %v1655 = vunpack.c.l.b16 %v1612
      %v1656 = vunpack.c.h.b16 %v1612
      %v1657 = vunpack.c.l.b16 %v1613
      %v1658 = vunpack.c.h.b16 %v1613
      %v1659 = vunpack.c.l.b16 %v1614
      %v1660 = vunpack.c.h.b16 %v1614
      %v1661 = vunpack.c.l.b16 %v1615
      %v1662 = vunpack.c.h.b16 %v1615
      %v1663 = vunpack.c.l.b16 %v1616
      %v1664 = vunpack.c.h.b16 %v1616
      %v1665 = vpack.c.b16 %v1633, %v1633
      %v1666 = vpack.c.b16 %v1634, %v1634
      %v1667 = vpack.c.b16 %v1635, %v1635
      %v1668 = vpack.c.b16 %v1636, %v1636
      %v1669 = vpack.c.b16 %v1637, %v1637
      %v1670 = vpack.c.b16 %v1638, %v1638
      %v1671 = vpack.c.b16 %v1639, %v1639
      %v1672 = vpack.c.b16 %v1640, %v1640
      %v1673 = vpack.c.b16 %v1641, %v1641
      %v1674 = vpack.c.b16 %v1642, %v1642
      %v1675 = vpack.c.b16 %v1643, %v1643
      %v1676 = vpack.c.b16 %v1644, %v1644
      %v1677 = vpack.c.b16 %v1645, %v1645
      %v1678 = vpack.c.b16 %v1646, %v1646
      %v1679 = vpack.c.b16 %v1647, %v1647
      %v1680 = vpack.c.b16 %v1648, %v1648
      %v1681 = vpack.c.b16 %v1649, %v1649
      %v1682 = vpack.c.b16 %v1650, %v1650
      %v1683 = vpack.c.b16 %v1651, %v1651
      %v1684 = vpack.c.b16 %v1652, %v1652
      %v1685 = vpack.c.b16 %v1653, %v1653
      %v1686 = vpack.c.b16 %v1654, %v1654
      %v1687 = vpack.c.b16 %v1655, %v1655
      %v1688 = vpack.c.b16 %v1656, %v1656
      %v1689 = vpack.c.b16 %v1657, %v1657
      %v1690 = vpack.c.b16 %v1658, %v1658
      %v1691 = vpack.c.b16 %v1659, %v1659
      %v1692 = vpack.c.b16 %v1660, %v1660
      %v1693 = vpack.c.b16 %v1661, %v1661
      %v1694 = vpack.c.b16 %v1662, %v1662
      %v1695 = vpack.c.b16 %v1663, %v1663
      %v1696 = vpack.c.b16 %v1664, %v1664
      %1729 = vst [vmem:[%s409] sm:$0xf] %v1665
      %1730 = vst [vmem:[%s409 + $0x4] sm:$0xf] %v1666
      %1731 = vst [vmem:[%s409 + $0x8] sm:$0xf] %v1667
      %1732 = vst [vmem:[%s409 + $0xc] sm:$0xf] %v1668
      %1733 = vst [vmem:[%s409 + $0x10] sm:$0xf] %v1669
      %1734 = vst [vmem:[%s409 + $0x14] sm:$0xf] %v1670
      %1735 = vst [vmem:[%s409 + $0x18] sm:$0xf] %v1671
      %1736 = vst [vmem:[%s409 + $0x1c] sm:$0xf] %v1672
      %1737 = vst [vmem:[%s409 + $0x20] sm:$0xf] %v1673
      %1738 = vst [vmem:[%s409 + $0x24] sm:$0xf] %v1674
      %1739 = vst [vmem:[%s409 + $0x28] sm:$0xf] %v1675
      %1740 = vst [vmem:[%s409 + $0x2c] sm:$0xf] %v1676
      %1741 = vst [vmem:[%s409 + $0x30] sm:$0xf] %v1677
      %1742 = vst [vmem:[%s409 + $0x34] sm:$0xf] %v1678
      %1743 = vst [vmem:[%s409 + $0x38] sm:$0xf] %v1679
      %1744 = vst [vmem:[%s409 + $0x3c] sm:$0xf] %v1680
      %1745 = vst [vmem:[%s409 + $0x40] sm:$0xf] %v1681
      %1746 = vst [vmem:[%s409 + $0x44] sm:$0xf] %v1682
      %1747 = vst [vmem:[%s409 + $0x48] sm:$0xf] %v1683
      %1748 = vst [vmem:[%s409 + $0x4c] sm:$0xf] %v1684
      %1749 = vst [vmem:[%s409 + $0x50] sm:$0xf] %v1685
      %1750 = vst [vmem:[%s409 + $0x54] sm:$0xf] %v1686
      %1751 = vst [vmem:[%s409 + $0x58] sm:$0xf] %v1687
      %1752 = vst [vmem:[%s409 + $0x5c] sm:$0xf] %v1688
      %1753 = vst [vmem:[%s409 + $0x60] sm:$0xf] %v1689
      %1754 = vst [vmem:[%s409 + $0x64] sm:$0xf] %v1690
      %1755 = vst [vmem:[%s409 + $0x68] sm:$0xf] %v1691
      %1756 = vst [vmem:[%s409 + $0x6c] sm:$0xf] %v1692
      %1757 = vst [vmem:[%s409 + $0x70] sm:$0xf] %v1693
      %1758 = vst [vmem:[%s409 + $0x74] sm:$0xf] %v1694
      %1759 = vst [vmem:[%s409 + $0x78] sm:$0xf] %v1695
      %1760 = vst [vmem:[%s409 + $0x7c] sm:$0xf] %v1696
      %s1761 = smul.u32 32, %s22
      %p1762 = scmp.lt.s32.totalorder %s1761, 63
      %s1763 = scalar_select %p1762, %s1761, 63
      %s1764 = smul.addr %s1763, 4
      %s1765 = scalar_lea.vmem %s7, %s1764
      %s1766 = smul.u32 32, %s22
      %p1767 = scmp.lt.s32.totalorder %s1766, 63
      %s1768 = scalar_select %p1767, %s1766, 63
      %s1769 = smul.addr %s1768, 4
      %s1770 = scalar_lea.vmem %s8, %s1769
      %p1771 = scmp.lt.s32.totalorder %s22, 1
      %s1772 = scalar_select %p1771, %s22, 1
      %s1773 = smul.addr %s1772, 2
      %s1774 = scalar_lea.vmem %s9, %s1773
      %p1775 = scmp.lt.s32.totalorder %s22, 1
      %s1776 = scalar_select %p1775, %s22, 1
      %s1777 = smul.addr %s1776, 2
      %s1778 = scalar_lea.vmem %s10, %s1777
      // Predicated region
      $region49: #{bottleneck_forward.6} parent=47 // pred_check
        %p1779 = pneg %p197
      $region50: #{bottleneck_forward.6} parent=47 // pred_check_branch
        %1781 = sbr.rel (%p1779) target = $region52
      $region51: #{bottleneck_forward.6} parent=47 // pred_region
        %s1782 = smul.u32 32, %s22
      $region52: #{bottleneck_forward.6} parent=47 // pred_fallthru
        _
      // Predicated region
      $region53: #{bottleneck_forward.6} parent=47 // pred_check
        %p1783 = pneg %p223
      $region54: #{bottleneck_forward.6} parent=47 // pred_check_branch
        %1785 = sbr.rel (%p1783) target = $region56
      $region55: #{bottleneck_forward.6} parent=47 // pred_region
        %s1786 = smul.u32 32, %s22
      $region56: #{bottleneck_forward.6} parent=47 // pred_fallthru
        _
      // Predicated region
      $region57: #{bottleneck_forward.6} parent=47 // pred_check
        %p1787 = pneg %p249
      $region58: #{bottleneck_forward.6} parent=47 // pred_check_branch
        %1789 = sbr.rel (%p1787) target = $region60
      $region59: #{bottleneck_forward.6} parent=47 // pred_region
        _
      $region60: #{bottleneck_forward.6} parent=47 // pred_fallthru
        _
      // Predicated region
      $region61: #{bottleneck_forward.6} parent=47 // pred_check
        %p1790 = pneg %p275
      $region62: #{bottleneck_forward.6} parent=47 // pred_check_branch
        %1792 = sbr.rel (%p1790) target = $region64
      $region63: #{bottleneck_forward.6} parent=47 // pred_region
        _
      $region64: #{bottleneck_forward.6} parent=47 // pred_fallthru
        _
    $region48: #{bottleneck_forward.6} parent=5 // pred_fallthru
      _
    %p1793 = scmp.le.s32.totalorder 2, %s17
    // Predicated region
    $region65: #{bottleneck_forward.6} parent=5 // pred_check
      %p1794 = pneg %p1793
    $region66: #{bottleneck_forward.6} parent=5 // pred_check_branch
      %1796 = sbr.rel (%p1794) target = $region68
    $region67: #{bottleneck_forward.6} parent=5 // pred_region
      %s1797 = ssub.s32 %s17, 2
      // Predicated region
      $region69: #{bottleneck_forward.6} parent=67 // pred_check
        %p1798 = pneg %p203
      $region70: #{bottleneck_forward.6} parent=67 // pred_check_branch
        %1800 = sbr.rel (%p1798) target = $region72
      $region71: #{bottleneck_forward.6} parent=67 // pred_region
        %s1801 = smul.u32 32, %s23
        %p1802 = scmp.lt.s32.totalorder %s1801, 63
        %s1803 = scalar_select %p1802, %s1801, 63
        %s1804 = smul.addr %s1803, 4
        %s1805 = scalar_lea.vmem %s7, %s1804
      $region72: #{bottleneck_forward.6} parent=67 // pred_fallthru
        _
      // Predicated region
      $region73: #{bottleneck_forward.6} parent=67 // pred_check
        %p1806 = pneg %p229
      $region74: #{bottleneck_forward.6} parent=67 // pred_check_branch
        %1808 = sbr.rel (%p1806) target = $region76
      $region75: #{bottleneck_forward.6} parent=67 // pred_region
        %s1809 = smul.u32 32, %s23
        %p1810 = scmp.lt.s32.totalorder %s1809, 63
        %s1811 = scalar_select %p1810, %s1809, 63
        %s1812 = smul.addr %s1811, 4
        %s1813 = scalar_lea.vmem %s8, %s1812
      $region76: #{bottleneck_forward.6} parent=67 // pred_fallthru
        _
      // Predicated region
      $region77: #{bottleneck_forward.6} parent=67 // pred_check
        %p1814 = pneg %p255
      $region78: #{bottleneck_forward.6} parent=67 // pred_check_branch
        %1816 = sbr.rel (%p1814) target = $region80
      $region79: #{bottleneck_forward.6} parent=67 // pred_region
        %p1817 = scmp.lt.s32.totalorder %s23, 1
        %s1818 = scalar_select %p1817, %s23, 1
        %s1819 = smul.addr %s1818, 2
        %s1820 = scalar_lea.vmem %s9, %s1819
      $region80: #{bottleneck_forward.6} parent=67 // pred_fallthru
        _
      // Predicated region
      $region81: #{bottleneck_forward.6} parent=67 // pred_check
        %p1821 = pneg %p281
      $region82: #{bottleneck_forward.6} parent=67 // pred_check_branch
        %1823 = sbr.rel (%p1821) target = $region84
      $region83: #{bottleneck_forward.6} parent=67 // pred_region
        %p1824 = scmp.lt.s32.totalorder %s23, 1
        %s1825 = scalar_select %p1824, %s23, 1
        %s1826 = smul.addr %s1825, 2
        %s1827 = scalar_lea.vmem %s10, %s1826
      $region84: #{bottleneck_forward.6} parent=67 // pred_fallthru
        _
    $region68: #{bottleneck_forward.6} parent=5 // pred_fallthru
      _
  $region6: #{bottleneck_forward.6} parent=0 // loop_footer
    %s21 = sadd.s32 1, %s17
  $region7: #{bottleneck_forward.6} parent=0 // loop_footer_branch
    %16 = sbr.rel target = $region3
  $region8: #{bottleneck_forward.6} parent=0 // loop_exit
    _

// kernel: bottleneck_forward.5
$region0: #{bottleneck_forward.5}
  #allocation0 [shape = 'u32[]', space=smem, size = 0x4, offset = 0x4, fixed_abs, tag = 'smem constant byte address 0x4 - core index']
  #allocation1 [shape = 'u32[144,128]{1,0:T(1,128)}', space=vmem, size = 0x12000, scoped, tag = 'internal scratch']
  #allocation2 [shape = 'bf16[18,18,128]{2,1,0:T(8,128)(2,1)}', space=vmem, size = 0x1b000, scoped, tag = 'scratch operand']
  #allocation3 [shape = 'bf16[256,1152]{1,0:T(16,128)(2,1)}', space=vmem, size = 0x90000, scoped, tag = 'scratch operand']
  %s0 = inlined_call_operand.vmem [shape: bf16[2,16,16,128], index: 0, kind: input, shape index: {}]
  %s1 = inlined_call_operand.vmem [shape: f32[2,2,128], index: 1, kind: input, shape index: {}]
  %s2 = inlined_call_operand.vmem [shape: f32[1,128], index: 2, kind: input, shape index: {}]
  %s3 = inlined_call_operand.vmem [shape: f32[1,128], index: 3, kind: input, shape index: {}]
  %s4 = inlined_call_operand.vmem [shape: bf16[1152,128], index: 4, kind: input, shape index: {}]
  %s5 = inlined_call_operand.vmem [shape: bf16[2,16,16,128], index: 5, kind: output, shape index: {0}]
  %s6 = inlined_call_operand.vmem [shape: f32[2,2,128], index: 6, kind: output, shape index: {1}]
  %7 = xla_tuple %s5, %s6
  %s8 = sld [smem:[#allocation0]]
  $region61: #{bottleneck_forward.5} parent=0
    _
  %s10 = ssub.s32 1, %s8
  %s11 = scalar_select 0, %s10, %s8
  loop: start=0, step=1, limit=4
  $region2: #{bottleneck_forward.5} parent=0 // loop_pre_header
    _
  $region3: #{bottleneck_forward.5} parent=0 // loop_header
    %s13 = sphi 0, %s17
    %p14 = scmp.ge.s32.totalorder %s13, 4
    %s23 = sphi 0, %s25
    %s26 = sphi 0, %s23
    %s27 = sphi 0, %s26
    %s43 = sphi 0, %s27
    %s47 = sphi 0, %s47
    %s49 = sphi 0, %s47
    %s50 = sphi 0, %s49
    %s64 = sphi 0, %s50
    %s68 = sphi 0, %s68
    %s70 = sphi 0, %s68
    %s71 = sphi 0, %s70
    %s85 = sphi 0, %s71
    %s89 = sphi 0, %s89
    %s91 = sphi 0, %s89
    %s92 = sphi 0, %s91
    %s106 = sphi 0, %s92
    %s110 = sphi 0, %s110
    %s112 = sphi 0, %s110
    %s113 = sphi 0, %s112
    %s127 = sphi 0, %s113
    %s133 = sphi 0, %s135
    %s136 = sphi 0, %s133
    %s137 = sphi 0, %s136
    %s153 = sphi 0, %s137
    %s159 = sphi 0, %s161
    %s162 = sphi 0, %s159
    %s163 = sphi 0, %s162
    %s179 = sphi 0, %s163
  $region4: #{bottleneck_forward.5} parent=0 // loop_header_branch
    %16 = sbr.rel (%p14) target = $region8
  $region5: #{bottleneck_forward.5} parent=0 // loop_body
    %s18 = ssub.s32 %s13, 1
    %s19 = ssub.s32 %s13, 2
    %s20 = sadd.s32 %s13, 1
    %s21 = ssub.s32 %s13, %s20
    %p22 = scmp.eq.s32.totalorder %s21, 0
    %s24 = sadd.s32 %s23, 1
    %s25 = scalar_select %p22, %s23, %s24
    %p28 = pneg %p22
    %p29 = scmp.eq.s32.totalorder %s13, 1
    %p30 = por %p28, %p29
    %p31 = scmp.ne.s32.totalorder %s23, %s26
    %p32 = scmp.eq.s32.totalorder %s13, 0
    %p33 = por %p31, %p32
    %p34 = scmp.ne.s32.totalorder %s23, %s26
    %p35 = scmp.eq.s32.totalorder %s18, 1
    %p36 = por %p34, %p35
    %p37 = scmp.ne.s32.totalorder %s26, %s27
    %p38 = scmp.eq.s32.totalorder %s18, 0
    %p39 = por %p37, %p38
    %p40 = scmp.ne.s32.totalorder %s26, %s27
    %p41 = scmp.eq.s32.totalorder %s19, 1
    %p42 = por %p40, %p41
    %p44 = scmp.ne.s32.totalorder %s27, %s43
    %p45 = scmp.eq.s32.totalorder %s19, 0
    %p46 = por %p44, %p45
    %s48 = sadd.s32 %s47, 1
    %p51 = scmp.eq.s32.totalorder %s13, 1
    %p52 = scmp.ne.s32.totalorder %s47, %s49
    %p53 = scmp.eq.s32.totalorder %s13, 0
    %p54 = por %p52, %p53
    %p55 = scmp.ne.s32.totalorder %s47, %s49
    %p56 = scmp.eq.s32.totalorder %s18, 1
    %p57 = por %p55, %p56
    %p58 = scmp.ne.s32.totalorder %s49, %s50
    %p59 = scmp.eq.s32.totalorder %s18, 0
    %p60 = por %p58, %p59
    %p61 = scmp.ne.s32.totalorder %s49, %s50
    %p62 = scmp.eq.s32.totalorder %s19, 1
    %p63 = por %p61, %p62
    %p65 = scmp.ne.s32.totalorder %s50, %s64
    %p66 = scmp.eq.s32.totalorder %s19, 0
    %p67 = por %p65, %p66
    %s69 = sadd.s32 %s68, 1
    %p72 = scmp.eq.s32.totalorder %s13, 1
    %p73 = scmp.ne.s32.totalorder %s68, %s70
    %p74 = scmp.eq.s32.totalorder %s13, 0
    %p75 = por %p73, %p74
    %p76 = scmp.ne.s32.totalorder %s68, %s70
    %p77 = scmp.eq.s32.totalorder %s18, 1
    %p78 = por %p76, %p77
    %p79 = scmp.ne.s32.totalorder %s70, %s71
    %p80 = scmp.eq.s32.totalorder %s18, 0
    %p81 = por %p79, %p80
    %p82 = scmp.ne.s32.totalorder %s70, %s71
    %p83 = scmp.eq.s32.totalorder %s19, 1
    %p84 = por %p82, %p83
    %p86 = scmp.ne.s32.totalorder %s71, %s85
    %p87 = scmp.eq.s32.totalorder %s19, 0
    %p88 = por %p86, %p87
    %s90 = sadd.s32 %s89, 1
    %p93 = scmp.eq.s32.totalorder %s13, 1
    %p94 = scmp.ne.s32.totalorder %s89, %s91
    %p95 = scmp.eq.s32.totalorder %s13, 0
    %p96 = por %p94, %p95
    %p97 = scmp.ne.s32.totalorder %s89, %s91
    %p98 = scmp.eq.s32.totalorder %s18, 1
    %p99 = por %p97, %p98
    %p100 = scmp.ne.s32.totalorder %s91, %s92
    %p101 = scmp.eq.s32.totalorder %s18, 0
    %p102 = por %p100, %p101
    %p103 = scmp.ne.s32.totalorder %s91, %s92
    %p104 = scmp.eq.s32.totalorder %s19, 1
    %p105 = por %p103, %p104
    %p107 = scmp.ne.s32.totalorder %s92, %s106
    %p108 = scmp.eq.s32.totalorder %s19, 0
    %p109 = por %p107, %p108
    %s111 = sadd.s32 %s110, 1
    %p114 = scmp.eq.s32.totalorder %s13, 1
    %p115 = scmp.ne.s32.totalorder %s110, %s112
    %p116 = scmp.eq.s32.totalorder %s13, 0
    %p117 = por %p115, %p116
    %p118 = scmp.ne.s32.totalorder %s110, %s112
    %p119 = scmp.eq.s32.totalorder %s18, 1
    %p120 = por %p118, %p119
    %p121 = scmp.ne.s32.totalorder %s112, %s113
    %p122 = scmp.eq.s32.totalorder %s18, 0
    %p123 = por %p121, %p122
    %p124 = scmp.ne.s32.totalorder %s112, %s113
    %p125 = scmp.eq.s32.totalorder %s19, 1
    %p126 = por %p124, %p125
    %p128 = scmp.ne.s32.totalorder %s113, %s127
    %p129 = scmp.eq.s32.totalorder %s19, 0
    %p130 = por %p128, %p129
    %s131 = ssub.s32 %s13, %s20
    %p132 = scmp.eq.s32.totalorder %s131, 0
    %s134 = sadd.s32 %s133, 1
    %s135 = scalar_select %p132, %s133, %s134
    %p138 = pneg %p132
    %p139 = scmp.eq.s32.totalorder %s13, 1
    %p140 = por %p138, %p139
    %p141 = scmp.ne.s32.totalorder %s133, %s136
    %p142 = scmp.eq.s32.totalorder %s13, 0
    %p143 = por %p141, %p142
    %p144 = scmp.ne.s32.totalorder %s133, %s136
    %p145 = scmp.eq.s32.totalorder %s18, 1
    %p146 = por %p144, %p145
    %p147 = scmp.ne.s32.totalorder %s136, %s137
    %p148 = scmp.eq.s32.totalorder %s18, 0
    %p149 = por %p147, %p148
    %p150 = scmp.ne.s32.totalorder %s136, %s137
    %p151 = scmp.eq.s32.totalorder %s19, 1
    %p152 = por %p150, %p151
    %p154 = scmp.ne.s32.totalorder %s137, %s153
    %p155 = scmp.eq.s32.totalorder %s19, 0
    %p156 = por %p154, %p155
    %s157 = ssub.s32 %s13, %s20
    %p158 = scmp.eq.s32.totalorder %s157, 0
    %s160 = sadd.s32 %s159, 1
    %s161 = scalar_select %p158, %s159, %s160
    %p164 = pneg %p158
    %p165 = scmp.eq.s32.totalorder %s13, 1
    %p166 = por %p164, %p165
    %p167 = scmp.ne.s32.totalorder %s159, %s162
    %p168 = scmp.eq.s32.totalorder %s13, 0
    %p169 = por %p167, %p168
    %p170 = scmp.ne.s32.totalorder %s159, %s162
    %p171 = scmp.eq.s32.totalorder %s18, 1
    %p172 = por %p170, %p171
    %p173 = scmp.ne.s32.totalorder %s162, %s163
    %p174 = scmp.eq.s32.totalorder %s18, 0
    %p175 = por %p173, %p174
    %p176 = scmp.ne.s32.totalorder %s162, %s163
    %p177 = scmp.eq.s32.totalorder %s19, 1
    %p178 = por %p176, %p177
    %p180 = scmp.ne.s32.totalorder %s163, %s179
    %p181 = scmp.eq.s32.totalorder %s19, 0
    %p182 = por %p180, %p181
    %p183 = scmp.le.s32.totalorder 1, %s13
    %p184 = scmp.lt.s32.totalorder %s13, 3
    %p185 = pnand %p183, %p184
    %p186 = pneg %p185
    // Predicated region
    $region9: #{bottleneck_forward.5} parent=5 // pred_check
      _
    $region10: #{bottleneck_forward.5} parent=5 // pred_check_branch
      %188 = sbr.rel (%p185) target = $region12
    $region11: #{bottleneck_forward.5} parent=5 // pred_region
      %s189 = ssub.s32 %s13, 1
      // Predicated region
      $region13: #{bottleneck_forward.5} parent=11 // pred_check
        %p190 = pneg %p60
      $region14: #{bottleneck_forward.5} parent=11 // pred_check_branch
        %192 = sbr.rel (%p190) target = $region16
      $region15: #{bottleneck_forward.5} parent=11 // pred_region
        _
      $region16: #{bottleneck_forward.5} parent=11 // pred_fallthru
        _
      // Predicated region
      $region17: #{bottleneck_forward.5} parent=11 // pred_check
        %p193 = pneg %p81
      $region18: #{bottleneck_forward.5} parent=11 // pred_check_branch
        %195 = sbr.rel (%p193) target = $region20
      $region19: #{bottleneck_forward.5} parent=11 // pred_region
        _
      $region20: #{bottleneck_forward.5} parent=11 // pred_fallthru
        _
      // Predicated region
      $region21: #{bottleneck_forward.5} parent=11 // pred_check
        %p196 = pneg %p102
      $region22: #{bottleneck_forward.5} parent=11 // pred_check_branch
        %198 = sbr.rel (%p196) target = $region24
      $region23: #{bottleneck_forward.5} parent=11 // pred_region
        _
      $region24: #{bottleneck_forward.5} parent=11 // pred_fallthru
        _
      // Predicated region
      $region25: #{bottleneck_forward.5} parent=11 // pred_check
        %p199 = pneg %p123
      $region26: #{bottleneck_forward.5} parent=11 // pred_check_branch
        %201 = sbr.rel (%p199) target = $region28
      $region27: #{bottleneck_forward.5} parent=11 // pred_region
        _
      $region28: #{bottleneck_forward.5} parent=11 // pred_fallthru
        _
    $region12: #{bottleneck_forward.5} parent=5 // pred_fallthru
      _
    %p202 = scmp.lt.s32.totalorder %s13, 2
    // Predicated region
    $region29: #{bottleneck_forward.5} parent=5 // pred_check
      %p203 = pneg %p202
    $region30: #{bottleneck_forward.5} parent=5 // pred_check_branch
      %205 = sbr.rel (%p203) target = $region32
    $region31: #{bottleneck_forward.5} parent=5 // pred_region
      // Predicated region
      $region33: #{bottleneck_forward.5} parent=31 // pred_check
        %p206 = pneg %p33
      $region34: #{bottleneck_forward.5} parent=31 // pred_check_branch
        %208 = sbr.rel (%p206) target = $region36
      $region35: #{bottleneck_forward.5} parent=31 // pred_region
        %p209 = scmp.lt.s32.totalorder %s13, 1
        %s210 = scalar_select %p209, %s13, 1
        %s211 = smul.addr %s210, 32
        %s212 = smul.addr %s211, 4
        %s213 = scalar_lea.vmem %s0, %s212
      $region36: #{bottleneck_forward.5} parent=31 // pred_fallthru
        _
    $region32: #{bottleneck_forward.5} parent=5 // pred_fallthru
      _
    %p214 = scmp.le.s32.totalorder 1, %s13
    %p215 = scmp.lt.s32.totalorder %s13, 3
    %p216 = pnand %p214, %p215
    %p217 = pneg %p216
    // Predicated region
    $region37: #{bottleneck_forward.5} parent=5 // pred_check
      _
    $region38: #{bottleneck_forward.5} parent=5 // pred_check_branch
      %219 = sbr.rel (%p216) target = $region40
    $region39: #{bottleneck_forward.5} parent=5 // pred_region
      %s220 = ssub.s32 %s13, 1
      %p221 = scmp.lt.s32.totalorder %s18, 1
      %s222 = scalar_select %p221, %s18, 1
      %s223 = smul.addr %s222, 32
      %s224 = smul.addr %s223, 4
      %s225 = scalar_lea.vmem %s0, %s224
      %p226 = pneg %p39
      %p227 = pneg %p36
      %p228 = pneg %p60
      %p229 = pneg %p57
      %p230 = pneg %p81
      %p231 = pneg %p78
      %p232 = pneg %p102
      %p233 = pneg %p99
      %p234 = pneg %p123
      %p235 = pneg %p120
      %p236 = pneg %p149
      %p237 = pneg %p146
      %p238 = scmp.lt.s32.totalorder %s18, 1
      %s239 = scalar_select %p238, %s18, 1
      %s240 = smul.addr %s239, 32
      %s241 = smul.addr %s240, 4
      %s242 = scalar_lea.vmem %s5, %s241
      %p243 = pneg %p175
      %p244 = pneg %p172
      %p245 = scmp.lt.s32.totalorder %s18, 1
      %s246 = scalar_select %p245, %s18, 1
      %s247 = smul.addr %s246, 2
      %s248 = scalar_lea.vmem %s6, %s247
      %p249 = scmp.lt.s32.totalorder %s18, 1
      %s250 = scalar_select %p249, %s18, 1
      %s251 = smul.addr %s250, 32
      %s252 = smul.addr %s251, 4
      %s253 = scalar_lea.vmem %s0, %s252
      %p254 = scmp.lt.s32.totalorder %s18, 1
      %s255 = scalar_select %p254, %s18, 1
      %s256 = smul.addr %s255, 32
      %s257 = smul.addr %s256, 4
      %s258 = scalar_lea.vmem %s5, %s257
      %p259 = scmp.lt.s32.totalorder %s18, 1
      %s260 = scalar_select %p259, %s18, 1
      %s261 = smul.addr %s260, 2
      %s262 = scalar_lea.vmem %s6, %s261
      %v264 = vld [vmem:[%s1] sm:$0x3]
      %v265 = vld [vmem:[%s1 + $0x2] sm:$0x3]
      %v266 = vld [vmem:[%s2] sm:$0x1]
      %v267 = vld [vmem:[%s3] sm:$0x1]
      %vm268 = vcmask 1041408
      %v269 = vsel %vm268, %v264, 0.0
      %v270 = vsel %vm268, %v265, 0.0
      %v271 = vadd.f32 %v269, %v270
      %v272 = vrcp.pop 512.0
      %v273 = vmul.f32 %v271, %v272
      %v274 = vmul.f32 %v273, %v273
      %v276 = vrot.slane %v274, 7
      %v278 = vsub.f32 %v273, %v276
      %v279 = vmax.f32 %v278, 0.0
      %v280 = vadd.f32 %v279, 1e-05
      %v281 = vrsqrt.pop %v280
      %v284 = vunpack.c.l.s4 1966171168
      %v285 = vunpack.c.0.s8 %v284
      %v286 = vlaneseq
      %v287 = vshrl.u32 %v286, 7
      %v288 = vsub.s32 %v285, %v287
      %v289 = vrot.slane %v281, %v288
      %v290 = vcombine.high %v289, %v289
      %v292 = vunpack.c.l.s4 1966171168
      %v293 = vunpack.c.0.s8 %v292
      %v294 = vlaneseq
      %v295 = vshrl.u32 %v294, 7
      %v296 = vsub.s32 %v293, %v295
      %v297 = vrot.slane %v290, %v296
      %v299 = vmul.f32 %v266, %v297
      %v300 = vmul.f32 %v273, %v299
      %v301 = vsub.f32 %v267, %v300
      %v302 = vld [vmem:[%s253] sm:$0xf]
      %v303 = vld [vmem:[%s253 + $0x4] sm:$0xf]
      %v304 = vld [vmem:[%s253 + $0x8] sm:$0xf]
      %v305 = vld [vmem:[%s253 + $0xc] sm:$0xf]
      %v306 = vld [vmem:[%s253 + $0x10] sm:$0xf]
      %v307 = vld [vmem:[%s253 + $0x14] sm:$0xf]
      %v308 = vld [vmem:[%s253 + $0x18] sm:$0xf]
      %v309 = vld [vmem:[%s253 + $0x1c] sm:$0xf]
      %v310 = vld [vmem:[%s253 + $0x20] sm:$0xf]
      %v311 = vld [vmem:[%s253 + $0x24] sm:$0xf]
      %v312 = vld [vmem:[%s253 + $0x28] sm:$0xf]
      %v313 = vld [vmem:[%s253 + $0x2c] sm:$0xf]
      %v314 = vld [vmem:[%s253 + $0x30] sm:$0xf]
      %v315 = vld [vmem:[%s253 + $0x34] sm:$0xf]
      %v316 = vld [vmem:[%s253 + $0x38] sm:$0xf]
      %v317 = vld [vmem:[%s253 + $0x3c] sm:$0xf]
      %v318 = vld [vmem:[%s253 + $0x40] sm:$0xf]
      %v319 = vld [vmem:[%s253 + $0x44] sm:$0xf]
      %v320 = vld [vmem:[%s253 + $0x48] sm:$0xf]
      %v321 = vld [vmem:[%s253 + $0x4c] sm:$0xf]
      %v322 = vld [vmem:[%s253 + $0x50] sm:$0xf]
      %v323 = vld [vmem:[%s253 + $0x54] sm:$0xf]
      %v324 = vld [vmem:[%s253 + $0x58] sm:$0xf]
      %v325 = vld [vmem:[%s253 + $0x5c] sm:$0xf]
      %v326 = vld [vmem:[%s253 + $0x60] sm:$0xf]
      %v327 = vld [vmem:[%s253 + $0x64] sm:$0xf]
      %v328 = vld [vmem:[%s253 + $0x68] sm:$0xf]
      %v329 = vld [vmem:[%s253 + $0x6c] sm:$0xf]
      %v330 = vld [vmem:[%s253 + $0x70] sm:$0xf]
      %v331 = vld [vmem:[%s253 + $0x74] sm:$0xf]
      %v332 = vld [vmem:[%s253 + $0x78] sm:$0xf]
      %v333 = vld [vmem:[%s253 + $0x7c] sm:$0xf]
      %v334 = vunpack.c.l.bf16 %v302
      %v335 = vunpack.c.l.bf16 %v303
      %v336 = vunpack.c.l.bf16 %v304
      %v337 = vunpack.c.l.bf16 %v305
      %v338 = vunpack.c.l.bf16 %v306
      %v339 = vunpack.c.l.bf16 %v307
      %v340 = vunpack.c.l.bf16 %v308
      %v341 = vunpack.c.l.bf16 %v309
      %v342 = vunpack.c.l.bf16 %v310
      %v343 = vunpack.c.l.bf16 %v311
      %v344 = vunpack.c.l.bf16 %v312
      %v345 = vunpack.c.l.bf16 %v313
      %v346 = vunpack.c.l.bf16 %v314
      %v347 = vunpack.c.l.bf16 %v315
      %v348 = vunpack.c.l.bf16 %v316
      %v349 = vunpack.c.l.bf16 %v317
      %v350 = vunpack.c.l.bf16 %v318
      %v351 = vunpack.c.l.bf16 %v319
      %v352 = vunpack.c.l.bf16 %v320
      %v353 = vunpack.c.l.bf16 %v321
      %v354 = vunpack.c.l.bf16 %v322
      %v355 = vunpack.c.l.bf16 %v323
      %v356 = vunpack.c.l.bf16 %v324
      %v357 = vunpack.c.l.bf16 %v325
      %v358 = vunpack.c.l.bf16 %v326
      %v359 = vunpack.c.l.bf16 %v327
      %v360 = vunpack.c.l.bf16 %v328
      %v361 = vunpack.c.l.bf16 %v329
      %v362 = vunpack.c.l.bf16 %v330
      %v363 = vunpack.c.l.bf16 %v331
      %v364 = vunpack.c.l.bf16 %v332
      %v365 = vunpack.c.l.bf16 %v333
      %v367 = vlaneseq
      %v368 = vshrl.u32 %v367, 7
      %v369 = vsub.s32 0, %v368
      %v370 = vrot.slane %v299, %v369
      %v372 = vmul.f32 %v334, %v370
      %v373 = vmul.f32 %v335, %v370
      %v374 = vmul.f32 %v336, %v370
      %v375 = vmul.f32 %v337, %v370
      %v376 = vmul.f32 %v338, %v370
      %v377 = vmul.f32 %v339, %v370
      %v378 = vmul.f32 %v340, %v370
      %v379 = vmul.f32 %v341, %v370
      %v380 = vmul.f32 %v342, %v370
      %v381 = vmul.f32 %v343, %v370
      %v382 = vmul.f32 %v344, %v370
      %v383 = vmul.f32 %v345, %v370
      %v384 = vmul.f32 %v346, %v370
      %v385 = vmul.f32 %v347, %v370
      %v386 = vmul.f32 %v348, %v370
      %v387 = vmul.f32 %v349, %v370
      %v388 = vmul.f32 %v350, %v370
      %v389 = vmul.f32 %v351, %v370
      %v390 = vmul.f32 %v352, %v370
      %v391 = vmul.f32 %v353, %v370
      %v392 = vmul.f32 %v354, %v370
      %v393 = vmul.f32 %v355, %v370
      %v394 = vmul.f32 %v356, %v370
      %v395 = vmul.f32 %v357, %v370
      %v396 = vmul.f32 %v358, %v370
      %v397 = vmul.f32 %v359, %v370
      %v398 = vmul.f32 %v360, %v370
      %v399 = vmul.f32 %v361, %v370
      %v400 = vmul.f32 %v362, %v370
      %v401 = vmul.f32 %v363, %v370
      %v402 = vmul.f32 %v364, %v370
      %v403 = vmul.f32 %v365, %v370
      %v405 = vlaneseq
      %v406 = vshrl.u32 %v405, 7
      %v407 = vsub.s32 0, %v406
      %v408 = vrot.slane %v301, %v407
      %v410 = vadd.f32 %v372, %v408
      %v411 = vadd.f32 %v373, %v408
      %v412 = vadd.f32 %v374, %v408
      %v413 = vadd.f32 %v375, %v408
      %v414 = vadd.f32 %v376, %v408
      %v415 = vadd.f32 %v377, %v408
      %v416 = vadd.f32 %v378, %v408
      %v417 = vadd.f32 %v379, %v408
      %v418 = vadd.f32 %v380, %v408
      %v419 = vadd.f32 %v381, %v408
      %v420 = vadd.f32 %v382, %v408
      %v421 = vadd.f32 %v383, %v408
      %v422 = vadd.f32 %v384, %v408
      %v423 = vadd.f32 %v385, %v408
      %v424 = vadd.f32 %v386, %v408
      %v425 = vadd.f32 %v387, %v408
      %v426 = vadd.f32 %v388, %v408
      %v427 = vadd.f32 %v389, %v408
      %v428 = vadd.f32 %v390, %v408
      %v429 = vadd.f32 %v391, %v408
      %v430 = vadd.f32 %v392, %v408
      %v431 = vadd.f32 %v393, %v408
      %v432 = vadd.f32 %v394, %v408
      %v433 = vadd.f32 %v395, %v408
      %v434 = vadd.f32 %v396, %v408
      %v435 = vadd.f32 %v397, %v408
      %v436 = vadd.f32 %v398, %v408
      %v437 = vadd.f32 %v399, %v408
      %v438 = vadd.f32 %v400, %v408
      %v439 = vadd.f32 %v401, %v408
      %v440 = vadd.f32 %v402, %v408
      %v441 = vadd.f32 %v403, %v408
      %v442 = vmax.f32 %v410, 0.0
      %v443 = vmax.f32 %v411, 0.0
      %v444 = vmax.f32 %v412, 0.0
      %v445 = vmax.f32 %v413, 0.0
      %v446 = vmax.f32 %v414, 0.0
      %v447 = vmax.f32 %v415, 0.0
      %v448 = vmax.f32 %v416, 0.0
      %v449 = vmax.f32 %v417, 0.0
      %v450 = vmax.f32 %v418, 0.0
      %v451 = vmax.f32 %v419, 0.0
      %v452 = vmax.f32 %v420, 0.0
      %v453 = vmax.f32 %v421, 0.0
      %v454 = vmax.f32 %v422, 0.0
      %v455 = vmax.f32 %v423, 0.0
      %v456 = vmax.f32 %v424, 0.0
      %v457 = vmax.f32 %v425, 0.0
      %v458 = vmax.f32 %v426, 0.0
      %v459 = vmax.f32 %v427, 0.0
      %v460 = vmax.f32 %v428, 0.0
      %v461 = vmax.f32 %v429, 0.0
      %v462 = vmax.f32 %v430, 0.0
      %v463 = vmax.f32 %v431, 0.0
      %v464 = vmax.f32 %v432, 0.0
      %v465 = vmax.f32 %v433, 0.0
      %v466 = vmax.f32 %v434, 0.0
      %v467 = vmax.f32 %v435, 0.0
      %v468 = vmax.f32 %v436, 0.0
      %v469 = vmax.f32 %v437, 0.0
      %v470 = vmax.f32 %v438, 0.0
      %v471 = vmax.f32 %v439, 0.0
      %v472 = vmax.f32 %v440, 0.0
      %v473 = vmax.f32 %v441, 0.0
      %474 = vst [vmem:[#allocation2] sm:$0xf] 0
      %475 = vst [vmem:[#allocation2 + $0x4] sm:$0xf] 0
      %476 = vst [vmem:[#allocation2 + $0x8] sm:$0x1] 0
      %s477 = scalar_lea.vmem [#allocation2], 204
      %478 = vst [vmem:[%s477] sm:$0xf] 0
      %479 = vst [vmem:[%s477 + $0x4] sm:$0xf] 0
      %480 = vst [vmem:[%s477 + $0x8] sm:$0x1] 0
      %vm481 = vcmask 1040384
      %vm482 = vsmask.f32 256
      %vm483 = vmand %vm481, %vm482
      %v484 = vld [vmem:[#allocation2] sm:$0x1]
      %v485 = vsel %vm483, 0, %v484
      %486 = vst [vmem:[#allocation2] sm:$0x1] %v485
      %v487 = vld [vmem:[#allocation2 + $0xc] sm:$0x1]
      %v488 = vsel %vm483, 0, %v487
      %489 = vst [vmem:[#allocation2 + $0xc] sm:$0x1] %v488
      %v490 = vld [vmem:[#allocation2 + $0x18] sm:$0x1]
      %v491 = vsel %vm483, 0, %v490
      %492 = vst [vmem:[#allocation2 + $0x18] sm:$0x1] %v491
      %v493 = vld [vmem:[#allocation2 + $0x24] sm:$0x1]
      %v494 = vsel %vm483, 0, %v493
      %495 = vst [vmem:[#allocation2 + $0x24] sm:$0x1] %v494
      %v496 = vld [vmem:[#allocation2 + $0x30] sm:$0x1]
      %v497 = vsel %vm483, 0, %v496
      %498 = vst [vmem:[#allocation2 + $0x30] sm:$0x1] %v497
      %v499 = vld [vmem:[#allocation2 + $0x3c] sm:$0x1]
      %v500 = vsel %vm483, 0, %v499
      %501 = vst [vmem:[#allocation2 + $0x3c] sm:$0x1] %v500
      %v502 = vld [vmem:[#allocation2 + $0x48] sm:$0x1]
      %v503 = vsel %vm483, 0, %v502
      %504 = vst [vmem:[#allocation2 + $0x48] sm:$0x1] %v503
      %v505 = vld [vmem:[#allocation2 + $0x54] sm:$0x1]
      %v506 = vsel %vm483, 0, %v505
      %507 = vst [vmem:[#allocation2 + $0x54] sm:$0x1] %v506
      %v508 = vld [vmem:[#allocation2 + $0x60] sm:$0x1]
      %v509 = vsel %vm483, 0, %v508
      %510 = vst [vmem:[#allocation2 + $0x60] sm:$0x1] %v509
      %v511 = vld [vmem:[#allocation2 + $0x6c] sm:$0x1]
      %v512 = vsel %vm483, 0, %v511
      %513 = vst [vmem:[#allocation2 + $0x6c] sm:$0x1] %v512
      %v514 = vld [vmem:[#allocation2 + $0x78] sm:$0x1]
      %v515 = vsel %vm483, 0, %v514
      %516 = vst [vmem:[#allocation2 + $0x78] sm:$0x1] %v515
      %v517 = vld [vmem:[#allocation2 + $0x84] sm:$0x1]
      %v518 = vsel %vm483, 0, %v517
      %519 = vst [vmem:[#allocation2 + $0x84] sm:$0x1] %v518
      %v520 = vld [vmem:[#allocation2 + $0x90] sm:$0x1]
      %v521 = vsel %vm483, 0, %v520
      %522 = vst [vmem:[#allocation2 + $0x90] sm:$0x1] %v521
      %v523 = vld [vmem:[#allocation2 + $0x9c] sm:$0x1]
      %v524 = vsel %vm483, 0, %v523
      %525 = vst [vmem:[#allocation2 + $0x9c] sm:$0x1] %v524
      %v526 = vld [vmem:[#allocation2 + $0xa8] sm:$0x1]
      %v527 = vsel %vm483, 0, %v526
      %528 = vst [vmem:[#allocation2 + $0xa8] sm:$0x1] %v527
      %v529 = vld [vmem:[#allocation2 + $0xb4] sm:$0x1]
      %v530 = vsel %vm483, 0, %v529
      %531 = vst [vmem:[#allocation2 + $0xb4] sm:$0x1] %v530
      %v532 = vld [vmem:[#allocation2 + $0xc0] sm:$0x1]
      %v533 = vsel %vm483, 0, %v532
      %534 = vst [vmem:[#allocation2 + $0xc0] sm:$0x1] %v533
      %v535 = vld [vmem:[#allocation2 + $0xcc] sm:$0x1]
      %v536 = vsel %vm483, 0, %v535
      %537 = vst [vmem:[#allocation2 + $0xcc] sm:$0x1] %v536
      %vm538 = vsmask.f32 7938
      %vm539 = vmand %vm481, %vm538
      %v540 = vld [vmem:[#allocation2 + $0x8] sm:$0x1]
      %v541 = vsel %vm539, 0, %v540
      %542 = vst [vmem:[#allocation2 + $0x8] sm:$0x1] %v541
      %v543 = vld [vmem:[#allocation2 + $0x14] sm:$0x1]
      %v544 = vsel %vm539, 0, %v543
      %545 = vst [vmem:[#allocation2 + $0x14] sm:$0x1] %v544
      %v546 = vld [vmem:[#allocation2 + $0x20] sm:$0x1]
      %v547 = vsel %vm539, 0, %v546
      %548 = vst [vmem:[#allocation2 + $0x20] sm:$0x1] %v547
      %v549 = vld [vmem:[#allocation2 + $0x2c] sm:$0x1]
      %v550 = vsel %vm539, 0, %v549
      %551 = vst [vmem:[#allocation2 + $0x2c] sm:$0x1] %v550
      %v552 = vld [vmem:[#allocation2 + $0x38] sm:$0x1]
      %v553 = vsel %vm539, 0, %v552
      %554 = vst [vmem:[#allocation2 + $0x38] sm:$0x1] %v553
      %v555 = vld [vmem:[#allocation2 + $0x44] sm:$0x1]
      %v556 = vsel %vm539, 0, %v555
      %557 = vst [vmem:[#allocation2 + $0x44] sm:$0x1] %v556
      %v558 = vld [vmem:[#allocation2 + $0x50] sm:$0x1]
      %v559 = vsel %vm539, 0, %v558
      %560 = vst [vmem:[#allocation2 + $0x50] sm:$0x1] %v559
      %v561 = vld [vmem:[#allocation2 + $0x5c] sm:$0x1]
      %v562 = vsel %vm539, 0, %v561
      %563 = vst [vmem:[#allocation2 + $0x5c] sm:$0x1] %v562
      %v564 = vld [vmem:[#allocation2 + $0x68] sm:$0x1]
      %v565 = vsel %vm539, 0, %v564
      %566 = vst [vmem:[#allocation2 + $0x68] sm:$0x1] %v565
      %v567 = vld [vmem:[#allocation2 + $0x74] sm:$0x1]
      %v568 = vsel %vm539, 0, %v567
      %569 = vst [vmem:[#allocation2 + $0x74] sm:$0x1] %v568
      %v570 = vld [vmem:[#allocation2 + $0x80] sm:$0x1]
      %v571 = vsel %vm539, 0, %v570
      %572 = vst [vmem:[#allocation2 + $0x80] sm:$0x1] %v571
      %v573 = vld [vmem:[#allocation2 + $0x8c] sm:$0x1]
      %v574 = vsel %vm539, 0, %v573
      %575 = vst [vmem:[#allocation2 + $0x8c] sm:$0x1] %v574
      %v576 = vld [vmem:[#allocation2 + $0x98] sm:$0x1]
      %v577 = vsel %vm539, 0, %v576
      %578 = vst [vmem:[#allocation2 + $0x98] sm:$0x1] %v577
      %v579 = vld [vmem:[#allocation2 + $0xa4] sm:$0x1]
      %v580 = vsel %vm539, 0, %v579
      %581 = vst [vmem:[#allocation2 + $0xa4] sm:$0x1] %v580
      %v582 = vld [vmem:[#allocation2 + $0xb0] sm:$0x1]
      %v583 = vsel %vm539, 0, %v582
      %584 = vst [vmem:[#allocation2 + $0xb0] sm:$0x1] %v583
      %v585 = vld [vmem:[#allocation2 + $0xbc] sm:$0x1]
      %v586 = vsel %vm539, 0, %v585
      %587 = vst [vmem:[#allocation2 + $0xbc] sm:$0x1] %v586
      %v588 = vld [vmem:[#allocation2 + $0xc8] sm:$0x1]
      %v589 = vsel %vm539, 0, %v588
      %590 = vst [vmem:[#allocation2 + $0xc8] sm:$0x1] %v589
      %v591 = vld [vmem:[#allocation2 + $0xd4] sm:$0x1]
      %v592 = vsel %vm539, 0, %v591
      %593 = vst [vmem:[#allocation2 + $0xd4] sm:$0x1] %v592
      %v594 = vpack.c.bf16 %v443, %v442
      %v595 = vpack.c.bf16 %v445, %v444
      %v596 = vpack.c.bf16 %v447, %v446
      %v597 = vpack.c.bf16 %v449, %v448
      %v598 = vpack.c.bf16 %v451, %v450
      %v599 = vpack.c.bf16 %v453, %v452
      %v600 = vpack.c.bf16 %v455, %v454
      %v601 = vpack.c.bf16 %v457, %v456
      %v602 = vpack.c.bf16 %v459, %v458
      %v603 = vpack.c.bf16 %v461, %v460
      %v604 = vpack.c.bf16 %v463, %v462
      %v605 = vpack.c.bf16 %v465, %v464
      %v606 = vpack.c.bf16 %v467, %v466
      %v607 = vpack.c.bf16 %v469, %v468
      %v608 = vpack.c.bf16 %v471, %v470
      %v609 = vpack.c.bf16 %v473, %v472
      %v626 = vunpack.c.l.b16 %v594
      %v627 = vunpack.c.h.b16 %v594
      %v628 = vunpack.c.l.b16 %v595
      %v629 = vunpack.c.h.b16 %v595
      %v630 = vunpack.c.l.b16 %v596
      %v631 = vunpack.c.h.b16 %v596
      %v632 = vunpack.c.l.b16 %v597
      %v633 = vunpack.c.h.b16 %v597
      %v634 = vunpack.c.l.b16 %v598
      %v635 = vunpack.c.h.b16 %v598
      %v636 = vunpack.c.l.b16 %v599
      %v637 = vunpack.c.h.b16 %v599
      %v638 = vunpack.c.l.b16 %v600
      %v639 = vunpack.c.h.b16 %v600
      %v640 = vunpack.c.l.b16 %v601
      %v641 = vunpack.c.h.b16 %v601
      %v642 = vunpack.c.l.b16 %v602
      %v643 = vunpack.c.h.b16 %v602
      %v644 = vunpack.c.l.b16 %v603
      %v645 = vunpack.c.h.b16 %v603
      %v646 = vunpack.c.l.b16 %v604
      %v647 = vunpack.c.h.b16 %v604
      %v648 = vunpack.c.l.b16 %v605
      %v649 = vunpack.c.h.b16 %v605
      %v650 = vunpack.c.l.b16 %v606
      %v651 = vunpack.c.h.b16 %v606
      %v652 = vunpack.c.l.b16 %v607
      %v653 = vunpack.c.h.b16 %v607
      %v654 = vunpack.c.l.b16 %v608
      %v655 = vunpack.c.h.b16 %v608
      %v656 = vunpack.c.l.b16 %v609
      %v657 = vunpack.c.h.b16 %v609
      %v658 = vpack.c.b16 %v626, %v626
      %v659 = vpack.c.b16 %v627, %v627
      %v660 = vpack.c.b16 %v628, %v628
      %v661 = vpack.c.b16 %v629, %v629
      %v662 = vpack.c.b16 %v630, %v630
      %v663 = vpack.c.b16 %v631, %v631
      %v664 = vpack.c.b16 %v632, %v632
      %v665 = vpack.c.b16 %v633, %v633
      %v666 = vpack.c.b16 %v634, %v634
      %v667 = vpack.c.b16 %v635, %v635
      %v668 = vpack.c.b16 %v636, %v636
      %v669 = vpack.c.b16 %v637, %v637
      %v670 = vpack.c.b16 %v638, %v638
      %v671 = vpack.c.b16 %v639, %v639
      %v672 = vpack.c.b16 %v640, %v640
      %v673 = vpack.c.b16 %v641, %v641
      %v674 = vpack.c.b16 %v642, %v642
      %v675 = vpack.c.b16 %v643, %v643
      %v676 = vpack.c.b16 %v644, %v644
      %v677 = vpack.c.b16 %v645, %v645
      %v678 = vpack.c.b16 %v646, %v646
      %v679 = vpack.c.b16 %v647, %v647
      %v680 = vpack.c.b16 %v648, %v648
      %v681 = vpack.c.b16 %v649, %v649
      %v682 = vpack.c.b16 %v650, %v650
      %v683 = vpack.c.b16 %v651, %v651
      %v684 = vpack.c.b16 %v652, %v652
      %v685 = vpack.c.b16 %v653, %v653
      %v686 = vpack.c.b16 %v654, %v654
      %v687 = vpack.c.b16 %v655, %v655
      %v688 = vpack.c.b16 %v656, %v656
      %v689 = vpack.c.b16 %v657, %v657
      %vm690 = vsmask.f32 4368
      %vm691 = vmor %vm482, %vm690
      %v693 = vshrl.u32 %v658, 16
      %v695 = vrot.slane %v693, 7
      %v696 = vshll.u32 %v658, 16
      %v698 = vor.u32 %v695, %v696
      %v699 = vrot.slane %v695, 4
      %v701 = vshrl.u32 %v659, 16
      %v703 = vrot.slane %v701, 7
      %v704 = vshll.u32 %v659, 16
      %v706 = vor.u32 %v703, %v704
      %v707 = vsel %vm691, %v699, %v706
      %v708 = vrot.slane %v703, 4
      %v710 = vshrl.u32 %v660, 16
      %v712 = vrot.slane %v710, 7
      %v713 = vshll.u32 %v660, 16
      %v715 = vor.u32 %v712, %v713
      %v716 = vrot.slane %v712, 4
      %v718 = vshrl.u32 %v661, 16
      %v720 = vrot.slane %v718, 7
      %v721 = vshll.u32 %v661, 16
      %v723 = vor.u32 %v720, %v721
      %v724 = vsel %vm691, %v716, %v723
      %v725 = vrot.slane %v720, 4
      %v727 = vshrl.u32 %v662, 16
      %v729 = vrot.slane %v727, 7
      %v730 = vshll.u32 %v662, 16
      %v732 = vor.u32 %v729, %v730
      %v733 = vrot.slane %v729, 4
      %v735 = vshrl.u32 %v663, 16
      %v737 = vrot.slane %v735, 7
      %v738 = vshll.u32 %v663, 16
      %v740 = vor.u32 %v737, %v738
      %v741 = vsel %vm691, %v733, %v740
      %v742 = vrot.slane %v737, 4
      %v744 = vshrl.u32 %v664, 16
      %v746 = vrot.slane %v744, 7
      %v747 = vshll.u32 %v664, 16
      %v749 = vor.u32 %v746, %v747
      %v750 = vrot.slane %v746, 4
      %v752 = vshrl.u32 %v665, 16
      %v754 = vrot.slane %v752, 7
      %v755 = vshll.u32 %v665, 16
      %v757 = vor.u32 %v754, %v755
      %v758 = vsel %vm691, %v750, %v757
      %v759 = vrot.slane %v754, 4
      %v761 = vshrl.u32 %v666, 16
      %v763 = vrot.slane %v761, 7
      %v764 = vshll.u32 %v666, 16
      %v766 = vor.u32 %v763, %v764
      %v767 = vrot.slane %v763, 4
      %v769 = vshrl.u32 %v667, 16
      %v771 = vrot.slane %v769, 7
      %v772 = vshll.u32 %v667, 16
      %v774 = vor.u32 %v771, %v772
      %v775 = vsel %vm691, %v767, %v774
      %v776 = vrot.slane %v771, 4
      %v778 = vshrl.u32 %v668, 16
      %v780 = vrot.slane %v778, 7
      %v781 = vshll.u32 %v668, 16
      %v783 = vor.u32 %v780, %v781
      %v784 = vrot.slane %v780, 4
      %v786 = vshrl.u32 %v669, 16
      %v788 = vrot.slane %v786, 7
      %v789 = vshll.u32 %v669, 16
      %v791 = vor.u32 %v788, %v789
      %v792 = vsel %vm691, %v784, %v791
      %v793 = vrot.slane %v788, 4
      %v795 = vshrl.u32 %v670, 16
      %v797 = vrot.slane %v795, 7
      %v798 = vshll.u32 %v670, 16
      %v800 = vor.u32 %v797, %v798
      %v801 = vrot.slane %v797, 4
      %v803 = vshrl.u32 %v671, 16
      %v805 = vrot.slane %v803, 7
      %v806 = vshll.u32 %v671, 16
      %v808 = vor.u32 %v805, %v806
      %v809 = vsel %vm691, %v801, %v808
      %v810 = vrot.slane %v805, 4
      %v812 = vshrl.u32 %v672, 16
      %v814 = vrot.slane %v812, 7
      %v815 = vshll.u32 %v672, 16
      %v817 = vor.u32 %v814, %v815
      %v818 = vrot.slane %v814, 4
      %v820 = vshrl.u32 %v673, 16
      %v822 = vrot.slane %v820, 7
      %v823 = vshll.u32 %v673, 16
      %v825 = vor.u32 %v822, %v823
      %v826 = vsel %vm691, %v818, %v825
      %v827 = vrot.slane %v822, 4
      %v829 = vshrl.u32 %v674, 16
      %v831 = vrot.slane %v829, 7
      %v832 = vshll.u32 %v674, 16
      %v834 = vor.u32 %v831, %v832
      %v835 = vrot.slane %v831, 4
      %v837 = vshrl.u32 %v675, 16
      %v839 = vrot.slane %v837, 7
      %v840 = vshll.u32 %v675, 16
      %v842 = vor.u32 %v839, %v840
      %v843 = vsel %vm691, %v835, %v842
      %v844 = vrot.slane %v839, 4
      %v846 = vshrl.u32 %v676, 16
      %v848 = vrot.slane %v846, 7
      %v849 = vshll.u32 %v676, 16
      %v851 = vor.u32 %v848, %v849
      %v852 = vrot.slane %v848, 4
      %v854 = vshrl.u32 %v677, 16
      %v856 = vrot.slane %v854, 7
      %v857 = vshll.u32 %v677, 16
      %v859 = vor.u32 %v856, %v857
      %v860 = vsel %vm691, %v852, %v859
      %v861 = vrot.slane %v856, 4
      %v863 = vshrl.u32 %v678, 16
      %v865 = vrot.slane %v863, 7
      %v866 = vshll.u32 %v678, 16
      %v868 = vor.u32 %v865, %v866
      %v869 = vrot.slane %v865, 4
      %v871 = vshrl.u32 %v679, 16
      %v873 = vrot.slane %v871, 7
      %v874 = vshll.u32 %v679, 16
      %v876 = vor.u32 %v873, %v874
      %v877 = vsel %vm691, %v869, %v876
      %v878 = vrot.slane %v873, 4
      %v880 = vshrl.u32 %v680, 16
      %v882 = vrot.slane %v880, 7
      %v883 = vshll.u32 %v680, 16
      %v885 = vor.u32 %v882, %v883
      %v886 = vrot.slane %v882, 4
      %v888 = vshrl.u32 %v681, 16
      %v890 = vrot.slane %v888, 7
      %v891 = vshll.u32 %v681, 16
      %v893 = vor.u32 %v890, %v891
      %v894 = vsel %vm691, %v886, %v893
      %v895 = vrot.slane %v890, 4
      %v897 = vshrl.u32 %v682, 16
      %v899 = vrot.slane %v897, 7
      %v900 = vshll.u32 %v682, 16
      %v902 = vor.u32 %v899, %v900
      %v903 = vrot.slane %v899, 4
      %v905 = vshrl.u32 %v683, 16
      %v907 = vrot.slane %v905, 7
      %v908 = vshll.u32 %v683, 16
      %v910 = vor.u32 %v907, %v908
      %v911 = vsel %vm691, %v903, %v910
      %v912 = vrot.slane %v907, 4
      %v914 = vshrl.u32 %v684, 16
      %v916 = vrot.slane %v914, 7
      %v917 = vshll.u32 %v684, 16
      %v919 = vor.u32 %v916, %v917
      %v920 = vrot.slane %v916, 4
      %v922 = vshrl.u32 %v685, 16
      %v924 = vrot.slane %v922, 7
      %v925 = vshll.u32 %v685, 16
      %v927 = vor.u32 %v924, %v925
      %v928 = vsel %vm691, %v920, %v927
      %v929 = vrot.slane %v924, 4
      %v931 = vshrl.u32 %v686, 16
      %v933 = vrot.slane %v931, 7
      %v934 = vshll.u32 %v686, 16
      %v936 = vor.u32 %v933, %v934
      %v937 = vrot.slane %v933, 4
      %v939 = vshrl.u32 %v687, 16
      %v941 = vrot.slane %v939, 7
      %v942 = vshll.u32 %v687, 16
      %v944 = vor.u32 %v941, %v942
      %v945 = vsel %vm691, %v937, %v944
      %v946 = vrot.slane %v941, 4
      %v948 = vshrl.u32 %v688, 16
      %v950 = vrot.slane %v948, 7
      %v951 = vshll.u32 %v688, 16
      %v953 = vor.u32 %v950, %v951
      %v954 = vrot.slane %v950, 4
      %v956 = vshrl.u32 %v689, 16
      %v958 = vrot.slane %v956, 7
      %v959 = vshll.u32 %v689, 16
      %v961 = vor.u32 %v958, %v959
      %v962 = vsel %vm691, %v954, %v961
      %v963 = vrot.slane %v958, 4
      %s1012 = scalar_lea.vmem [#allocation2], 12
      %vm1013 = vcmask 1043456
      %vm1014 = vmand %vm1013, %vm538
      %v1015 = vld [vmem:[%s1012] sm:$0xf]
      %v1016 = vsel %vm1014, %v698, %v1015
      %1017 = vst [vmem:[%s1012] sm:$0xf] %v1016
      %1018 = vst [vmem:[%s1012 + $0x4] sm:$0xf] %v707
      %v1019 = vld [vmem:[%s1012 + $0x8] sm:$0x1]
      %v1020 = vsel %vm483, %v708, %v1019
      %1021 = vst [vmem:[%s1012 + $0x8] sm:$0x1] %v1020
      %v1022 = vld [vmem:[%s1012 + $0xc] sm:$0xf]
      %v1023 = vsel %vm1014, %v715, %v1022
      %1024 = vst [vmem:[%s1012 + $0xc] sm:$0xf] %v1023
      %1025 = vst [vmem:[%s1012 + $0x10] sm:$0xf] %v724
      %v1026 = vld [vmem:[%s1012 + $0x14] sm:$0x1]
      %v1027 = vsel %vm483, %v725, %v1026
      %1028 = vst [vmem:[%s1012 + $0x14] sm:$0x1] %v1027
      %v1029 = vld [vmem:[%s1012 + $0x18] sm:$0xf]
      %v1030 = vsel %vm1014, %v732, %v1029
      %1031 = vst [vmem:[%s1012 + $0x18] sm:$0xf] %v1030
      %1032 = vst [vmem:[%s1012 + $0x1c] sm:$0xf] %v741
      %v1033 = vld [vmem:[%s1012 + $0x20] sm:$0x1]
      %v1034 = vsel %vm483, %v742, %v1033
      %1035 = vst [vmem:[%s1012 + $0x20] sm:$0x1] %v1034
      %v1036 = vld [vmem:[%s1012 + $0x24] sm:$0xf]
      %v1037 = vsel %vm1014, %v749, %v1036
      %1038 = vst [vmem:[%s1012 + $0x24] sm:$0xf] %v1037
      %1039 = vst [vmem:[%s1012 + $0x28] sm:$0xf] %v758
      %v1040 = vld [vmem:[%s1012 + $0x2c] sm:$0x1]
      %v1041 = vsel %vm483, %v759, %v1040
      %1042 = vst [vmem:[%s1012 + $0x2c] sm:$0x1] %v1041
      %v1043 = vld [vmem:[%s1012 + $0x30] sm:$0xf]
      %v1044 = vsel %vm1014, %v766, %v1043
      %1045 = vst [vmem:[%s1012 + $0x30] sm:$0xf] %v1044
      %1046 = vst [vmem:[%s1012 + $0x34] sm:$0xf] %v775
      %v1047 = vld [vmem:[%s1012 + $0x38] sm:$0x1]
      %v1048 = vsel %vm483, %v776, %v1047
      %1049 = vst [vmem:[%s1012 + $0x38] sm:$0x1] %v1048
      %v1050 = vld [vmem:[%s1012 + $0x3c] sm:$0xf]
      %v1051 = vsel %vm1014, %v783, %v1050
      %1052 = vst [vmem:[%s1012 + $0x3c] sm:$0xf] %v1051
      %1053 = vst [vmem:[%s1012 + $0x40] sm:$0xf] %v792
      %v1054 = vld [vmem:[%s1012 + $0x44] sm:$0x1]
      %v1055 = vsel %vm483, %v793, %v1054
      %1056 = vst [vmem:[%s1012 + $0x44] sm:$0x1] %v1055
      %v1057 = vld [vmem:[%s1012 + $0x48] sm:$0xf]
      %v1058 = vsel %vm1014, %v800, %v1057
      %1059 = vst [vmem:[%s1012 + $0x48] sm:$0xf] %v1058
      %1060 = vst [vmem:[%s1012 + $0x4c] sm:$0xf] %v809
      %v1061 = vld [vmem:[%s1012 + $0x50] sm:$0x1]
      %v1062 = vsel %vm483, %v810, %v1061
      %1063 = vst [vmem:[%s1012 + $0x50] sm:$0x1] %v1062
      %v1064 = vld [vmem:[%s1012 + $0x54] sm:$0xf]
      %v1065 = vsel %vm1014, %v817, %v1064
      %1066 = vst [vmem:[%s1012 + $0x54] sm:$0xf] %v1065
      %1067 = vst [vmem:[%s1012 + $0x58] sm:$0xf] %v826
      %v1068 = vld [vmem:[%s1012 + $0x5c] sm:$0x1]
      %v1069 = vsel %vm483, %v827, %v1068
      %1070 = vst [vmem:[%s1012 + $0x5c] sm:$0x1] %v1069
      %v1071 = vld [vmem:[%s1012 + $0x60] sm:$0xf]
      %v1072 = vsel %vm1014, %v834, %v1071
      %1073 = vst [vmem:[%s1012 + $0x60] sm:$0xf] %v1072
      %1074 = vst [vmem:[%s1012 + $0x64] sm:$0xf] %v843
      %v1075 = vld [vmem:[%s1012 + $0x68] sm:$0x1]
      %v1076 = vsel %vm483, %v844, %v1075
      %1077 = vst [vmem:[%s1012 + $0x68] sm:$0x1] %v1076
      %v1078 = vld [vmem:[%s1012 + $0x6c] sm:$0xf]
      %v1079 = vsel %vm1014, %v851, %v1078
      %1080 = vst [vmem:[%s1012 + $0x6c] sm:$0xf] %v1079
      %1081 = vst [vmem:[%s1012 + $0x70] sm:$0xf] %v860
      %v1082 = vld [vmem:[%s1012 + $0x74] sm:$0x1]
      %v1083 = vsel %vm483, %v861, %v1082
      %1084 = vst [vmem:[%s1012 + $0x74] sm:$0x1] %v1083
      %v1085 = vld [vmem:[%s1012 + $0x78] sm:$0xf]
      %v1086 = vsel %vm1014, %v868, %v1085
      %1087 = vst [vmem:[%s1012 + $0x78] sm:$0xf] %v1086
      %1088 = vst [vmem:[%s1012 + $0x7c] sm:$0xf] %v877
      %v1089 = vld [vmem:[%s1012 + $0x80] sm:$0x1]
      %v1090 = vsel %vm483, %v878, %v1089
      %1091 = vst [vmem:[%s1012 + $0x80] sm:$0x1] %v1090
      %v1092 = vld [vmem:[%s1012 + $0x84] sm:$0xf]
      %v1093 = vsel %vm1014, %v885, %v1092
      %1094 = vst [vmem:[%s1012 + $0x84] sm:$0xf] %v1093
      %1095 = vst [vmem:[%s1012 + $0x88] sm:$0xf] %v894
      %v1096 = vld [vmem:[%s1012 + $0x8c] sm:$0x1]
      %v1097 = vsel %vm483, %v895, %v1096
      %1098 = vst [vmem:[%s1012 + $0x8c] sm:$0x1] %v1097
      %v1099 = vld [vmem:[%s1012 + $0x90] sm:$0xf]
      %v1100 = vsel %vm1014, %v902, %v1099
      %1101 = vst [vmem:[%s1012 + $0x90] sm:$0xf] %v1100
      %1102 = vst [vmem:[%s1012 + $0x94] sm:$0xf] %v911
      %v1103 = vld [vmem:[%s1012 + $0x98] sm:$0x1]
      %v1104 = vsel %vm483, %v912, %v1103
      %1105 = vst [vmem:[%s1012 + $0x98] sm:$0x1] %v1104
      %v1106 = vld [vmem:[%s1012 + $0x9c] sm:$0xf]
      %v1107 = vsel %vm1014, %v919, %v1106
      %1108 = vst [vmem:[%s1012 + $0x9c] sm:$0xf] %v1107
      %1109 = vst [vmem:[%s1012 + $0xa0] sm:$0xf] %v928
      %v1110 = vld [vmem:[%s1012 + $0xa4] sm:$0x1]
      %v1111 = vsel %vm483, %v929, %v1110
      %1112 = vst [vmem:[%s1012 + $0xa4] sm:$0x1] %v1111
      %v1113 = vld [vmem:[%s1012 + $0xa8] sm:$0xf]
      %v1114 = vsel %vm1014, %v936, %v1113
      %1115 = vst [vmem:[%s1012 + $0xa8] sm:$0xf] %v1114
      %1116 = vst [vmem:[%s1012 + $0xac] sm:$0xf] %v945
      %v1117 = vld [vmem:[%s1012 + $0xb0] sm:$0x1]
      %v1118 = vsel %vm483, %v946, %v1117
      %1119 = vst [vmem:[%s1012 + $0xb0] sm:$0x1] %v1118
      %v1120 = vld [vmem:[%s1012 + $0xb4] sm:$0xf]
      %v1121 = vsel %vm1014, %v953, %v1120
      %1122 = vst [vmem:[%s1012 + $0xb4] sm:$0xf] %v1121
      %1123 = vst [vmem:[%s1012 + $0xb8] sm:$0xf] %v962
      %v1124 = vld [vmem:[%s1012 + $0xbc] sm:$0x1]
      %v1125 = vsel %vm483, %v963, %v1124
      %1126 = vst [vmem:[%s1012 + $0xbc] sm:$0x1] %v1125
      %v1127 = vld [vmem:[#allocation2] sm:$0xf]
      %v1128 = vld [vmem:[#allocation2 + $0x4] sm:$0xf]
      %v1129 = vld [vmem:[#allocation2 + $0xc] sm:$0xf]
      %v1130 = vld [vmem:[#allocation2 + $0x10] sm:$0xf]
      %v1131 = vld [vmem:[#allocation2 + $0x18] sm:$0xf]
      %v1132 = vld [vmem:[#allocation2 + $0x1c] sm:$0xf]
      %v1133 = vld [vmem:[#allocation2 + $0x24] sm:$0xf]
      %v1134 = vld [vmem:[#allocation2 + $0x28] sm:$0xf]
      %v1135 = vld [vmem:[#allocation2 + $0x30] sm:$0xf]
      %v1136 = vld [vmem:[#allocation2 + $0x34] sm:$0xf]
      %v1137 = vld [vmem:[#allocation2 + $0x3c] sm:$0xf]
      %v1138 = vld [vmem:[#allocation2 + $0x40] sm:$0xf]
      %v1139 = vld [vmem:[#allocation2 + $0x48] sm:$0xf]
      %v1140 = vld [vmem:[#allocation2 + $0x4c] sm:$0xf]
      %v1141 = vld [vmem:[#allocation2 + $0x54] sm:$0xf]
      %v1142 = vld [vmem:[#allocation2 + $0x58] sm:$0xf]
      %v1143 = vld [vmem:[#allocation2 + $0x60] sm:$0xf]
      %v1144 = vld [vmem:[#allocation2 + $0x64] sm:$0xf]
      %v1145 = vld [vmem:[#allocation2 + $0x6c] sm:$0xf]
      %v1146 = vld [vmem:[#allocation2 + $0x70] sm:$0xf]
      %v1147 = vld [vmem:[#allocation2 + $0x78] sm:$0xf]
      %v1148 = vld [vmem:[#allocation2 + $0x7c] sm:$0xf]
      %v1149 = vld [vmem:[#allocation2 + $0x84] sm:$0xf]
      %v1150 = vld [vmem:[#allocation2 + $0x88] sm:$0xf]
      %v1151 = vld [vmem:[#allocation2 + $0x90] sm:$0xf]
      %v1152 = vld [vmem:[#allocation2 + $0x94] sm:$0xf]
      %v1153 = vld [vmem:[#allocation2 + $0x9c] sm:$0xf]
      %v1154 = vld [vmem:[#allocation2 + $0xa0] sm:$0xf]
      %v1155 = vld [vmem:[#allocation2 + $0xa8] sm:$0xf]
      %v1156 = vld [vmem:[#allocation2 + $0xac] sm:$0xf]
      %v1157 = vld [vmem:[#allocation2 + $0xb4] sm:$0xf]
      %v1158 = vld [vmem:[#allocation2 + $0xb8] sm:$0xf]
      %v1191 = vunpack.c.l.b16 %v1127
      %v1192 = vunpack.c.l.b16 %v1128
      %v1193 = vunpack.c.l.b16 %v1129
      %v1194 = vunpack.c.l.b16 %v1130
      %v1195 = vunpack.c.l.b16 %v1131
      %v1196 = vunpack.c.l.b16 %v1132
      %v1197 = vunpack.c.l.b16 %v1133
      %v1198 = vunpack.c.l.b16 %v1134
      %v1199 = vunpack.c.l.b16 %v1135
      %v1200 = vunpack.c.l.b16 %v1136
      %v1201 = vunpack.c.l.b16 %v1137
      %v1202 = vunpack.c.l.b16 %v1138
      %v1203 = vunpack.c.l.b16 %v1139
      %v1204 = vunpack.c.l.b16 %v1140
      %v1205 = vunpack.c.l.b16 %v1141
      %v1206 = vunpack.c.l.b16 %v1142
      %v1207 = vunpack.c.l.b16 %v1143
      %v1208 = vunpack.c.l.b16 %v1144
      %v1209 = vunpack.c.l.b16 %v1145
      %v1210 = vunpack.c.l.b16 %v1146
      %v1211 = vunpack.c.l.b16 %v1147
      %v1212 = vunpack.c.l.b16 %v1148
      %v1213 = vunpack.c.l.b16 %v1149
      %v1214 = vunpack.c.l.b16 %v1150
      %v1215 = vunpack.c.l.b16 %v1151
      %v1216 = vunpack.c.l.b16 %v1152
      %v1217 = vunpack.c.l.b16 %v1153
      %v1218 = vunpack.c.l.b16 %v1154
      %v1219 = vunpack.c.l.b16 %v1155
      %v1220 = vunpack.c.l.b16 %v1156
      %v1221 = vunpack.c.l.b16 %v1157
      %v1222 = vunpack.c.l.b16 %v1158
      %v1223 = vpack.c.b16 %v1192, %v1191
      %v1224 = vpack.c.b16 %v1194, %v1193
      %v1225 = vpack.c.b16 %v1196, %v1195
      %v1226 = vpack.c.b16 %v1198, %v1197
      %v1227 = vpack.c.b16 %v1200, %v1199
      %v1228 = vpack.c.b16 %v1202, %v1201
      %v1229 = vpack.c.b16 %v1204, %v1203
      %v1230 = vpack.c.b16 %v1206, %v1205
      %v1231 = vpack.c.b16 %v1208, %v1207
      %v1232 = vpack.c.b16 %v1210, %v1209
      %v1233 = vpack.c.b16 %v1212, %v1211
      %v1234 = vpack.c.b16 %v1214, %v1213
      %v1235 = vpack.c.b16 %v1216, %v1215
      %v1236 = vpack.c.b16 %v1218, %v1217
      %v1237 = vpack.c.b16 %v1220, %v1219
      %v1238 = vpack.c.b16 %v1222, %v1221
      %1255 = vst [vmem:[#allocation3] sm:$0xff] %v1223
      %1256 = vst [vmem:[#allocation3 + $0x48] sm:$0xff] %v1224
      %1257 = vst [vmem:[#allocation3 + $0x90] sm:$0xff] %v1225
      %1258 = vst [vmem:[#allocation3 + $0xd8] sm:$0xff] %v1226
      %1259 = vst [vmem:[#allocation3 + $0x120] sm:$0xff] %v1227
      %1260 = vst [vmem:[#allocation3 + $0x168] sm:$0xff] %v1228
      %1261 = vst [vmem:[#allocation3 + $0x1b0] sm:$0xff] %v1229
      %1262 = vst [vmem:[#allocation3 + $0x1f8] sm:$0xff] %v1230
      %1263 = vst [vmem:[#allocation3 + $0x240] sm:$0xff] %v1231
      %1264 = vst [vmem:[#allocation3 + $0x288] sm:$0xff] %v1232
      %1265 = vst [vmem:[#allocation3 + $0x2d0] sm:$0xff] %v1233
      %1266 = vst [vmem:[#allocation3 + $0x318] sm:$0xff] %v1234
      %1267 = vst [vmem:[#allocation3 + $0x360] sm:$0xff] %v1235
      %1268 = vst [vmem:[#allocation3 + $0x3a8] sm:$0xff] %v1236
      %1269 = vst [vmem:[#allocation3 + $0x3f0] sm:$0xff] %v1237
      %1270 = vst [vmem:[#allocation3 + $0x438] sm:$0xff] %v1238
      %v1271 = vld [vmem:[#allocation2] sm:$0xf]
      %v1272 = vld [vmem:[#allocation2 + $0x4] sm:$0xf]
      %v1273 = vld [vmem:[#allocation2 + $0x8] sm:$0x1]
      %v1274 = vld [vmem:[#allocation2 + $0xc] sm:$0xf]
      %v1275 = vld [vmem:[#allocation2 + $0x10] sm:$0xf]
      %v1276 = vld [vmem:[#allocation2 + $0x14] sm:$0x1]
      %v1277 = vld [vmem:[#allocation2 + $0x18] sm:$0xf]
      %v1278 = vld [vmem:[#allocation2 + $0x1c] sm:$0xf]
      %v1279 = vld [vmem:[#allocation2 + $0x20] sm:$0x1]
      %v1280 = vld [vmem:[#allocation2 + $0x24] sm:$0xf]
      %v1281 = vld [vmem:[#allocation2 + $0x28] sm:$0xf]
      %v1282 = vld [vmem:[#allocation2 + $0x2c] sm:$0x1]
      %v1283 = vld [vmem:[#allocation2 + $0x30] sm:$0xf]
      %v1284 = vld [vmem:[#allocation2 + $0x34] sm:$0xf]
      %v1285 = vld [vmem:[#allocation2 + $0x38] sm:$0x1]
      %v1286 = vld [vmem:[#allocation2 + $0x3c] sm:$0xf]
      %v1287 = vld [vmem:[#allocation2 + $0x40] sm:$0xf]
      %v1288 = vld [vmem:[#allocation2 + $0x44] sm:$0x1]
      %v1289 = vld [vmem:[#allocation2 + $0x48] sm:$0xf]
      %v1290 = vld [vmem:[#allocation2 + $0x4c] sm:$0xf]
      %v1291 = vld [vmem:[#allocation2 + $0x50] sm:$0x1]
      %v1292 = vld [vmem:[#allocation2 + $0x54] sm:$0xf]
      %v1293 = vld [vmem:[#allocation2 + $0x58] sm:$0xf]
      %v1294 = vld [vmem:[#allocation2 + $0x5c] sm:$0x1]
      %v1295 = vld [vmem:[#allocation2 + $0x60] sm:$0xf]
      %v1296 = vld [vmem:[#allocation2 + $0x64] sm:$0xf]
      %v1297 = vld [vmem:[#allocation2 + $0x68] sm:$0x1]
      %v1298 = vld [vmem:[#allocation2 + $0x6c] sm:$0xf]
      %v1299 = vld [vmem:[#allocation2 + $0x70] sm:$0xf]
      %v1300 = vld [vmem:[#allocation2 + $0x74] sm:$0x1]
      %v1301 = vld [vmem:[#allocation2 + $0x78] sm:$0xf]
      %v1302 = vld [vmem:[#allocation2 + $0x7c] sm:$0xf]
      %v1303 = vld [vmem:[#allocation2 + $0x80] sm:$0x1]
      %v1304 = vld [vmem:[#allocation2 + $0x84] sm:$0xf]
      %v1305 = vld [vmem:[#allocation2 + $0x88] sm:$0xf]
      %v1306 = vld [vmem:[#allocation2 + $0x8c] sm:$0x1]
      %v1307 = vld [vmem:[#allocation2 + $0x90] sm:$0xf]
      %v1308 = vld [vmem:[#allocation2 + $0x94] sm:$0xf]
      %v1309 = vld [vmem:[#allocation2 + $0x98] sm:$0x1]
      %v1310 = vld [vmem:[#allocation2 + $0x9c] sm:$0xf]
      %v1311 = vld [vmem:[#allocation2 + $0xa0] sm:$0xf]
      %v1312 = vld [vmem:[#allocation2 + $0xa4] sm:$0x1]
      %v1313 = vld [vmem:[#allocation2 + $0xa8] sm:$0xf]
      %v1314 = vld [vmem:[#allocation2 + $0xac] sm:$0xf]
      %v1315 = vld [vmem:[#allocation2 + $0xb0] sm:$0x1]
      %v1316 = vld [vmem:[#allocation2 + $0xb4] sm:$0xf]
      %v1317 = vld [vmem:[#allocation2 + $0xb8] sm:$0xf]
      %v1318 = vld [vmem:[#allocation2 + $0xbc] sm:$0x1]
      %vm1319 = vsmask.f32 3328
      %vm1320 = vsmask.f32 7440
      %vm1321 = vmor %vm1319, %vm1320
      %v1323 = vshrl.u32 %v1271, 16
      %v1325 = vrot.slane %v1323, 4
      %v1326 = vshll.u32 %v1271, 16
      %v1328 = vrot.slane %v1326, 5
      %v1329 = vor.u32 %v1325, %v1328
      %v1330 = vrot.slane %v1329, 4
      %v1332 = vshll.u32 %v1272, 16
      %v1334 = vrot.slane %v1332, 5
      %v1335 = vsel %vm1321, %v1330, %v1334
      %v1336 = vshrl.u32 %v1272, 16
      %v1338 = vrot.slane %v1336, 4
      %v1339 = vor.u32 %v1338, %v1334
      %v1340 = vrot.slane %v1339, 4
      %v1342 = vshll.u32 %v1273, 16
      %v1344 = vrot.slane %v1342, 5
      %v1345 = vsel %vm1321, %v1340, %v1344
      %v1347 = vshrl.u32 %v1274, 16
      %v1349 = vrot.slane %v1347, 4
      %v1350 = vshll.u32 %v1274, 16
      %v1352 = vrot.slane %v1350, 5
      %v1353 = vor.u32 %v1349, %v1352
      %v1354 = vrot.slane %v1353, 4
      %v1356 = vshll.u32 %v1275, 16
      %v1358 = vrot.slane %v1356, 5
      %v1359 = vsel %vm1321, %v1354, %v1358
      %v1360 = vshrl.u32 %v1275, 16
      %v1362 = vrot.slane %v1360, 4
      %v1363 = vor.u32 %v1362, %v1358
      %v1364 = vrot.slane %v1363, 4
      %v1366 = vshll.u32 %v1276, 16
      %v1368 = vrot.slane %v1366, 5
      %v1369 = vsel %vm1321, %v1364, %v1368
      %v1371 = vshrl.u32 %v1277, 16
      %v1373 = vrot.slane %v1371, 4
      %v1374 = vshll.u32 %v1277, 16
      %v1376 = vrot.slane %v1374, 5
      %v1377 = vor.u32 %v1373, %v1376
      %v1378 = vrot.slane %v1377, 4
      %v1380 = vshll.u32 %v1278, 16
      %v1382 = vrot.slane %v1380, 5
      %v1383 = vsel %vm1321, %v1378, %v1382
      %v1384 = vshrl.u32 %v1278, 16
      %v1386 = vrot.slane %v1384, 4
      %v1387 = vor.u32 %v1386, %v1382
      %v1388 = vrot.slane %v1387, 4
      %v1390 = vshll.u32 %v1279, 16
      %v1392 = vrot.slane %v1390, 5
      %v1393 = vsel %vm1321, %v1388, %v1392
      %v1395 = vshrl.u32 %v1280, 16
      %v1397 = vrot.slane %v1395, 4
      %v1398 = vshll.u32 %v1280, 16
      %v1400 = vrot.slane %v1398, 5
      %v1401 = vor.u32 %v1397, %v1400
      %v1402 = vrot.slane %v1401, 4
      %v1404 = vshll.u32 %v1281, 16
      %v1406 = vrot.slane %v1404, 5
      %v1407 = vsel %vm1321, %v1402, %v1406
      %v1408 = vshrl.u32 %v1281, 16
      %v1410 = vrot.slane %v1408, 4
      %v1411 = vor.u32 %v1410, %v1406
      %v1412 = vrot.slane %v1411, 4
      %v1414 = vshll.u32 %v1282, 16
      %v1416 = vrot.slane %v1414, 5
      %v1417 = vsel %vm1321, %v1412, %v1416
      %v1419 = vshrl.u32 %v1283, 16
      %v1421 = vrot.slane %v1419, 4
      %v1422 = vshll.u32 %v1283, 16
      %v1424 = vrot.slane %v1422, 5
      %v1425 = vor.u32 %v1421, %v1424
      %v1426 = vrot.slane %v1425, 4
      %v1428 = vshll.u32 %v1284, 16
      %v1430 = vrot.slane %v1428, 5
      %v1431 = vsel %vm1321, %v1426, %v1430
      %v1432 = vshrl.u32 %v1284, 16
      %v1434 = vrot.slane %v1432, 4
      %v1435 = vor.u32 %v1434, %v1430
      %v1436 = vrot.slane %v1435, 4
      %v1438 = vshll.u32 %v1285, 16
      %v1440 = vrot.slane %v1438, 5
      %v1441 = vsel %vm1321, %v1436, %v1440
      %v1443 = vshrl.u32 %v1286, 16
      %v1445 = vrot.slane %v1443, 4
      %v1446 = vshll.u32 %v1286, 16
      %v1448 = vrot.slane %v1446, 5
      %v1449 = vor.u32 %v1445, %v1448
      %v1450 = vrot.slane %v1449, 4
      %v1452 = vshll.u32 %v1287, 16
      %v1454 = vrot.slane %v1452, 5
      %v1455 = vsel %vm1321, %v1450, %v1454
      %v1456 = vshrl.u32 %v1287, 16
      %v1458 = vrot.slane %v1456, 4
      %v1459 = vor.u32 %v1458, %v1454
      %v1460 = vrot.slane %v1459, 4
      %v1462 = vshll.u32 %v1288, 16
      %v1464 = vrot.slane %v1462, 5
      %v1465 = vsel %vm1321, %v1460, %v1464
      %v1467 = vshrl.u32 %v1289, 16
      %v1469 = vrot.slane %v1467, 4
      %v1470 = vshll.u32 %v1289, 16
      %v1472 = vrot.slane %v1470, 5
      %v1473 = vor.u32 %v1469, %v1472
      %v1474 = vrot.slane %v1473, 4
      %v1476 = vshll.u32 %v1290, 16
      %v1478 = vrot.slane %v1476, 5
      %v1479 = vsel %vm1321, %v1474, %v1478
      %v1480 = vshrl.u32 %v1290, 16
      %v1482 = vrot.slane %v1480, 4
      %v1483 = vor.u32 %v1482, %v1478
      %v1484 = vrot.slane %v1483, 4
      %v1486 = vshll.u32 %v1291, 16
      %v1488 = vrot.slane %v1486, 5
      %v1489 = vsel %vm1321, %v1484, %v1488
      %v1491 = vshrl.u32 %v1292, 16
      %v1493 = vrot.slane %v1491, 4
      %v1494 = vshll.u32 %v1292, 16
      %v1496 = vrot.slane %v1494, 5
      %v1497 = vor.u32 %v1493, %v1496
      %v1498 = vrot.slane %v1497, 4
      %v1500 = vshll.u32 %v1293, 16
      %v1502 = vrot.slane %v1500, 5
      %v1503 = vsel %vm1321, %v1498, %v1502
      %v1504 = vshrl.u32 %v1293, 16
      %v1506 = vrot.slane %v1504, 4
      %v1507 = vor.u32 %v1506, %v1502
      %v1508 = vrot.slane %v1507, 4
      %v1510 = vshll.u32 %v1294, 16
      %v1512 = vrot.slane %v1510, 5
      %v1513 = vsel %vm1321, %v1508, %v1512
      %v1515 = vshrl.u32 %v1295, 16
      %v1517 = vrot.slane %v1515, 4
      %v1518 = vshll.u32 %v1295, 16
      %v1520 = vrot.slane %v1518, 5
      %v1521 = vor.u32 %v1517, %v1520
      %v1522 = vrot.slane %v1521, 4
      %v1524 = vshll.u32 %v1296, 16
      %v1526 = vrot.slane %v1524, 5
      %v1527 = vsel %vm1321, %v1522, %v1526
      %v1528 = vshrl.u32 %v1296, 16
      %v1530 = vrot.slane %v1528, 4
      %v1531 = vor.u32 %v1530, %v1526
      %v1532 = vrot.slane %v1531, 4
      %v1534 = vshll.u32 %v1297, 16
      %v1536 = vrot.slane %v1534, 5
      %v1537 = vsel %vm1321, %v1532, %v1536
      %v1539 = vshrl.u32 %v1298, 16
      %v1541 = vrot.slane %v1539, 4
      %v1542 = vshll.u32 %v1298, 16
      %v1544 = vrot.slane %v1542, 5
      %v1545 = vor.u32 %v1541, %v1544
      %v1546 = vrot.slane %v1545, 4
      %v1548 = vshll.u32 %v1299, 16
      %v1550 = vrot.slane %v1548, 5
      %v1551 = vsel %vm1321, %v1546, %v1550
      %v1552 = vshrl.u32 %v1299, 16
      %v1554 = vrot.slane %v1552, 4
      %v1555 = vor.u32 %v1554, %v1550
      %v1556 = vrot.slane %v1555, 4
      %v1558 = vshll.u32 %v1300, 16
      %v1560 = vrot.slane %v1558, 5
      %v1561 = vsel %vm1321, %v1556, %v1560
      %v1563 = vshrl.u32 %v1301, 16
      %v1565 = vrot.slane %v1563, 4
      %v1566 = vshll.u32 %v1301, 16
      %v1568 = vrot.slane %v1566, 5
      %v1569 = vor.u32 %v1565, %v1568
      %v1570 = vrot.slane %v1569, 4
      %v1572 = vshll.u32 %v1302, 16
      %v1574 = vrot.slane %v1572, 5
      %v1575 = vsel %vm1321, %v1570, %v1574
      %v1576 = vshrl.u32 %v1302, 16
      %v1578 = vrot.slane %v1576, 4
      %v1579 = vor.u32 %v1578, %v1574
      %v1580 = vrot.slane %v1579, 4
      %v1582 = vshll.u32 %v1303, 16
      %v1584 = vrot.slane %v1582, 5
      %v1585 = vsel %vm1321, %v1580, %v1584
      %v1587 = vshrl.u32 %v1304, 16
      %v1589 = vrot.slane %v1587, 4
      %v1590 = vshll.u32 %v1304, 16
      %v1592 = vrot.slane %v1590, 5
      %v1593 = vor.u32 %v1589, %v1592
      %v1594 = vrot.slane %v1593, 4
      %v1596 = vshll.u32 %v1305, 16
      %v1598 = vrot.slane %v1596, 5
      %v1599 = vsel %vm1321, %v1594, %v1598
      %v1600 = vshrl.u32 %v1305, 16
      %v1602 = vrot.slane %v1600, 4
      %v1603 = vor.u32 %v1602, %v1598
      %v1604 = vrot.slane %v1603, 4
      %v1606 = vshll.u32 %v1306, 16
      %v1608 = vrot.slane %v1606, 5
      %v1609 = vsel %vm1321, %v1604, %v1608
      %v1611 = vshrl.u32 %v1307, 16
      %v1613 = vrot.slane %v1611, 4
      %v1614 = vshll.u32 %v1307, 16
      %v1616 = vrot.slane %v1614, 5
      %v1617 = vor.u32 %v1613, %v1616
      %v1618 = vrot.slane %v1617, 4
      %v1620 = vshll.u32 %v1308, 16
      %v1622 = vrot.slane %v1620, 5
      %v1623 = vsel %vm1321, %v1618, %v1622
      %v1624 = vshrl.u32 %v1308, 16
      %v1626 = vrot.slane %v1624, 4
      %v1627 = vor.u32 %v1626, %v1622
      %v1628 = vrot.slane %v1627, 4
      %v1630 = vshll.u32 %v1309, 16
      %v1632 = vrot.slane %v1630, 5
      %v1633 = vsel %vm1321, %v1628, %v1632
      %v1635 = vshrl.u32 %v1310, 16
      %v1637 = vrot.slane %v1635, 4
      %v1638 = vshll.u32 %v1310, 16
      %v1640 = vrot.slane %v1638, 5
      %v1641 = vor.u32 %v1637, %v1640
      %v1642 = vrot.slane %v1641, 4
      %v1644 = vshll.u32 %v1311, 16
      %v1646 = vrot.slane %v1644, 5
      %v1647 = vsel %vm1321, %v1642, %v1646
      %v1648 = vshrl.u32 %v1311, 16
      %v1650 = vrot.slane %v1648, 4
      %v1651 = vor.u32 %v1650, %v1646
      %v1652 = vrot.slane %v1651, 4
      %v1654 = vshll.u32 %v1312, 16
      %v1656 = vrot.slane %v1654, 5
      %v1657 = vsel %vm1321, %v1652, %v1656
      %v1659 = vshrl.u32 %v1313, 16
      %v1661 = vrot.slane %v1659, 4
      %v1662 = vshll.u32 %v1313, 16
      %v1664 = vrot.slane %v1662, 5
      %v1665 = vor.u32 %v1661, %v1664
      %v1666 = vrot.slane %v1665, 4
      %v1668 = vshll.u32 %v1314, 16
      %v1670 = vrot.slane %v1668, 5
      %v1671 = vsel %vm1321, %v1666, %v1670
      %v1672 = vshrl.u32 %v1314, 16
      %v1674 = vrot.slane %v1672, 4
      %v1675 = vor.u32 %v1674, %v1670
      %v1676 = vrot.slane %v1675, 4
      %v1678 = vshll.u32 %v1315, 16
      %v1680 = vrot.slane %v1678, 5
      %v1681 = vsel %vm1321, %v1676, %v1680
      %v1683 = vshrl.u32 %v1316, 16
      %v1685 = vrot.slane %v1683, 4
      %v1686 = vshll.u32 %v1316, 16
      %v1688 = vrot.slane %v1686, 5
      %v1689 = vor.u32 %v1685, %v1688
      %v1690 = vrot.slane %v1689, 4
      %v1692 = vshll.u32 %v1317, 16
      %v1694 = vrot.slane %v1692, 5
      %v1695 = vsel %vm1321, %v1690, %v1694
      %v1696 = vshrl.u32 %v1317, 16
      %v1698 = vrot.slane %v1696, 4
      %v1699 = vor.u32 %v1698, %v1694
      %v1700 = vrot.slane %v1699, 4
      %v1702 = vshll.u32 %v1318, 16
      %v1704 = vrot.slane %v1702, 5
      %v1705 = vsel %vm1321, %v1700, %v1704
      %v1706 = vunpack.c.l.b16 %v1335
      %v1707 = vunpack.c.l.b16 %v1345
      %v1708 = vunpack.c.l.b16 %v1359
      %v1709 = vunpack.c.l.b16 %v1369
      %v1710 = vunpack.c.l.b16 %v1383
      %v1711 = vunpack.c.l.b16 %v1393
      %v1712 = vunpack.c.l.b16 %v1407
      %v1713 = vunpack.c.l.b16 %v1417
      %v1714 = vunpack.c.l.b16 %v1431
      %v1715 = vunpack.c.l.b16 %v1441
      %v1716 = vunpack.c.l.b16 %v1455
      %v1717 = vunpack.c.l.b16 %v1465
      %v1718 = vunpack.c.l.b16 %v1479
      %v1719 = vunpack.c.l.b16 %v1489
      %v1720 = vunpack.c.l.b16 %v1503
      %v1721 = vunpack.c.l.b16 %v1513
      %v1722 = vunpack.c.l.b16 %v1527
      %v1723 = vunpack.c.l.b16 %v1537
      %v1724 = vunpack.c.l.b16 %v1551
      %v1725 = vunpack.c.l.b16 %v1561
      %v1726 = vunpack.c.l.b16 %v1575
      %v1727 = vunpack.c.l.b16 %v1585
      %v1728 = vunpack.c.l.b16 %v1599
      %v1729 = vunpack.c.l.b16 %v1609
      %v1730 = vunpack.c.l.b16 %v1623
      %v1731 = vunpack.c.l.b16 %v1633
      %v1732 = vunpack.c.l.b16 %v1647
      %v1733 = vunpack.c.l.b16 %v1657
      %v1734 = vunpack.c.l.b16 %v1671
      %v1735 = vunpack.c.l.b16 %v1681
      %v1736 = vunpack.c.l.b16 %v1695
      %v1737 = vunpack.c.l.b16 %v1705
      %v1738 = vpack.c.b16 %v1707, %v1706
      %v1739 = vpack.c.b16 %v1709, %v1708
      %v1740 = vpack.c.b16 %v1711, %v1710
      %v1741 = vpack.c.b16 %v1713, %v1712
      %v1742 = vpack.c.b16 %v1715, %v1714
      %v1743 = vpack.c.b16 %v1717, %v1716
      %v1744 = vpack.c.b16 %v1719, %v1718
      %v1745 = vpack.c.b16 %v1721, %v1720
      %v1746 = vpack.c.b16 %v1723, %v1722
      %v1747 = vpack.c.b16 %v1725, %v1724
      %v1748 = vpack.c.b16 %v1727, %v1726
      %v1749 = vpack.c.b16 %v1729, %v1728
      %v1750 = vpack.c.b16 %v1731, %v1730
      %v1751 = vpack.c.b16 %v1733, %v1732
      %v1752 = vpack.c.b16 %v1735, %v1734
      %v1753 = vpack.c.b16 %v1737, %v1736
      %1770 = vst [vmem:[#allocation3 + $0x8] sm:$0xff] %v1738
      %1771 = vst [vmem:[#allocation3 + $0x50] sm:$0xff] %v1739
      %1772 = vst [vmem:[#allocation3 + $0x98] sm:$0xff] %v1740
      %1773 = vst [vmem:[#allocation3 + $0xe0] sm:$0xff] %v1741
      %1774 = vst [vmem:[#allocation3 + $0x128] sm:$0xff] %v1742
      %1775 = vst [vmem:[#allocation3 + $0x170] sm:$0xff] %v1743
      %1776 = vst [vmem:[#allocation3 + $0x1b8] sm:$0xff] %v1744
      %1777 = vst [vmem:[#allocation3 + $0x200] sm:$0xff] %v1745
      %1778 = vst [vmem:[#allocation3 + $0x248] sm:$0xff] %v1746
      %1779 = vst [vmem:[#allocation3 + $0x290] sm:$0xff] %v1747
      %1780 = vst [vmem:[#allocation3 + $0x2d8] sm:$0xff] %v1748
      %1781 = vst [vmem:[#allocation3 + $0x320] sm:$0xff] %v1749
      %1782 = vst [vmem:[#allocation3 + $0x368] sm:$0xff] %v1750
      %1783 = vst [vmem:[#allocation3 + $0x3b0] sm:$0xff] %v1751
      %1784 = vst [vmem:[#allocation3 + $0x3f8] sm:$0xff] %v1752
      %1785 = vst [vmem:[#allocation3 + $0x440] sm:$0xff] %v1753
      %v1786 = vld [vmem:[#allocation2] sm:$0xe]
      %v1787 = vld [vmem:[#allocation2 + $0x4] sm:$0xf]
      %v1788 = vld [vmem:[#allocation2 + $0x8] sm:$0x1]
      %v1789 = vld [vmem:[#allocation2 + $0xc] sm:$0xe]
      %v1790 = vld [vmem:[#allocation2 + $0x10] sm:$0xf]
      %v1791 = vld [vmem:[#allocation2 + $0x14] sm:$0x1]
      %v1792 = vld [vmem:[#allocation2 + $0x18] sm:$0xe]
      %v1793 = vld [vmem:[#allocation2 + $0x1c] sm:$0xf]
      %v1794 = vld [vmem:[#allocation2 + $0x20] sm:$0x1]
      %v1795 = vld [vmem:[#allocation2 + $0x24] sm:$0xe]
      %v1796 = vld [vmem:[#allocation2 + $0x28] sm:$0xf]
      %v1797 = vld [vmem:[#allocation2 + $0x2c] sm:$0x1]
      %v1798 = vld [vmem:[#allocation2 + $0x30] sm:$0xe]
      %v1799 = vld [vmem:[#allocation2 + $0x34] sm:$0xf]
      %v1800 = vld [vmem:[#allocation2 + $0x38] sm:$0x1]
      %v1801 = vld [vmem:[#allocation2 + $0x3c] sm:$0xe]
      %v1802 = vld [vmem:[#allocation2 + $0x40] sm:$0xf]
      %v1803 = vld [vmem:[#allocation2 + $0x44] sm:$0x1]
      %v1804 = vld [vmem:[#allocation2 + $0x48] sm:$0xe]
      %v1805 = vld [vmem:[#allocation2 + $0x4c] sm:$0xf]
      %v1806 = vld [vmem:[#allocation2 + $0x50] sm:$0x1]
      %v1807 = vld [vmem:[#allocation2 + $0x54] sm:$0xe]
      %v1808 = vld [vmem:[#allocation2 + $0x58] sm:$0xf]
      %v1809 = vld [vmem:[#allocation2 + $0x5c] sm:$0x1]
      %v1810 = vld [vmem:[#allocation2 + $0x60] sm:$0xe]
      %v1811 = vld [vmem:[#allocation2 + $0x64] sm:$0xf]
      %v1812 = vld [vmem:[#allocation2 + $0x68] sm:$0x1]
      %v1813 = vld [vmem:[#allocation2 + $0x6c] sm:$0xe]
      %v1814 = vld [vmem:[#allocation2 + $0x70] sm:$0xf]
      %v1815 = vld [vmem:[#allocation2 + $0x74] sm:$0x1]
      %v1816 = vld [vmem:[#allocation2 + $0x78] sm:$0xe]
      %v1817 = vld [vmem:[#allocation2 + $0x7c] sm:$0xf]
      %v1818 = vld [vmem:[#allocation2 + $0x80] sm:$0x1]
      %v1819 = vld [vmem:[#allocation2 + $0x84] sm:$0xe]
      %v1820 = vld [vmem:[#allocation2 + $0x88] sm:$0xf]
      %v1821 = vld [vmem:[#allocation2 + $0x8c] sm:$0x1]
      %v1822 = vld [vmem:[#allocation2 + $0x90] sm:$0xe]
      %v1823 = vld [vmem:[#allocation2 + $0x94] sm:$0xf]
      %v1824 = vld [vmem:[#allocation2 + $0x98] sm:$0x1]
      %v1825 = vld [vmem:[#allocation2 + $0x9c] sm:$0xe]
      %v1826 = vld [vmem:[#allocation2 + $0xa0] sm:$0xf]
      %v1827 = vld [vmem:[#allocation2 + $0xa4] sm:$0x1]
      %v1828 = vld [vmem:[#allocation2 + $0xa8] sm:$0xe]
      %v1829 = vld [vmem:[#allocation2 + $0xac] sm:$0xf]
      %v1830 = vld [vmem:[#allocation2 + $0xb0] sm:$0x1]
      %v1831 = vld [vmem:[#allocation2 + $0xb4] sm:$0xe]
      %v1832 = vld [vmem:[#allocation2 + $0xb8] sm:$0xf]
      %v1833 = vld [vmem:[#allocation2 + $0xbc] sm:$0x1]
      %vm1882 = vcmask 1042432
      %vm1883 = vcmask 1046532
      %vm1884 = vmor %vm1882, %vm1883
      %v1885 = vrot.slane %v1786, 5
      %v1886 = vrot.slane %v1885, 4
      %v1887 = vrot.slane %v1787, 5
      %v1888 = vsel %vm1884, %v1886, %v1887
      %v1889 = vrot.slane %v1887, 4
      %v1890 = vrot.slane %v1788, 5
      %v1891 = vsel %vm1884, %v1889, %v1890
      %v1892 = vrot.slane %v1789, 5
      %v1893 = vrot.slane %v1892, 4
      %v1894 = vrot.slane %v1790, 5
      %v1895 = vsel %vm1884, %v1893, %v1894
      %v1896 = vrot.slane %v1894, 4
      %v1897 = vrot.slane %v1791, 5
      %v1898 = vsel %vm1884, %v1896, %v1897
      %v1899 = vrot.slane %v1792, 5
      %v1900 = vrot.slane %v1899, 4
      %v1901 = vrot.slane %v1793, 5
      %v1902 = vsel %vm1884, %v1900, %v1901
      %v1903 = vrot.slane %v1901, 4
      %v1904 = vrot.slane %v1794, 5
      %v1905 = vsel %vm1884, %v1903, %v1904
      %v1906 = vrot.slane %v1795, 5
      %v1907 = vrot.slane %v1906, 4
      %v1908 = vrot.slane %v1796, 5
      %v1909 = vsel %vm1884, %v1907, %v1908
      %v1910 = vrot.slane %v1908, 4
      %v1911 = vrot.slane %v1797, 5
      %v1912 = vsel %vm1884, %v1910, %v1911
      %v1913 = vrot.slane %v1798, 5
      %v1914 = vrot.slane %v1913, 4
      %v1915 = vrot.slane %v1799, 5
      %v1916 = vsel %vm1884, %v1914, %v1915
      %v1917 = vrot.slane %v1915, 4
      %v1918 = vrot.slane %v1800, 5
      %v1919 = vsel %vm1884, %v1917, %v1918
      %v1920 = vrot.slane %v1801, 5
      %v1921 = vrot.slane %v1920, 4
      %v1922 = vrot.slane %v1802, 5
      %v1923 = vsel %vm1884, %v1921, %v1922
      %v1924 = vrot.slane %v1922, 4
      %v1925 = vrot.slane %v1803, 5
      %v1926 = vsel %vm1884, %v1924, %v1925
      %v1927 = vrot.slane %v1804, 5
      %v1928 = vrot.slane %v1927, 4
      %v1929 = vrot.slane %v1805, 5
      %v1930 = vsel %vm1884, %v1928, %v1929
      %v1931 = vrot.slane %v1929, 4
      %v1932 = vrot.slane %v1806, 5
      %v1933 = vsel %vm1884, %v1931, %v1932
      %v1934 = vrot.slane %v1807, 5
      %v1935 = vrot.slane %v1934, 4
      %v1936 = vrot.slane %v1808, 5
      %v1937 = vsel %vm1884, %v1935, %v1936
      %v1938 = vrot.slane %v1936, 4
      %v1939 = vrot.slane %v1809, 5
      %v1940 = vsel %vm1884, %v1938, %v1939
      %v1941 = vrot.slane %v1810, 5
      %v1942 = vrot.slane %v1941, 4
      %v1943 = vrot.slane %v1811, 5
      %v1944 = vsel %vm1884, %v1942, %v1943
      %v1945 = vrot.slane %v1943, 4
      %v1946 = vrot.slane %v1812, 5
      %v1947 = vsel %vm1884, %v1945, %v1946
      %v1948 = vrot.slane %v1813, 5
      %v1949 = vrot.slane %v1948, 4
      %v1950 = vrot.slane %v1814, 5
      %v1951 = vsel %vm1884, %v1949, %v1950
      %v1952 = vrot.slane %v1950, 4
      %v1953 = vrot.slane %v1815, 5
      %v1954 = vsel %vm1884, %v1952, %v1953
      %v1955 = vrot.slane %v1816, 5
      %v1956 = vrot.slane %v1955, 4
      %v1957 = vrot.slane %v1817, 5
      %v1958 = vsel %vm1884, %v1956, %v1957
      %v1959 = vrot.slane %v1957, 4
      %v1960 = vrot.slane %v1818, 5
      %v1961 = vsel %vm1884, %v1959, %v1960
      %v1962 = vrot.slane %v1819, 5
      %v1963 = vrot.slane %v1962, 4
      %v1964 = vrot.slane %v1820, 5
      %v1965 = vsel %vm1884, %v1963, %v1964
      %v1966 = vrot.slane %v1964, 4
      %v1967 = vrot.slane %v1821, 5
      %v1968 = vsel %vm1884, %v1966, %v1967
      %v1969 = vrot.slane %v1822, 5
      %v1970 = vrot.slane %v1969, 4
      %v1971 = vrot.slane %v1823, 5
      %v1972 = vsel %vm1884, %v1970, %v1971
      %v1973 = vrot.slane %v1971, 4
      %v1974 = vrot.slane %v1824, 5
      %v1975 = vsel %vm1884, %v1973, %v1974
      %v1976 = vrot.slane %v1825, 5
      %v1977 = vrot.slane %v1976, 4
      %v1978 = vrot.slane %v1826, 5
      %v1979 = vsel %vm1884, %v1977, %v1978
      %v1980 = vrot.slane %v1978, 4
      %v1981 = vrot.slane %v1827, 5
      %v1982 = vsel %vm1884, %v1980, %v1981
      %v1983 = vrot.slane %v1828, 5
      %v1984 = vrot.slane %v1983, 4
      %v1985 = vrot.slane %v1829, 5
      %v1986 = vsel %vm1884, %v1984, %v1985
      %v1987 = vrot.slane %v1985, 4
      %v1988 = vrot.slane %v1830, 5
      %v1989 = vsel %vm1884, %v1987, %v1988
      %v1990 = vrot.slane %v1831, 5
      %v1991 = vrot.slane %v1990, 4
      %v1992 = vrot.slane %v1832, 5
      %v1993 = vsel %vm1884, %v1991, %v1992
      %v1994 = vrot.slane %v1992, 4
      %v1995 = vrot.slane %v1833, 5
      %v1996 = vsel %vm1884, %v1994, %v1995
      %v1997 = vunpack.c.l.b16 %v1888
      %v1998 = vunpack.c.l.b16 %v1891
      %v1999 = vunpack.c.l.b16 %v1895
      %v2000 = vunpack.c.l.b16 %v1898
      %v2001 = vunpack.c.l.b16 %v1902
      %v2002 = vunpack.c.l.b16 %v1905
      %v2003 = vunpack.c.l.b16 %v1909
      %v2004 = vunpack.c.l.b16 %v1912
      %v2005 = vunpack.c.l.b16 %v1916
      %v2006 = vunpack.c.l.b16 %v1919
      %v2007 = vunpack.c.l.b16 %v1923
      %v2008 = vunpack.c.l.b16 %v1926
      %v2009 = vunpack.c.l.b16 %v1930
      %v2010 = vunpack.c.l.b16 %v1933
      %v2011 = vunpack.c.l.b16 %v1937
      %v2012 = vunpack.c.l.b16 %v1940
      %v2013 = vunpack.c.l.b16 %v1944
      %v2014 = vunpack.c.l.b16 %v1947
      %v2015 = vunpack.c.l.b16 %v1951
      %v2016 = vunpack.c.l.b16 %v1954
      %v2017 = vunpack.c.l.b16 %v1958
      %v2018 = vunpack.c.l.b16 %v1961
      %v2019 = vunpack.c.l.b16 %v1965
      %v2020 = vunpack.c.l.b16 %v1968
      %v2021 = vunpack.c.l.b16 %v1972
      %v2022 = vunpack.c.l.b16 %v1975
      %v2023 = vunpack.c.l.b16 %v1979
      %v2024 = vunpack.c.l.b16 %v1982
      %v2025 = vunpack.c.l.b16 %v1986
      %v2026 = vunpack.c.l.b16 %v1989
      %v2027 = vunpack.c.l.b16 %v1993
      %v2028 = vunpack.c.l.b16 %v1996
      %v2029 = vpack.c.b16 %v1998, %v1997
      %v2030 = vpack.c.b16 %v2000, %v1999
      %v2031 = vpack.c.b16 %v2002, %v2001
      %v2032 = vpack.c.b16 %v2004, %v2003
      %v2033 = vpack.c.b16 %v2006, %v2005
      %v2034 = vpack.c.b16 %v2008, %v2007
      %v2035 = vpack.c.b16 %v2010, %v2009
      %v2036 = vpack.c.b16 %v2012, %v2011
      %v2037 = vpack.c.b16 %v2014, %v2013
      %v2038 = vpack.c.b16 %v2016, %v2015
      %v2039 = vpack.c.b16 %v2018, %v2017
      %v2040 = vpack.c.b16 %v2020, %v2019
      %v2041 = vpack.c.b16 %v2022, %v2021
      %v2042 = vpack.c.b16 %v2024, %v2023
      %v2043 = vpack.c.b16 %v2026, %v2025
      %v2044 = vpack.c.b16 %v2028, %v2027
      %2061 = vst [vmem:[#allocation3 + $0x10] sm:$0xff] %v2029
      %2062 = vst [vmem:[#allocation3 + $0x58] sm:$0xff] %v2030
      %2063 = vst [vmem:[#allocation3 + $0xa0] sm:$0xff] %v2031
      %2064 = vst [vmem:[#allocation3 + $0xe8] sm:$0xff] %v2032
      %2065 = vst [vmem:[#allocation3 + $0x130] sm:$0xff] %v2033
      %2066 = vst [vmem:[#allocation3 + $0x178] sm:$0xff] %v2034
      %2067 = vst [vmem:[#allocation3 + $0x1c0] sm:$0xff] %v2035
      %2068 = vst [vmem:[#allocation3 + $0x208] sm:$0xff] %v2036
      %2069 = vst [vmem:[#allocation3 + $0x250] sm:$0xff] %v2037
      %2070 = vst [vmem:[#allocation3 + $0x298] sm:$0xff] %v2038
      %2071 = vst [vmem:[#allocation3 + $0x2e0] sm:$0xff] %v2039
      %2072 = vst [vmem:[#allocation3 + $0x328] sm:$0xff] %v2040
      %2073 = vst [vmem:[#allocation3 + $0x370] sm:$0xff] %v2041
      %2074 = vst [vmem:[#allocation3 + $0x3b8] sm:$0xff] %v2042
      %2075 = vst [vmem:[#allocation3 + $0x400] sm:$0xff] %v2043
      %2076 = vst [vmem:[#allocation3 + $0x448] sm:$0xff] %v2044
      %v2077 = vld [vmem:[%s1012] sm:$0xf]
      %v2078 = vld [vmem:[%s1012 + $0x4] sm:$0xf]
      %v2079 = vld [vmem:[%s1012 + $0xc] sm:$0xf]
      %v2080 = vld [vmem:[%s1012 + $0x10] sm:$0xf]
      %v2081 = vld [vmem:[%s1012 + $0x18] sm:$0xf]
      %v2082 = vld [vmem:[%s1012 + $0x1c] sm:$0xf]
      %v2083 = vld [vmem:[%s1012 + $0x24] sm:$0xf]
      %v2084 = vld [vmem:[%s1012 + $0x28] sm:$0xf]
      %v2085 = vld [vmem:[%s1012 + $0x30] sm:$0xf]
      %v2086 = vld [vmem:[%s1012 + $0x34] sm:$0xf]
      %v2087 = vld [vmem:[%s1012 + $0x3c] sm:$0xf]
      %v2088 = vld [vmem:[%s1012 + $0x40] sm:$0xf]
      %v2089 = vld [vmem:[%s1012 + $0x48] sm:$0xf]
      %v2090 = vld [vmem:[%s1012 + $0x4c] sm:$0xf]
      %v2091 = vld [vmem:[%s1012 + $0x54] sm:$0xf]
      %v2092 = vld [vmem:[%s1012 + $0x58] sm:$0xf]
      %v2093 = vld [vmem:[%s1012 + $0x60] sm:$0xf]
      %v2094 = vld [vmem:[%s1012 + $0x64] sm:$0xf]
      %v2095 = vld [vmem:[%s1012 + $0x6c] sm:$0xf]
      %v2096 = vld [vmem:[%s1012 + $0x70] sm:$0xf]
      %v2097 = vld [vmem:[%s1012 + $0x78] sm:$0xf]
      %v2098 = vld [vmem:[%s1012 + $0x7c] sm:$0xf]
      %v2099 = vld [vmem:[%s1012 + $0x84] sm:$0xf]
      %v2100 = vld [vmem:[%s1012 + $0x88] sm:$0xf]
      %v2101 = vld [vmem:[%s1012 + $0x90] sm:$0xf]
      %v2102 = vld [vmem:[%s1012 + $0x94] sm:$0xf]
      %v2103 = vld [vmem:[%s1012 + $0x9c] sm:$0xf]
      %v2104 = vld [vmem:[%s1012 + $0xa0] sm:$0xf]
      %v2105 = vld [vmem:[%s1012 + $0xa8] sm:$0xf]
      %v2106 = vld [vmem:[%s1012 + $0xac] sm:$0xf]
      %v2107 = vld [vmem:[%s1012 + $0xb4] sm:$0xf]
      %v2108 = vld [vmem:[%s1012 + $0xb8] sm:$0xf]
      %v2141 = vunpack.c.l.b16 %v2077
      %v2142 = vunpack.c.l.b16 %v2078
      %v2143 = vunpack.c.l.b16 %v2079
      %v2144 = vunpack.c.l.b16 %v2080
      %v2145 = vunpack.c.l.b16 %v2081
      %v2146 = vunpack.c.l.b16 %v2082
      %v2147 = vunpack.c.l.b16 %v2083
      %v2148 = vunpack.c.l.b16 %v2084
      %v2149 = vunpack.c.l.b16 %v2085
      %v2150 = vunpack.c.l.b16 %v2086
      %v2151 = vunpack.c.l.b16 %v2087
      %v2152 = vunpack.c.l.b16 %v2088
      %v2153 = vunpack.c.l.b16 %v2089
      %v2154 = vunpack.c.l.b16 %v2090
      %v2155 = vunpack.c.l.b16 %v2091
      %v2156 = vunpack.c.l.b16 %v2092
      %v2157 = vunpack.c.l.b16 %v2093
      %v2158 = vunpack.c.l.b16 %v2094
      %v2159 = vunpack.c.l.b16 %v2095
      %v2160 = vunpack.c.l.b16 %v2096
      %v2161 = vunpack.c.l.b16 %v2097
      %v2162 = vunpack.c.l.b16 %v2098
      %v2163 = vunpack.c.l.b16 %v2099
      %v2164 = vunpack.c.l.b16 %v2100
      %v2165 = vunpack.c.l.b16 %v2101
      %v2166 = vunpack.c.l.b16 %v2102
      %v2167 = vunpack.c.l.b16 %v2103
      %v2168 = vunpack.c.l.b16 %v2104
      %v2169 = vunpack.c.l.b16 %v2105
      %v2170 = vunpack.c.l.b16 %v2106
      %v2171 = vunpack.c.l.b16 %v2107
      %v2172 = vunpack.c.l.b16 %v2108
      %v2173 = vpack.c.b16 %v2142, %v2141
      %v2174 = vpack.c.b16 %v2144, %v2143
      %v2175 = vpack.c.b16 %v2146, %v2145
      %v2176 = vpack.c.b16 %v2148, %v2147
      %v2177 = vpack.c.b16 %v2150, %v2149
      %v2178 = vpack.c.b16 %v2152, %v2151
      %v2179 = vpack.c.b16 %v2154, %v2153
      %v2180 = vpack.c.b16 %v2156, %v2155
      %v2181 = vpack.c.b16 %v2158, %v2157
      %v2182 = vpack.c.b16 %v2160, %v2159
      %v2183 = vpack.c.b16 %v2162, %v2161
      %v2184 = vpack.c.b16 %v2164, %v2163
      %v2185 = vpack.c.b16 %v2166, %v2165
      %v2186 = vpack.c.b16 %v2168, %v2167
      %v2187 = vpack.c.b16 %v2170, %v2169
      %v2188 = vpack.c.b16 %v2172, %v2171
      %2205 = vst [vmem:[#allocation3 + $0x18] sm:$0xff] %v2173
      %2206 = vst [vmem:[#allocation3 + $0x60] sm:$0xff] %v2174
      %2207 = vst [vmem:[#allocation3 + $0xa8] sm:$0xff] %v2175
      %2208 = vst [vmem:[#allocation3 + $0xf0] sm:$0xff] %v2176
      %2209 = vst [vmem:[#allocation3 + $0x138] sm:$0xff] %v2177
      %2210 = vst [vmem:[#allocation3 + $0x180] sm:$0xff] %v2178
      %2211 = vst [vmem:[#allocation3 + $0x1c8] sm:$0xff] %v2179
      %2212 = vst [vmem:[#allocation3 + $0x210] sm:$0xff] %v2180
      %2213 = vst [vmem:[#allocation3 + $0x258] sm:$0xff] %v2181
      %2214 = vst [vmem:[#allocation3 + $0x2a0] sm:$0xff] %v2182
      %2215 = vst [vmem:[#allocation3 + $0x2e8] sm:$0xff] %v2183
      %2216 = vst [vmem:[#allocation3 + $0x330] sm:$0xff] %v2184
      %2217 = vst [vmem:[#allocation3 + $0x378] sm:$0xff] %v2185
      %2218 = vst [vmem:[#allocation3 + $0x3c0] sm:$0xff] %v2186
      %2219 = vst [vmem:[#allocation3 + $0x408] sm:$0xff] %v2187
      %2220 = vst [vmem:[#allocation3 + $0x450] sm:$0xff] %v2188
      %v2221 = vld [vmem:[%s1012] sm:$0xf]
      %v2222 = vld [vmem:[%s1012 + $0x4] sm:$0xf]
      %v2223 = vld [vmem:[%s1012 + $0x8] sm:$0x1]
      %v2224 = vld [vmem:[%s1012 + $0xc] sm:$0xf]
      %v2225 = vld [vmem:[%s1012 + $0x10] sm:$0xf]
      %v2226 = vld [vmem:[%s1012 + $0x14] sm:$0x1]
      %v2227 = vld [vmem:[%s1012 + $0x18] sm:$0xf]
      %v2228 = vld [vmem:[%s1012 + $0x1c] sm:$0xf]
      %v2229 = vld [vmem:[%s1012 + $0x20] sm:$0x1]
      %v2230 = vld [vmem:[%s1012 + $0x24] sm:$0xf]
      %v2231 = vld [vmem:[%s1012 + $0x28] sm:$0xf]
      %v2232 = vld [vmem:[%s1012 + $0x2c] sm:$0x1]
      %v2233 = vld [vmem:[%s1012 + $0x30] sm:$0xf]
      %v2234 = vld [vmem:[%s1012 + $0x34] sm:$0xf]
      %v2235 = vld [vmem:[%s1012 + $0x38] sm:$0x1]
      %v2236 = vld [vmem:[%s1012 + $0x3c] sm:$0xf]
      %v2237 = vld [vmem:[%s1012 + $0x40] sm:$0xf]
      %v2238 = vld [vmem:[%s1012 + $0x44] sm:$0x1]
      %v2239 = vld [vmem:[%s1012 + $0x48] sm:$0xf]
      %v2240 = vld [vmem:[%s1012 + $0x4c] sm:$0xf]
      %v2241 = vld [vmem:[%s1012 + $0x50] sm:$0x1]
      %v2242 = vld [vmem:[%s1012 + $0x54] sm:$0xf]
      %v2243 = vld [vmem:[%s1012 + $0x58] sm:$0xf]
      %v2244 = vld [vmem:[%s1012 + $0x5c] sm:$0x1]
      %v2245 = vld [vmem:[%s1012 + $0x60] sm:$0xf]
      %v2246 = vld [vmem:[%s1012 + $0x64] sm:$0xf]
      %v2247 = vld [vmem:[%s1012 + $0x68] sm:$0x1]
      %v2248 = vld [vmem:[%s1012 + $0x6c] sm:$0xf]
      %v2249 = vld [vmem:[%s1012 + $0x70] sm:$0xf]
      %v2250 = vld [vmem:[%s1012 + $0x74] sm:$0x1]
      %v2251 = vld [vmem:[%s1012 + $0x78] sm:$0xf]
      %v2252 = vld [vmem:[%s1012 + $0x7c] sm:$0xf]
      %v2253 = vld [vmem:[%s1012 + $0x80] sm:$0x1]
      %v2254 = vld [vmem:[%s1012 + $0x84] sm:$0xf]
      %v2255 = vld [vmem:[%s1012 + $0x88] sm:$0xf]
      %v2256 = vld [vmem:[%s1012 + $0x8c] sm:$0x1]
      %v2257 = vld [vmem:[%s1012 + $0x90] sm:$0xf]
      %v2258 = vld [vmem:[%s1012 + $0x94] sm:$0xf]
      %v2259 = vld [vmem:[%s1012 + $0x98] sm:$0x1]
      %v2260 = vld [vmem:[%s1012 + $0x9c] sm:$0xf]
      %v2261 = vld [vmem:[%s1012 + $0xa0] sm:$0xf]
      %v2262 = vld [vmem:[%s1012 + $0xa4] sm:$0x1]
      %v2263 = vld [vmem:[%s1012 + $0xa8] sm:$0xf]
      %v2264 = vld [vmem:[%s1012 + $0xac] sm:$0xf]
      %v2265 = vld [vmem:[%s1012 + $0xb0] sm:$0x1]
      %v2266 = vld [vmem:[%s1012 + $0xb4] sm:$0xf]
      %v2267 = vld [vmem:[%s1012 + $0xb8] sm:$0xf]
      %v2268 = vld [vmem:[%s1012 + $0xbc] sm:$0x1]
      %v2270 = vshrl.u32 %v2221, 16
      %v2272 = vrot.slane %v2270, 4
      %v2273 = vshll.u32 %v2221, 16
      %v2275 = vrot.slane %v2273, 5
      %v2276 = vor.u32 %v2272, %v2275
      %v2277 = vrot.slane %v2276, 4
      %v2279 = vshll.u32 %v2222, 16
      %v2281 = vrot.slane %v2279, 5
      %v2282 = vsel %vm1321, %v2277, %v2281
      %v2283 = vshrl.u32 %v2222, 16
      %v2285 = vrot.slane %v2283, 4
      %v2286 = vor.u32 %v2285, %v2281
      %v2287 = vrot.slane %v2286, 4
      %v2289 = vshll.u32 %v2223, 16
      %v2291 = vrot.slane %v2289, 5
      %v2292 = vsel %vm1321, %v2287, %v2291
      %v2294 = vshrl.u32 %v2224, 16
      %v2296 = vrot.slane %v2294, 4
      %v2297 = vshll.u32 %v2224, 16
      %v2299 = vrot.slane %v2297, 5
      %v2300 = vor.u32 %v2296, %v2299
      %v2301 = vrot.slane %v2300, 4
      %v2303 = vshll.u32 %v2225, 16
      %v2305 = vrot.slane %v2303, 5
      %v2306 = vsel %vm1321, %v2301, %v2305
      %v2307 = vshrl.u32 %v2225, 16
      %v2309 = vrot.slane %v2307, 4
      %v2310 = vor.u32 %v2309, %v2305
      %v2311 = vrot.slane %v2310, 4
      %v2313 = vshll.u32 %v2226, 16
      %v2315 = vrot.slane %v2313, 5
      %v2316 = vsel %vm1321, %v2311, %v2315
      %v2318 = vshrl.u32 %v2227, 16
      %v2320 = vrot.slane %v2318, 4
      %v2321 = vshll.u32 %v2227, 16
      %v2323 = vrot.slane %v2321, 5
      %v2324 = vor.u32 %v2320, %v2323
      %v2325 = vrot.slane %v2324, 4
      %v2327 = vshll.u32 %v2228, 16
      %v2329 = vrot.slane %v2327, 5
      %v2330 = vsel %vm1321, %v2325, %v2329
      %v2331 = vshrl.u32 %v2228, 16
      %v2333 = vrot.slane %v2331, 4
      %v2334 = vor.u32 %v2333, %v2329
      %v2335 = vrot.slane %v2334, 4
      %v2337 = vshll.u32 %v2229, 16
      %v2339 = vrot.slane %v2337, 5
      %v2340 = vsel %vm1321, %v2335, %v2339
      %v2342 = vshrl.u32 %v2230, 16
      %v2344 = vrot.slane %v2342, 4
      %v2345 = vshll.u32 %v2230, 16
      %v2347 = vrot.slane %v2345, 5
      %v2348 = vor.u32 %v2344, %v2347
      %v2349 = vrot.slane %v2348, 4
      %v2351 = vshll.u32 %v2231, 16
      %v2353 = vrot.slane %v2351, 5
      %v2354 = vsel %vm1321, %v2349, %v2353
      %v2355 = vshrl.u32 %v2231, 16
      %v2357 = vrot.slane %v2355, 4
      %v2358 = vor.u32 %v2357, %v2353
      %v2359 = vrot.slane %v2358, 4
      %v2361 = vshll.u32 %v2232, 16
      %v2363 = vrot.slane %v2361, 5
      %v2364 = vsel %vm1321, %v2359, %v2363
      %v2366 = vshrl.u32 %v2233, 16
      %v2368 = vrot.slane %v2366, 4
      %v2369 = vshll.u32 %v2233, 16
      %v2371 = vrot.slane %v2369, 5
      %v2372 = vor.u32 %v2368, %v2371
      %v2373 = vrot.slane %v2372, 4
      %v2375 = vshll.u32 %v2234, 16
      %v2377 = vrot.slane %v2375, 5
      %v2378 = vsel %vm1321, %v2373, %v2377
      %v2379 = vshrl.u32 %v2234, 16
      %v2381 = vrot.slane %v2379, 4
      %v2382 = vor.u32 %v2381, %v2377
      %v2383 = vrot.slane %v2382, 4
      %v2385 = vshll.u32 %v2235, 16
      %v2387 = vrot.slane %v2385, 5
      %v2388 = vsel %vm1321, %v2383, %v2387
      %v2390 = vshrl.u32 %v2236, 16
      %v2392 = vrot.slane %v2390, 4
      %v2393 = vshll.u32 %v2236, 16
      %v2395 = vrot.slane %v2393, 5
      %v2396 = vor.u32 %v2392, %v2395
      %v2397 = vrot.slane %v2396, 4
      %v2399 = vshll.u32 %v2237, 16
      %v2401 = vrot.slane %v2399, 5
      %v2402 = vsel %vm1321, %v2397, %v2401
      %v2403 = vshrl.u32 %v2237, 16
      %v2405 = vrot.slane %v2403, 4
      %v2406 = vor.u32 %v2405, %v2401
      %v2407 = vrot.slane %v2406, 4
      %v2409 = vshll.u32 %v2238, 16
      %v2411 = vrot.slane %v2409, 5
      %v2412 = vsel %vm1321, %v2407, %v2411
      %v2414 = vshrl.u32 %v2239, 16
      %v2416 = vrot.slane %v2414, 4
      %v2417 = vshll.u32 %v2239, 16
      %v2419 = vrot.slane %v2417, 5
      %v2420 = vor.u32 %v2416, %v2419
      %v2421 = vrot.slane %v2420, 4
      %v2423 = vshll.u32 %v2240, 16
      %v2425 = vrot.slane %v2423, 5
      %v2426 = vsel %vm1321, %v2421, %v2425
      %v2427 = vshrl.u32 %v2240, 16
      %v2429 = vrot.slane %v2427, 4
      %v2430 = vor.u32 %v2429, %v2425
      %v2431 = vrot.slane %v2430, 4
      %v2433 = vshll.u32 %v2241, 16
      %v2435 = vrot.slane %v2433, 5
      %v2436 = vsel %vm1321, %v2431, %v2435
      %v2438 = vshrl.u32 %v2242, 16
      %v2440 = vrot.slane %v2438, 4
      %v2441 = vshll.u32 %v2242, 16
      %v2443 = vrot.slane %v2441, 5
      %v2444 = vor.u32 %v2440, %v2443
      %v2445 = vrot.slane %v2444, 4
      %v2447 = vshll.u32 %v2243, 16
      %v2449 = vrot.slane %v2447, 5
      %v2450 = vsel %vm1321, %v2445, %v2449
      %v2451 = vshrl.u32 %v2243, 16
      %v2453 = vrot.slane %v2451, 4
      %v2454 = vor.u32 %v2453, %v2449
      %v2455 = vrot.slane %v2454, 4
      %v2457 = vshll.u32 %v2244, 16
      %v2459 = vrot.slane %v2457, 5
      %v2460 = vsel %vm1321, %v2455, %v2459
      %v2462 = vshrl.u32 %v2245, 16
      %v2464 = vrot.slane %v2462, 4
      %v2465 = vshll.u32 %v2245, 16
      %v2467 = vrot.slane %v2465, 5
      %v2468 = vor.u32 %v2464, %v2467
      %v2469 = vrot.slane %v2468, 4
      %v2471 = vshll.u32 %v2246, 16
      %v2473 = vrot.slane %v2471, 5
      %v2474 = vsel %vm1321, %v2469, %v2473
      %v2475 = vshrl.u32 %v2246, 16
      %v2477 = vrot.slane %v2475, 4
      %v2478 = vor.u32 %v2477, %v2473
      %v2479 = vrot.slane %v2478, 4
      %v2481 = vshll.u32 %v2247, 16
      %v2483 = vrot.slane %v2481, 5
      %v2484 = vsel %vm1321, %v2479, %v2483
      %v2486 = vshrl.u32 %v2248, 16
      %v2488 = vrot.slane %v2486, 4
      %v2489 = vshll.u32 %v2248, 16
      %v2491 = vrot.slane %v2489, 5
      %v2492 = vor.u32 %v2488, %v2491
      %v2493 = vrot.slane %v2492, 4
      %v2495 = vshll.u32 %v2249, 16
      %v2497 = vrot.slane %v2495, 5
      %v2498 = vsel %vm1321, %v2493, %v2497
      %v2499 = vshrl.u32 %v2249, 16
      %v2501 = vrot.slane %v2499, 4
      %v2502 = vor.u32 %v2501, %v2497
      %v2503 = vrot.slane %v2502, 4
      %v2505 = vshll.u32 %v2250, 16
      %v2507 = vrot.slane %v2505, 5
      %v2508 = vsel %vm1321, %v2503, %v2507
      %v2510 = vshrl.u32 %v2251, 16
      %v2512 = vrot.slane %v2510, 4
      %v2513 = vshll.u32 %v2251, 16
      %v2515 = vrot.slane %v2513, 5
      %v2516 = vor.u32 %v2512, %v2515
      %v2517 = vrot.slane %v2516, 4
      %v2519 = vshll.u32 %v2252, 16
      %v2521 = vrot.slane %v2519, 5
      %v2522 = vsel %vm1321, %v2517, %v2521
      %v2523 = vshrl.u32 %v2252, 16
      %v2525 = vrot.slane %v2523, 4
      %v2526 = vor.u32 %v2525, %v2521
      %v2527 = vrot.slane %v2526, 4
      %v2529 = vshll.u32 %v2253, 16
      %v2531 = vrot.slane %v2529, 5
      %v2532 = vsel %vm1321, %v2527, %v2531
      %v2534 = vshrl.u32 %v2254, 16
      %v2536 = vrot.slane %v2534, 4
      %v2537 = vshll.u32 %v2254, 16
      %v2539 = vrot.slane %v2537, 5
      %v2540 = vor.u32 %v2536, %v2539
      %v2541 = vrot.slane %v2540, 4
      %v2543 = vshll.u32 %v2255, 16
      %v2545 = vrot.slane %v2543, 5
      %v2546 = vsel %vm1321, %v2541, %v2545
      %v2547 = vshrl.u32 %v2255, 16
      %v2549 = vrot.slane %v2547, 4
      %v2550 = vor.u32 %v2549, %v2545
      %v2551 = vrot.slane %v2550, 4
      %v2553 = vshll.u32 %v2256, 16
      %v2555 = vrot.slane %v2553, 5
      %v2556 = vsel %vm1321, %v2551, %v2555
      %v2558 = vshrl.u32 %v2257, 16
      %v2560 = vrot.slane %v2558, 4
      %v2561 = vshll.u32 %v2257, 16
      %v2563 = vrot.slane %v2561, 5
      %v2564 = vor.u32 %v2560, %v2563
      %v2565 = vrot.slane %v2564, 4
      %v2567 = vshll.u32 %v2258, 16
      %v2569 = vrot.slane %v2567, 5
      %v2570 = vsel %vm1321, %v2565, %v2569
      %v2571 = vshrl.u32 %v2258, 16
      %v2573 = vrot.slane %v2571, 4
      %v2574 = vor.u32 %v2573, %v2569
      %v2575 = vrot.slane %v2574, 4
      %v2577 = vshll.u32 %v2259, 16
      %v2579 = vrot.slane %v2577, 5
      %v2580 = vsel %vm1321, %v2575, %v2579
      %v2582 = vshrl.u32 %v2260, 16
      %v2584 = vrot.slane %v2582, 4
      %v2585 = vshll.u32 %v2260, 16
      %v2587 = vrot.slane %v2585, 5
      %v2588 = vor.u32 %v2584, %v2587
      %v2589 = vrot.slane %v2588, 4
      %v2591 = vshll.u32 %v2261, 16
      %v2593 = vrot.slane %v2591, 5
      %v2594 = vsel %vm1321, %v2589, %v2593
      %v2595 = vshrl.u32 %v2261, 16
      %v2597 = vrot.slane %v2595, 4
      %v2598 = vor.u32 %v2597, %v2593
      %v2599 = vrot.slane %v2598, 4
      %v2601 = vshll.u32 %v2262, 16
      %v2603 = vrot.slane %v2601, 5
      %v2604 = vsel %vm1321, %v2599, %v2603
      %v2606 = vshrl.u32 %v2263, 16
      %v2608 = vrot.slane %v2606, 4
      %v2609 = vshll.u32 %v2263, 16
      %v2611 = vrot.slane %v2609, 5
      %v2612 = vor.u32 %v2608, %v2611
      %v2613 = vrot.slane %v2612, 4
      %v2615 = vshll.u32 %v2264, 16
      %v2617 = vrot.slane %v2615, 5
      %v2618 = vsel %vm1321, %v2613, %v2617
      %v2619 = vshrl.u32 %v2264, 16
      %v2621 = vrot.slane %v2619, 4
      %v2622 = vor.u32 %v2621, %v2617
      %v2623 = vrot.slane %v2622, 4
      %v2625 = vshll.u32 %v2265, 16
      %v2627 = vrot.slane %v2625, 5
      %v2628 = vsel %vm1321, %v2623, %v2627
      %v2630 = vshrl.u32 %v2266, 16
      %v2632 = vrot.slane %v2630, 4
      %v2633 = vshll.u32 %v2266, 16
      %v2635 = vrot.slane %v2633, 5
      %v2636 = vor.u32 %v2632, %v2635
      %v2637 = vrot.slane %v2636, 4
      %v2639 = vshll.u32 %v2267, 16
      %v2641 = vrot.slane %v2639, 5
      %v2642 = vsel %vm1321, %v2637, %v2641
      %v2643 = vshrl.u32 %v2267, 16
      %v2645 = vrot.slane %v2643, 4
      %v2646 = vor.u32 %v2645, %v2641
      %v2647 = vrot.slane %v2646, 4
      %v2649 = vshll.u32 %v2268, 16
      %v2651 = vrot.slane %v2649, 5
      %v2652 = vsel %vm1321, %v2647, %v2651
      %v2653 = vunpack.c.l.b16 %v2282
      %v2654 = vunpack.c.l.b16 %v2292
      %v2655 = vunpack.c.l.b16 %v2306
      %v2656 = vunpack.c.l.b16 %v2316
      %v2657 = vunpack.c.l.b16 %v2330
      %v2658 = vunpack.c.l.b16 %v2340
      %v2659 = vunpack.c.l.b16 %v2354
      %v2660 = vunpack.c.l.b16 %v2364
      %v2661 = vunpack.c.l.b16 %v2378
      %v2662 = vunpack.c.l.b16 %v2388
      %v2663 = vunpack.c.l.b16 %v2402
      %v2664 = vunpack.c.l.b16 %v2412
      %v2665 = vunpack.c.l.b16 %v2426
      %v2666 = vunpack.c.l.b16 %v2436
      %v2667 = vunpack.c.l.b16 %v2450
      %v2668 = vunpack.c.l.b16 %v2460
      %v2669 = vunpack.c.l.b16 %v2474
      %v2670 = vunpack.c.l.b16 %v2484
      %v2671 = vunpack.c.l.b16 %v2498
      %v2672 = vunpack.c.l.b16 %v2508
      %v2673 = vunpack.c.l.b16 %v2522
      %v2674 = vunpack.c.l.b16 %v2532
      %v2675 = vunpack.c.l.b16 %v2546
      %v2676 = vunpack.c.l.b16 %v2556
      %v2677 = vunpack.c.l.b16 %v2570
      %v2678 = vunpack.c.l.b16 %v2580
      %v2679 = vunpack.c.l.b16 %v2594
      %v2680 = vunpack.c.l.b16 %v2604
      %v2681 = vunpack.c.l.b16 %v2618
      %v2682 = vunpack.c.l.b16 %v2628
      %v2683 = vunpack.c.l.b16 %v2642
      %v2684 = vunpack.c.l.b16 %v2652
      %v2685 = vpack.c.b16 %v2654, %v2653
      %v2686 = vpack.c.b16 %v2656, %v2655
      %v2687 = vpack.c.b16 %v2658, %v2657
      %v2688 = vpack.c.b16 %v2660, %v2659
      %v2689 = vpack.c.b16 %v2662, %v2661
      %v2690 = vpack.c.b16 %v2664, %v2663
      %v2691 = vpack.c.b16 %v2666, %v2665
      %v2692 = vpack.c.b16 %v2668, %v2667
      %v2693 = vpack.c.b16 %v2670, %v2669
      %v2694 = vpack.c.b16 %v2672, %v2671
      %v2695 = vpack.c.b16 %v2674, %v2673
      %v2696 = vpack.c.b16 %v2676, %v2675
      %v2697 = vpack.c.b16 %v2678, %v2677
      %v2698 = vpack.c.b16 %v2680, %v2679
      %v2699 = vpack.c.b16 %v2682, %v2681
      %v2700 = vpack.c.b16 %v2684, %v2683
      %2717 = vst [vmem:[#allocation3 + $0x20] sm:$0xff] %v2685
      %2718 = vst [vmem:[#allocation3 + $0x68] sm:$0xff] %v2686
      %2719 = vst [vmem:[#allocation3 + $0xb0] sm:$0xff] %v2687
      %2720 = vst [vmem:[#allocation3 + $0xf8] sm:$0xff] %v2688
      %2721 = vst [vmem:[#allocation3 + $0x140] sm:$0xff] %v2689
      %2722 = vst [vmem:[#allocation3 + $0x188] sm:$0xff] %v2690
      %2723 = vst [vmem:[#allocation3 + $0x1d0] sm:$0xff] %v2691
      %2724 = vst [vmem:[#allocation3 + $0x218] sm:$0xff] %v2692
      %2725 = vst [vmem:[#allocation3 + $0x260] sm:$0xff] %v2693
      %2726 = vst [vmem:[#allocation3 + $0x2a8] sm:$0xff] %v2694
      %2727 = vst [vmem:[#allocation3 + $0x2f0] sm:$0xff] %v2695
      %2728 = vst [vmem:[#allocation3 + $0x338] sm:$0xff] %v2696
      %2729 = vst [vmem:[#allocation3 + $0x380] sm:$0xff] %v2697
      %2730 = vst [vmem:[#allocation3 + $0x3c8] sm:$0xff] %v2698
      %2731 = vst [vmem:[#allocation3 + $0x410] sm:$0xff] %v2699
      %2732 = vst [vmem:[#allocation3 + $0x458] sm:$0xff] %v2700
      %v2733 = vld [vmem:[%s1012] sm:$0xe]
      %v2734 = vld [vmem:[%s1012 + $0x4] sm:$0xf]
      %v2735 = vld [vmem:[%s1012 + $0x8] sm:$0x1]
      %v2736 = vld [vmem:[%s1012 + $0xc] sm:$0xe]
      %v2737 = vld [vmem:[%s1012 + $0x10] sm:$0xf]
      %v2738 = vld [vmem:[%s1012 + $0x14] sm:$0x1]
      %v2739 = vld [vmem:[%s1012 + $0x18] sm:$0xe]
      %v2740 = vld [vmem:[%s1012 + $0x1c] sm:$0xf]
      %v2741 = vld [vmem:[%s1012 + $0x20] sm:$0x1]
      %v2742 = vld [vmem:[%s1012 + $0x24] sm:$0xe]
      %v2743 = vld [vmem:[%s1012 + $0x28] sm:$0xf]
      %v2744 = vld [vmem:[%s1012 + $0x2c] sm:$0x1]
      %v2745 = vld [vmem:[%s1012 + $0x30] sm:$0xe]
      %v2746 = vld [vmem:[%s1012 + $0x34] sm:$0xf]
      %v2747 = vld [vmem:[%s1012 + $0x38] sm:$0x1]
      %v2748 = vld [vmem:[%s1012 + $0x3c] sm:$0xe]
      %v2749 = vld [vmem:[%s1012 + $0x40] sm:$0xf]
      %v2750 = vld [vmem:[%s1012 + $0x44] sm:$0x1]
      %v2751 = vld [vmem:[%s1012 + $0x48] sm:$0xe]
      %v2752 = vld [vmem:[%s1012 + $0x4c] sm:$0xf]
      %v2753 = vld [vmem:[%s1012 + $0x50] sm:$0x1]
      %v2754 = vld [vmem:[%s1012 + $0x54] sm:$0xe]
      %v2755 = vld [vmem:[%s1012 + $0x58] sm:$0xf]
      %v2756 = vld [vmem:[%s1012 + $0x5c] sm:$0x1]
      %v2757 = vld [vmem:[%s1012 + $0x60] sm:$0xe]
      %v2758 = vld [vmem:[%s1012 + $0x64] sm:$0xf]
      %v2759 = vld [vmem:[%s1012 + $0x68] sm:$0x1]
      %v2760 = vld [vmem:[%s1012 + $0x6c] sm:$0xe]
      %v2761 = vld [vmem:[%s1012 + $0x70] sm:$0xf]
      %v2762 = vld [vmem:[%s1012 + $0x74] sm:$0x1]
      %v2763 = vld [vmem:[%s1012 + $0x78] sm:$0xe]
      %v2764 = vld [vmem:[%s1012 + $0x7c] sm:$0xf]
      %v2765 = vld [vmem:[%s1012 + $0x80] sm:$0x1]
      %v2766 = vld [vmem:[%s1012 + $0x84] sm:$0xe]
      %v2767 = vld [vmem:[%s1012 + $0x88] sm:$0xf]
      %v2768 = vld [vmem:[%s1012 + $0x8c] sm:$0x1]
      %v2769 = vld [vmem:[%s1012 + $0x90] sm:$0xe]
      %v2770 = vld [vmem:[%s1012 + $0x94] sm:$0xf]
      %v2771 = vld [vmem:[%s1012 + $0x98] sm:$0x1]
      %v2772 = vld [vmem:[%s1012 + $0x9c] sm:$0xe]
      %v2773 = vld [vmem:[%s1012 + $0xa0] sm:$0xf]
      %v2774 = vld [vmem:[%s1012 + $0xa4] sm:$0x1]
      %v2775 = vld [vmem:[%s1012 + $0xa8] sm:$0xe]
      %v2776 = vld [vmem:[%s1012 + $0xac] sm:$0xf]
      %v2777 = vld [vmem:[%s1012 + $0xb0] sm:$0x1]
      %v2778 = vld [vmem:[%s1012 + $0xb4] sm:$0xe]
      %v2779 = vld [vmem:[%s1012 + $0xb8] sm:$0xf]
      %v2780 = vld [vmem:[%s1012 + $0xbc] sm:$0x1]
      %v2829 = vrot.slane %v2733, 5
      %v2830 = vrot.slane %v2829, 4
      %v2831 = vrot.slane %v2734, 5
      %v2832 = vsel %vm1884, %v2830, %v2831
      %v2833 = vrot.slane %v2831, 4
      %v2834 = vrot.slane %v2735, 5
      %v2835 = vsel %vm1884, %v2833, %v2834
      %v2836 = vrot.slane %v2736, 5
      %v2837 = vrot.slane %v2836, 4
      %v2838 = vrot.slane %v2737, 5
      %v2839 = vsel %vm1884, %v2837, %v2838
      %v2840 = vrot.slane %v2838, 4
      %v2841 = vrot.slane %v2738, 5
      %v2842 = vsel %vm1884, %v2840, %v2841
      %v2843 = vrot.slane %v2739, 5
      %v2844 = vrot.slane %v2843, 4
      %v2845 = vrot.slane %v2740, 5
      %v2846 = vsel %vm1884, %v2844, %v2845
      %v2847 = vrot.slane %v2845, 4
      %v2848 = vrot.slane %v2741, 5
      %v2849 = vsel %vm1884, %v2847, %v2848
      %v2850 = vrot.slane %v2742, 5
      %v2851 = vrot.slane %v2850, 4
      %v2852 = vrot.slane %v2743, 5
      %v2853 = vsel %vm1884, %v2851, %v2852
      %v2854 = vrot.slane %v2852, 4
      %v2855 = vrot.slane %v2744, 5
      %v2856 = vsel %vm1884, %v2854, %v2855
      %v2857 = vrot.slane %v2745, 5
      %v2858 = vrot.slane %v2857, 4
      %v2859 = vrot.slane %v2746, 5
      %v2860 = vsel %vm1884, %v2858, %v2859
      %v2861 = vrot.slane %v2859, 4
      %v2862 = vrot.slane %v2747, 5
      %v2863 = vsel %vm1884, %v2861, %v2862
      %v2864 = vrot.slane %v2748, 5
      %v2865 = vrot.slane %v2864, 4
      %v2866 = vrot.slane %v2749, 5
      %v2867 = vsel %vm1884, %v2865, %v2866
      %v2868 = vrot.slane %v2866, 4
      %v2869 = vrot.slane %v2750, 5
      %v2870 = vsel %vm1884, %v2868, %v2869
      %v2871 = vrot.slane %v2751, 5
      %v2872 = vrot.slane %v2871, 4
      %v2873 = vrot.slane %v2752, 5
      %v2874 = vsel %vm1884, %v2872, %v2873
      %v2875 = vrot.slane %v2873, 4
      %v2876 = vrot.slane %v2753, 5
      %v2877 = vsel %vm1884, %v2875, %v2876
      %v2878 = vrot.slane %v2754, 5
      %v2879 = vrot.slane %v2878, 4
      %v2880 = vrot.slane %v2755, 5
      %v2881 = vsel %vm1884, %v2879, %v2880
      %v2882 = vrot.slane %v2880, 4
      %v2883 = vrot.slane %v2756, 5
      %v2884 = vsel %vm1884, %v2882, %v2883
      %v2885 = vrot.slane %v2757, 5
      %v2886 = vrot.slane %v2885, 4
      %v2887 = vrot.slane %v2758, 5
      %v2888 = vsel %vm1884, %v2886, %v2887
      %v2889 = vrot.slane %v2887, 4
      %v2890 = vrot.slane %v2759, 5
      %v2891 = vsel %vm1884, %v2889, %v2890
      %v2892 = vrot.slane %v2760, 5
      %v2893 = vrot.slane %v2892, 4
      %v2894 = vrot.slane %v2761, 5
      %v2895 = vsel %vm1884, %v2893, %v2894
      %v2896 = vrot.slane %v2894, 4
      %v2897 = vrot.slane %v2762, 5
      %v2898 = vsel %vm1884, %v2896, %v2897
      %v2899 = vrot.slane %v2763, 5
      %v2900 = vrot.slane %v2899, 4
      %v2901 = vrot.slane %v2764, 5
      %v2902 = vsel %vm1884, %v2900, %v2901
      %v2903 = vrot.slane %v2901, 4
      %v2904 = vrot.slane %v2765, 5
      %v2905 = vsel %vm1884, %v2903, %v2904
      %v2906 = vrot.slane %v2766, 5
      %v2907 = vrot.slane %v2906, 4
      %v2908 = vrot.slane %v2767, 5
      %v2909 = vsel %vm1884, %v2907, %v2908
      %v2910 = vrot.slane %v2908, 4
      %v2911 = vrot.slane %v2768, 5
      %v2912 = vsel %vm1884, %v2910, %v2911
      %v2913 = vrot.slane %v2769, 5
      %v2914 = vrot.slane %v2913, 4
      %v2915 = vrot.slane %v2770, 5
      %v2916 = vsel %vm1884, %v2914, %v2915
      %v2917 = vrot.slane %v2915, 4
      %v2918 = vrot.slane %v2771, 5
      %v2919 = vsel %vm1884, %v2917, %v2918
      %v2920 = vrot.slane %v2772, 5
      %v2921 = vrot.slane %v2920, 4
      %v2922 = vrot.slane %v2773, 5
      %v2923 = vsel %vm1884, %v2921, %v2922
      %v2924 = vrot.slane %v2922, 4
      %v2925 = vrot.slane %v2774, 5
      %v2926 = vsel %vm1884, %v2924, %v2925
      %v2927 = vrot.slane %v2775, 5
      %v2928 = vrot.slane %v2927, 4
      %v2929 = vrot.slane %v2776, 5
      %v2930 = vsel %vm1884, %v2928, %v2929
      %v2931 = vrot.slane %v2929, 4
      %v2932 = vrot.slane %v2777, 5
      %v2933 = vsel %vm1884, %v2931, %v2932
      %v2934 = vrot.slane %v2778, 5
      %v2935 = vrot.slane %v2934, 4
      %v2936 = vrot.slane %v2779, 5
      %v2937 = vsel %vm1884, %v2935, %v2936
      %v2938 = vrot.slane %v2936, 4
      %v2939 = vrot.slane %v2780, 5
      %v2940 = vsel %vm1884, %v2938, %v2939
      %v2941 = vunpack.c.l.b16 %v2832
      %v2942 = vunpack.c.l.b16 %v2835
      %v2943 = vunpack.c.l.b16 %v2839
      %v2944 = vunpack.c.l.b16 %v2842
      %v2945 = vunpack.c.l.b16 %v2846
      %v2946 = vunpack.c.l.b16 %v2849
      %v2947 = vunpack.c.l.b16 %v2853
      %v2948 = vunpack.c.l.b16 %v2856
      %v2949 = vunpack.c.l.b16 %v2860
      %v2950 = vunpack.c.l.b16 %v2863
      %v2951 = vunpack.c.l.b16 %v2867
      %v2952 = vunpack.c.l.b16 %v2870
      %v2953 = vunpack.c.l.b16 %v2874
      %v2954 = vunpack.c.l.b16 %v2877
      %v2955 = vunpack.c.l.b16 %v2881
      %v2956 = vunpack.c.l.b16 %v2884
      %v2957 = vunpack.c.l.b16 %v2888
      %v2958 = vunpack.c.l.b16 %v2891
      %v2959 = vunpack.c.l.b16 %v2895
      %v2960 = vunpack.c.l.b16 %v2898
      %v2961 = vunpack.c.l.b16 %v2902
      %v2962 = vunpack.c.l.b16 %v2905
      %v2963 = vunpack.c.l.b16 %v2909
      %v2964 = vunpack.c.l.b16 %v2912
      %v2965 = vunpack.c.l.b16 %v2916
      %v2966 = vunpack.c.l.b16 %v2919
      %v2967 = vunpack.c.l.b16 %v2923
      %v2968 = vunpack.c.l.b16 %v2926
      %v2969 = vunpack.c.l.b16 %v2930
      %v2970 = vunpack.c.l.b16 %v2933
      %v2971 = vunpack.c.l.b16 %v2937
      %v2972 = vunpack.c.l.b16 %v2940
      %v2973 = vpack.c.b16 %v2942, %v2941
      %v2974 = vpack.c.b16 %v2944, %v2943
      %v2975 = vpack.c.b16 %v2946, %v2945
      %v2976 = vpack.c.b16 %v2948, %v2947
      %v2977 = vpack.c.b16 %v2950, %v2949
      %v2978 = vpack.c.b16 %v2952, %v2951
      %v2979 = vpack.c.b16 %v2954, %v2953
      %v2980 = vpack.c.b16 %v2956, %v2955
      %v2981 = vpack.c.b16 %v2958, %v2957
      %v2982 = vpack.c.b16 %v2960, %v2959
      %v2983 = vpack.c.b16 %v2962, %v2961
      %v2984 = vpack.c.b16 %v2964, %v2963
      %v2985 = vpack.c.b16 %v2966, %v2965
      %v2986 = vpack.c.b16 %v2968, %v2967
      %v2987 = vpack.c.b16 %v2970, %v2969
      %v2988 = vpack.c.b16 %v2972, %v2971
      %3005 = vst [vmem:[#allocation3 + $0x28] sm:$0xff] %v2973
      %3006 = vst [vmem:[#allocation3 + $0x70] sm:$0xff] %v2974
      %3007 = vst [vmem:[#allocation3 + $0xb8] sm:$0xff] %v2975
      %3008 = vst [vmem:[#allocation3 + $0x100] sm:$0xff] %v2976
      %3009 = vst [vmem:[#allocation3 + $0x148] sm:$0xff] %v2977
      %3010 = vst [vmem:[#allocation3 + $0x190] sm:$0xff] %v2978
      %3011 = vst [vmem:[#allocation3 + $0x1d8] sm:$0xff] %v2979
      %3012 = vst [vmem:[#allocation3 + $0x220] sm:$0xff] %v2980
      %3013 = vst [vmem:[#allocation3 + $0x268] sm:$0xff] %v2981
      %3014 = vst [vmem:[#allocation3 + $0x2b0] sm:$0xff] %v2982
      %3015 = vst [vmem:[#allocation3 + $0x2f8] sm:$0xff] %v2983
      %3016 = vst [vmem:[#allocation3 + $0x340] sm:$0xff] %v2984
      %3017 = vst [vmem:[#allocation3 + $0x388] sm:$0xff] %v2985
      %3018 = vst [vmem:[#allocation3 + $0x3d0] sm:$0xff] %v2986
      %3019 = vst [vmem:[#allocation3 + $0x418] sm:$0xff] %v2987
      %3020 = vst [vmem:[#allocation3 + $0x460] sm:$0xff] %v2988
      %s3021 = scalar_lea.vmem [#allocation2], 24
      %v3022 = vld [vmem:[%s3021] sm:$0xf]
      %v3023 = vld [vmem:[%s3021 + $0x4] sm:$0xf]
      %v3024 = vld [vmem:[%s3021 + $0xc] sm:$0xf]
      %v3025 = vld [vmem:[%s3021 + $0x10] sm:$0xf]
      %v3026 = vld [vmem:[%s3021 + $0x18] sm:$0xf]
      %v3027 = vld [vmem:[%s3021 + $0x1c] sm:$0xf]
      %v3028 = vld [vmem:[%s3021 + $0x24] sm:$0xf]
      %v3029 = vld [vmem:[%s3021 + $0x28] sm:$0xf]
      %v3030 = vld [vmem:[%s3021 + $0x30] sm:$0xf]
      %v3031 = vld [vmem:[%s3021 + $0x34] sm:$0xf]
      %v3032 = vld [vmem:[%s3021 + $0x3c] sm:$0xf]
      %v3033 = vld [vmem:[%s3021 + $0x40] sm:$0xf]
      %v3034 = vld [vmem:[%s3021 + $0x48] sm:$0xf]
      %v3035 = vld [vmem:[%s3021 + $0x4c] sm:$0xf]
      %v3036 = vld [vmem:[%s3021 + $0x54] sm:$0xf]
      %v3037 = vld [vmem:[%s3021 + $0x58] sm:$0xf]
      %v3038 = vld [vmem:[%s3021 + $0x60] sm:$0xf]
      %v3039 = vld [vmem:[%s3021 + $0x64] sm:$0xf]
      %v3040 = vld [vmem:[%s3021 + $0x6c] sm:$0xf]
      %v3041 = vld [vmem:[%s3021 + $0x70] sm:$0xf]
      %v3042 = vld [vmem:[%s3021 + $0x78] sm:$0xf]
      %v3043 = vld [vmem:[%s3021 + $0x7c] sm:$0xf]
      %v3044 = vld [vmem:[%s3021 + $0x84] sm:$0xf]
      %v3045 = vld [vmem:[%s3021 + $0x88] sm:$0xf]
      %v3046 = vld [vmem:[%s3021 + $0x90] sm:$0xf]
      %v3047 = vld [vmem:[%s3021 + $0x94] sm:$0xf]
      %v3048 = vld [vmem:[%s3021 + $0x9c] sm:$0xf]
      %v3049 = vld [vmem:[%s3021 + $0xa0] sm:$0xf]
      %v3050 = vld [vmem:[%s3021 + $0xa8] sm:$0xf]
      %v3051 = vld [vmem:[%s3021 + $0xac] sm:$0xf]
      %v3052 = vld [vmem:[%s3021 + $0xb4] sm:$0xf]
      %v3053 = vld [vmem:[%s3021 + $0xb8] sm:$0xf]
      %v3086 = vunpack.c.l.b16 %v3022
      %v3087 = vunpack.c.l.b16 %v3023
      %v3088 = vunpack.c.l.b16 %v3024
      %v3089 = vunpack.c.l.b16 %v3025
      %v3090 = vunpack.c.l.b16 %v3026
      %v3091 = vunpack.c.l.b16 %v3027
      %v3092 = vunpack.c.l.b16 %v3028
      %v3093 = vunpack.c.l.b16 %v3029
      %v3094 = vunpack.c.l.b16 %v3030
      %v3095 = vunpack.c.l.b16 %v3031
      %v3096 = vunpack.c.l.b16 %v3032
      %v3097 = vunpack.c.l.b16 %v3033
      %v3098 = vunpack.c.l.b16 %v3034
      %v3099 = vunpack.c.l.b16 %v3035
      %v3100 = vunpack.c.l.b16 %v3036
      %v3101 = vunpack.c.l.b16 %v3037
      %v3102 = vunpack.c.l.b16 %v3038
      %v3103 = vunpack.c.l.b16 %v3039
      %v3104 = vunpack.c.l.b16 %v3040
      %v3105 = vunpack.c.l.b16 %v3041
      %v3106 = vunpack.c.l.b16 %v3042
      %v3107 = vunpack.c.l.b16 %v3043
      %v3108 = vunpack.c.l.b16 %v3044
      %v3109 = vunpack.c.l.b16 %v3045
      %v3110 = vunpack.c.l.b16 %v3046
      %v3111 = vunpack.c.l.b16 %v3047
      %v3112 = vunpack.c.l.b16 %v3048
      %v3113 = vunpack.c.l.b16 %v3049
      %v3114 = vunpack.c.l.b16 %v3050
      %v3115 = vunpack.c.l.b16 %v3051
      %v3116 = vunpack.c.l.b16 %v3052
      %v3117 = vunpack.c.l.b16 %v3053
      %v3118 = vpack.c.b16 %v3087, %v3086
      %v3119 = vpack.c.b16 %v3089, %v3088
      %v3120 = vpack.c.b16 %v3091, %v3090
      %v3121 = vpack.c.b16 %v3093, %v3092
      %v3122 = vpack.c.b16 %v3095, %v3094
      %v3123 = vpack.c.b16 %v3097, %v3096
      %v3124 = vpack.c.b16 %v3099, %v3098
      %v3125 = vpack.c.b16 %v3101, %v3100
      %v3126 = vpack.c.b16 %v3103, %v3102
      %v3127 = vpack.c.b16 %v3105, %v3104
      %v3128 = vpack.c.b16 %v3107, %v3106
      %v3129 = vpack.c.b16 %v3109, %v3108
      %v3130 = vpack.c.b16 %v3111, %v3110
      %v3131 = vpack.c.b16 %v3113, %v3112
      %v3132 = vpack.c.b16 %v3115, %v3114
      %v3133 = vpack.c.b16 %v3117, %v3116
      %3150 = vst [vmem:[#allocation3 + $0x30] sm:$0xff] %v3118
      %3151 = vst [vmem:[#allocation3 + $0x78] sm:$0xff] %v3119
      %3152 = vst [vmem:[#allocation3 + $0xc0] sm:$0xff] %v3120
      %3153 = vst [vmem:[#allocation3 + $0x108] sm:$0xff] %v3121
      %3154 = vst [vmem:[#allocation3 + $0x150] sm:$0xff] %v3122
      %3155 = vst [vmem:[#allocation3 + $0x198] sm:$0xff] %v3123
      %3156 = vst [vmem:[#allocation3 + $0x1e0] sm:$0xff] %v3124
      %3157 = vst [vmem:[#allocation3 + $0x228] sm:$0xff] %v3125
      %3158 = vst [vmem:[#allocation3 + $0x270] sm:$0xff] %v3126
      %3159 = vst [vmem:[#allocation3 + $0x2b8] sm:$0xff] %v3127
      %3160 = vst [vmem:[#allocation3 + $0x300] sm:$0xff] %v3128
      %3161 = vst [vmem:[#allocation3 + $0x348] sm:$0xff] %v3129
      %3162 = vst [vmem:[#allocation3 + $0x390] sm:$0xff] %v3130
      %3163 = vst [vmem:[#allocation3 + $0x3d8] sm:$0xff] %v3131
      %3164 = vst [vmem:[#allocation3 + $0x420] sm:$0xff] %v3132
      %3165 = vst [vmem:[#allocation3 + $0x468] sm:$0xff] %v3133
      %v3166 = vld [vmem:[%s3021] sm:$0xf]
      %v3167 = vld [vmem:[%s3021 + $0x4] sm:$0xf]
      %v3168 = vld [vmem:[%s3021 + $0x8] sm:$0x1]
      %v3169 = vld [vmem:[%s3021 + $0xc] sm:$0xf]
      %v3170 = vld [vmem:[%s3021 + $0x10] sm:$0xf]
      %v3171 = vld [vmem:[%s3021 + $0x14] sm:$0x1]
      %v3172 = vld [vmem:[%s3021 + $0x18] sm:$0xf]
      %v3173 = vld [vmem:[%s3021 + $0x1c] sm:$0xf]
      %v3174 = vld [vmem:[%s3021 + $0x20] sm:$0x1]
      %v3175 = vld [vmem:[%s3021 + $0x24] sm:$0xf]
      %v3176 = vld [vmem:[%s3021 + $0x28] sm:$0xf]
      %v3177 = vld [vmem:[%s3021 + $0x2c] sm:$0x1]
      %v3178 = vld [vmem:[%s3021 + $0x30] sm:$0xf]
      %v3179 = vld [vmem:[%s3021 + $0x34] sm:$0xf]
      %v3180 = vld [vmem:[%s3021 + $0x38] sm:$0x1]
      %v3181 = vld [vmem:[%s3021 + $0x3c] sm:$0xf]
      %v3182 = vld [vmem:[%s3021 + $0x40] sm:$0xf]
      %v3183 = vld [vmem:[%s3021 + $0x44] sm:$0x1]
      %v3184 = vld [vmem:[%s3021 + $0x48] sm:$0xf]
      %v3185 = vld [vmem:[%s3021 + $0x4c] sm:$0xf]
      %v3186 = vld [vmem:[%s3021 + $0x50] sm:$0x1]
      %v3187 = vld [vmem:[%s3021 + $0x54] sm:$0xf]
      %v3188 = vld [vmem:[%s3021 + $0x58] sm:$0xf]
      %v3189 = vld [vmem:[%s3021 + $0x5c] sm:$0x1]
      %v3190 = vld [vmem:[%s3021 + $0x60] sm:$0xf]
      %v3191 = vld [vmem:[%s3021 + $0x64] sm:$0xf]
      %v3192 = vld [vmem:[%s3021 + $0x68] sm:$0x1]
      %v3193 = vld [vmem:[%s3021 + $0x6c] sm:$0xf]
      %v3194 = vld [vmem:[%s3021 + $0x70] sm:$0xf]
      %v3195 = vld [vmem:[%s3021 + $0x74] sm:$0x1]
      %v3196 = vld [vmem:[%s3021 + $0x78] sm:$0xf]
      %v3197 = vld [vmem:[%s3021 + $0x7c] sm:$0xf]
      %v3198 = vld [vmem:[%s3021 + $0x80] sm:$0x1]
      %v3199 = vld [vmem:[%s3021 + $0x84] sm:$0xf]
      %v3200 = vld [vmem:[%s3021 + $0x88] sm:$0xf]
      %v3201 = vld [vmem:[%s3021 + $0x8c] sm:$0x1]
      %v3202 = vld [vmem:[%s3021 + $0x90] sm:$0xf]
      %v3203 = vld [vmem:[%s3021 + $0x94] sm:$0xf]
      %v3204 = vld [vmem:[%s3021 + $0x98] sm:$0x1]
      %v3205 = vld [vmem:[%s3021 + $0x9c] sm:$0xf]
      %v3206 = vld [vmem:[%s3021 + $0xa0] sm:$0xf]
      %v3207 = vld [vmem:[%s3021 + $0xa4] sm:$0x1]
      %v3208 = vld [vmem:[%s3021 + $0xa8] sm:$0xf]
      %v3209 = vld [vmem:[%s3021 + $0xac] sm:$0xf]
      %v3210 = vld [vmem:[%s3021 + $0xb0] sm:$0x1]
      %v3211 = vld [vmem:[%s3021 + $0xb4] sm:$0xf]
      %v3212 = vld [vmem:[%s3021 + $0xb8] sm:$0xf]
      %v3213 = vld [vmem:[%s3021 + $0xbc] sm:$0x1]
      %v3215 = vshrl.u32 %v3166, 16
      %v3217 = vrot.slane %v3215, 4
      %v3218 = vshll.u32 %v3166, 16
      %v3220 = vrot.slane %v3218, 5
      %v3221 = vor.u32 %v3217, %v3220
      %v3222 = vrot.slane %v3221, 4
      %v3224 = vshll.u32 %v3167, 16
      %v3226 = vrot.slane %v3224, 5
      %v3227 = vsel %vm1321, %v3222, %v3226
      %v3228 = vshrl.u32 %v3167, 16
      %v3230 = vrot.slane %v3228, 4
      %v3231 = vor.u32 %v3230, %v3226
      %v3232 = vrot.slane %v3231, 4
      %v3234 = vshll.u32 %v3168, 16
      %v3236 = vrot.slane %v3234, 5
      %v3237 = vsel %vm1321, %v3232, %v3236
      %v3239 = vshrl.u32 %v3169, 16
      %v3241 = vrot.slane %v3239, 4
      %v3242 = vshll.u32 %v3169, 16
      %v3244 = vrot.slane %v3242, 5
      %v3245 = vor.u32 %v3241, %v3244
      %v3246 = vrot.slane %v3245, 4
      %v3248 = vshll.u32 %v3170, 16
      %v3250 = vrot.slane %v3248, 5
      %v3251 = vsel %vm1321, %v3246, %v3250
      %v3252 = vshrl.u32 %v3170, 16
      %v3254 = vrot.slane %v3252, 4
      %v3255 = vor.u32 %v3254, %v3250
      %v3256 = vrot.slane %v3255, 4
      %v3258 = vshll.u32 %v3171, 16
      %v3260 = vrot.slane %v3258, 5
      %v3261 = vsel %vm1321, %v3256, %v3260
      %v3263 = vshrl.u32 %v3172, 16
      %v3265 = vrot.slane %v3263, 4
      %v3266 = vshll.u32 %v3172, 16
      %v3268 = vrot.slane %v3266, 5
      %v3269 = vor.u32 %v3265, %v3268
      %v3270 = vrot.slane %v3269, 4
      %v3272 = vshll.u32 %v3173, 16
      %v3274 = vrot.slane %v3272, 5
      %v3275 = vsel %vm1321, %v3270, %v3274
      %v3276 = vshrl.u32 %v3173, 16
      %v3278 = vrot.slane %v3276, 4
      %v3279 = vor.u32 %v3278, %v3274
      %v3280 = vrot.slane %v3279, 4
      %v3282 = vshll.u32 %v3174, 16
      %v3284 = vrot.slane %v3282, 5
      %v3285 = vsel %vm1321, %v3280, %v3284
      %v3287 = vshrl.u32 %v3175, 16
      %v3289 = vrot.slane %v3287, 4
      %v3290 = vshll.u32 %v3175, 16
      %v3292 = vrot.slane %v3290, 5
      %v3293 = vor.u32 %v3289, %v3292
      %v3294 = vrot.slane %v3293, 4
      %v3296 = vshll.u32 %v3176, 16
      %v3298 = vrot.slane %v3296, 5
      %v3299 = vsel %vm1321, %v3294, %v3298
      %v3300 = vshrl.u32 %v3176, 16
      %v3302 = vrot.slane %v3300, 4
      %v3303 = vor.u32 %v3302, %v3298
      %v3304 = vrot.slane %v3303, 4
      %v3306 = vshll.u32 %v3177, 16
      %v3308 = vrot.slane %v3306, 5
      %v3309 = vsel %vm1321, %v3304, %v3308
      %v3311 = vshrl.u32 %v3178, 16
      %v3313 = vrot.slane %v3311, 4
      %v3314 = vshll.u32 %v3178, 16
      %v3316 = vrot.slane %v3314, 5
      %v3317 = vor.u32 %v3313, %v3316
      %v3318 = vrot.slane %v3317, 4
      %v3320 = vshll.u32 %v3179, 16
      %v3322 = vrot.slane %v3320, 5
      %v3323 = vsel %vm1321, %v3318, %v3322
      %v3324 = vshrl.u32 %v3179, 16
      %v3326 = vrot.slane %v3324, 4
      %v3327 = vor.u32 %v3326, %v3322
      %v3328 = vrot.slane %v3327, 4
      %v3330 = vshll.u32 %v3180, 16
      %v3332 = vrot.slane %v3330, 5
      %v3333 = vsel %vm1321, %v3328, %v3332
      %v3335 = vshrl.u32 %v3181, 16
      %v3337 = vrot.slane %v3335, 4
      %v3338 = vshll.u32 %v3181, 16
      %v3340 = vrot.slane %v3338, 5
      %v3341 = vor.u32 %v3337, %v3340
      %v3342 = vrot.slane %v3341, 4
      %v3344 = vshll.u32 %v3182, 16
      %v3346 = vrot.slane %v3344, 5
      %v3347 = vsel %vm1321, %v3342, %v3346
      %v3348 = vshrl.u32 %v3182, 16
      %v3350 = vrot.slane %v3348, 4
      %v3351 = vor.u32 %v3350, %v3346
      %v3352 = vrot.slane %v3351, 4
      %v3354 = vshll.u32 %v3183, 16
      %v3356 = vrot.slane %v3354, 5
      %v3357 = vsel %vm1321, %v3352, %v3356
      %v3359 = vshrl.u32 %v3184, 16
      %v3361 = vrot.slane %v3359, 4
      %v3362 = vshll.u32 %v3184, 16
      %v3364 = vrot.slane %v3362, 5
      %v3365 = vor.u32 %v3361, %v3364
      %v3366 = vrot.slane %v3365, 4
      %v3368 = vshll.u32 %v3185, 16
      %v3370 = vrot.slane %v3368, 5
      %v3371 = vsel %vm1321, %v3366, %v3370
      %v3372 = vshrl.u32 %v3185, 16
      %v3374 = vrot.slane %v3372, 4
      %v3375 = vor.u32 %v3374, %v3370
      %v3376 = vrot.slane %v3375, 4
      %v3378 = vshll.u32 %v3186, 16
      %v3380 = vrot.slane %v3378, 5
      %v3381 = vsel %vm1321, %v3376, %v3380
      %v3383 = vshrl.u32 %v3187, 16
      %v3385 = vrot.slane %v3383, 4
      %v3386 = vshll.u32 %v3187, 16
      %v3388 = vrot.slane %v3386, 5
      %v3389 = vor.u32 %v3385, %v3388
      %v3390 = vrot.slane %v3389, 4
      %v3392 = vshll.u32 %v3188, 16
      %v3394 = vrot.slane %v3392, 5
      %v3395 = vsel %vm1321, %v3390, %v3394
      %v3396 = vshrl.u32 %v3188, 16
      %v3398 = vrot.slane %v3396, 4
      %v3399 = vor.u32 %v3398, %v3394
      %v3400 = vrot.slane %v3399, 4
      %v3402 = vshll.u32 %v3189, 16
      %v3404 = vrot.slane %v3402, 5
      %v3405 = vsel %vm1321, %v3400, %v3404
      %v3407 = vshrl.u32 %v3190, 16
      %v3409 = vrot.slane %v3407, 4
      %v3410 = vshll.u32 %v3190, 16
      %v3412 = vrot.slane %v3410, 5
      %v3413 = vor.u32 %v3409, %v3412
      %v3414 = vrot.slane %v3413, 4
      %v3416 = vshll.u32 %v3191, 16
      %v3418 = vrot.slane %v3416, 5
      %v3419 = vsel %vm1321, %v3414, %v3418
      %v3420 = vshrl.u32 %v3191, 16
      %v3422 = vrot.slane %v3420, 4
      %v3423 = vor.u32 %v3422, %v3418
      %v3424 = vrot.slane %v3423, 4
      %v3426 = vshll.u32 %v3192, 16
      %v3428 = vrot.slane %v3426, 5
      %v3429 = vsel %vm1321, %v3424, %v3428
      %v3431 = vshrl.u32 %v3193, 16
      %v3433 = vrot.slane %v3431, 4
      %v3434 = vshll.u32 %v3193, 16
      %v3436 = vrot.slane %v3434, 5
      %v3437 = vor.u32 %v3433, %v3436
      %v3438 = vrot.slane %v3437, 4
      %v3440 = vshll.u32 %v3194, 16
      %v3442 = vrot.slane %v3440, 5
      %v3443 = vsel %vm1321, %v3438, %v3442
      %v3444 = vshrl.u32 %v3194, 16
      %v3446 = vrot.slane %v3444, 4
      %v3447 = vor.u32 %v3446, %v3442
      %v3448 = vrot.slane %v3447, 4
      %v3450 = vshll.u32 %v3195, 16
      %v3452 = vrot.slane %v3450, 5
      %v3453 = vsel %vm1321, %v3448, %v3452
      %v3455 = vshrl.u32 %v3196, 16
      %v3457 = vrot.slane %v3455, 4
      %v3458 = vshll.u32 %v3196, 16
      %v3460 = vrot.slane %v3458, 5
      %v3461 = vor.u32 %v3457, %v3460
      %v3462 = vrot.slane %v3461, 4
      %v3464 = vshll.u32 %v3197, 16
      %v3466 = vrot.slane %v3464, 5
      %v3467 = vsel %vm1321, %v3462, %v3466
      %v3468 = vshrl.u32 %v3197, 16
      %v3470 = vrot.slane %v3468, 4
      %v3471 = vor.u32 %v3470, %v3466
      %v3472 = vrot.slane %v3471, 4
      %v3474 = vshll.u32 %v3198, 16
      %v3476 = vrot.slane %v3474, 5
      %v3477 = vsel %vm1321, %v3472, %v3476
      %v3479 = vshrl.u32 %v3199, 16
      %v3481 = vrot.slane %v3479, 4
      %v3482 = vshll.u32 %v3199, 16
      %v3484 = vrot.slane %v3482, 5
      %v3485 = vor.u32 %v3481, %v3484
      %v3486 = vrot.slane %v3485, 4
      %v3488 = vshll.u32 %v3200, 16
      %v3490 = vrot.slane %v3488, 5
      %v3491 = vsel %vm1321, %v3486, %v3490
      %v3492 = vshrl.u32 %v3200, 16
      %v3494 = vrot.slane %v3492, 4
      %v3495 = vor.u32 %v3494, %v3490
      %v3496 = vrot.slane %v3495, 4
      %v3498 = vshll.u32 %v3201, 16
      %v3500 = vrot.slane %v3498, 5
      %v3501 = vsel %vm1321, %v3496, %v3500
      %v3503 = vshrl.u32 %v3202, 16
      %v3505 = vrot.slane %v3503, 4
      %v3506 = vshll.u32 %v3202, 16
      %v3508 = vrot.slane %v3506, 5
      %v3509 = vor.u32 %v3505, %v3508
      %v3510 = vrot.slane %v3509, 4
      %v3512 = vshll.u32 %v3203, 16
      %v3514 = vrot.slane %v3512, 5
      %v3515 = vsel %vm1321, %v3510, %v3514
      %v3516 = vshrl.u32 %v3203, 16
      %v3518 = vrot.slane %v3516, 4
      %v3519 = vor.u32 %v3518, %v3514
      %v3520 = vrot.slane %v3519, 4
      %v3522 = vshll.u32 %v3204, 16
      %v3524 = vrot.slane %v3522, 5
      %v3525 = vsel %vm1321, %v3520, %v3524
      %v3527 = vshrl.u32 %v3205, 16
      %v3529 = vrot.slane %v3527, 4
      %v3530 = vshll.u32 %v3205, 16
      %v3532 = vrot.slane %v3530, 5
      %v3533 = vor.u32 %v3529, %v3532
      %v3534 = vrot.slane %v3533, 4
      %v3536 = vshll.u32 %v3206, 16
      %v3538 = vrot.slane %v3536, 5
      %v3539 = vsel %vm1321, %v3534, %v3538
      %v3540 = vshrl.u32 %v3206, 16
      %v3542 = vrot.slane %v3540, 4
      %v3543 = vor.u32 %v3542, %v3538
      %v3544 = vrot.slane %v3543, 4
      %v3546 = vshll.u32 %v3207, 16
      %v3548 = vrot.slane %v3546, 5
      %v3549 = vsel %vm1321, %v3544, %v3548
      %v3551 = vshrl.u32 %v3208, 16
      %v3553 = vrot.slane %v3551, 4
      %v3554 = vshll.u32 %v3208, 16
      %v3556 = vrot.slane %v3554, 5
      %v3557 = vor.u32 %v3553, %v3556
      %v3558 = vrot.slane %v3557, 4
      %v3560 = vshll.u32 %v3209, 16
      %v3562 = vrot.slane %v3560, 5
      %v3563 = vsel %vm1321, %v3558, %v3562
      %v3564 = vshrl.u32 %v3209, 16
      %v3566 = vrot.slane %v3564, 4
      %v3567 = vor.u32 %v3566, %v3562
      %v3568 = vrot.slane %v3567, 4
      %v3570 = vshll.u32 %v3210, 16
      %v3572 = vrot.slane %v3570, 5
      %v3573 = vsel %vm1321, %v3568, %v3572
      %v3575 = vshrl.u32 %v3211, 16
      %v3577 = vrot.slane %v3575, 4
      %v3578 = vshll.u32 %v3211, 16
      %v3580 = vrot.slane %v3578, 5
      %v3581 = vor.u32 %v3577, %v3580
      %v3582 = vrot.slane %v3581, 4
      %v3584 = vshll.u32 %v3212, 16
      %v3586 = vrot.slane %v3584, 5
      %v3587 = vsel %vm1321, %v3582, %v3586
      %v3588 = vshrl.u32 %v3212, 16
      %v3590 = vrot.slane %v3588, 4
      %v3591 = vor.u32 %v3590, %v3586
      %v3592 = vrot.slane %v3591, 4
      %v3594 = vshll.u32 %v3213, 16
      %v3596 = vrot.slane %v3594, 5
      %v3597 = vsel %vm1321, %v3592, %v3596
      %v3598 = vunpack.c.l.b16 %v3227
      %v3599 = vunpack.c.l.b16 %v3237
      %v3600 = vunpack.c.l.b16 %v3251
      %v3601 = vunpack.c.l.b16 %v3261
      %v3602 = vunpack.c.l.b16 %v3275
      %v3603 = vunpack.c.l.b16 %v3285
      %v3604 = vunpack.c.l.b16 %v3299
      %v3605 = vunpack.c.l.b16 %v3309
      %v3606 = vunpack.c.l.b16 %v3323
      %v3607 = vunpack.c.l.b16 %v3333
      %v3608 = vunpack.c.l.b16 %v3347
      %v3609 = vunpack.c.l.b16 %v3357
      %v3610 = vunpack.c.l.b16 %v3371
      %v3611 = vunpack.c.l.b16 %v3381
      %v3612 = vunpack.c.l.b16 %v3395
      %v3613 = vunpack.c.l.b16 %v3405
      %v3614 = vunpack.c.l.b16 %v3419
      %v3615 = vunpack.c.l.b16 %v3429
      %v3616 = vunpack.c.l.b16 %v3443
      %v3617 = vunpack.c.l.b16 %v3453
      %v3618 = vunpack.c.l.b16 %v3467
      %v3619 = vunpack.c.l.b16 %v3477
      %v3620 = vunpack.c.l.b16 %v3491
      %v3621 = vunpack.c.l.b16 %v3501
      %v3622 = vunpack.c.l.b16 %v3515
      %v3623 = vunpack.c.l.b16 %v3525
      %v3624 = vunpack.c.l.b16 %v3539
      %v3625 = vunpack.c.l.b16 %v3549
      %v3626 = vunpack.c.l.b16 %v3563
      %v3627 = vunpack.c.l.b16 %v3573
      %v3628 = vunpack.c.l.b16 %v3587
      %v3629 = vunpack.c.l.b16 %v3597
      %v3630 = vpack.c.b16 %v3599, %v3598
      %v3631 = vpack.c.b16 %v3601, %v3600
      %v3632 = vpack.c.b16 %v3603, %v3602
      %v3633 = vpack.c.b16 %v3605, %v3604
      %v3634 = vpack.c.b16 %v3607, %v3606
      %v3635 = vpack.c.b16 %v3609, %v3608
      %v3636 = vpack.c.b16 %v3611, %v3610
      %v3637 = vpack.c.b16 %v3613, %v3612
      %v3638 = vpack.c.b16 %v3615, %v3614
      %v3639 = vpack.c.b16 %v3617, %v3616
      %v3640 = vpack.c.b16 %v3619, %v3618
      %v3641 = vpack.c.b16 %v3621, %v3620
      %v3642 = vpack.c.b16 %v3623, %v3622
      %v3643 = vpack.c.b16 %v3625, %v3624
      %v3644 = vpack.c.b16 %v3627, %v3626
      %v3645 = vpack.c.b16 %v3629, %v3628
      %3662 = vst [vmem:[#allocation3 + $0x38] sm:$0xff] %v3630
      %3663 = vst [vmem:[#allocation3 + $0x80] sm:$0xff] %v3631
      %3664 = vst [vmem:[#allocation3 + $0xc8] sm:$0xff] %v3632
      %3665 = vst [vmem:[#allocation3 + $0x110] sm:$0xff] %v3633
      %3666 = vst [vmem:[#allocation3 + $0x158] sm:$0xff] %v3634
      %3667 = vst [vmem:[#allocation3 + $0x1a0] sm:$0xff] %v3635
      %3668 = vst [vmem:[#allocation3 + $0x1e8] sm:$0xff] %v3636
      %3669 = vst [vmem:[#allocation3 + $0x230] sm:$0xff] %v3637
      %3670 = vst [vmem:[#allocation3 + $0x278] sm:$0xff] %v3638
      %3671 = vst [vmem:[#allocation3 + $0x2c0] sm:$0xff] %v3639
      %3672 = vst [vmem:[#allocation3 + $0x308] sm:$0xff] %v3640
      %3673 = vst [vmem:[#allocation3 + $0x350] sm:$0xff] %v3641
      %3674 = vst [vmem:[#allocation3 + $0x398] sm:$0xff] %v3642
      %3675 = vst [vmem:[#allocation3 + $0x3e0] sm:$0xff] %v3643
      %3676 = vst [vmem:[#allocation3 + $0x428] sm:$0xff] %v3644
      %3677 = vst [vmem:[#allocation3 + $0x470] sm:$0xff] %v3645
      %v3678 = vld [vmem:[%s3021] sm:$0xe]
      %v3679 = vld [vmem:[%s3021 + $0x4] sm:$0xf]
      %v3680 = vld [vmem:[%s3021 + $0x8] sm:$0x1]
      %v3681 = vld [vmem:[%s3021 + $0xc] sm:$0xe]
      %v3682 = vld [vmem:[%s3021 + $0x10] sm:$0xf]
      %v3683 = vld [vmem:[%s3021 + $0x14] sm:$0x1]
      %v3684 = vld [vmem:[%s3021 + $0x18] sm:$0xe]
      %v3685 = vld [vmem:[%s3021 + $0x1c] sm:$0xf]
      %v3686 = vld [vmem:[%s3021 + $0x20] sm:$0x1]
      %v3687 = vld [vmem:[%s3021 + $0x24] sm:$0xe]
      %v3688 = vld [vmem:[%s3021 + $0x28] sm:$0xf]
      %v3689 = vld [vmem:[%s3021 + $0x2c] sm:$0x1]
      %v3690 = vld [vmem:[%s3021 + $0x30] sm:$0xe]
      %v3691 = vld [vmem:[%s3021 + $0x34] sm:$0xf]
      %v3692 = vld [vmem:[%s3021 + $0x38] sm:$0x1]
      %v3693 = vld [vmem:[%s3021 + $0x3c] sm:$0xe]
      %v3694 = vld [vmem:[%s3021 + $0x40] sm:$0xf]
      %v3695 = vld [vmem:[%s3021 + $0x44] sm:$0x1]
      %v3696 = vld [vmem:[%s3021 + $0x48] sm:$0xe]
      %v3697 = vld [vmem:[%s3021 + $0x4c] sm:$0xf]
      %v3698 = vld [vmem:[%s3021 + $0x50] sm:$0x1]
      %v3699 = vld [vmem:[%s3021 + $0x54] sm:$0xe]
      %v3700 = vld [vmem:[%s3021 + $0x58] sm:$0xf]
      %v3701 = vld [vmem:[%s3021 + $0x5c] sm:$0x1]
      %v3702 = vld [vmem:[%s3021 + $0x60] sm:$0xe]
      %v3703 = vld [vmem:[%s3021 + $0x64] sm:$0xf]
      %v3704 = vld [vmem:[%s3021 + $0x68] sm:$0x1]
      %v3705 = vld [vmem:[%s3021 + $0x6c] sm:$0xe]
      %v3706 = vld [vmem:[%s3021 + $0x70] sm:$0xf]
      %v3707 = vld [vmem:[%s3021 + $0x74] sm:$0x1]
      %v3708 = vld [vmem:[%s3021 + $0x78] sm:$0xe]
      %v3709 = vld [vmem:[%s3021 + $0x7c] sm:$0xf]
      %v3710 = vld [vmem:[%s3021 + $0x80] sm:$0x1]
      %v3711 = vld [vmem:[%s3021 + $0x84] sm:$0xe]
      %v3712 = vld [vmem:[%s3021 + $0x88] sm:$0xf]
      %v3713 = vld [vmem:[%s3021 + $0x8c] sm:$0x1]
      %v3714 = vld [vmem:[%s3021 + $0x90] sm:$0xe]
      %v3715 = vld [vmem:[%s3021 + $0x94] sm:$0xf]
      %v3716 = vld [vmem:[%s3021 + $0x98] sm:$0x1]
      %v3717 = vld [vmem:[%s3021 + $0x9c] sm:$0xe]
      %v3718 = vld [vmem:[%s3021 + $0xa0] sm:$0xf]
      %v3719 = vld [vmem:[%s3021 + $0xa4] sm:$0x1]
      %v3720 = vld [vmem:[%s3021 + $0xa8] sm:$0xe]
      %v3721 = vld [vmem:[%s3021 + $0xac] sm:$0xf]
      %v3722 = vld [vmem:[%s3021 + $0xb0] sm:$0x1]
      %v3723 = vld [vmem:[%s3021 + $0xb4] sm:$0xe]
      %v3724 = vld [vmem:[%s3021 + $0xb8] sm:$0xf]
      %v3725 = vld [vmem:[%s3021 + $0xbc] sm:$0x1]
      %v3774 = vrot.slane %v3678, 5
      %v3775 = vrot.slane %v3774, 4
      %v3776 = vrot.slane %v3679, 5
      %v3777 = vsel %vm1884, %v3775, %v3776
      %v3778 = vrot.slane %v3776, 4
      %v3779 = vrot.slane %v3680, 5
      %v3780 = vsel %vm1884, %v3778, %v3779
      %v3781 = vrot.slane %v3681, 5
      %v3782 = vrot.slane %v3781, 4
      %v3783 = vrot.slane %v3682, 5
      %v3784 = vsel %vm1884, %v3782, %v3783
      %v3785 = vrot.slane %v3783, 4
      %v3786 = vrot.slane %v3683, 5
      %v3787 = vsel %vm1884, %v3785, %v3786
      %v3788 = vrot.slane %v3684, 5
      %v3789 = vrot.slane %v3788, 4
      %v3790 = vrot.slane %v3685, 5
      %v3791 = vsel %vm1884, %v3789, %v3790
      %v3792 = vrot.slane %v3790, 4
      %v3793 = vrot.slane %v3686, 5
      %v3794 = vsel %vm1884, %v3792, %v3793
      %v3795 = vrot.slane %v3687, 5
      %v3796 = vrot.slane %v3795, 4
      %v3797 = vrot.slane %v3688, 5
      %v3798 = vsel %vm1884, %v3796, %v3797
      %v3799 = vrot.slane %v3797, 4
      %v3800 = vrot.slane %v3689, 5
      %v3801 = vsel %vm1884, %v3799, %v3800
      %v3802 = vrot.slane %v3690, 5
      %v3803 = vrot.slane %v3802, 4
      %v3804 = vrot.slane %v3691, 5
      %v3805 = vsel %vm1884, %v3803, %v3804
      %v3806 = vrot.slane %v3804, 4
      %v3807 = vrot.slane %v3692, 5
      %v3808 = vsel %vm1884, %v3806, %v3807
      %v3809 = vrot.slane %v3693, 5
      %v3810 = vrot.slane %v3809, 4
      %v3811 = vrot.slane %v3694, 5
      %v3812 = vsel %vm1884, %v3810, %v3811
      %v3813 = vrot.slane %v3811, 4
      %v3814 = vrot.slane %v3695, 5
      %v3815 = vsel %vm1884, %v3813, %v3814
      %v3816 = vrot.slane %v3696, 5
      %v3817 = vrot.slane %v3816, 4
      %v3818 = vrot.slane %v3697, 5
      %v3819 = vsel %vm1884, %v3817, %v3818
      %v3820 = vrot.slane %v3818, 4
      %v3821 = vrot.slane %v3698, 5
      %v3822 = vsel %vm1884, %v3820, %v3821
      %v3823 = vrot.slane %v3699, 5
      %v3824 = vrot.slane %v3823, 4
      %v3825 = vrot.slane %v3700, 5
      %v3826 = vsel %vm1884, %v3824, %v3825
      %v3827 = vrot.slane %v3825, 4
      %v3828 = vrot.slane %v3701, 5
      %v3829 = vsel %vm1884, %v3827, %v3828
      %v3830 = vrot.slane %v3702, 5
      %v3831 = vrot.slane %v3830, 4
      %v3832 = vrot.slane %v3703, 5
      %v3833 = vsel %vm1884, %v3831, %v3832
      %v3834 = vrot.slane %v3832, 4
      %v3835 = vrot.slane %v3704, 5
      %v3836 = vsel %vm1884, %v3834, %v3835
      %v3837 = vrot.slane %v3705, 5
      %v3838 = vrot.slane %v3837, 4
      %v3839 = vrot.slane %v3706, 5
      %v3840 = vsel %vm1884, %v3838, %v3839
      %v3841 = vrot.slane %v3839, 4
      %v3842 = vrot.slane %v3707, 5
      %v3843 = vsel %vm1884, %v3841, %v3842
      %v3844 = vrot.slane %v3708, 5
      %v3845 = vrot.slane %v3844, 4
      %v3846 = vrot.slane %v3709, 5
      %v3847 = vsel %vm1884, %v3845, %v3846
      %v3848 = vrot.slane %v3846, 4
      %v3849 = vrot.slane %v3710, 5
      %v3850 = vsel %vm1884, %v3848, %v3849
      %v3851 = vrot.slane %v3711, 5
      %v3852 = vrot.slane %v3851, 4
      %v3853 = vrot.slane %v3712, 5
      %v3854 = vsel %vm1884, %v3852, %v3853
      %v3855 = vrot.slane %v3853, 4
      %v3856 = vrot.slane %v3713, 5
      %v3857 = vsel %vm1884, %v3855, %v3856
      %v3858 = vrot.slane %v3714, 5
      %v3859 = vrot.slane %v3858, 4
      %v3860 = vrot.slane %v3715, 5
      %v3861 = vsel %vm1884, %v3859, %v3860
      %v3862 = vrot.slane %v3860, 4
      %v3863 = vrot.slane %v3716, 5
      %v3864 = vsel %vm1884, %v3862, %v3863
      %v3865 = vrot.slane %v3717, 5
      %v3866 = vrot.slane %v3865, 4
      %v3867 = vrot.slane %v3718, 5
      %v3868 = vsel %vm1884, %v3866, %v3867
      %v3869 = vrot.slane %v3867, 4
      %v3870 = vrot.slane %v3719, 5
      %v3871 = vsel %vm1884, %v3869, %v3870
      %v3872 = vrot.slane %v3720, 5
      %v3873 = vrot.slane %v3872, 4
      %v3874 = vrot.slane %v3721, 5
      %v3875 = vsel %vm1884, %v3873, %v3874
      %v3876 = vrot.slane %v3874, 4
      %v3877 = vrot.slane %v3722, 5
      %v3878 = vsel %vm1884, %v3876, %v3877
      %v3879 = vrot.slane %v3723, 5
      %v3880 = vrot.slane %v3879, 4
      %v3881 = vrot.slane %v3724, 5
      %v3882 = vsel %vm1884, %v3880, %v3881
      %v3883 = vrot.slane %v3881, 4
      %v3884 = vrot.slane %v3725, 5
      %v3885 = vsel %vm1884, %v3883, %v3884
      %v3886 = vunpack.c.l.b16 %v3777
      %v3887 = vunpack.c.l.b16 %v3780
      %v3888 = vunpack.c.l.b16 %v3784
      %v3889 = vunpack.c.l.b16 %v3787
      %v3890 = vunpack.c.l.b16 %v3791
      %v3891 = vunpack.c.l.b16 %v3794
      %v3892 = vunpack.c.l.b16 %v3798
      %v3893 = vunpack.c.l.b16 %v3801
      %v3894 = vunpack.c.l.b16 %v3805
      %v3895 = vunpack.c.l.b16 %v3808
      %v3896 = vunpack.c.l.b16 %v3812
      %v3897 = vunpack.c.l.b16 %v3815
      %v3898 = vunpack.c.l.b16 %v3819
      %v3899 = vunpack.c.l.b16 %v3822
      %v3900 = vunpack.c.l.b16 %v3826
      %v3901 = vunpack.c.l.b16 %v3829
      %v3902 = vunpack.c.l.b16 %v3833
      %v3903 = vunpack.c.l.b16 %v3836
      %v3904 = vunpack.c.l.b16 %v3840
      %v3905 = vunpack.c.l.b16 %v3843
      %v3906 = vunpack.c.l.b16 %v3847
      %v3907 = vunpack.c.l.b16 %v3850
      %v3908 = vunpack.c.l.b16 %v3854
      %v3909 = vunpack.c.l.b16 %v3857
      %v3910 = vunpack.c.l.b16 %v3861
      %v3911 = vunpack.c.l.b16 %v3864
      %v3912 = vunpack.c.l.b16 %v3868
      %v3913 = vunpack.c.l.b16 %v3871
      %v3914 = vunpack.c.l.b16 %v3875
      %v3915 = vunpack.c.l.b16 %v3878
      %v3916 = vunpack.c.l.b16 %v3882
      %v3917 = vunpack.c.l.b16 %v3885
      %v3918 = vpack.c.b16 %v3887, %v3886
      %v3919 = vpack.c.b16 %v3889, %v3888
      %v3920 = vpack.c.b16 %v3891, %v3890
      %v3921 = vpack.c.b16 %v3893, %v3892
      %v3922 = vpack.c.b16 %v3895, %v3894
      %v3923 = vpack.c.b16 %v3897, %v3896
      %v3924 = vpack.c.b16 %v3899, %v3898
      %v3925 = vpack.c.b16 %v3901, %v3900
      %v3926 = vpack.c.b16 %v3903, %v3902
      %v3927 = vpack.c.b16 %v3905, %v3904
      %v3928 = vpack.c.b16 %v3907, %v3906
      %v3929 = vpack.c.b16 %v3909, %v3908
      %v3930 = vpack.c.b16 %v3911, %v3910
      %v3931 = vpack.c.b16 %v3913, %v3912
      %v3932 = vpack.c.b16 %v3915, %v3914
      %v3933 = vpack.c.b16 %v3917, %v3916
      %3950 = vst [vmem:[#allocation3 + $0x40] sm:$0xff] %v3918
      %3951 = vst [vmem:[#allocation3 + $0x88] sm:$0xff] %v3919
      %3952 = vst [vmem:[#allocation3 + $0xd0] sm:$0xff] %v3920
      %3953 = vst [vmem:[#allocation3 + $0x118] sm:$0xff] %v3921
      %3954 = vst [vmem:[#allocation3 + $0x160] sm:$0xff] %v3922
      %3955 = vst [vmem:[#allocation3 + $0x1a8] sm:$0xff] %v3923
      %3956 = vst [vmem:[#allocation3 + $0x1f0] sm:$0xff] %v3924
      %3957 = vst [vmem:[#allocation3 + $0x238] sm:$0xff] %v3925
      %3958 = vst [vmem:[#allocation3 + $0x280] sm:$0xff] %v3926
      %3959 = vst [vmem:[#allocation3 + $0x2c8] sm:$0xff] %v3927
      %3960 = vst [vmem:[#allocation3 + $0x310] sm:$0xff] %v3928
      %3961 = vst [vmem:[#allocation3 + $0x358] sm:$0xff] %v3929
      %3962 = vst [vmem:[#allocation3 + $0x3a0] sm:$0xff] %v3930
      %3963 = vst [vmem:[#allocation3 + $0x3e8] sm:$0xff] %v3931
      %3964 = vst [vmem:[#allocation3 + $0x430] sm:$0xff] %v3932
      %3965 = vst [vmem:[#allocation3 + $0x478] sm:$0xff] %v3933
      %v3966 = vld [vmem:[#allocation3] sm:$0xff]
      %v3967 = vld [vmem:[#allocation3 + $0x8] sm:$0xff]
      %v3968 = vld [vmem:[#allocation3 + $0x10] sm:$0xff]
      %v3969 = vld [vmem:[#allocation3 + $0x18] sm:$0xff]
      %v3970 = vld [vmem:[#allocation3 + $0x20] sm:$0xff]
      %v3971 = vld [vmem:[#allocation3 + $0x28] sm:$0xff]
      %v3972 = vld [vmem:[#allocation3 + $0x30] sm:$0xff]
      %v3973 = vld [vmem:[#allocation3 + $0x38] sm:$0xff]
      %v3974 = vld [vmem:[#allocation3 + $0x40] sm:$0xff]
      %v3975 = vld [vmem:[#allocation3 + $0x48] sm:$0xff]
      %v3976 = vld [vmem:[#allocation3 + $0x50] sm:$0xff]
      %v3977 = vld [vmem:[#allocation3 + $0x58] sm:$0xff]
      %v3978 = vld [vmem:[#allocation3 + $0x60] sm:$0xff]
      %v3979 = vld [vmem:[#allocation3 + $0x68] sm:$0xff]
      %v3980 = vld [vmem:[#allocation3 + $0x70] sm:$0xff]
      %v3981 = vld [vmem:[#allocation3 + $0x78] sm:$0xff]
      %v3982 = vld [vmem:[#allocation3 + $0x80] sm:$0xff]
      %v3983 = vld [vmem:[#allocation3 + $0x88] sm:$0xff]
      %v3984 = vld [vmem:[#allocation3 + $0x90] sm:$0xff]
      %v3985 = vld [vmem:[#allocation3 + $0x98] sm:$0xff]
      %v3986 = vld [vmem:[#allocation3 + $0xa0] sm:$0xff]
      %v3987 = vld [vmem:[#allocation3 + $0xa8] sm:$0xff]
      %v3988 = vld [vmem:[#allocation3 + $0xb0] sm:$0xff]
      %v3989 = vld [vmem:[#allocation3 + $0xb8] sm:$0xff]
      %v3990 = vld [vmem:[#allocation3 + $0xc0] sm:$0xff]
      %v3991 = vld [vmem:[#allocation3 + $0xc8] sm:$0xff]
      %v3992 = vld [vmem:[#allocation3 + $0xd0] sm:$0xff]
      %v3993 = vld [vmem:[#allocation3 + $0xd8] sm:$0xff]
      %v3994 = vld [vmem:[#allocation3 + $0xe0] sm:$0xff]
      %v3995 = vld [vmem:[#allocation3 + $0xe8] sm:$0xff]
      %v3996 = vld [vmem:[#allocation3 + $0xf0] sm:$0xff]
      %v3997 = vld [vmem:[#allocation3 + $0xf8] sm:$0xff]
      %v3998 = vld [vmem:[#allocation3 + $0x100] sm:$0xff]
      %v3999 = vld [vmem:[#allocation3 + $0x108] sm:$0xff]
      %v4000 = vld [vmem:[#allocation3 + $0x110] sm:$0xff]
      %v4001 = vld [vmem:[#allocation3 + $0x118] sm:$0xff]
      %v4002 = vld [vmem:[#allocation3 + $0x120] sm:$0xff]
      %v4003 = vld [vmem:[#allocation3 + $0x128] sm:$0xff]
      %v4004 = vld [vmem:[#allocation3 + $0x130] sm:$0xff]
      %v4005 = vld [vmem:[#allocation3 + $0x138] sm:$0xff]
      %v4006 = vld [vmem:[#allocation3 + $0x140] sm:$0xff]
      %v4007 = vld [vmem:[#allocation3 + $0x148] sm:$0xff]
      %v4008 = vld [vmem:[#allocation3 + $0x150] sm:$0xff]
      %v4009 = vld [vmem:[#allocation3 + $0x158] sm:$0xff]
      %v4010 = vld [vmem:[#allocation3 + $0x160] sm:$0xff]
      %v4011 = vld [vmem:[#allocation3 + $0x168] sm:$0xff]
      %v4012 = vld [vmem:[#allocation3 + $0x170] sm:$0xff]
      %v4013 = vld [vmem:[#allocation3 + $0x178] sm:$0xff]
      %v4014 = vld [vmem:[#allocation3 + $0x180] sm:$0xff]
      %v4015 = vld [vmem:[#allocation3 + $0x188] sm:$0xff]
      %v4016 = vld [vmem:[#allocation3 + $0x190] sm:$0xff]
      %v4017 = vld [vmem:[#allocation3 + $0x198] sm:$0xff]
      %v4018 = vld [vmem:[#allocation3 + $0x1a0] sm:$0xff]
      %v4019 = vld [vmem:[#allocation3 + $0x1a8] sm:$0xff]
      %v4020 = vld [vmem:[#allocation3 + $0x1b0] sm:$0xff]
      %v4021 = vld [vmem:[#allocation3 + $0x1b8] sm:$0xff]
      %v4022 = vld [vmem:[#allocation3 + $0x1c0] sm:$0xff]
      %v4023 = vld [vmem:[#allocation3 + $0x1c8] sm:$0xff]
      %v4024 = vld [vmem:[#allocation3 + $0x1d0] sm:$0xff]
      %v4025 = vld [vmem:[#allocation3 + $0x1d8] sm:$0xff]
      %v4026 = vld [vmem:[#allocation3 + $0x1e0] sm:$0xff]
      %v4027 = vld [vmem:[#allocation3 + $0x1e8] sm:$0xff]
      %v4028 = vld [vmem:[#allocation3 + $0x1f0] sm:$0xff]
      %v4029 = vld [vmem:[#allocation3 + $0x1f8] sm:$0xff]
      %v4030 = vld [vmem:[#allocation3 + $0x200] sm:$0xff]
      %v4031 = vld [vmem:[#allocation3 + $0x208] sm:$0xff]
      %v4032 = vld [vmem:[#allocation3 + $0x210] sm:$0xff]
      %v4033 = vld [vmem:[#allocation3 + $0x218] sm:$0xff]
      %v4034 = vld [vmem:[#allocation3 + $0x220] sm:$0xff]
      %v4035 = vld [vmem:[#allocation3 + $0x228] sm:$0xff]
      %v4036 = vld [vmem:[#allocation3 + $0x230] sm:$0xff]
      %v4037 = vld [vmem:[#allocation3 + $0x238] sm:$0xff]
      %v4038 = vld [vmem:[#allocation3 + $0x240] sm:$0xff]
      %v4039 = vld [vmem:[#allocation3 + $0x248] sm:$0xff]
      %v4040 = vld [vmem:[#allocation3 + $0x250] sm:$0xff]
      %v4041 = vld [vmem:[#allocation3 + $0x258] sm:$0xff]
      %v4042 = vld [vmem:[#allocation3 + $0x260] sm:$0xff]
      %v4043 = vld [vmem:[#allocation3 + $0x268] sm:$0xff]
      %v4044 = vld [vmem:[#allocation3 + $0x270] sm:$0xff]
      %v4045 = vld [vmem:[#allocation3 + $0x278] sm:$0xff]
      %v4046 = vld [vmem:[#allocation3 + $0x280] sm:$0xff]
      %v4047 = vld [vmem:[#allocation3 + $0x288] sm:$0xff]
      %v4048 = vld [vmem:[#allocation3 + $0x290] sm:$0xff]
      %v4049 = vld [vmem:[#allocation3 + $0x298] sm:$0xff]
      %v4050 = vld [vmem:[#allocation3 + $0x2a0] sm:$0xff]
      %v4051 = vld [vmem:[#allocation3 + $0x2a8] sm:$0xff]
      %v4052 = vld [vmem:[#allocation3 + $0x2b0] sm:$0xff]
      %v4053 = vld [vmem:[#allocation3 + $0x2b8] sm:$0xff]
      %v4054 = vld [vmem:[#allocation3 + $0x2c0] sm:$0xff]
      %v4055 = vld [vmem:[#allocation3 + $0x2c8] sm:$0xff]
      %v4056 = vld [vmem:[#allocation3 + $0x2d0] sm:$0xff]
      %v4057 = vld [vmem:[#allocation3 + $0x2d8] sm:$0xff]
      %v4058 = vld [vmem:[#allocation3 + $0x2e0] sm:$0xff]
      %v4059 = vld [vmem:[#allocation3 + $0x2e8] sm:$0xff]
      %v4060 = vld [vmem:[#allocation3 + $0x2f0] sm:$0xff]
      %v4061 = vld [vmem:[#allocation3 + $0x2f8] sm:$0xff]
      %v4062 = vld [vmem:[#allocation3 + $0x300] sm:$0xff]
      %v4063 = vld [vmem:[#allocation3 + $0x308] sm:$0xff]
      %v4064 = vld [vmem:[#allocation3 + $0x310] sm:$0xff]
      %v4065 = vld [vmem:[#allocation3 + $0x318] sm:$0xff]
      %v4066 = vld [vmem:[#allocation3 + $0x320] sm:$0xff]
      %v4067 = vld [vmem:[#allocation3 + $0x328] sm:$0xff]
      %v4068 = vld [vmem:[#allocation3 + $0x330] sm:$0xff]
      %v4069 = vld [vmem:[#allocation3 + $0x338] sm:$0xff]
      %v4070 = vld [vmem:[#allocation3 + $0x340] sm:$0xff]
      %v4071 = vld [vmem:[#allocation3 + $0x348] sm:$0xff]
      %v4072 = vld [vmem:[#allocation3 + $0x350] sm:$0xff]
      %v4073 = vld [vmem:[#allocation3 + $0x358] sm:$0xff]
      %v4074 = vld [vmem:[#allocation3 + $0x360] sm:$0xff]
      %v4075 = vld [vmem:[#allocation3 + $0x368] sm:$0xff]
      %v4076 = vld [vmem:[#allocation3 + $0x370] sm:$0xff]
      %v4077 = vld [vmem:[#allocation3 + $0x378] sm:$0xff]
      %v4078 = vld [vmem:[#allocation3 + $0x380] sm:$0xff]
      %v4079 = vld [vmem:[#allocation3 + $0x388] sm:$0xff]
      %v4080 = vld [vmem:[#allocation3 + $0x390] sm:$0xff]
      %v4081 = vld [vmem:[#allocation3 + $0x398] sm:$0xff]
      %v4082 = vld [vmem:[#allocation3 + $0x3a0] sm:$0xff]
      %v4083 = vld [vmem:[#allocation3 + $0x3a8] sm:$0xff]
      %v4084 = vld [vmem:[#allocation3 + $0x3b0] sm:$0xff]
      %v4085 = vld [vmem:[#allocation3 + $0x3b8] sm:$0xff]
      %v4086 = vld [vmem:[#allocation3 + $0x3c0] sm:$0xff]
      %v4087 = vld [vmem:[#allocation3 + $0x3c8] sm:$0xff]
      %v4088 = vld [vmem:[#allocation3 + $0x3d0] sm:$0xff]
      %v4089 = vld [vmem:[#allocation3 + $0x3d8] sm:$0xff]
      %v4090 = vld [vmem:[#allocation3 + $0x3e0] sm:$0xff]
      %v4091 = vld [vmem:[#allocation3 + $0x3e8] sm:$0xff]
      %v4092 = vld [vmem:[#allocation3 + $0x3f0] sm:$0xff]
      %v4093 = vld [vmem:[#allocation3 + $0x3f8] sm:$0xff]
      %v4094 = vld [vmem:[#allocation3 + $0x400] sm:$0xff]
      %v4095 = vld [vmem:[#allocation3 + $0x408] sm:$0xff]
      %v4096 = vld [vmem:[#allocation3 + $0x410] sm:$0xff]
      %v4097 = vld [vmem:[#allocation3 + $0x418] sm:$0xff]
      %v4098 = vld [vmem:[#allocation3 + $0x420] sm:$0xff]
      %v4099 = vld [vmem:[#allocation3 + $0x428] sm:$0xff]
      %v4100 = vld [vmem:[#allocation3 + $0x430] sm:$0xff]
      %v4101 = vld [vmem:[#allocation3 + $0x438] sm:$0xff]
      %v4102 = vld [vmem:[#allocation3 + $0x440] sm:$0xff]
      %v4103 = vld [vmem:[#allocation3 + $0x448] sm:$0xff]
      %v4104 = vld [vmem:[#allocation3 + $0x450] sm:$0xff]
      %v4105 = vld [vmem:[#allocation3 + $0x458] sm:$0xff]
      %v4106 = vld [vmem:[#allocation3 + $0x460] sm:$0xff]
      %v4107 = vld [vmem:[#allocation3 + $0x468] sm:$0xff]
      %v4108 = vld [vmem:[#allocation3 + $0x470] sm:$0xff]
      %v4109 = vld [vmem:[#allocation3 + $0x478] sm:$0xff]
      %v4110 = vld [vmem:[%s4] sm:$0xf]
      %v4111 = vld [vmem:[%s4 + $0x4] sm:$0xf]
      %v4112 = vld [vmem:[%s4 + $0x8] sm:$0xf]
      %v4113 = vld [vmem:[%s4 + $0xc] sm:$0xf]
      %v4114 = vld [vmem:[%s4 + $0x10] sm:$0xf]
      %v4115 = vld [vmem:[%s4 + $0x14] sm:$0xf]
      %v4116 = vld [vmem:[%s4 + $0x18] sm:$0xf]
      %v4117 = vld [vmem:[%s4 + $0x1c] sm:$0xf]
      %v4118 = vld [vmem:[%s4 + $0x20] sm:$0xf]
      %v4119 = vld [vmem:[%s4 + $0x24] sm:$0xf]
      %v4120 = vld [vmem:[%s4 + $0x28] sm:$0xf]
      %v4121 = vld [vmem:[%s4 + $0x2c] sm:$0xf]
      %v4122 = vld [vmem:[%s4 + $0x30] sm:$0xf]
      %v4123 = vld [vmem:[%s4 + $0x34] sm:$0xf]
      %v4124 = vld [vmem:[%s4 + $0x38] sm:$0xf]
      %v4125 = vld [vmem:[%s4 + $0x3c] sm:$0xf]
      %v4126 = vld [vmem:[%s4 + $0x40] sm:$0xf]
      %v4127 = vld [vmem:[%s4 + $0x44] sm:$0xf]
      %v4128 = vld [vmem:[%s4 + $0x48] sm:$0xf]
      %v4129 = vld [vmem:[%s4 + $0x4c] sm:$0xf]
      %v4130 = vld [vmem:[%s4 + $0x50] sm:$0xf]
      %v4131 = vld [vmem:[%s4 + $0x54] sm:$0xf]
      %v4132 = vld [vmem:[%s4 + $0x58] sm:$0xf]
      %v4133 = vld [vmem:[%s4 + $0x5c] sm:$0xf]
      %v4134 = vld [vmem:[%s4 + $0x60] sm:$0xf]
      %v4135 = vld [vmem:[%s4 + $0x64] sm:$0xf]
      %v4136 = vld [vmem:[%s4 + $0x68] sm:$0xf]
      %v4137 = vld [vmem:[%s4 + $0x6c] sm:$0xf]
      %v4138 = vld [vmem:[%s4 + $0x70] sm:$0xf]
      %v4139 = vld [vmem:[%s4 + $0x74] sm:$0xf]
      %v4140 = vld [vmem:[%s4 + $0x78] sm:$0xf]
      %v4141 = vld [vmem:[%s4 + $0x7c] sm:$0xf]
      %v4142 = vld [vmem:[%s4 + $0x80] sm:$0xf]
      %v4143 = vld [vmem:[%s4 + $0x84] sm:$0xf]
      %v4144 = vld [vmem:[%s4 + $0x88] sm:$0xf]
      %v4145 = vld [vmem:[%s4 + $0x8c] sm:$0xf]
      %v4146 = vld [vmem:[%s4 + $0x90] sm:$0xf]
      %v4147 = vld [vmem:[%s4 + $0x94] sm:$0xf]
      %v4148 = vld [vmem:[%s4 + $0x98] sm:$0xf]
      %v4149 = vld [vmem:[%s4 + $0x9c] sm:$0xf]
      %v4150 = vld [vmem:[%s4 + $0xa0] sm:$0xf]
      %v4151 = vld [vmem:[%s4 + $0xa4] sm:$0xf]
      %v4152 = vld [vmem:[%s4 + $0xa8] sm:$0xf]
      %v4153 = vld [vmem:[%s4 + $0xac] sm:$0xf]
      %v4154 = vld [vmem:[%s4 + $0xb0] sm:$0xf]
      %v4155 = vld [vmem:[%s4 + $0xb4] sm:$0xf]
      %v4156 = vld [vmem:[%s4 + $0xb8] sm:$0xf]
      %v4157 = vld [vmem:[%s4 + $0xbc] sm:$0xf]
      %v4158 = vld [vmem:[%s4 + $0xc0] sm:$0xf]
      %v4159 = vld [vmem:[%s4 + $0xc4] sm:$0xf]
      %v4160 = vld [vmem:[%s4 + $0xc8] sm:$0xf]
      %v4161 = vld [vmem:[%s4 + $0xcc] sm:$0xf]
      %v4162 = vld [vmem:[%s4 + $0xd0] sm:$0xf]
      %v4163 = vld [vmem:[%s4 + $0xd4] sm:$0xf]
      %v4164 = vld [vmem:[%s4 + $0xd8] sm:$0xf]
      %v4165 = vld [vmem:[%s4 + $0xdc] sm:$0xf]
      %v4166 = vld [vmem:[%s4 + $0xe0] sm:$0xf]
      %v4167 = vld [vmem:[%s4 + $0xe4] sm:$0xf]
      %v4168 = vld [vmem:[%s4 + $0xe8] sm:$0xf]
      %v4169 = vld [vmem:[%s4 + $0xec] sm:$0xf]
      %v4170 = vld [vmem:[%s4 + $0xf0] sm:$0xf]
      %v4171 = vld [vmem:[%s4 + $0xf4] sm:$0xf]
      %v4172 = vld [vmem:[%s4 + $0xf8] sm:$0xf]
      %v4173 = vld [vmem:[%s4 + $0xfc] sm:$0xf]
      %v4174 = vld [vmem:[%s4 + $0x100] sm:$0xf]
      %v4175 = vld [vmem:[%s4 + $0x104] sm:$0xf]
      %v4176 = vld [vmem:[%s4 + $0x108] sm:$0xf]
      %v4177 = vld [vmem:[%s4 + $0x10c] sm:$0xf]
      %v4178 = vld [vmem:[%s4 + $0x110] sm:$0xf]
      %v4179 = vld [vmem:[%s4 + $0x114] sm:$0xf]
      %v4180 = vld [vmem:[%s4 + $0x118] sm:$0xf]
      %v4181 = vld [vmem:[%s4 + $0x11c] sm:$0xf]
      %v4182 = vld [vmem:[%s4 + $0x120] sm:$0xf]
      %v4183 = vld [vmem:[%s4 + $0x124] sm:$0xf]
      %v4184 = vld [vmem:[%s4 + $0x128] sm:$0xf]
      %v4185 = vld [vmem:[%s4 + $0x12c] sm:$0xf]
      %v4186 = vld [vmem:[%s4 + $0x130] sm:$0xf]
      %v4187 = vld [vmem:[%s4 + $0x134] sm:$0xf]
      %v4188 = vld [vmem:[%s4 + $0x138] sm:$0xf]
      %v4189 = vld [vmem:[%s4 + $0x13c] sm:$0xf]
      %v4190 = vld [vmem:[%s4 + $0x140] sm:$0xf]
      %v4191 = vld [vmem:[%s4 + $0x144] sm:$0xf]
      %v4192 = vld [vmem:[%s4 + $0x148] sm:$0xf]
      %v4193 = vld [vmem:[%s4 + $0x14c] sm:$0xf]
      %v4194 = vld [vmem:[%s4 + $0x150] sm:$0xf]
      %v4195 = vld [vmem:[%s4 + $0x154] sm:$0xf]
      %v4196 = vld [vmem:[%s4 + $0x158] sm:$0xf]
      %v4197 = vld [vmem:[%s4 + $0x15c] sm:$0xf]
      %v4198 = vld [vmem:[%s4 + $0x160] sm:$0xf]
      %v4199 = vld [vmem:[%s4 + $0x164] sm:$0xf]
      %v4200 = vld [vmem:[%s4 + $0x168] sm:$0xf]
      %v4201 = vld [vmem:[%s4 + $0x16c] sm:$0xf]
      %v4202 = vld [vmem:[%s4 + $0x170] sm:$0xf]
      %v4203 = vld [vmem:[%s4 + $0x174] sm:$0xf]
      %v4204 = vld [vmem:[%s4 + $0x178] sm:$0xf]
      %v4205 = vld [vmem:[%s4 + $0x17c] sm:$0xf]
      %v4206 = vld [vmem:[%s4 + $0x180] sm:$0xf]
      %v4207 = vld [vmem:[%s4 + $0x184] sm:$0xf]
      %v4208 = vld [vmem:[%s4 + $0x188] sm:$0xf]
      %v4209 = vld [vmem:[%s4 + $0x18c] sm:$0xf]
      %v4210 = vld [vmem:[%s4 + $0x190] sm:$0xf]
      %v4211 = vld [vmem:[%s4 + $0x194] sm:$0xf]
      %v4212 = vld [vmem:[%s4 + $0x198] sm:$0xf]
      %v4213 = vld [vmem:[%s4 + $0x19c] sm:$0xf]
      %v4214 = vld [vmem:[%s4 + $0x1a0] sm:$0xf]
      %v4215 = vld [vmem:[%s4 + $0x1a4] sm:$0xf]
      %v4216 = vld [vmem:[%s4 + $0x1a8] sm:$0xf]
      %v4217 = vld [vmem:[%s4 + $0x1ac] sm:$0xf]
      %v4218 = vld [vmem:[%s4 + $0x1b0] sm:$0xf]
      %v4219 = vld [vmem:[%s4 + $0x1b4] sm:$0xf]
      %v4220 = vld [vmem:[%s4 + $0x1b8] sm:$0xf]
      %v4221 = vld [vmem:[%s4 + $0x1bc] sm:$0xf]
      %v4222 = vld [vmem:[%s4 + $0x1c0] sm:$0xf]
      %v4223 = vld [vmem:[%s4 + $0x1c4] sm:$0xf]
      %v4224 = vld [vmem:[%s4 + $0x1c8] sm:$0xf]
      %v4225 = vld [vmem:[%s4 + $0x1cc] sm:$0xf]
      %v4226 = vld [vmem:[%s4 + $0x1d0] sm:$0xf]
      %v4227 = vld [vmem:[%s4 + $0x1d4] sm:$0xf]
      %v4228 = vld [vmem:[%s4 + $0x1d8] sm:$0xf]
      %v4229 = vld [vmem:[%s4 + $0x1dc] sm:$0xf]
      %v4230 = vld [vmem:[%s4 + $0x1e0] sm:$0xf]
      %v4231 = vld [vmem:[%s4 + $0x1e4] sm:$0xf]
      %v4232 = vld [vmem:[%s4 + $0x1e8] sm:$0xf]
      %v4233 = vld [vmem:[%s4 + $0x1ec] sm:$0xf]
      %v4234 = vld [vmem:[%s4 + $0x1f0] sm:$0xf]
      %v4235 = vld [vmem:[%s4 + $0x1f4] sm:$0xf]
      %v4236 = vld [vmem:[%s4 + $0x1f8] sm:$0xf]
      %v4237 = vld [vmem:[%s4 + $0x1fc] sm:$0xf]
      %v4238 = vld [vmem:[%s4 + $0x200] sm:$0xf]
      %v4239 = vld [vmem:[%s4 + $0x204] sm:$0xf]
      %v4240 = vld [vmem:[%s4 + $0x208] sm:$0xf]
      %v4241 = vld [vmem:[%s4 + $0x20c] sm:$0xf]
      %v4242 = vld [vmem:[%s4 + $0x210] sm:$0xf]
      %v4243 = vld [vmem:[%s4 + $0x214] sm:$0xf]
      %v4244 = vld [vmem:[%s4 + $0x218] sm:$0xf]
      %v4245 = vld [vmem:[%s4 + $0x21c] sm:$0xf]
      %v4246 = vld [vmem:[%s4 + $0x220] sm:$0xf]
      %v4247 = vld [vmem:[%s4 + $0x224] sm:$0xf]
      %v4248 = vld [vmem:[%s4 + $0x228] sm:$0xf]
      %v4249 = vld [vmem:[%s4 + $0x22c] sm:$0xf]
      %v4250 = vld [vmem:[%s4 + $0x230] sm:$0xf]
      %v4251 = vld [vmem:[%s4 + $0x234] sm:$0xf]
      %v4252 = vld [vmem:[%s4 + $0x238] sm:$0xf]
      %v4253 = vld [vmem:[%s4 + $0x23c] sm:$0xf]
      %v4398 = vunpack.c.l.b16 %v4110
      %v4399 = vunpack.c.l.b16 %v4111
      %v4400 = vunpack.c.l.b16 %v4112
      %v4401 = vunpack.c.l.b16 %v4113
      %v4402 = vunpack.c.l.b16 %v4114
      %v4403 = vunpack.c.l.b16 %v4115
      %v4404 = vunpack.c.l.b16 %v4116
      %v4405 = vunpack.c.l.b16 %v4117
      %v4406 = vunpack.c.l.b16 %v4118
      %v4407 = vunpack.c.l.b16 %v4119
      %v4408 = vunpack.c.l.b16 %v4120
      %v4409 = vunpack.c.l.b16 %v4121
      %v4410 = vunpack.c.l.b16 %v4122
      %v4411 = vunpack.c.l.b16 %v4123
      %v4412 = vunpack.c.l.b16 %v4124
      %v4413 = vunpack.c.l.b16 %v4125
      %v4414 = vunpack.c.l.b16 %v4126
      %v4415 = vunpack.c.l.b16 %v4127
      %v4416 = vunpack.c.l.b16 %v4128
      %v4417 = vunpack.c.l.b16 %v4129
      %v4418 = vunpack.c.l.b16 %v4130
      %v4419 = vunpack.c.l.b16 %v4131
      %v4420 = vunpack.c.l.b16 %v4132
      %v4421 = vunpack.c.l.b16 %v4133
      %v4422 = vunpack.c.l.b16 %v4134
      %v4423 = vunpack.c.l.b16 %v4135
      %v4424 = vunpack.c.l.b16 %v4136
      %v4425 = vunpack.c.l.b16 %v4137
      %v4426 = vunpack.c.l.b16 %v4138
      %v4427 = vunpack.c.l.b16 %v4139
      %v4428 = vunpack.c.l.b16 %v4140
      %v4429 = vunpack.c.l.b16 %v4141
      %v4430 = vunpack.c.l.b16 %v4142
      %v4431 = vunpack.c.l.b16 %v4143
      %v4432 = vunpack.c.l.b16 %v4144
      %v4433 = vunpack.c.l.b16 %v4145
      %v4434 = vunpack.c.l.b16 %v4146
      %v4435 = vunpack.c.l.b16 %v4147
      %v4436 = vunpack.c.l.b16 %v4148
      %v4437 = vunpack.c.l.b16 %v4149
      %v4438 = vunpack.c.l.b16 %v4150
      %v4439 = vunpack.c.l.b16 %v4151
      %v4440 = vunpack.c.l.b16 %v4152
      %v4441 = vunpack.c.l.b16 %v4153
      %v4442 = vunpack.c.l.b16 %v4154
      %v4443 = vunpack.c.l.b16 %v4155
      %v4444 = vunpack.c.l.b16 %v4156
      %v4445 = vunpack.c.l.b16 %v4157
      %v4446 = vunpack.c.l.b16 %v4158
      %v4447 = vunpack.c.l.b16 %v4159
      %v4448 = vunpack.c.l.b16 %v4160
      %v4449 = vunpack.c.l.b16 %v4161
      %v4450 = vunpack.c.l.b16 %v4162
      %v4451 = vunpack.c.l.b16 %v4163
      %v4452 = vunpack.c.l.b16 %v4164
      %v4453 = vunpack.c.l.b16 %v4165
      %v4454 = vunpack.c.l.b16 %v4166
      %v4455 = vunpack.c.l.b16 %v4167
      %v4456 = vunpack.c.l.b16 %v4168
      %v4457 = vunpack.c.l.b16 %v4169
      %v4458 = vunpack.c.l.b16 %v4170
      %v4459 = vunpack.c.l.b16 %v4171
      %v4460 = vunpack.c.l.b16 %v4172
      %v4461 = vunpack.c.l.b16 %v4173
      %v4462 = vunpack.c.l.b16 %v4174
      %v4463 = vunpack.c.l.b16 %v4175
      %v4464 = vunpack.c.l.b16 %v4176
      %v4465 = vunpack.c.l.b16 %v4177
      %v4466 = vunpack.c.l.b16 %v4178
      %v4467 = vunpack.c.l.b16 %v4179
      %v4468 = vunpack.c.l.b16 %v4180
      %v4469 = vunpack.c.l.b16 %v4181
      %v4470 = vunpack.c.l.b16 %v4182
      %v4471 = vunpack.c.l.b16 %v4183
      %v4472 = vunpack.c.l.b16 %v4184
      %v4473 = vunpack.c.l.b16 %v4185
      %v4474 = vunpack.c.l.b16 %v4186
      %v4475 = vunpack.c.l.b16 %v4187
      %v4476 = vunpack.c.l.b16 %v4188
      %v4477 = vunpack.c.l.b16 %v4189
      %v4478 = vunpack.c.l.b16 %v4190
      %v4479 = vunpack.c.l.b16 %v4191
      %v4480 = vunpack.c.l.b16 %v4192
      %v4481 = vunpack.c.l.b16 %v4193
      %v4482 = vunpack.c.l.b16 %v4194
      %v4483 = vunpack.c.l.b16 %v4195
      %v4484 = vunpack.c.l.b16 %v4196
      %v4485 = vunpack.c.l.b16 %v4197
      %v4486 = vunpack.c.l.b16 %v4198
      %v4487 = vunpack.c.l.b16 %v4199
      %v4488 = vunpack.c.l.b16 %v4200
      %v4489 = vunpack.c.l.b16 %v4201
      %v4490 = vunpack.c.l.b16 %v4202
      %v4491 = vunpack.c.l.b16 %v4203
      %v4492 = vunpack.c.l.b16 %v4204
      %v4493 = vunpack.c.l.b16 %v4205
      %v4494 = vunpack.c.l.b16 %v4206
      %v4495 = vunpack.c.l.b16 %v4207
      %v4496 = vunpack.c.l.b16 %v4208
      %v4497 = vunpack.c.l.b16 %v4209
      %v4498 = vunpack.c.l.b16 %v4210
      %v4499 = vunpack.c.l.b16 %v4211
      %v4500 = vunpack.c.l.b16 %v4212
      %v4501 = vunpack.c.l.b16 %v4213
      %v4502 = vunpack.c.l.b16 %v4214
      %v4503 = vunpack.c.l.b16 %v4215
      %v4504 = vunpack.c.l.b16 %v4216
      %v4505 = vunpack.c.l.b16 %v4217
      %v4506 = vunpack.c.l.b16 %v4218
      %v4507 = vunpack.c.l.b16 %v4219
      %v4508 = vunpack.c.l.b16 %v4220
      %v4509 = vunpack.c.l.b16 %v4221
      %v4510 = vunpack.c.l.b16 %v4222
      %v4511 = vunpack.c.l.b16 %v4223
      %v4512 = vunpack.c.l.b16 %v4224
      %v4513 = vunpack.c.l.b16 %v4225
      %v4514 = vunpack.c.l.b16 %v4226
      %v4515 = vunpack.c.l.b16 %v4227
      %v4516 = vunpack.c.l.b16 %v4228
      %v4517 = vunpack.c.l.b16 %v4229
      %v4518 = vunpack.c.l.b16 %v4230
      %v4519 = vunpack.c.l.b16 %v4231
      %v4520 = vunpack.c.l.b16 %v4232
      %v4521 = vunpack.c.l.b16 %v4233
      %v4522 = vunpack.c.l.b16 %v4234
      %v4523 = vunpack.c.l.b16 %v4235
      %v4524 = vunpack.c.l.b16 %v4236
      %v4525 = vunpack.c.l.b16 %v4237
      %v4526 = vunpack.c.l.b16 %v4238
      %v4527 = vunpack.c.l.b16 %v4239
      %v4528 = vunpack.c.l.b16 %v4240
      %v4529 = vunpack.c.l.b16 %v4241
      %v4530 = vunpack.c.l.b16 %v4242
      %v4531 = vunpack.c.l.b16 %v4243
      %v4532 = vunpack.c.l.b16 %v4244
      %v4533 = vunpack.c.l.b16 %v4245
      %v4534 = vunpack.c.l.b16 %v4246
      %v4535 = vunpack.c.l.b16 %v4247
      %v4536 = vunpack.c.l.b16 %v4248
      %v4537 = vunpack.c.l.b16 %v4249
      %v4538 = vunpack.c.l.b16 %v4250
      %v4539 = vunpack.c.l.b16 %v4251
      %v4540 = vunpack.c.l.b16 %v4252
      %v4541 = vunpack.c.l.b16 %v4253
      %v4542 = vpack.c.b16 %v4399, %v4398
      %v4543 = vpack.c.b16 %v4401, %v4400
      %v4544 = vpack.c.b16 %v4403, %v4402
      %v4545 = vpack.c.b16 %v4405, %v4404
      %v4546 = vpack.c.b16 %v4407, %v4406
      %v4547 = vpack.c.b16 %v4409, %v4408
      %v4548 = vpack.c.b16 %v4411, %v4410
      %v4549 = vpack.c.b16 %v4413, %v4412
      %v4550 = vpack.c.b16 %v4415, %v4414
      %v4551 = vpack.c.b16 %v4417, %v4416
      %v4552 = vpack.c.b16 %v4419, %v4418
      %v4553 = vpack.c.b16 %v4421, %v4420
      %v4554 = vpack.c.b16 %v4423, %v4422
      %v4555 = vpack.c.b16 %v4425, %v4424
      %v4556 = vpack.c.b16 %v4427, %v4426
      %v4557 = vpack.c.b16 %v4429, %v4428
      %v4558 = vpack.c.b16 %v4431, %v4430
      %v4559 = vpack.c.b16 %v4433, %v4432
      %v4560 = vpack.c.b16 %v4435, %v4434
      %v4561 = vpack.c.b16 %v4437, %v4436
      %v4562 = vpack.c.b16 %v4439, %v4438
      %v4563 = vpack.c.b16 %v4441, %v4440
      %v4564 = vpack.c.b16 %v4443, %v4442
      %v4565 = vpack.c.b16 %v4445, %v4444
      %v4566 = vpack.c.b16 %v4447, %v4446
      %v4567 = vpack.c.b16 %v4449, %v4448
      %v4568 = vpack.c.b16 %v4451, %v4450
      %v4569 = vpack.c.b16 %v4453, %v4452
      %v4570 = vpack.c.b16 %v4455, %v4454
      %v4571 = vpack.c.b16 %v4457, %v4456
      %v4572 = vpack.c.b16 %v4459, %v4458
      %v4573 = vpack.c.b16 %v4461, %v4460
      %v4574 = vpack.c.b16 %v4463, %v4462
      %v4575 = vpack.c.b16 %v4465, %v4464
      %v4576 = vpack.c.b16 %v4467, %v4466
      %v4577 = vpack.c.b16 %v4469, %v4468
      %v4578 = vpack.c.b16 %v4471, %v4470
      %v4579 = vpack.c.b16 %v4473, %v4472
      %v4580 = vpack.c.b16 %v4475, %v4474
      %v4581 = vpack.c.b16 %v4477, %v4476
      %v4582 = vpack.c.b16 %v4479, %v4478
      %v4583 = vpack.c.b16 %v4481, %v4480
      %v4584 = vpack.c.b16 %v4483, %v4482
      %v4585 = vpack.c.b16 %v4485, %v4484
      %v4586 = vpack.c.b16 %v4487, %v4486
      %v4587 = vpack.c.b16 %v4489, %v4488
      %v4588 = vpack.c.b16 %v4491, %v4490
      %v4589 = vpack.c.b16 %v4493, %v4492
      %v4590 = vpack.c.b16 %v4495, %v4494
      %v4591 = vpack.c.b16 %v4497, %v4496
      %v4592 = vpack.c.b16 %v4499, %v4498
      %v4593 = vpack.c.b16 %v4501, %v4500
      %v4594 = vpack.c.b16 %v4503, %v4502
      %v4595 = vpack.c.b16 %v4505, %v4504
      %v4596 = vpack.c.b16 %v4507, %v4506
      %v4597 = vpack.c.b16 %v4509, %v4508
      %v4598 = vpack.c.b16 %v4511, %v4510
      %v4599 = vpack.c.b16 %v4513, %v4512
      %v4600 = vpack.c.b16 %v4515, %v4514
      %v4601 = vpack.c.b16 %v4517, %v4516
      %v4602 = vpack.c.b16 %v4519, %v4518
      %v4603 = vpack.c.b16 %v4521, %v4520
      %v4604 = vpack.c.b16 %v4523, %v4522
      %v4605 = vpack.c.b16 %v4525, %v4524
      %v4606 = vpack.c.b16 %v4527, %v4526
      %v4607 = vpack.c.b16 %v4529, %v4528
      %v4608 = vpack.c.b16 %v4531, %v4530
      %v4609 = vpack.c.b16 %v4533, %v4532
      %v4610 = vpack.c.b16 %v4535, %v4534
      %v4611 = vpack.c.b16 %v4537, %v4536
      %v4612 = vpack.c.b16 %v4539, %v4538
      %v4613 = vpack.c.b16 %v4541, %v4540
      %4686 = vmatprep.subr.bf16.mxu0 0
      %4687 = vmatpush1.bf16.msra.mxu0 %v4542
      %4688 = vmatprep.subr.bf16.mxu0 0
      %4689 = vmatpush1.bf16.msra.mxu0 %v4543
      %4690 = vmatprep.subr.bf16.mxu0 0
      %4691 = vmatpush1.bf16.msra.mxu0 %v4544
      %4692 = vmatprep.subr.bf16.mxu0 0
      %4693 = vmatpush1.bf16.msra.mxu0 %v4545
      %4694 = vmatprep.subr.bf16.mxu0 0
      %4695 = vmatpush1.bf16.msra.mxu0 %v4546
      %4696 = vmatprep.subr.bf16.mxu0 0
      %4697 = vmatpush1.bf16.msra.mxu0 %v4547
      %4698 = vmatprep.subr.bf16.mxu0 0
      %4699 = vmatpush1.bf16.msra.mxu0 %v4548
      %4700 = vmatprep.subr.bf16.mxu0 0
      %4701 = vmatpush1.bf16.msra.mxu0 %v4549
      %4702 = vmatprep.subr.bf16.mxu0 0
      %4703 = vmatpush1.bf16.msra.mxu0 %v4550
      %4704 = vmatprep.subr.bf16.mxu0 0
      %4705 = vmatpush1.bf16.msra.mxu0 %v4551
      %4706 = vmatprep.subr.bf16.mxu0 0
      %4707 = vmatpush1.bf16.msra.mxu0 %v4552
      %4708 = vmatprep.subr.bf16.mxu0 0
      %4709 = vmatpush1.bf16.msra.mxu0 %v4553
      %4710 = vmatprep.subr.bf16.mxu0 0
      %4711 = vmatpush1.bf16.msra.mxu0 %v4554
      %4712 = vmatprep.subr.bf16.mxu0 0
      %4713 = vmatpush1.bf16.msra.mxu0 %v4555
      %4714 = vmatprep.subr.bf16.mxu0 0
      %4715 = vmatpush1.bf16.msra.mxu0 %v4556
      %4716 = vmatprep.subr.bf16.mxu0 0
      %4717 = vmatpush1.bf16.msra.mxu0 %v4557
      %4718 = vmatprep.mubr.bf16.mxu0 %v3967
      %4719 = vmatmul.mubr.bf16.gmra.mrb[0].mxu0 %v3966
      %v4720 = vpop.f32.mrb[0].mxu0
      %v4721 = vadd.f32 0.0, %v4720
      %v4722 = vpop.f32.mrb[0].mxu0
      %v4723 = vpop.f32.mrb[0].mxu0
      %v4724 = vadd.f32 0.0, %v4723
      %v4725 = vpop.f32.mrb[0].mxu0
      %4726 = vmatprep.mubr.bf16.mxu0 %v3976
      %4727 = vmatmul.mubr.bf16.gmra.mrb[0].mxu0 %v3975
      %v4728 = vpop.f32.mrb[0].mxu0
      %v4729 = vadd.f32 0.0, %v4728
      %v4730 = vpop.f32.mrb[0].mxu0
      %v4731 = vpop.f32.mrb[0].mxu0
      %v4732 = vadd.f32 0.0, %v4731
      %v4733 = vpop.f32.mrb[0].mxu0
      %4734 = vmatprep.mubr.bf16.mxu0 %v3985
      %4735 = vmatmul.mubr.bf16.gmra.mrb[0].mxu0 %v3984
      %v4736 = vpop.f32.mrb[0].mxu0
      %v4737 = vadd.f32 0.0, %v4736
      %v4738 = vpop.f32.mrb[0].mxu0
      %v4739 = vpop.f32.mrb[0].mxu0
      %v4740 = vadd.f32 0.0, %v4739
      %v4741 = vpop.f32.mrb[0].mxu0
      %4742 = vmatprep.mubr.bf16.mxu0 %v3994
      %4743 = vmatmul.mubr.bf16.gmra.mrb[0].mxu0 %v3993
      %v4744 = vpop.f32.mrb[0].mxu0
      %v4745 = vadd.f32 0.0, %v4744
      %v4746 = vpop.f32.mrb[0].mxu0
      %v4747 = vpop.f32.mrb[0].mxu0
      %v4748 = vadd.f32 0.0, %v4747
      %v4749 = vpop.f32.mrb[0].mxu0
      %4750 = vmatprep.mubr.bf16.mxu0 %v4003
      %4751 = vmatmul.mubr.bf16.gmra.mrb[0].mxu0 %v4002
      %v4752 = vpop.f32.mrb[0].mxu0
      %v4753 = vadd.f32 0.0, %v4752
      %v4754 = vpop.f32.mrb[0].mxu0
      %v4755 = vpop.f32.mrb[0].mxu0
      %v4756 = vadd.f32 0.0, %v4755
      %v4757 = vpop.f32.mrb[0].mxu0
      %4758 = vmatprep.mubr.bf16.mxu0 %v4012
      %4759 = vmatmul.mubr.bf16.gmra.mrb[0].mxu0 %v4011
      %v4760 = vpop.f32.mrb[0].mxu0
      %v4761 = vadd.f32 0.0, %v4760
      %v4762 = vpop.f32.mrb[0].mxu0
      %v4763 = vpop.f32.mrb[0].mxu0
      %v4764 = vadd.f32 0.0, %v4763
      %v4765 = vpop.f32.mrb[0].mxu0
      %4766 = vmatprep.mubr.bf16.mxu0 %v4021
      %4767 = vmatmul.mubr.bf16.gmra.mrb[0].mxu0 %v4020
      %v4768 = vpop.f32.mrb[0].mxu0
      %v4769 = vadd.f32 0.0, %v4768
      %v4770 = vpop.f32.mrb[0].mxu0
      %v4771 = vpop.f32.mrb[0].mxu0
      %v4772 = vadd.f32 0.0, %v4771
      %v4773 = vpop.f32.mrb[0].mxu0
      %4774 = vmatprep.mubr.bf16.mxu0 %v4030
      %4775 = vmatmul.mubr.bf16.gmra.mrb[0].mxu0 %v4029
      %v4776 = vpop.f32.mrb[0].mxu0
      %v4777 = vadd.f32 0.0, %v4776
      %v4778 = vpop.f32.mrb[0].mxu0
      %v4779 = vpop.f32.mrb[0].mxu0
      %v4780 = vadd.f32 0.0, %v4779
      %v4781 = vpop.f32.mrb[0].mxu0
      %4782 = vmatprep.mubr.bf16.mxu0 %v4039
      %4783 = vmatmul.mubr.bf16.gmra.mrb[0].mxu0 %v4038
      %v4784 = vpop.f32.mrb[0].mxu0
      %v4785 = vadd.f32 0.0, %v4784
      %v4786 = vpop.f32.mrb[0].mxu0
      %v4787 = vpop.f32.mrb[0].mxu0
      %v4788 = vadd.f32 0.0, %v4787
      %v4789 = vpop.f32.mrb[0].mxu0
      %4790 = vmatprep.mubr.bf16.mxu0 %v4048
      %4791 = vmatmul.mubr.bf16.gmra.mrb[0].mxu0 %v4047
      %v4792 = vpop.f32.mrb[0].mxu0
      %v4793 = vadd.f32 0.0, %v4792
      %v4794 = vpop.f32.mrb[0].mxu0
      %v4795 = vpop.f32.mrb[0].mxu0
      %v4796 = vadd.f32 0.0, %v4795
      %v4797 = vpop.f32.mrb[0].mxu0
      %4798 = vmatprep.mubr.bf16.mxu0 %v4057
      %4799 = vmatmul.mubr.bf16.gmra.mrb[0].mxu0 %v4056
      %v4800 = vpop.f32.mrb[0].mxu0
      %v4801 = vadd.f32 0.0, %v4800
      %v4802 = vpop.f32.mrb[0].mxu0
      %v4803 = vpop.f32.mrb[0].mxu0
      %v4804 = vadd.f32 0.0, %v4803
      %v4805 = vpop.f32.mrb[0].mxu0
      %4806 = vmatprep.mubr.bf16.mxu0 %v4066
      %4807 = vmatmul.mubr.bf16.gmra.mrb[0].mxu0 %v4065
      %v4808 = vpop.f32.mrb[0].mxu0
      %v4809 = vadd.f32 0.0, %v4808
      %v4810 = vpop.f32.mrb[0].mxu0
      %v4811 = vpop.f32.mrb[0].mxu0
      %v4812 = vadd.f32 0.0, %v4811
      %v4813 = vpop.f32.mrb[0].mxu0
      %4814 = vmatprep.mubr.bf16.mxu0 %v4075
      %4815 = vmatmul.mubr.bf16.gmra.mrb[0].mxu0 %v4074
      %v4816 = vpop.f32.mrb[0].mxu0
      %v4817 = vadd.f32 0.0, %v4816
      %v4818 = vpop.f32.mrb[0].mxu0
      %v4819 = vpop.f32.mrb[0].mxu0
      %v4820 = vadd.f32 0.0, %v4819
      %v4821 = vpop.f32.mrb[0].mxu0
      %4822 = vmatprep.mubr.bf16.mxu0 %v4084
      %4823 = vmatmul.mubr.bf16.gmra.mrb[0].mxu0 %v4083
      %v4824 = vpop.f32.mrb[0].mxu0
      %v4825 = vadd.f32 0.0, %v4824
      %v4826 = vpop.f32.mrb[0].mxu0
      %v4827 = vpop.f32.mrb[0].mxu0
      %v4828 = vadd.f32 0.0, %v4827
      %v4829 = vpop.f32.mrb[0].mxu0
      %4830 = vmatprep.mubr.bf16.mxu0 %v4093
      %4831 = vmatmul.mubr.bf16.gmra.mrb[0].mxu0 %v4092
      %v4832 = vpop.f32.mrb[0].mxu0
      %v4833 = vadd.f32 0.0, %v4832
      %v4834 = vpop.f32.mrb[0].mxu0
      %v4835 = vpop.f32.mrb[0].mxu0
      %v4836 = vadd.f32 0.0, %v4835
      %v4837 = vpop.f32.mrb[0].mxu0
      %4838 = vmatprep.mubr.bf16.mxu0 %v4102
      %4839 = vmatmul.mubr.bf16.gmra.mrb[0].mxu0 %v4101
      %v4840 = vpop.f32.mrb[0].mxu0
      %v4841 = vadd.f32 0.0, %v4840
      %v4842 = vpop.f32.mrb[0].mxu0
      %v4843 = vpop.f32.mrb[0].mxu0
      %v4844 = vadd.f32 0.0, %v4843
      %v4845 = vpop.f32.mrb[0].mxu0
      %4846 = vdwg.mxu0
      %4847 = vmatprep.subr.bf16.mxu0 0
      %4848 = vmatpush1.bf16.msra.mxu0 %v4558
      %4849 = vmatprep.subr.bf16.mxu0 0
      %4850 = vmatpush1.bf16.msra.mxu0 %v4559
      %4851 = vmatprep.subr.bf16.mxu0 0
      %4852 = vmatpush1.bf16.msra.mxu0 %v4560
      %4853 = vmatprep.subr.bf16.mxu0 0
      %4854 = vmatpush1.bf16.msra.mxu0 %v4561
      %4855 = vmatprep.subr.bf16.mxu0 0
      %4856 = vmatpush1.bf16.msra.mxu0 %v4562
      %4857 = vmatprep.subr.bf16.mxu0 0
      %4858 = vmatpush1.bf16.msra.mxu0 %v4563
      %4859 = vmatprep.subr.bf16.mxu0 0
      %4860 = vmatpush1.bf16.msra.mxu0 %v4564
      %4861 = vmatprep.subr.bf16.mxu0 0
      %4862 = vmatpush1.bf16.msra.mxu0 %v4565
      %4863 = vmatprep.subr.bf16.mxu0 0
      %4864 = vmatpush1.bf16.msra.mxu0 %v4566
      %4865 = vmatprep.subr.bf16.mxu0 0
      %4866 = vmatpush1.bf16.msra.mxu0 %v4567
      %4867 = vmatprep.subr.bf16.mxu0 0
      %4868 = vmatpush1.bf16.msra.mxu0 %v4568
      %4869 = vmatprep.subr.bf16.mxu0 0
      %4870 = vmatpush1.bf16.msra.mxu0 %v4569
      %4871 = vmatprep.subr.bf16.mxu0 0
      %4872 = vmatpush1.bf16.msra.mxu0 %v4570
      %4873 = vmatprep.subr.bf16.mxu0 0
      %4874 = vmatpush1.bf16.msra.mxu0 %v4571
      %4875 = vmatprep.subr.bf16.mxu0 0
      %4876 = vmatpush1.bf16.msra.mxu0 %v4572
      %4877 = vmatprep.subr.bf16.mxu0 0
      %4878 = vmatpush1.bf16.msra.mxu0 %v4573
      %4879 = vmatprep.mubr.bf16.mxu0 %v3969
      %4880 = vmatmul.mubr.bf16.gmra.mrb[0].mxu0 %v3968
      %v4881 = vpop.f32.mrb[0].mxu0
      %v4882 = vadd.f32 %v4721, %v4881
      %v4883 = vpop.f32.mrb[0].mxu0
      %v4884 = vpop.f32.mrb[0].mxu0
      %v4885 = vadd.f32 %v4724, %v4884
      %v4886 = vpop.f32.mrb[0].mxu0
      %4887 = vmatprep.mubr.bf16.mxu0 %v3978
      %4888 = vmatmul.mubr.bf16.gmra.mrb[0].mxu0 %v3977
      %v4889 = vpop.f32.mrb[0].mxu0
      %v4890 = vadd.f32 %v4729, %v4889
      %v4891 = vpop.f32.mrb[0].mxu0
      %v4892 = vpop.f32.mrb[0].mxu0
      %v4893 = vadd.f32 %v4732, %v4892
      %v4894 = vpop.f32.mrb[0].mxu0
      %4895 = vmatprep.mubr.bf16.mxu0 %v3987
      %4896 = vmatmul.mubr.bf16.gmra.mrb[0].mxu0 %v3986
      %v4897 = vpop.f32.mrb[0].mxu0
      %v4898 = vadd.f32 %v4737, %v4897
      %v4899 = vpop.f32.mrb[0].mxu0
      %v4900 = vpop.f32.mrb[0].mxu0
      %v4901 = vadd.f32 %v4740, %v4900
      %v4902 = vpop.f32.mrb[0].mxu0
      %4903 = vmatprep.mubr.bf16.mxu0 %v3996
      %4904 = vmatmul.mubr.bf16.gmra.mrb[0].mxu0 %v3995
      %v4905 = vpop.f32.mrb[0].mxu0
      %v4906 = vadd.f32 %v4745, %v4905
      %v4907 = vpop.f32.mrb[0].mxu0
      %v4908 = vpop.f32.mrb[0].mxu0
      %v4909 = vadd.f32 %v4748, %v4908
      %v4910 = vpop.f32.mrb[0].mxu0
      %4911 = vmatprep.mubr.bf16.mxu0 %v4005
      %4912 = vmatmul.mubr.bf16.gmra.mrb[0].mxu0 %v4004
      %v4913 = vpop.f32.mrb[0].mxu0
      %v4914 = vadd.f32 %v4753, %v4913
      %v4915 = vpop.f32.mrb[0].mxu0
      %v4916 = vpop.f32.mrb[0].mxu0
      %v4917 = vadd.f32 %v4756, %v4916
      %v4918 = vpop.f32.mrb[0].mxu0
      %4919 = vmatprep.mubr.bf16.mxu0 %v4014
      %4920 = vmatmul.mubr.bf16.gmra.mrb[0].mxu0 %v4013
      %v4921 = vpop.f32.mrb[0].mxu0
      %v4922 = vadd.f32 %v4761, %v4921
      %v4923 = vpop.f32.mrb[0].mxu0
      %v4924 = vpop.f32.mrb[0].mxu0
      %v4925 = vadd.f32 %v4764, %v4924
      %v4926 = vpop.f32.mrb[0].mxu0
      %4927 = vmatprep.mubr.bf16.mxu0 %v4023
      %4928 = vmatmul.mubr.bf16.gmra.mrb[0].mxu0 %v4022
      %v4929 = vpop.f32.mrb[0].mxu0
      %v4930 = vadd.f32 %v4769, %v4929
      %v4931 = vpop.f32.mrb[0].mxu0
      %v4932 = vpop.f32.mrb[0].mxu0
      %v4933 = vadd.f32 %v4772, %v4932
      %v4934 = vpop.f32.mrb[0].mxu0
      %4935 = vmatprep.mubr.bf16.mxu0 %v4032
      %4936 = vmatmul.mubr.bf16.gmra.mrb[0].mxu0 %v4031
      %v4937 = vpop.f32.mrb[0].mxu0
      %v4938 = vadd.f32 %v4777, %v4937
      %v4939 = vpop.f32.mrb[0].mxu0
      %v4940 = vpop.f32.mrb[0].mxu0
      %v4941 = vadd.f32 %v4780, %v4940
      %v4942 = vpop.f32.mrb[0].mxu0
      %4943 = vmatprep.mubr.bf16.mxu0 %v4041
      %4944 = vmatmul.mubr.bf16.gmra.mrb[0].mxu0 %v4040
      %v4945 = vpop.f32.mrb[0].mxu0
      %v4946 = vadd.f32 %v4785, %v4945
      %v4947 = vpop.f32.mrb[0].mxu0
      %v4948 = vpop.f32.mrb[0].mxu0
      %v4949 = vadd.f32 %v4788, %v4948
      %v4950 = vpop.f32.mrb[0].mxu0
      %4951 = vmatprep.mubr.bf16.mxu0 %v4050
      %4952 = vmatmul.mubr.bf16.gmra.mrb[0].mxu0 %v4049
      %v4953 = vpop.f32.mrb[0].mxu0
      %v4954 = vadd.f32 %v4793, %v4953
      %v4955 = vpop.f32.mrb[0].mxu0
      %v4956 = vpop.f32.mrb[0].mxu0
      %v4957 = vadd.f32 %v4796, %v4956
      %v4958 = vpop.f32.mrb[0].mxu0
      %4959 = vmatprep.mubr.bf16.mxu0 %v4059
      %4960 = vmatmul.mubr.bf16.gmra.mrb[0].mxu0 %v4058
      %v4961 = vpop.f32.mrb[0].mxu0
      %v4962 = vadd.f32 %v4801, %v4961
      %v4963 = vpop.f32.mrb[0].mxu0
      %v4964 = vpop.f32.mrb[0].mxu0
      %v4965 = vadd.f32 %v4804, %v4964
      %v4966 = vpop.f32.mrb[0].mxu0
      %4967 = vmatprep.mubr.bf16.mxu0 %v4068
      %4968 = vmatmul.mubr.bf16.gmra.mrb[0].mxu0 %v4067
      %v4969 = vpop.f32.mrb[0].mxu0
      %v4970 = vadd.f32 %v4809, %v4969
      %v4971 = vpop.f32.mrb[0].mxu0
      %v4972 = vpop.f32.mrb[0].mxu0
      %v4973 = vadd.f32 %v4812, %v4972
      %v4974 = vpop.f32.mrb[0].mxu0
      %4975 = vmatprep.mubr.bf16.mxu0 %v4077
      %4976 = vmatmul.mubr.bf16.gmra.mrb[0].mxu0 %v4076
      %v4977 = vpop.f32.mrb[0].mxu0
      %v4978 = vadd.f32 %v4817, %v4977
      %v4979 = vpop.f32.mrb[0].mxu0
      %v4980 = vpop.f32.mrb[0].mxu0
      %v4981 = vadd.f32 %v4820, %v4980
      %v4982 = vpop.f32.mrb[0].mxu0
      %4983 = vmatprep.mubr.bf16.mxu0 %v4086
      %4984 = vmatmul.mubr.bf16.gmra.mrb[0].mxu0 %v4085
      %v4985 = vpop.f32.mrb[0].mxu0
      %v4986 = vadd.f32 %v4825, %v4985
      %v4987 = vpop.f32.mrb[0].mxu0
      %v4988 = vpop.f32.mrb[0].mxu0
      %v4989 = vadd.f32 %v4828, %v4988
      %v4990 = vpop.f32.mrb[0].mxu0
      %4991 = vmatprep.mubr.bf16.mxu0 %v4095
      %4992 = vmatmul.mubr.bf16.gmra.mrb[0].mxu0 %v4094
      %v4993 = vpop.f32.mrb[0].mxu0
      %v4994 = vadd.f32 %v4833, %v4993
      %v4995 = vpop.f32.mrb[0].mxu0
      %v4996 = vpop.f32.mrb[0].mxu0
      %v4997 = vadd.f32 %v4836, %v4996
      %v4998 = vpop.f32.mrb[0].mxu0
      %4999 = vmatprep.mubr.bf16.mxu0 %v4104
      %5000 = vmatmul.mubr.bf16.gmra.mrb[0].mxu0 %v4103
      %v5001 = vpop.f32.mrb[0].mxu0
      %v5002 = vadd.f32 %v4841, %v5001
      %v5003 = vpop.f32.mrb[0].mxu0
      %v5004 = vpop.f32.mrb[0].mxu0
      %v5005 = vadd.f32 %v4844, %v5004
      %v5006 = vpop.f32.mrb[0].mxu0
      %5007 = vdwg.mxu0
      %5008 = vmatprep.subr.bf16.mxu0 0
      %5009 = vmatpush1.bf16.msra.mxu0 %v4574
      %5010 = vmatprep.subr.bf16.mxu0 0
      %5011 = vmatpush1.bf16.msra.mxu0 %v4575
      %5012 = vmatprep.subr.bf16.mxu0 0
      %5013 = vmatpush1.bf16.msra.mxu0 %v4576
      %5014 = vmatprep.subr.bf16.mxu0 0
      %5015 = vmatpush1.bf16.msra.mxu0 %v4577
      %5016 = vmatprep.subr.bf16.mxu0 0
      %5017 = vmatpush1.bf16.msra.mxu0 %v4578
      %5018 = vmatprep.subr.bf16.mxu0 0
      %5019 = vmatpush1.bf16.msra.mxu0 %v4579
      %5020 = vmatprep.subr.bf16.mxu0 0
      %5021 = vmatpush1.bf16.msra.mxu0 %v4580
      %5022 = vmatprep.subr.bf16.mxu0 0
      %5023 = vmatpush1.bf16.msra.mxu0 %v4581
      %5024 = vmatprep.subr.bf16.mxu0 0
      %5025 = vmatpush1.bf16.msra.mxu0 %v4582
      %5026 = vmatprep.subr.bf16.mxu0 0
      %5027 = vmatpush1.bf16.msra.mxu0 %v4583
      %5028 = vmatprep.subr.bf16.mxu0 0
      %5029 = vmatpush1.bf16.msra.mxu0 %v4584
      %5030 = vmatprep.subr.bf16.mxu0 0
      %5031 = vmatpush1.bf16.msra.mxu0 %v4585
      %5032 = vmatprep.subr.bf16.mxu0 0
      %5033 = vmatpush1.bf16.msra.mxu0 %v4586
      %5034 = vmatprep.subr.bf16.mxu0 0
      %5035 = vmatpush1.bf16.msra.mxu0 %v4587
      %5036 = vmatprep.subr.bf16.mxu0 0
      %5037 = vmatpush1.bf16.msra.mxu0 %v4588
      %5038 = vmatprep.subr.bf16.mxu0 0
      %5039 = vmatpush1.bf16.msra.mxu0 %v4589
      %5040 = vmatprep.mubr.bf16.mxu0 %v3971
      %5041 = vmatmul.mubr.bf16.gmra.mrb[0].mxu0 %v3970
      %v5042 = vpop.f32.mrb[0].mxu0
      %v5043 = vadd.f32 %v4882, %v5042
      %v5044 = vpop.f32.mrb[0].mxu0
      %v5045 = vpop.f32.mrb[0].mxu0
      %v5046 = vadd.f32 %v4885, %v5045
      %v5047 = vpop.f32.mrb[0].mxu0
      %5048 = vmatprep.mubr.bf16.mxu0 %v3980
      %5049 = vmatmul.mubr.bf16.gmra.mrb[0].mxu0 %v3979
      %v5050 = vpop.f32.mrb[0].mxu0
      %v5051 = vadd.f32 %v4890, %v5050
      %v5052 = vpop.f32.mrb[0].mxu0
      %v5053 = vpop.f32.mrb[0].mxu0
      %v5054 = vadd.f32 %v4893, %v5053
      %v5055 = vpop.f32.mrb[0].mxu0
      %5056 = vmatprep.mubr.bf16.mxu0 %v3989
      %5057 = vmatmul.mubr.bf16.gmra.mrb[0].mxu0 %v3988
      %v5058 = vpop.f32.mrb[0].mxu0
      %v5059 = vadd.f32 %v4898, %v5058
      %v5060 = vpop.f32.mrb[0].mxu0
      %v5061 = vpop.f32.mrb[0].mxu0
      %v5062 = vadd.f32 %v4901, %v5061
      %v5063 = vpop.f32.mrb[0].mxu0
      %5064 = vmatprep.mubr.bf16.mxu0 %v3998
      %5065 = vmatmul.mubr.bf16.gmra.mrb[0].mxu0 %v3997
      %v5066 = vpop.f32.mrb[0].mxu0
      %v5067 = vadd.f32 %v4906, %v5066
      %v5068 = vpop.f32.mrb[0].mxu0
      %v5069 = vpop.f32.mrb[0].mxu0
      %v5070 = vadd.f32 %v4909, %v5069
      %v5071 = vpop.f32.mrb[0].mxu0
      %5072 = vmatprep.mubr.bf16.mxu0 %v4007
      %5073 = vmatmul.mubr.bf16.gmra.mrb[0].mxu0 %v4006
      %v5074 = vpop.f32.mrb[0].mxu0
      %v5075 = vadd.f32 %v4914, %v5074
      %v5076 = vpop.f32.mrb[0].mxu0
      %v5077 = vpop.f32.mrb[0].mxu0
      %v5078 = vadd.f32 %v4917, %v5077
      %v5079 = vpop.f32.mrb[0].mxu0
      %5080 = vmatprep.mubr.bf16.mxu0 %v4016
      %5081 = vmatmul.mubr.bf16.gmra.mrb[0].mxu0 %v4015
      %v5082 = vpop.f32.mrb[0].mxu0
      %v5083 = vadd.f32 %v4922, %v5082
      %v5084 = vpop.f32.mrb[0].mxu0
      %v5085 = vpop.f32.mrb[0].mxu0
      %v5086 = vadd.f32 %v4925, %v5085
      %v5087 = vpop.f32.mrb[0].mxu0
      %5088 = vmatprep.mubr.bf16.mxu0 %v4025
      %5089 = vmatmul.mubr.bf16.gmra.mrb[0].mxu0 %v4024
      %v5090 = vpop.f32.mrb[0].mxu0
      %v5091 = vadd.f32 %v4930, %v5090
      %v5092 = vpop.f32.mrb[0].mxu0
      %v5093 = vpop.f32.mrb[0].mxu0
      %v5094 = vadd.f32 %v4933, %v5093
      %v5095 = vpop.f32.mrb[0].mxu0
      %5096 = vmatprep.mubr.bf16.mxu0 %v4034
      %5097 = vmatmul.mubr.bf16.gmra.mrb[0].mxu0 %v4033
      %v5098 = vpop.f32.mrb[0].mxu0
      %v5099 = vadd.f32 %v4938, %v5098
      %v5100 = vpop.f32.mrb[0].mxu0
      %v5101 = vpop.f32.mrb[0].mxu0
      %v5102 = vadd.f32 %v4941, %v5101
      %v5103 = vpop.f32.mrb[0].mxu0
      %5104 = vmatprep.mubr.bf16.mxu0 %v4043
      %5105 = vmatmul.mubr.bf16.gmra.mrb[0].mxu0 %v4042
      %v5106 = vpop.f32.mrb[0].mxu0
      %v5107 = vadd.f32 %v4946, %v5106
      %v5108 = vpop.f32.mrb[0].mxu0
      %v5109 = vpop.f32.mrb[0].mxu0
      %v5110 = vadd.f32 %v4949, %v5109
      %v5111 = vpop.f32.mrb[0].mxu0
      %5112 = vmatprep.mubr.bf16.mxu0 %v4052
      %5113 = vmatmul.mubr.bf16.gmra.mrb[0].mxu0 %v4051
      %v5114 = vpop.f32.mrb[0].mxu0
      %v5115 = vadd.f32 %v4954, %v5114
      %v5116 = vpop.f32.mrb[0].mxu0
      %v5117 = vpop.f32.mrb[0].mxu0
      %v5118 = vadd.f32 %v4957, %v5117
      %v5119 = vpop.f32.mrb[0].mxu0
      %5120 = vmatprep.mubr.bf16.mxu0 %v4061
      %5121 = vmatmul.mubr.bf16.gmra.mrb[0].mxu0 %v4060
      %v5122 = vpop.f32.mrb[0].mxu0
      %v5123 = vadd.f32 %v4962, %v5122
      %v5124 = vpop.f32.mrb[0].mxu0
      %v5125 = vpop.f32.mrb[0].mxu0
      %v5126 = vadd.f32 %v4965, %v5125
      %v5127 = vpop.f32.mrb[0].mxu0
      %5128 = vmatprep.mubr.bf16.mxu0 %v4070
      %5129 = vmatmul.mubr.bf16.gmra.mrb[0].mxu0 %v4069
      %v5130 = vpop.f32.mrb[0].mxu0
      %v5131 = vadd.f32 %v4970, %v5130
      %v5132 = vpop.f32.mrb[0].mxu0
      %v5133 = vpop.f32.mrb[0].mxu0
      %v5134 = vadd.f32 %v4973, %v5133
      %v5135 = vpop.f32.mrb[0].mxu0
      %5136 = vmatprep.mubr.bf16.mxu0 %v4079
      %5137 = vmatmul.mubr.bf16.gmra.mrb[0].mxu0 %v4078
      %v5138 = vpop.f32.mrb[0].mxu0
      %v5139 = vadd.f32 %v4978, %v5138
      %v5140 = vpop.f32.mrb[0].mxu0
      %v5141 = vpop.f32.mrb[0].mxu0
      %v5142 = vadd.f32 %v4981, %v5141
      %v5143 = vpop.f32.mrb[0].mxu0
      %5144 = vmatprep.mubr.bf16.mxu0 %v4088
      %5145 = vmatmul.mubr.bf16.gmra.mrb[0].mxu0 %v4087
      %v5146 = vpop.f32.mrb[0].mxu0
      %v5147 = vadd.f32 %v4986, %v5146
      %v5148 = vpop.f32.mrb[0].mxu0
      %v5149 = vpop.f32.mrb[0].mxu0
      %v5150 = vadd.f32 %v4989, %v5149
      %v5151 = vpop.f32.mrb[0].mxu0
      %5152 = vmatprep.mubr.bf16.mxu0 %v4097
      %5153 = vmatmul.mubr.bf16.gmra.mrb[0].mxu0 %v4096
      %v5154 = vpop.f32.mrb[0].mxu0
      %v5155 = vadd.f32 %v4994, %v5154
      %v5156 = vpop.f32.mrb[0].mxu0
      %v5157 = vpop.f32.mrb[0].mxu0
      %v5158 = vadd.f32 %v4997, %v5157
      %v5159 = vpop.f32.mrb[0].mxu0
      %5160 = vmatprep.mubr.bf16.mxu0 %v4106
      %5161 = vmatmul.mubr.bf16.gmra.mrb[0].mxu0 %v4105
      %v5162 = vpop.f32.mrb[0].mxu0
      %v5163 = vadd.f32 %v5002, %v5162
      %v5164 = vpop.f32.mrb[0].mxu0
      %v5165 = vpop.f32.mrb[0].mxu0
      %v5166 = vadd.f32 %v5005, %v5165
      %v5167 = vpop.f32.mrb[0].mxu0
      %5168 = vdwg.mxu0
      %5169 = vmatprep.subr.bf16.mxu0 0
      %5170 = vmatpush1.bf16.msra.mxu0 %v4590
      %5171 = vmatprep.subr.bf16.mxu0 0
      %5172 = vmatpush1.bf16.msra.mxu0 %v4591
      %5173 = vmatprep.subr.bf16.mxu0 0
      %5174 = vmatpush1.bf16.msra.mxu0 %v4592
      %5175 = vmatprep.subr.bf16.mxu0 0
      %5176 = vmatpush1.bf16.msra.mxu0 %v4593
      %5177 = vmatprep.subr.bf16.mxu0 0
      %5178 = vmatpush1.bf16.msra.mxu0 %v4594
      %5179 = vmatprep.subr.bf16.mxu0 0
      %5180 = vmatpush1.bf16.msra.mxu0 %v4595
      %5181 = vmatprep.subr.bf16.mxu0 0
      %5182 = vmatpush1.bf16.msra.mxu0 %v4596
      %5183 = vmatprep.subr.bf16.mxu0 0
      %5184 = vmatpush1.bf16.msra.mxu0 %v4597
      %5185 = vmatprep.subr.bf16.mxu0 0
      %5186 = vmatpush1.bf16.msra.mxu0 %v4598
      %5187 = vmatprep.subr.bf16.mxu0 0
      %5188 = vmatpush1.bf16.msra.mxu0 %v4599
      %5189 = vmatprep.subr.bf16.mxu0 0
      %5190 = vmatpush1.bf16.msra.mxu0 %v4600
      %5191 = vmatprep.subr.bf16.mxu0 0
      %5192 = vmatpush1.bf16.msra.mxu0 %v4601
      %5193 = vmatprep.subr.bf16.mxu0 0
      %5194 = vmatpush1.bf16.msra.mxu0 %v4602
      %5195 = vmatprep.subr.bf16.mxu0 0
      %5196 = vmatpush1.bf16.msra.mxu0 %v4603
      %5197 = vmatprep.subr.bf16.mxu0 0
      %5198 = vmatpush1.bf16.msra.mxu0 %v4604
      %5199 = vmatprep.subr.bf16.mxu0 0
      %5200 = vmatpush1.bf16.msra.mxu0 %v4605
      %5201 = vmatprep.mubr.bf16.mxu0 %v3973
      %5202 = vmatmul.mubr.bf16.gmra.mrb[0].mxu0 %v3972
      %v5203 = vpop.f32.mrb[0].mxu0
      %v5204 = vadd.f32 %v5043, %v5203
      %v5205 = vpop.f32.mrb[0].mxu0
      %v5206 = vpop.f32.mrb[0].mxu0
      %v5207 = vadd.f32 %v5046, %v5206
      %v5208 = vpop.f32.mrb[0].mxu0
      %5209 = vmatprep.mubr.bf16.mxu0 %v3982
      %5210 = vmatmul.mubr.bf16.gmra.mrb[0].mxu0 %v3981
      %v5211 = vpop.f32.mrb[0].mxu0
      %v5212 = vadd.f32 %v5051, %v5211
      %v5213 = vpop.f32.mrb[0].mxu0
      %v5214 = vpop.f32.mrb[0].mxu0
      %v5215 = vadd.f32 %v5054, %v5214
      %v5216 = vpop.f32.mrb[0].mxu0
      %5217 = vmatprep.mubr.bf16.mxu0 %v3991
      %5218 = vmatmul.mubr.bf16.gmra.mrb[0].mxu0 %v3990
      %v5219 = vpop.f32.mrb[0].mxu0
      %v5220 = vadd.f32 %v5059, %v5219
      %v5221 = vpop.f32.mrb[0].mxu0
      %v5222 = vpop.f32.mrb[0].mxu0
      %v5223 = vadd.f32 %v5062, %v5222
      %v5224 = vpop.f32.mrb[0].mxu0
      %5225 = vmatprep.mubr.bf16.mxu0 %v4000
      %5226 = vmatmul.mubr.bf16.gmra.mrb[0].mxu0 %v3999
      %v5227 = vpop.f32.mrb[0].mxu0
      %v5228 = vadd.f32 %v5067, %v5227
      %v5229 = vpop.f32.mrb[0].mxu0
      %v5230 = vpop.f32.mrb[0].mxu0
      %v5231 = vadd.f32 %v5070, %v5230
      %v5232 = vpop.f32.mrb[0].mxu0
      %5233 = vmatprep.mubr.bf16.mxu0 %v4009
      %5234 = vmatmul.mubr.bf16.gmra.mrb[0].mxu0 %v4008
      %v5235 = vpop.f32.mrb[0].mxu0
      %v5236 = vadd.f32 %v5075, %v5235
      %v5237 = vpop.f32.mrb[0].mxu0
      %v5238 = vpop.f32.mrb[0].mxu0
      %v5239 = vadd.f32 %v5078, %v5238
      %v5240 = vpop.f32.mrb[0].mxu0
      %5241 = vmatprep.mubr.bf16.mxu0 %v4018
      %5242 = vmatmul.mubr.bf16.gmra.mrb[0].mxu0 %v4017
      %v5243 = vpop.f32.mrb[0].mxu0
      %v5244 = vadd.f32 %v5083, %v5243
      %v5245 = vpop.f32.mrb[0].mxu0
      %v5246 = vpop.f32.mrb[0].mxu0
      %v5247 = vadd.f32 %v5086, %v5246
      %v5248 = vpop.f32.mrb[0].mxu0
      %5249 = vmatprep.mubr.bf16.mxu0 %v4027
      %5250 = vmatmul.mubr.bf16.gmra.mrb[0].mxu0 %v4026
      %v5251 = vpop.f32.mrb[0].mxu0
      %v5252 = vadd.f32 %v5091, %v5251
      %v5253 = vpop.f32.mrb[0].mxu0
      %v5254 = vpop.f32.mrb[0].mxu0
      %v5255 = vadd.f32 %v5094, %v5254
      %v5256 = vpop.f32.mrb[0].mxu0
      %5257 = vmatprep.mubr.bf16.mxu0 %v4036
      %5258 = vmatmul.mubr.bf16.gmra.mrb[0].mxu0 %v4035
      %v5259 = vpop.f32.mrb[0].mxu0
      %v5260 = vadd.f32 %v5099, %v5259
      %v5261 = vpop.f32.mrb[0].mxu0
      %v5262 = vpop.f32.mrb[0].mxu0
      %v5263 = vadd.f32 %v5102, %v5262
      %v5264 = vpop.f32.mrb[0].mxu0
      %5265 = vmatprep.mubr.bf16.mxu0 %v4045
      %5266 = vmatmul.mubr.bf16.gmra.mrb[0].mxu0 %v4044
      %v5267 = vpop.f32.mrb[0].mxu0
      %v5268 = vadd.f32 %v5107, %v5267
      %v5269 = vpop.f32.mrb[0].mxu0
      %v5270 = vpop.f32.mrb[0].mxu0
      %v5271 = vadd.f32 %v5110, %v5270
      %v5272 = vpop.f32.mrb[0].mxu0
      %5273 = vmatprep.mubr.bf16.mxu0 %v4054
      %5274 = vmatmul.mubr.bf16.gmra.mrb[0].mxu0 %v4053
      %v5275 = vpop.f32.mrb[0].mxu0
      %v5276 = vadd.f32 %v5115, %v5275
      %v5277 = vpop.f32.mrb[0].mxu0
      %v5278 = vpop.f32.mrb[0].mxu0
      %v5279 = vadd.f32 %v5118, %v5278
      %v5280 = vpop.f32.mrb[0].mxu0
      %5281 = vmatprep.mubr.bf16.mxu0 %v4063
      %5282 = vmatmul.mubr.bf16.gmra.mrb[0].mxu0 %v4062
      %v5283 = vpop.f32.mrb[0].mxu0
      %v5284 = vadd.f32 %v5123, %v5283
      %v5285 = vpop.f32.mrb[0].mxu0
      %v5286 = vpop.f32.mrb[0].mxu0
      %v5287 = vadd.f32 %v5126, %v5286
      %v5288 = vpop.f32.mrb[0].mxu0
      %5289 = vmatprep.mubr.bf16.mxu0 %v4072
      %5290 = vmatmul.mubr.bf16.gmra.mrb[0].mxu0 %v4071
      %v5291 = vpop.f32.mrb[0].mxu0
      %v5292 = vadd.f32 %v5131, %v5291
      %v5293 = vpop.f32.mrb[0].mxu0
      %v5294 = vpop.f32.mrb[0].mxu0
      %v5295 = vadd.f32 %v5134, %v5294
      %v5296 = vpop.f32.mrb[0].mxu0
      %5297 = vmatprep.mubr.bf16.mxu0 %v4081
      %5298 = vmatmul.mubr.bf16.gmra.mrb[0].mxu0 %v4080
      %v5299 = vpop.f32.mrb[0].mxu0
      %v5300 = vadd.f32 %v5139, %v5299
      %v5301 = vpop.f32.mrb[0].mxu0
      %v5302 = vpop.f32.mrb[0].mxu0
      %v5303 = vadd.f32 %v5142, %v5302
      %v5304 = vpop.f32.mrb[0].mxu0
      %5305 = vmatprep.mubr.bf16.mxu0 %v4090
      %5306 = vmatmul.mubr.bf16.gmra.mrb[0].mxu0 %v4089
      %v5307 = vpop.f32.mrb[0].mxu0
      %v5308 = vadd.f32 %v5147, %v5307
      %v5309 = vpop.f32.mrb[0].mxu0
      %v5310 = vpop.f32.mrb[0].mxu0
      %v5311 = vadd.f32 %v5150, %v5310
      %v5312 = vpop.f32.mrb[0].mxu0
      %5313 = vmatprep.mubr.bf16.mxu0 %v4099
      %5314 = vmatmul.mubr.bf16.gmra.mrb[0].mxu0 %v4098
      %v5315 = vpop.f32.mrb[0].mxu0
      %v5316 = vadd.f32 %v5155, %v5315
      %v5317 = vpop.f32.mrb[0].mxu0
      %v5318 = vpop.f32.mrb[0].mxu0
      %v5319 = vadd.f32 %v5158, %v5318
      %v5320 = vpop.f32.mrb[0].mxu0
      %5321 = vmatprep.mubr.bf16.mxu0 %v4108
      %5322 = vmatmul.mubr.bf16.gmra.mrb[0].mxu0 %v4107
      %v5323 = vpop.f32.mrb[0].mxu0
      %v5324 = vadd.f32 %v5163, %v5323
      %v5325 = vpop.f32.mrb[0].mxu0
      %v5326 = vpop.f32.mrb[0].mxu0
      %v5327 = vadd.f32 %v5166, %v5326
      %v5328 = vpop.f32.mrb[0].mxu0
      %5329 = vdwg.mxu0
      %5330 = vmatprep.subr.bf16.mxu0 0
      %5331 = vmatpush1.bf16.msra.mxu0 %v4606
      %5332 = vmatprep.subr.bf16.mxu0 0
      %5333 = vmatpush1.bf16.msra.mxu0 %v4607
      %5334 = vmatprep.subr.bf16.mxu0 0
      %5335 = vmatpush1.bf16.msra.mxu0 %v4608
      %5336 = vmatprep.subr.bf16.mxu0 0
      %5337 = vmatpush1.bf16.msra.mxu0 %v4609
      %5338 = vmatprep.subr.bf16.mxu0 0
      %5339 = vmatpush1.bf16.msra.mxu0 %v4610
      %5340 = vmatprep.subr.bf16.mxu0 0
      %5341 = vmatpush1.bf16.msra.mxu0 %v4611
      %5342 = vmatprep.subr.bf16.mxu0 0
      %5343 = vmatpush1.bf16.msra.mxu0 %v4612
      %5344 = vmatprep.subr.bf16.mxu0 0
      %5345 = vmatpush1.bf16.msra.mxu0 %v4613
      %5346 = vmatprep.subr.bf16.mxu0 0
      %5347 = vmatpush1.bf16.msra.mxu0 0
      %5348 = vmatprep.subr.bf16.mxu0 0
      %5349 = vmatpush1.bf16.msra.mxu0 0
      %5350 = vmatprep.subr.bf16.mxu0 0
      %5351 = vmatpush1.bf16.msra.mxu0 0
      %5352 = vmatprep.subr.bf16.mxu0 0
      %5353 = vmatpush1.bf16.msra.mxu0 0
      %5354 = vmatprep.subr.bf16.mxu0 0
      %5355 = vmatpush1.bf16.msra.mxu0 0
      %5356 = vmatprep.subr.bf16.mxu0 0
      %5357 = vmatpush1.bf16.msra.mxu0 0
      %5358 = vmatprep.subr.bf16.mxu0 0
      %5359 = vmatpush1.bf16.msra.mxu0 0
      %5360 = vmatprep.subr.bf16.mxu0 0
      %5361 = vmatpush1.bf16.msra.mxu0 0
      %5362 = vmatprep.mubr.bf16.mxu0 0
      %5363 = vmatmul.mubr.bf16.gmra.mrb[0].mxu0 %v3974
      %v5364 = vpop.f32.mrb[0].mxu0
      %v5365 = vadd.f32 %v5204, %v5364
      %v5366 = vpop.f32.mrb[0].mxu0
      %v5367 = vpop.f32.mrb[0].mxu0
      %v5368 = vadd.f32 %v5207, %v5367
      %v5369 = vpop.f32.mrb[0].mxu0
      %5370 = vmatprep.mubr.bf16.mxu0 0
      %5371 = vmatmul.mubr.bf16.gmra.mrb[0].mxu0 %v3983
      %v5372 = vpop.f32.mrb[0].mxu0
      %v5373 = vadd.f32 %v5212, %v5372
      %v5374 = vpop.f32.mrb[0].mxu0
      %v5375 = vpop.f32.mrb[0].mxu0
      %v5376 = vadd.f32 %v5215, %v5375
      %v5377 = vpop.f32.mrb[0].mxu0
      %5378 = vmatprep.mubr.bf16.mxu0 0
      %5379 = vmatmul.mubr.bf16.gmra.mrb[0].mxu0 %v3992
      %v5380 = vpop.f32.mrb[0].mxu0
      %v5381 = vadd.f32 %v5220, %v5380
      %v5382 = vpop.f32.mrb[0].mxu0
      %v5383 = vpop.f32.mrb[0].mxu0
      %v5384 = vadd.f32 %v5223, %v5383
      %v5385 = vpop.f32.mrb[0].mxu0
      %5386 = vmatprep.mubr.bf16.mxu0 0
      %5387 = vmatmul.mubr.bf16.gmra.mrb[0].mxu0 %v4001
      %v5388 = vpop.f32.mrb[0].mxu0
      %v5389 = vadd.f32 %v5228, %v5388
      %v5390 = vpop.f32.mrb[0].mxu0
      %v5391 = vpop.f32.mrb[0].mxu0
      %v5392 = vadd.f32 %v5231, %v5391
      %v5393 = vpop.f32.mrb[0].mxu0
      %5394 = vmatprep.mubr.bf16.mxu0 0
      %5395 = vmatmul.mubr.bf16.gmra.mrb[0].mxu0 %v4010
      %v5396 = vpop.f32.mrb[0].mxu0
      %v5397 = vadd.f32 %v5236, %v5396
      %v5398 = vpop.f32.mrb[0].mxu0
      %v5399 = vpop.f32.mrb[0].mxu0
      %v5400 = vadd.f32 %v5239, %v5399
      %v5401 = vpop.f32.mrb[0].mxu0
      %5402 = vmatprep.mubr.bf16.mxu0 0
      %5403 = vmatmul.mubr.bf16.gmra.mrb[0].mxu0 %v4019
      %v5404 = vpop.f32.mrb[0].mxu0
      %v5405 = vadd.f32 %v5244, %v5404
      %v5406 = vpop.f32.mrb[0].mxu0
      %v5407 = vpop.f32.mrb[0].mxu0
      %v5408 = vadd.f32 %v5247, %v5407
      %v5409 = vpop.f32.mrb[0].mxu0
      %5410 = vmatprep.mubr.bf16.mxu0 0
      %5411 = vmatmul.mubr.bf16.gmra.mrb[0].mxu0 %v4028
      %v5412 = vpop.f32.mrb[0].mxu0
      %v5413 = vadd.f32 %v5252, %v5412
      %v5414 = vpop.f32.mrb[0].mxu0
      %v5415 = vpop.f32.mrb[0].mxu0
      %v5416 = vadd.f32 %v5255, %v5415
      %v5417 = vpop.f32.mrb[0].mxu0
      %5418 = vmatprep.mubr.bf16.mxu0 0
      %5419 = vmatmul.mubr.bf16.gmra.mrb[0].mxu0 %v4037
      %v5420 = vpop.f32.mrb[0].mxu0
      %v5421 = vadd.f32 %v5260, %v5420
      %v5422 = vpop.f32.mrb[0].mxu0
      %v5423 = vpop.f32.mrb[0].mxu0
      %v5424 = vadd.f32 %v5263, %v5423
      %v5425 = vpop.f32.mrb[0].mxu0
      %5426 = vmatprep.mubr.bf16.mxu0 0
      %5427 = vmatmul.mubr.bf16.gmra.mrb[0].mxu0 %v4046
      %v5428 = vpop.f32.mrb[0].mxu0
      %v5429 = vadd.f32 %v5268, %v5428
      %v5430 = vpop.f32.mrb[0].mxu0
      %v5431 = vpop.f32.mrb[0].mxu0
      %v5432 = vadd.f32 %v5271, %v5431
      %v5433 = vpop.f32.mrb[0].mxu0
      %5434 = vmatprep.mubr.bf16.mxu0 0
      %5435 = vmatmul.mubr.bf16.gmra.mrb[0].mxu0 %v4055
      %v5436 = vpop.f32.mrb[0].mxu0
      %v5437 = vadd.f32 %v5276, %v5436
      %v5438 = vpop.f32.mrb[0].mxu0
      %v5439 = vpop.f32.mrb[0].mxu0
      %v5440 = vadd.f32 %v5279, %v5439
      %v5441 = vpop.f32.mrb[0].mxu0
      %5442 = vmatprep.mubr.bf16.mxu0 0
      %5443 = vmatmul.mubr.bf16.gmra.mrb[0].mxu0 %v4064
      %v5444 = vpop.f32.mrb[0].mxu0
      %v5445 = vadd.f32 %v5284, %v5444
      %v5446 = vpop.f32.mrb[0].mxu0
      %v5447 = vpop.f32.mrb[0].mxu0
      %v5448 = vadd.f32 %v5287, %v5447
      %v5449 = vpop.f32.mrb[0].mxu0
      %5450 = vmatprep.mubr.bf16.mxu0 0
      %5451 = vmatmul.mubr.bf16.gmra.mrb[0].mxu0 %v4073
      %v5452 = vpop.f32.mrb[0].mxu0
      %v5453 = vadd.f32 %v5292, %v5452
      %v5454 = vpop.f32.mrb[0].mxu0
      %v5455 = vpop.f32.mrb[0].mxu0
      %v5456 = vadd.f32 %v5295, %v5455
      %v5457 = vpop.f32.mrb[0].mxu0
      %5458 = vmatprep.mubr.bf16.mxu0 0
      %5459 = vmatmul.mubr.bf16.gmra.mrb[0].mxu0 %v4082
      %v5460 = vpop.f32.mrb[0].mxu0
      %v5461 = vadd.f32 %v5300, %v5460
      %v5462 = vpop.f32.mrb[0].mxu0
      %v5463 = vpop.f32.mrb[0].mxu0
      %v5464 = vadd.f32 %v5303, %v5463
      %v5465 = vpop.f32.mrb[0].mxu0
      %5466 = vmatprep.mubr.bf16.mxu0 0
      %5467 = vmatmul.mubr.bf16.gmra.mrb[0].mxu0 %v4091
      %v5468 = vpop.f32.mrb[0].mxu0
      %v5469 = vadd.f32 %v5308, %v5468
      %v5470 = vpop.f32.mrb[0].mxu0
      %v5471 = vpop.f32.mrb[0].mxu0
      %v5472 = vadd.f32 %v5311, %v5471
      %v5473 = vpop.f32.mrb[0].mxu0
      %5474 = vmatprep.mubr.bf16.mxu0 0
      %5475 = vmatmul.mubr.bf16.gmra.mrb[0].mxu0 %v4100
      %v5476 = vpop.f32.mrb[0].mxu0
      %v5477 = vadd.f32 %v5316, %v5476
      %v5478 = vpop.f32.mrb[0].mxu0
      %v5479 = vpop.f32.mrb[0].mxu0
      %v5480 = vadd.f32 %v5319, %v5479
      %v5481 = vpop.f32.mrb[0].mxu0
      %5482 = vmatprep.mubr.bf16.mxu0 0
      %5483 = vmatmul.mubr.bf16.gmra.mrb[0].mxu0 %v4109
      %v5484 = vpop.f32.mrb[0].mxu0
      %v5485 = vadd.f32 %v5324, %v5484
      %v5486 = vpop.f32.mrb[0].mxu0
      %v5487 = vpop.f32.mrb[0].mxu0
      %v5488 = vadd.f32 %v5327, %v5487
      %v5489 = vpop.f32.mrb[0].mxu0
      %5490 = vdwg.mxu0
      %v5491 = vadd.f32 %v5365, %v5368
      %v5492 = vadd.f32 %v5491, %v5373
      %v5493 = vadd.f32 %v5492, %v5376
      %v5494 = vadd.f32 %v5493, %v5381
      %v5495 = vadd.f32 %v5494, %v5384
      %v5496 = vadd.f32 %v5495, %v5389
      %v5497 = vadd.f32 %v5496, %v5392
      %v5498 = vadd.f32 %v5497, %v5397
      %v5499 = vadd.f32 %v5498, %v5400
      %v5500 = vadd.f32 %v5499, %v5405
      %v5501 = vadd.f32 %v5500, %v5408
      %v5502 = vadd.f32 %v5501, %v5413
      %v5503 = vadd.f32 %v5502, %v5416
      %v5504 = vadd.f32 %v5503, %v5421
      %v5505 = vadd.f32 %v5504, %v5424
      %v5506 = vadd.f32 %v5505, %v5429
      %v5507 = vadd.f32 %v5506, %v5432
      %v5508 = vadd.f32 %v5507, %v5437
      %v5509 = vadd.f32 %v5508, %v5440
      %v5510 = vadd.f32 %v5509, %v5445
      %v5511 = vadd.f32 %v5510, %v5448
      %v5512 = vadd.f32 %v5511, %v5453
      %v5513 = vadd.f32 %v5512, %v5456
      %v5514 = vadd.f32 %v5513, %v5461
      %v5515 = vadd.f32 %v5514, %v5464
      %v5516 = vadd.f32 %v5515, %v5469
      %v5517 = vadd.f32 %v5516, %v5472
      %v5518 = vadd.f32 %v5517, %v5477
      %v5519 = vadd.f32 %v5518, %v5480
      %v5520 = vadd.f32 %v5519, %v5485
      %v5521 = vadd.f32 %v5520, %v5488
      %v5522 = vrot.slane %v5521, 4
      %v5523 = vadd.f32 %v5521, %v5522
      %v5524 = vrot.slane %v5523, 2
      %v5525 = vadd.f32 %v5523, %v5524
      %v5526 = vrot.slane %v5525, 1
      %v5527 = vadd.f32 %v5525, %v5526
      %v5528 = vmul.f32 %v5365, %v5365
      %v5529 = vmul.f32 %v5368, %v5368
      %v5530 = vmul.f32 %v5373, %v5373
      %v5531 = vmul.f32 %v5376, %v5376
      %v5532 = vmul.f32 %v5381, %v5381
      %v5533 = vmul.f32 %v5384, %v5384
      %v5534 = vmul.f32 %v5389, %v5389
      %v5535 = vmul.f32 %v5392, %v5392
      %v5536 = vmul.f32 %v5397, %v5397
      %v5537 = vmul.f32 %v5400, %v5400
      %v5538 = vmul.f32 %v5405, %v5405
      %v5539 = vmul.f32 %v5408, %v5408
      %v5540 = vmul.f32 %v5413, %v5413
      %v5541 = vmul.f32 %v5416, %v5416
      %v5542 = vmul.f32 %v5421, %v5421
      %v5543 = vmul.f32 %v5424, %v5424
      %v5544 = vmul.f32 %v5429, %v5429
      %v5545 = vmul.f32 %v5432, %v5432
      %v5546 = vmul.f32 %v5437, %v5437
      %v5547 = vmul.f32 %v5440, %v5440
      %v5548 = vmul.f32 %v5445, %v5445
      %v5549 = vmul.f32 %v5448, %v5448
      %v5550 = vmul.f32 %v5453, %v5453
      %v5551 = vmul.f32 %v5456, %v5456
      %v5552 = vmul.f32 %v5461, %v5461
      %v5553 = vmul.f32 %v5464, %v5464
      %v5554 = vmul.f32 %v5469, %v5469
      %v5555 = vmul.f32 %v5472, %v5472
      %v5556 = vmul.f32 %v5477, %v5477
      %v5557 = vmul.f32 %v5480, %v5480
      %v5558 = vmul.f32 %v5485, %v5485
      %v5559 = vmul.f32 %v5488, %v5488
      %v5560 = vadd.f32 %v5528, %v5529
      %v5561 = vadd.f32 %v5560, %v5530
      %v5562 = vadd.f32 %v5561, %v5531
      %v5563 = vadd.f32 %v5562, %v5532
      %v5564 = vadd.f32 %v5563, %v5533
      %v5565 = vadd.f32 %v5564, %v5534
      %v5566 = vadd.f32 %v5565, %v5535
      %v5567 = vadd.f32 %v5566, %v5536
      %v5568 = vadd.f32 %v5567, %v5537
      %v5569 = vadd.f32 %v5568, %v5538
      %v5570 = vadd.f32 %v5569, %v5539
      %v5571 = vadd.f32 %v5570, %v5540
      %v5572 = vadd.f32 %v5571, %v5541
      %v5573 = vadd.f32 %v5572, %v5542
      %v5574 = vadd.f32 %v5573, %v5543
      %v5575 = vadd.f32 %v5574, %v5544
      %v5576 = vadd.f32 %v5575, %v5545
      %v5577 = vadd.f32 %v5576, %v5546
      %v5578 = vadd.f32 %v5577, %v5547
      %v5579 = vadd.f32 %v5578, %v5548
      %v5580 = vadd.f32 %v5579, %v5549
      %v5581 = vadd.f32 %v5580, %v5550
      %v5582 = vadd.f32 %v5581, %v5551
      %v5583 = vadd.f32 %v5582, %v5552
      %v5584 = vadd.f32 %v5583, %v5553
      %v5585 = vadd.f32 %v5584, %v5554
      %v5586 = vadd.f32 %v5585, %v5555
      %v5587 = vadd.f32 %v5586, %v5556
      %v5588 = vadd.f32 %v5587, %v5557
      %v5589 = vadd.f32 %v5588, %v5558
      %v5590 = vadd.f32 %v5589, %v5559
      %v5591 = vrot.slane %v5590, 4
      %v5592 = vadd.f32 %v5590, %v5591
      %v5593 = vrot.slane %v5592, 2
      %v5594 = vadd.f32 %v5592, %v5593
      %v5595 = vrot.slane %v5594, 1
      %v5596 = vadd.f32 %v5594, %v5595
      %vm5597 = vcmask 1040384
      %v5598 = vsel %vm5597, %v5527, %v5596
      %5599 = vst [vmem:[%s262] sm:$0x3] %v5598
      %v5600 = vpack.c.bf16 %v5368, %v5365
      %v5601 = vpack.c.bf16 %v5376, %v5373
      %v5602 = vpack.c.bf16 %v5384, %v5381
      %v5603 = vpack.c.bf16 %v5392, %v5389
      %v5604 = vpack.c.bf16 %v5400, %v5397
      %v5605 = vpack.c.bf16 %v5408, %v5405
      %v5606 = vpack.c.bf16 %v5416, %v5413
      %v5607 = vpack.c.bf16 %v5424, %v5421
      %v5608 = vpack.c.bf16 %v5432, %v5429
      %v5609 = vpack.c.bf16 %v5440, %v5437
      %v5610 = vpack.c.bf16 %v5448, %v5445
      %v5611 = vpack.c.bf16 %v5456, %v5453
      %v5612 = vpack.c.bf16 %v5464, %v5461
      %v5613 = vpack.c.bf16 %v5472, %v5469
      %v5614 = vpack.c.bf16 %v5480, %v5477
      %v5615 = vpack.c.bf16 %v5488, %v5485
      %v5632 = vunpack.c.l.b16 %v5600
      %v5633 = vunpack.c.h.b16 %v5600
      %v5634 = vunpack.c.l.b16 %v5601
      %v5635 = vunpack.c.h.b16 %v5601
      %v5636 = vunpack.c.l.b16 %v5602
      %v5637 = vunpack.c.h.b16 %v5602
      %v5638 = vunpack.c.l.b16 %v5603
      %v5639 = vunpack.c.h.b16 %v5603
      %v5640 = vunpack.c.l.b16 %v5604
      %v5641 = vunpack.c.h.b16 %v5604
      %v5642 = vunpack.c.l.b16 %v5605
      %v5643 = vunpack.c.h.b16 %v5605
      %v5644 = vunpack.c.l.b16 %v5606
      %v5645 = vunpack.c.h.b16 %v5606
      %v5646 = vunpack.c.l.b16 %v5607
      %v5647 = vunpack.c.h.b16 %v5607
      %v5648 = vunpack.c.l.b16 %v5608
      %v5649 = vunpack.c.h.b16 %v5608
      %v5650 = vunpack.c.l.b16 %v5609
      %v5651 = vunpack.c.h.b16 %v5609
      %v5652 = vunpack.c.l.b16 %v5610
      %v5653 = vunpack.c.h.b16 %v5610
      %v5654 = vunpack.c.l.b16 %v5611
      %v5655 = vunpack.c.h.b16 %v5611
      %v5656 = vunpack.c.l.b16 %v5612
      %v5657 = vunpack.c.h.b16 %v5612
      %v5658 = vunpack.c.l.b16 %v5613
      %v5659 = vunpack.c.h.b16 %v5613
      %v5660 = vunpack.c.l.b16 %v5614
      %v5661 = vunpack.c.h.b16 %v5614
      %v5662 = vunpack.c.l.b16 %v5615
      %v5663 = vunpack.c.h.b16 %v5615
      %v5664 = vpack.c.b16 %v5632, %v5632
      %v5665 = vpack.c.b16 %v5633, %v5633
      %v5666 = vpack.c.b16 %v5634, %v5634
      %v5667 = vpack.c.b16 %v5635, %v5635
      %v5668 = vpack.c.b16 %v5636, %v5636
      %v5669 = vpack.c.b16 %v5637, %v5637
      %v5670 = vpack.c.b16 %v5638, %v5638
      %v5671 = vpack.c.b16 %v5639, %v5639
      %v5672 = vpack.c.b16 %v5640, %v5640
      %v5673 = vpack.c.b16 %v5641, %v5641
      %v5674 = vpack.c.b16 %v5642, %v5642
      %v5675 = vpack.c.b16 %v5643, %v5643
      %v5676 = vpack.c.b16 %v5644, %v5644
      %v5677 = vpack.c.b16 %v5645, %v5645
      %v5678 = vpack.c.b16 %v5646, %v5646
      %v5679 = vpack.c.b16 %v5647, %v5647
      %v5680 = vpack.c.b16 %v5648, %v5648
      %v5681 = vpack.c.b16 %v5649, %v5649
      %v5682 = vpack.c.b16 %v5650, %v5650
      %v5683 = vpack.c.b16 %v5651, %v5651
      %v5684 = vpack.c.b16 %v5652, %v5652
      %v5685 = vpack.c.b16 %v5653, %v5653
      %v5686 = vpack.c.b16 %v5654, %v5654
      %v5687 = vpack.c.b16 %v5655, %v5655
      %v5688 = vpack.c.b16 %v5656, %v5656
      %v5689 = vpack.c.b16 %v5657, %v5657
      %v5690 = vpack.c.b16 %v5658, %v5658
      %v5691 = vpack.c.b16 %v5659, %v5659
      %v5692 = vpack.c.b16 %v5660, %v5660
      %v5693 = vpack.c.b16 %v5661, %v5661
      %v5694 = vpack.c.b16 %v5662, %v5662
      %v5695 = vpack.c.b16 %v5663, %v5663
      %5728 = vst [vmem:[%s258] sm:$0xf] %v5664
      %5729 = vst [vmem:[%s258 + $0x4] sm:$0xf] %v5665
      %5730 = vst [vmem:[%s258 + $0x8] sm:$0xf] %v5666
      %5731 = vst [vmem:[%s258 + $0xc] sm:$0xf] %v5667
      %5732 = vst [vmem:[%s258 + $0x10] sm:$0xf] %v5668
      %5733 = vst [vmem:[%s258 + $0x14] sm:$0xf] %v5669
      %5734 = vst [vmem:[%s258 + $0x18] sm:$0xf] %v5670
      %5735 = vst [vmem:[%s258 + $0x1c] sm:$0xf] %v5671
      %5736 = vst [vmem:[%s258 + $0x20] sm:$0xf] %v5672
      %5737 = vst [vmem:[%s258 + $0x24] sm:$0xf] %v5673
      %5738 = vst [vmem:[%s258 + $0x28] sm:$0xf] %v5674
      %5739 = vst [vmem:[%s258 + $0x2c] sm:$0xf] %v5675
      %5740 = vst [vmem:[%s258 + $0x30] sm:$0xf] %v5676
      %5741 = vst [vmem:[%s258 + $0x34] sm:$0xf] %v5677
      %5742 = vst [vmem:[%s258 + $0x38] sm:$0xf] %v5678
      %5743 = vst [vmem:[%s258 + $0x3c] sm:$0xf] %v5679
      %5744 = vst [vmem:[%s258 + $0x40] sm:$0xf] %v5680
      %5745 = vst [vmem:[%s258 + $0x44] sm:$0xf] %v5681
      %5746 = vst [vmem:[%s258 + $0x48] sm:$0xf] %v5682
      %5747 = vst [vmem:[%s258 + $0x4c] sm:$0xf] %v5683
      %5748 = vst [vmem:[%s258 + $0x50] sm:$0xf] %v5684
      %5749 = vst [vmem:[%s258 + $0x54] sm:$0xf] %v5685
      %5750 = vst [vmem:[%s258 + $0x58] sm:$0xf] %v5686
      %5751 = vst [vmem:[%s258 + $0x5c] sm:$0xf] %v5687
      %5752 = vst [vmem:[%s258 + $0x60] sm:$0xf] %v5688
      %5753 = vst [vmem:[%s258 + $0x64] sm:$0xf] %v5689
      %5754 = vst [vmem:[%s258 + $0x68] sm:$0xf] %v5690
      %5755 = vst [vmem:[%s258 + $0x6c] sm:$0xf] %v5691
      %5756 = vst [vmem:[%s258 + $0x70] sm:$0xf] %v5692
      %5757 = vst [vmem:[%s258 + $0x74] sm:$0xf] %v5693
      %5758 = vst [vmem:[%s258 + $0x78] sm:$0xf] %v5694
      %5759 = vst [vmem:[%s258 + $0x7c] sm:$0xf] %v5695
      %p5760 = scmp.lt.s32.totalorder %s18, 1
      %s5761 = scalar_select %p5760, %s18, 1
      %s5762 = smul.addr %s5761, 32
      %s5763 = smul.addr %s5762, 4
      %s5764 = scalar_lea.vmem %s5, %s5763
      %p5765 = scmp.lt.s32.totalorder %s18, 1
      %s5766 = scalar_select %p5765, %s18, 1
      %s5767 = smul.addr %s5766, 2
      %s5768 = scalar_lea.vmem %s6, %s5767
      // Predicated region
      $region41: #{bottleneck_forward.5} parent=39 // pred_check
        %p5769 = pneg %p146
      $region42: #{bottleneck_forward.5} parent=39 // pred_check_branch
        %5771 = sbr.rel (%p5769) target = $region44
      $region43: #{bottleneck_forward.5} parent=39 // pred_region
        _
      $region44: #{bottleneck_forward.5} parent=39 // pred_fallthru
        _
      // Predicated region
      $region45: #{bottleneck_forward.5} parent=39 // pred_check
        %p5772 = pneg %p172
      $region46: #{bottleneck_forward.5} parent=39 // pred_check_branch
        %5774 = sbr.rel (%p5772) target = $region48
      $region47: #{bottleneck_forward.5} parent=39 // pred_region
        _
      $region48: #{bottleneck_forward.5} parent=39 // pred_fallthru
        _
    $region40: #{bottleneck_forward.5} parent=5 // pred_fallthru
      _
    %p5775 = scmp.le.s32.totalorder 2, %s13
    // Predicated region
    $region49: #{bottleneck_forward.5} parent=5 // pred_check
      %p5776 = pneg %p5775
    $region50: #{bottleneck_forward.5} parent=5 // pred_check_branch
      %5778 = sbr.rel (%p5776) target = $region52
    $region51: #{bottleneck_forward.5} parent=5 // pred_region
      %s5779 = ssub.s32 %s13, 2
      // Predicated region
      $region53: #{bottleneck_forward.5} parent=51 // pred_check
        %p5780 = pneg %p152
      $region54: #{bottleneck_forward.5} parent=51 // pred_check_branch
        %5782 = sbr.rel (%p5780) target = $region56
      $region55: #{bottleneck_forward.5} parent=51 // pred_region
        %p5783 = scmp.lt.s32.totalorder %s19, 1
        %s5784 = scalar_select %p5783, %s19, 1
        %s5785 = smul.addr %s5784, 32
        %s5786 = smul.addr %s5785, 4
        %s5787 = scalar_lea.vmem %s5, %s5786
      $region56: #{bottleneck_forward.5} parent=51 // pred_fallthru
        _
      // Predicated region
      $region57: #{bottleneck_forward.5} parent=51 // pred_check
        %p5788 = pneg %p178
      $region58: #{bottleneck_forward.5} parent=51 // pred_check_branch
        %5790 = sbr.rel (%p5788) target = $region60
      $region59: #{bottleneck_forward.5} parent=51 // pred_region
        %p5791 = scmp.lt.s32.totalorder %s19, 1
        %s5792 = scalar_select %p5791, %s19, 1
        %s5793 = smul.addr %s5792, 2
        %s5794 = scalar_lea.vmem %s6, %s5793
      $region60: #{bottleneck_forward.5} parent=51 // pred_fallthru
        _
    $region52: #{bottleneck_forward.5} parent=5 // pred_fallthru
      _
  $region6: #{bottleneck_forward.5} parent=0 // loop_footer
    %s17 = sadd.s32 1, %s13
  $region7: #{bottleneck_forward.5} parent=0 // loop_footer_branch
    %12 = sbr.rel target = $region3
  $region8: #{bottleneck_forward.5} parent=0 // loop_exit
    _

</llo_original>
